<compile_context>
chip_gen: v7x
topology: tpu7x:2x2x1
jax: 0.10.0
libtpu: 0.0.40
codegen_flags: <defaults>
</compile_context>

<pallas_src>
import functools

import jax
import jax.numpy as jnp
from jax import lax
from jax.experimental import pallas as pl
from jax.experimental.pallas import tpu as pltpu


def _round_up(x, m):
    return (x + m - 1) // m * m


# ----------------------------------------------------------------------------
# Pallas kernels (single VMEM block each -- no grid, no per-step overhead)
# ----------------------------------------------------------------------------
def _matmul_bias_act_kernel(a_ref, b_ref, bias_ref, o_ref, *, relu):
    acc = jnp.dot(a_ref[...], b_ref[...], preferred_element_type=jnp.float32)
    acc = acc + bias_ref[...]
    if relu:
        acc = jnp.maximum(acc, 0.0)
    o_ref[...] = acc.astype(o_ref.dtype)


def matmul_bias_act(a_p, b_p, bias_p, relu):
    """a_p: (Mp, Kp) bf16; b_p: (Kp, Np) bf16; bias_p: (1, Np) f32.

    Returns bf16 (Mp, Np); caller slices the valid region.
    """
    Mp, _ = a_p.shape
    _, Np = b_p.shape
    return pl.pallas_call(
        functools.partial(_matmul_bias_act_kernel, relu=relu),
        out_shape=jax.ShapeDtypeStruct((Mp, Np), jnp.bfloat16),
    )(a_p, b_p, bias_p)


def _layer4_chain_kernel(*refs, n_layers):
    # refs = (x_ref, w0, b0, w1, b1, ..., w7, b7, o_ref)
    x_ref = refs[0]
    o_ref = refs[-1]
    h = x_ref[...]                                   # bf16 (Mp, C0p)
    for i in range(n_layers):
        w_ref = refs[1 + 2 * i]
        b_ref = refs[2 + 2 * i]
        acc = jnp.dot(h, w_ref[...], preferred_element_type=jnp.float32)
        acc = jnp.maximum(acc + b_ref[...], 0.0)
        h = acc.astype(jnp.bfloat16)
    o_ref[...] = h


def _bn_kernel(x_ref, gamma_ref, beta_ref, o_ref, *, m_valid, eps):
    # Two-pass (subtract-mean) batch statistics in f32 over one VMEM read;
    # padded rows are masked out of the variance sum.
    x = x_ref[...].astype(jnp.float32)
    row = lax.broadcasted_iota(jnp.int32, x.shape, 0)
    mask = (row < m_valid).astype(jnp.float32)
    inv_m = 1.0 / float(m_valid)
    mean = jnp.sum(x, axis=0, keepdims=True) * inv_m      # padded rows are 0
    d = (x - mean) * mask
    var = jnp.sum(d * d, axis=0, keepdims=True) * inv_m
    scale = gamma_ref[...] * lax.rsqrt(var + eps)
    shift = beta_ref[...] - mean * scale
    o_ref[...] = (x * scale + shift).astype(o_ref.dtype)


# ----------------------------------------------------------------------------
# NN building blocks (glue in plain JAX, compute in the Pallas kernels above)
# ----------------------------------------------------------------------------
def conv2d(x, op):
    """x: (N,H,W,Ci) -> (N,Ho,Wo,Co) via im2col + Pallas matmul (bias+ReLU fused)."""
    N, H, W, Ci = x.shape
    Kh, Kw = op['kh'], op['kw']
    stride, pad, Co = op['stride'], op['pad'], op['co']
    Ho = (H + 2 * pad - Kh) // stride + 1
    Wo = (W + 2 * pad - Kw) // stride + 1
    x = x.astype(jnp.bfloat16)
    M = N * Ho * Wo
    Mp = _round_up(M, 16)                        # bf16 sublane tile = 16 rows

    # Fast path: 1x1 spatial input+output -> only the center tap is non-zero
    # (all other taps read zero padding). Bit-identical, K = Ci instead of
    # Kh*Kw*Ci, and no im2col at all.
    if (H == 1 and W == 1 and Ho == 1 and Wo == 1
            and pad < Kh and pad < Kw and op['wc'] is not None):
        Cip = op['wc'].shape[0]
        a = jnp.pad(x.reshape(N, Ci), ((0, Mp - N), (0, Cip - Ci)))
        out = matmul_bias_act(a, op['wc'], op['b'], op['relu'])
        return out[:N, :Co].reshape(N, 1, 1, Co)

    Kp, _ = op['w'].shape
    xp = jnp.pad(x, ((0, 0), (pad, pad), (pad, pad), (0, 0)))
    cols = []
    for kh in range(Kh):
        for kw in range(Kw):
            sl = lax.slice(
                xp,
                (0, kh, kw, 0),
                (N, kh + stride * (Ho - 1) + 1, kw + stride * (Wo - 1) + 1, Ci),
                (1, stride, stride, 1),
            )
            cols.append(sl)
    patches = jnp.concatenate(cols, axis=-1)     # (N, Ho, Wo, Kh*Kw*Ci), bf16
    K = Kh * Kw * Ci
    a = jnp.pad(patches.reshape(M, K), ((0, Mp - M), (0, Kp - K)))
    out = matmul_bias_act(a, op['w'], op['b'], op['relu'])
    return out[:M, :Co].reshape(N, Ho, Wo, Co)


def batchnorm2d(x, op, eps=1e-5):
    N, H, W, C = x.shape
    M = N * H * W
    Cp = op['gamma_p'].shape[1]
    Mp = _round_up(M, 16)
    x2 = jnp.pad(x.reshape(M, C).astype(jnp.bfloat16),
                 ((0, Mp - M), (0, Cp - C)))
    y = pl.pallas_call(
        functools.partial(_bn_kernel, m_valid=M, eps=eps),
        out_shape=jax.ShapeDtypeStruct((Mp, Cp), jnp.bfloat16),
    )(x2, op['gamma_p'], op['beta_p'])
    return y[:M, :C].reshape(N, H, W, C)


def maxpool2x2(x):
    N, H, W, C = x.shape
    return x.reshape(N, H // 2, 2, W // 2, 2, C).max(axis=(2, 4))


def apply_layer(ops, x):
    for op in ops:
        if op['type'] == 'conv':
            x = conv2d(x, op)
        elif op['type'] == 'bn':
            x = batchnorm2d(x, op)
        else:  # pool
            x = maxpool2x2(x)
    return x


def apply_layer4(ops, x):
    """All eight ConvT(3,1,1)+ReLU layers. At 1x1 spatial they collapse to
    center-tap matmuls and are chained inside ONE pallas_call (activation
    stays resident in VMEM, zero intermediate HBM traffic)."""
    N, H, W, C = x.shape
    if H == 1 and W == 1:
        M = N
        Mp = _round_up(M, 16)
        c0p = ops[0]['wc'].shape[0]
        a = jnp.pad(x.reshape(M, C).astype(jnp.bfloat16),
                    ((0, Mp - M), (0, c0p - C)))
        args = [a]
        for op in ops:
            args += [op['wc'], op['b']]
        np_last = ops[-1]['wc'].shape[1]
        out = pl.pallas_call(
            functools.partial(_layer4_chain_kernel, n_layers=len(ops)),
            out_shape=jax.ShapeDtypeStruct((Mp, np_last), jnp.bfloat16),
        )(*args)
        co = ops[-1]['co']
        return out[:M, :co].reshape(N, 1, 1, co)
    # General fallback for larger spatial sizes.
    for op in ops:
        x = conv2d(x, op)
    return x


# ----------------------------------------------------------------------------
# Parameter construction (deterministic, synthetic, pre-packed for the kernels)
# ----------------------------------------------------------------------------
CONV_ARCH = ((1, 3, 128), (1, 128, 512))   # layer5 VGG arch; ends at 512 channels


def _conv_op(key, ci, co, k, stride, pad, relu=True):
    fan_in = k * k * ci
    w = jax.random.normal(key, (k, k, ci, co), jnp.float32) * jnp.sqrt(2.0 / fan_in)
    b = jnp.zeros((co,), jnp.float32)
    K = k * k * ci
    Kp = _round_up(K, 128)
    Np = _round_up(co, 128)
    # Pre-reshape / pad / bf16-cast weights ONCE (no per-forward re-packing).
    w_p = jnp.pad(w.reshape(K, co), ((0, Kp - K), (0, Np - co))).astype(jnp.bfloat16)
    b_p = jnp.pad(b, (0, Np - co)).reshape(1, Np)
    # Center-tap slice for the 1x1-spatial fast path.
    wc = None
    if pad < k:
        Cip = _round_up(ci, 128)
        wc = jnp.pad(w[pad, pad], ((0, Cip - ci), (0, Np - co))).astype(jnp.bfloat16)
    return {'type': 'conv', 'w': w_p, 'wc': wc, 'b': b_p, 'kh': k, 'kw': k,
            'ci': ci, 'co': co, 'stride': stride, 'pad': pad, 'relu': relu}


def _bn_op(c):
    Cp = _round_up(c, 128)
    return {'type': 'bn',
            'gamma_p': jnp.pad(jnp.ones((c,), jnp.float32), (0, Cp - c)).reshape(1, Cp),
            'beta_p': jnp.zeros((1, Cp), jnp.float32),
            'c': c}


def _pool_op():
    return {'type': 'pool'}


def init_params(key):
    cnt = [0]

    def nk():
        cnt[0] += 1
        return jax.random.fold_in(key, cnt[0])

    layer1 = [
        _conv_op(nk(), 3, 6, 11, 1, 5),     # L1_IVNet_1
        _conv_op(nk(), 6, 6, 5, 1, 2),      # L1_IVNet_2
        _conv_op(nk(), 6, 6, 11, 2, 5),     # L1_VNet_5
        _bn_op(6),                          # L1_BNLayer
    ]
    layer2 = [
        _conv_op(nk(), 6, 6, 5, 1, 2),
        _conv_op(nk(), 6, 16, 5, 1, 2),
        _conv_op(nk(), 16, 16, 5, 2, 2),
        _conv_op(nk(), 16, 16, 5, 2, 2),
        _bn_op(16),
    ]
    layer3 = [
        _conv_op(nk(), 16, 16, 3, 1, 1),
        _conv_op(nk(), 16, 32, 3, 1, 1),
        _conv_op(nk(), 32, 32, 3, 2, 1),
        _conv_op(nk(), 32, 64, 3, 2, 1),
        _conv_op(nk(), 64, 128, 3, 2, 1),
        _conv_op(nk(), 128, 256, 3, 2, 1),
        _conv_op(nk(), 256, 512, 3, 2, 1),
        _bn_op(512),
    ]
    # ConvTranspose2d(k=3, s=1, p=1) keeps spatial size and equals a conv with
    # pad = k-1-p = 1 (flipped kernel); synthetic weights -> parameterise the
    # equivalent conv directly.
    layer4 = []
    chans = [512, 256, 128, 128, 64, 32, 16, 8, 4]
    for ci, co in zip(chans[:-1], chans[1:]):
        layer4.append(_conv_op(nk(), ci, co, 3, 1, 1))
    layer5 = []
    for (num_convs, cin, cout) in CONV_ARCH:
        c = cin
        for _ in range(num_convs):
            layer5.append(_conv_op(nk(), c, cout, 3, 1, 1))
            c = cout
        layer5.append(_pool_op())
    layer5.append(_bn_op(512))
    return dict(layer1=layer1, layer2=layer2, layer3=layer3,
                layer4=layer4, layer5=layer5)


# ----------------------------------------------------------------------------
# Forward pass
# ----------------------------------------------------------------------------
def drdnet_forward(params, x_nchw, x1_nchw):
    # NCHW at the API boundary (PyTorch), NHWC inside.
    x = jnp.transpose(x_nchw, (0, 2, 3, 1))
    x1 = jnp.transpose(x1_nchw, (0, 2, 3, 1))
    out1 = apply_layer(params['layer1'], x)
    out2 = apply_layer(params['layer2'], out1)
    out3 = apply_layer(params['layer3'], out2)
    out4 = out3 + apply_layer(params['layer5'], x1)
    out5 = apply_layer4(params['layer4'], out4)
    return jnp.transpose(out5, (0, 3, 1, 2)).astype(jnp.float32)   # back to NCHW


if __name__ == "__main__":
    key = jax.random.PRNGKey(0)
    pkey, xkey, x1key = jax.random.split(key, 3)

    params = init_params(pkey)

    # Small shapes consistent with the module's stride pattern:
    # x  : (2, 3, 16, 16) -> layer1/2/3 downsample 16 -> 8 -> 2 -> 1 spatial
    # x1 : (2, 3,  4,  4) -> two VGG blocks (2x2 maxpool each) -> 1x1, 512 ch
    x = jax.random.normal(xkey, (2, 3, 16, 16), jnp.float32)
    x1 = jax.random.normal(x1key, (2, 3, 4, 4), jnp.float32)

    # Single jitted program: all pallas_calls + glue compile/dispatch once.
    forward = jax.jit(functools.partial(drdnet_forward, params))

    out = jax.block_until_ready(forward(x, x1))
    assert out.shape == (2, 4, 1, 1), out.shape
    assert jnp.all(jnp.isfinite(out))
    print("KERNEL_OK")
</pallas_src>

<mosaic_0001>
module attributes {stable_mosaic.version = 11 : i64} {
  func.func @_matmul_bias_act_kernel(%arg0: memref<512x384xbf16, #tpu.memory_space<vmem>>, %arg1: memref<384x128xbf16, #tpu.memory_space<vmem>>, %arg2: memref<1x128xf32, #tpu.memory_space<vmem>>, %arg3: memref<512x128xbf16, #tpu.memory_space<vmem>>) attributes {dimension_semantics = [], scalar_prefetch = 0 : i64, scratch_operands = 0 : i64, tpu.core_type = #tpu.core_type<tc>} {
    %c0 = arith.constant 0 : index
    %c0_0 = arith.constant 0 : index
    %0 = vector.load %arg0[%c0, %c0_0] : memref<512x384xbf16, #tpu.memory_space<vmem>>, vector<512x384xbf16>
    %c0_1 = arith.constant 0 : index
    %c0_2 = arith.constant 0 : index
    %1 = vector.load %arg1[%c0_1, %c0_2] : memref<384x128xbf16, #tpu.memory_space<vmem>>, vector<384x128xbf16>
    %cst = arith.constant dense<0.000000e+00> : vector<512x128xf32>
    %2 = tpu.matmul %0, %1, %cst {dimension_numbers = #tpu.dot_dimension_numbers<[1], [0], [0], [1], [0, 0, 1, 1], [], []>} : vector<512x384xbf16>, vector<384x128xbf16>, vector<512x128xf32> -> vector<512x128xf32>
    %c0_3 = arith.constant 0 : index
    %c0_4 = arith.constant 0 : index
    %3 = vector.load %arg2[%c0_3, %c0_4] : memref<1x128xf32, #tpu.memory_space<vmem>>, vector<1x128xf32>
    %4 = vector.broadcast %3 : vector<1x128xf32> to vector<512x128xf32>
    %5 = arith.addf %2, %4 : vector<512x128xf32>
    %cst_5 = arith.constant 0.000000e+00 : f32
    %6 = vector.broadcast %cst_5 : f32 to vector<512x128xf32>
    %7 = arith.maximumf %5, %6 : vector<512x128xf32>
    %8 = arith.truncf %7 : vector<512x128xf32> to vector<512x128xbf16>
    %c0_6 = arith.constant 0 : index
    %c0_7 = arith.constant 0 : index
    %9 = vector.load %arg3[%c0_6, %c0_7] : memref<512x128xbf16, #tpu.memory_space<vmem>>, vector<512x128xbf16>
    tpu.vector_store %arg3[%c0_6, %c0_7], %8 {strides = array<i32>} : memref<512x128xbf16, #tpu.memory_space<vmem>>, vector<512x128xbf16>,
    return
  }
}

module attributes {stable_mosaic.version = 11 : i64} {
  func.func @_matmul_bias_act_kernel(%arg0: memref<512x256xbf16, #tpu.memory_space<vmem>>, %arg1: memref<256x128xbf16, #tpu.memory_space<vmem>>, %arg2: memref<1x128xf32, #tpu.memory_space<vmem>>, %arg3: memref<512x128xbf16, #tpu.memory_space<vmem>>) attributes {dimension_semantics = [], scalar_prefetch = 0 : i64, scratch_operands = 0 : i64, tpu.core_type = #tpu.core_type<tc>} {
    %c0 = arith.constant 0 : index
    %c0_0 = arith.constant 0 : index
    %0 = vector.load %arg0[%c0, %c0_0] : memref<512x256xbf16, #tpu.memory_space<vmem>>, vector<512x256xbf16>
    %c0_1 = arith.constant 0 : index
    %c0_2 = arith.constant 0 : index
    %1 = vector.load %arg1[%c0_1, %c0_2] : memref<256x128xbf16, #tpu.memory_space<vmem>>, vector<256x128xbf16>
    %cst = arith.constant dense<0.000000e+00> : vector<512x128xf32>
    %2 = tpu.matmul %0, %1, %cst {dimension_numbers = #tpu.dot_dimension_numbers<[1], [0], [0], [1], [0, 0, 1, 1], [], []>} : vector<512x256xbf16>, vector<256x128xbf16>, vector<512x128xf32> -> vector<512x128xf32>
    %c0_3 = arith.constant 0 : index
    %c0_4 = arith.constant 0 : index
    %3 = vector.load %arg2[%c0_3, %c0_4] : memref<1x128xf32, #tpu.memory_space<vmem>>, vector<1x128xf32>
    %4 = vector.broadcast %3 : vector<1x128xf32> to vector<512x128xf32>
    %5 = arith.addf %2, %4 : vector<512x128xf32>
    %cst_5 = arith.constant 0.000000e+00 : f32
    %6 = vector.broadcast %cst_5 : f32 to vector<512x128xf32>
    %7 = arith.maximumf %5, %6 : vector<512x128xf32>
    %8 = arith.truncf %7 : vector<512x128xf32> to vector<512x128xbf16>
    %c0_6 = arith.constant 0 : index
    %c0_7 = arith.constant 0 : index
    %9 = vector.load %arg3[%c0_6, %c0_7] : memref<512x128xbf16, #tpu.memory_space<vmem>>, vector<512x128xbf16>
    tpu.vector_store %arg3[%c0_6, %c0_7], %8 {strides = array<i32>} : memref<512x128xbf16, #tpu.memory_space<vmem>>, vector<512x128xbf16>,
    return
  }
}

module attributes {stable_mosaic.version = 11 : i64} {
  func.func @_matmul_bias_act_kernel(%arg0: memref<128x768xbf16, #tpu.memory_space<vmem>>, %arg1: memref<768x128xbf16, #tpu.memory_space<vmem>>, %arg2: memref<1x128xf32, #tpu.memory_space<vmem>>, %arg3: memref<128x128xbf16, #tpu.memory_space<vmem>>) attributes {dimension_semantics = [], scalar_prefetch = 0 : i64, scratch_operands = 0 : i64, tpu.core_type = #tpu.core_type<tc>} {
    %c0 = arith.constant 0 : index
    %c0_0 = arith.constant 0 : index
    %0 = vector.load %arg0[%c0, %c0_0] : memref<128x768xbf16, #tpu.memory_space<vmem>>, vector<128x768xbf16>
    %c0_1 = arith.constant 0 : index
    %c0_2 = arith.constant 0 : index
    %1 = vector.load %arg1[%c0_1, %c0_2] : memref<768x128xbf16, #tpu.memory_space<vmem>>, vector<768x128xbf16>
    %cst = arith.constant dense<0.000000e+00> : vector<128x128xf32>
    %2 = tpu.matmul %0, %1, %cst {dimension_numbers = #tpu.dot_dimension_numbers<[1], [0], [0], [1], [0, 0, 1, 1], [], []>} : vector<128x768xbf16>, vector<768x128xbf16>, vector<128x128xf32> -> vector<128x128xf32>
    %c0_3 = arith.constant 0 : index
    %c0_4 = arith.constant 0 : index
    %3 = vector.load %arg2[%c0_3, %c0_4] : memref<1x128xf32, #tpu.memory_space<vmem>>, vector<1x128xf32>
    %4 = vector.broadcast %3 : vector<1x128xf32> to vector<128x128xf32>
    %5 = arith.addf %2, %4 : vector<128x128xf32>
    %cst_5 = arith.constant 0.000000e+00 : f32
    %6 = vector.broadcast %cst_5 : f32 to vector<128x128xf32>
    %7 = arith.maximumf %5, %6 : vector<128x128xf32>
    %8 = arith.truncf %7 : vector<128x128xf32> to vector<128x128xbf16>
    %c0_6 = arith.constant 0 : index
    %c0_7 = arith.constant 0 : index
    %9 = vector.load %arg3[%c0_6, %c0_7] : memref<128x128xbf16, #tpu.memory_space<vmem>>, vector<128x128xbf16>
    tpu.vector_store %arg3[%c0_6, %c0_7], %8 {strides = array<i32>} : memref<128x128xbf16, #tpu.memory_space<vmem>>, vector<128x128xbf16>,
    return
  }
}

module attributes {stable_mosaic.version = 11 : i64} {
  func.func @_bn_kernel(%arg0: memref<128x128xbf16, #tpu.memory_space<vmem>>, %arg1: memref<1x128xf32, #tpu.memory_space<vmem>>, %arg2: memref<1x128xf32, #tpu.memory_space<vmem>>, %arg3: memref<128x128xbf16, #tpu.memory_space<vmem>>) attributes {dimension_semantics = [], scalar_prefetch = 0 : i64, scratch_operands = 0 : i64, tpu.core_type = #tpu.core_type<tc>} {
    %c0 = arith.constant 0 : index
    %c0_0 = arith.constant 0 : index
    %0 = vector.load %arg0[%c0, %c0_0] : memref<128x128xbf16, #tpu.memory_space<vmem>>, vector<128x128xbf16>
    %1 = arith.extf %0 : vector<128x128xbf16> to vector<128x128xf32>
    %2 = tpu.iota {dimensions = array<i32: 0>} : vector<128x128xi32>
    %c128_i32 = arith.constant 128 : i32
    %3 = vector.broadcast %c128_i32 : i32 to vector<128x128xi32>
    %4 = arith.cmpi slt, %2, %3 : vector<128x128xi32>
    %5 = arith.extui %4 : vector<128x128xi1> to vector<128x128xi32>
    %6 = arith.sitofp %5 : vector<128x128xi32> to vector<128x128xf32>
    %cst = arith.constant dense<0.000000e+00> : vector<128xf32>
    %7 = vector.multi_reduction <add>, %1, %cst [0] : vector<128x128xf32> to vector<128xf32>
    %8 = vector.shape_cast %7 : vector<128xf32> to vector<1x128xf32>
    %cst_1 = arith.constant 7.812500e-03 : f32
    %9 = vector.broadcast %cst_1 : f32 to vector<1x128xf32>
    %10 = arith.mulf %8, %9 : vector<1x128xf32>
    %11 = vector.broadcast %10 : vector<1x128xf32> to vector<128x128xf32>
    %12 = arith.subf %1, %11 : vector<128x128xf32>
    %13 = arith.mulf %12, %6 : vector<128x128xf32>
    %14 = arith.mulf %13, %13 : vector<128x128xf32>
    %cst_2 = arith.constant dense<0.000000e+00> : vector<128xf32>
    %15 = vector.multi_reduction <add>, %14, %cst_2 [0] : vector<128x128xf32> to vector<128xf32>
    %16 = vector.shape_cast %15 : vector<128xf32> to vector<1x128xf32>
    %cst_3 = arith.constant 7.812500e-03 : f32
    %17 = vector.broadcast %cst_3 : f32 to vector<1x128xf32>
    %18 = arith.mulf %16, %17 : vector<1x128xf32>
    %c0_4 = arith.constant 0 : index
    %c0_5 = arith.constant 0 : index
    %19 = vector.load %arg1[%c0_4, %c0_5] : memref<1x128xf32, #tpu.memory_space<vmem>>, vector<1x128xf32>
    %cst_6 = arith.constant 9.99999974E-6 : f32
    %20 = vector.broadcast %cst_6 : f32 to vector<1x128xf32>
    %21 = arith.addf %18, %20 : vector<1x128xf32>
    %22 = math.rsqrt %21 : vector<1x128xf32>
    %23 = arith.mulf %19, %22 : vector<1x128xf32>
    %c0_7 = arith.constant 0 : index
    %c0_8 = arith.constant 0 : index
    %24 = vector.load %arg2[%c0_7, %c0_8] : memref<1x128xf32, #tpu.memory_space<vmem>>, vector<1x128xf32>
    %25 = arith.mulf %10, %23 : vector<1x128xf32>
    %26 = arith.subf %24, %25 : vector<1x128xf32>
    %27 = vector.broadcast %23 : vector<1x128xf32> to vector<128x128xf32>
    %28 = arith.mulf %1, %27 : vector<128x128xf32>
    %29 = vector.broadcast %26 : vector<1x128xf32> to vector<128x128xf32>
    %30 = arith.addf %28, %29 : vector<128x128xf32>
    %31 = arith.truncf %30 : vector<128x128xf32> to vector<128x128xbf16>
    %c0_9 = arith.constant 0 : index
    %c0_10 = arith.constant 0 : index
    %32 = vector.load %arg3[%c0_9, %c0_10] : memref<128x128xbf16, #tpu.memory_space<vmem>>, vector<128x128xbf16>
    tpu.vector_store %arg3[%c0_9, %c0_10], %31 {strides = array<i32>} : memref<128x128xbf16, #tpu.memory_space<vmem>>, vector<128x128xbf16>,
    return
  }
}

module attributes {stable_mosaic.version = 11 : i64} {
  func.func @_matmul_bias_act_kernel(%arg0: memref<128x256xbf16, #tpu.memory_space<vmem>>, %arg1: memref<256x128xbf16, #tpu.memory_space<vmem>>, %arg2: memref<1x128xf32, #tpu.memory_space<vmem>>, %arg3: memref<128x128xbf16, #tpu.memory_space<vmem>>) attributes {dimension_semantics = [], scalar_prefetch = 0 : i64, scratch_operands = 0 : i64, tpu.core_type = #tpu.core_type<tc>} {
    %c0 = arith.constant 0 : index
    %c0_0 = arith.constant 0 : index
    %0 = vector.load %arg0[%c0, %c0_0] : memref<128x256xbf16, #tpu.memory_space<vmem>>, vector<128x256xbf16>
    %c0_1 = arith.constant 0 : index
    %c0_2 = arith.constant 0 : index
    %1 = vector.load %arg1[%c0_1, %c0_2] : memref<256x128xbf16, #tpu.memory_space<vmem>>, vector<256x128xbf16>
    %cst = arith.constant dense<0.000000e+00> : vector<128x128xf32>
    %2 = tpu.matmul %0, %1, %cst {dimension_numbers = #tpu.dot_dimension_numbers<[1], [0], [0], [1], [0, 0, 1, 1], [], []>} : vector<128x256xbf16>, vector<256x128xbf16>, vector<128x128xf32> -> vector<128x128xf32>
    %c0_3 = arith.constant 0 : index
    %c0_4 = arith.constant 0 : index
    %3 = vector.load %arg2[%c0_3, %c0_4] : memref<1x128xf32, #tpu.memory_space<vmem>>, vector<1x128xf32>
    %4 = vector.broadcast %3 : vector<1x128xf32> to vector<128x128xf32>
    %5 = arith.addf %2, %4 : vector<128x128xf32>
    %cst_5 = arith.constant 0.000000e+00 : f32
    %6 = vector.broadcast %cst_5 : f32 to vector<128x128xf32>
    %7 = arith.maximumf %5, %6 : vector<128x128xf32>
    %8 = arith.truncf %7 : vector<128x128xf32> to vector<128x128xbf16>
    %c0_6 = arith.constant 0 : index
    %c0_7 = arith.constant 0 : index
    %9 = vector.load %arg3[%c0_6, %c0_7] : memref<128x128xbf16, #tpu.memory_space<vmem>>, vector<128x128xbf16>
    tpu.vector_store %arg3[%c0_6, %c0_7], %8 {strides = array<i32>} : memref<128x128xbf16, #tpu.memory_space<vmem>>, vector<128x128xbf16>,
    return
  }
}

module attributes {stable_mosaic.version = 11 : i64} {
  func.func @_matmul_bias_act_kernel(%arg0: memref<32x512xbf16, #tpu.memory_space<vmem>>, %arg1: memref<512x128xbf16, #tpu.memory_space<vmem>>, %arg2: memref<1x128xf32, #tpu.memory_space<vmem>>, %arg3: memref<32x128xbf16, #tpu.memory_space<vmem>>) attributes {dimension_semantics = [], scalar_prefetch = 0 : i64, scratch_operands = 0 : i64, tpu.core_type = #tpu.core_type<tc>} {
    %c0 = arith.constant 0 : index
    %c0_0 = arith.constant 0 : index
    %0 = vector.load %arg0[%c0, %c0_0] : memref<32x512xbf16, #tpu.memory_space<vmem>>, vector<32x512xbf16>
    %c0_1 = arith.constant 0 : index
    %c0_2 = arith.constant 0 : index
    %1 = vector.load %arg1[%c0_1, %c0_2] : memref<512x128xbf16, #tpu.memory_space<vmem>>, vector<512x128xbf16>
    %cst = arith.constant dense<0.000000e+00> : vector<32x128xf32>
    %2 = tpu.matmul %0, %1, %cst {dimension_numbers = #tpu.dot_dimension_numbers<[1], [0], [0], [1], [0, 0, 1, 1], [], []>} : vector<32x512xbf16>, vector<512x128xbf16>, vector<32x128xf32> -> vector<32x128xf32>
    %c0_3 = arith.constant 0 : index
    %c0_4 = arith.constant 0 : index
    %3 = vector.load %arg2[%c0_3, %c0_4] : memref<1x128xf32, #tpu.memory_space<vmem>>, vector<1x128xf32>
    %4 = vector.broadcast %3 : vector<1x128xf32> to vector<32x128xf32>
    %5 = arith.addf %2, %4 : vector<32x128xf32>
    %cst_5 = arith.constant 0.000000e+00 : f32
    %6 = vector.broadcast %cst_5 : f32 to vector<32x128xf32>
    %7 = arith.maximumf %5, %6 : vector<32x128xf32>
    %8 = arith.truncf %7 : vector<32x128xf32> to vector<32x128xbf16>
    %c0_6 = arith.constant 0 : index
    %c0_7 = arith.constant 0 : index
    %9 = vector.load %arg3[%c0_6, %c0_7] : memref<32x128xbf16, #tpu.memory_space<vmem>>, vector<32x128xbf16>
    tpu.vector_store %arg3[%c0_6, %c0_7], %8 {strides = array<i32>} : memref<32x128xbf16, #tpu.memory_space<vmem>>, vector<32x128xbf16>,
    return
  }
}

module attributes {stable_mosaic.version = 11 : i64} {
  func.func @_matmul_bias_act_kernel(%arg0: memref<16x512xbf16, #tpu.memory_space<vmem>>, %arg1: memref<512x128xbf16, #tpu.memory_space<vmem>>, %arg2: memref<1x128xf32, #tpu.memory_space<vmem>>, %arg3: memref<16x128xbf16, #tpu.memory_space<vmem>>) attributes {dimension_semantics = [], scalar_prefetch = 0 : i64, scratch_operands = 0 : i64, tpu.core_type = #tpu.core_type<tc>} {
    %c0 = arith.constant 0 : index
    %c0_0 = arith.constant 0 : index
    %0 = vector.load %arg0[%c0, %c0_0] : memref<16x512xbf16, #tpu.memory_space<vmem>>, vector<16x512xbf16>
    %c0_1 = arith.constant 0 : index
    %c0_2 = arith.constant 0 : index
    %1 = vector.load %arg1[%c0_1, %c0_2] : memref<512x128xbf16, #tpu.memory_space<vmem>>, vector<512x128xbf16>
    %cst = arith.constant dense<0.000000e+00> : vector<16x128xf32>
    %2 = tpu.matmul %0, %1, %cst {dimension_numbers = #tpu.dot_dimension_numbers<[1], [0], [0], [1], [0, 0, 1, 1], [], []>} : vector<16x512xbf16>, vector<512x128xbf16>, vector<16x128xf32> -> vector<16x128xf32>
    %c0_3 = arith.constant 0 : index
    %c0_4 = arith.constant 0 : index
    %3 = vector.load %arg2[%c0_3, %c0_4] : memref<1x128xf32, #tpu.memory_space<vmem>>, vector<1x128xf32>
    %4 = vector.broadcast %3 : vector<1x128xf32> to vector<16x128xf32>
    %5 = arith.addf %2, %4 : vector<16x128xf32>
    %cst_5 = arith.constant 0.000000e+00 : f32
    %6 = vector.broadcast %cst_5 : f32 to vector<16x128xf32>
    %7 = arith.maximumf %5, %6 : vector<16x128xf32>
    %8 = arith.truncf %7 : vector<16x128xf32> to vector<16x128xbf16>
    %c0_6 = arith.constant 0 : index
    %c0_7 = arith.constant 0 : index
    %9 = vector.load %arg3[%c0_6, %c0_7] : memref<16x128xbf16, #tpu.memory_space<vmem>>, vector<16x128xbf16>
    tpu.vector_store %arg3[%c0_6, %c0_7], %8 {strides = array<i32>} : memref<16x128xbf16, #tpu.memory_space<vmem>>, vector<16x128xbf16>,
    return
  }
}

module attributes {stable_mosaic.version = 11 : i64} {
  func.func @_matmul_bias_act_kernel(%arg0: memref<16x256xbf16, #tpu.memory_space<vmem>>, %arg1: memref<256x128xbf16, #tpu.memory_space<vmem>>, %arg2: memref<1x128xf32, #tpu.memory_space<vmem>>, %arg3: memref<16x128xbf16, #tpu.memory_space<vmem>>) attributes {dimension_semantics = [], scalar_prefetch = 0 : i64, scratch_operands = 0 : i64, tpu.core_type = #tpu.core_type<tc>} {
    %c0 = arith.constant 0 : index
    %c0_0 = arith.constant 0 : index
    %0 = vector.load %arg0[%c0, %c0_0] : memref<16x256xbf16, #tpu.memory_space<vmem>>, vector<16x256xbf16>
    %c0_1 = arith.constant 0 : index
    %c0_2 = arith.constant 0 : index
    %1 = vector.load %arg1[%c0_1, %c0_2] : memref<256x128xbf16, #tpu.memory_space<vmem>>, vector<256x128xbf16>
    %cst = arith.constant dense<0.000000e+00> : vector<16x128xf32>
    %2 = tpu.matmul %0, %1, %cst {dimension_numbers = #tpu.dot_dimension_numbers<[1], [0], [0], [1], [0, 0, 1, 1], [], []>} : vector<16x256xbf16>, vector<256x128xbf16>, vector<16x128xf32> -> vector<16x128xf32>
    %c0_3 = arith.constant 0 : index
    %c0_4 = arith.constant 0 : index
    %3 = vector.load %arg2[%c0_3, %c0_4] : memref<1x128xf32, #tpu.memory_space<vmem>>, vector<1x128xf32>
    %4 = vector.broadcast %3 : vector<1x128xf32> to vector<16x128xf32>
    %5 = arith.addf %2, %4 : vector<16x128xf32>
    %cst_5 = arith.constant 0.000000e+00 : f32
    %6 = vector.broadcast %cst_5 : f32 to vector<16x128xf32>
    %7 = arith.maximumf %5, %6 : vector<16x128xf32>
    %8 = arith.truncf %7 : vector<16x128xf32> to vector<16x128xbf16>
    %c0_6 = arith.constant 0 : index
    %c0_7 = arith.constant 0 : index
    %9 = vector.load %arg3[%c0_6, %c0_7] : memref<16x128xbf16, #tpu.memory_space<vmem>>, vector<16x128xbf16>
    tpu.vector_store %arg3[%c0_6, %c0_7], %8 {strides = array<i32>} : memref<16x128xbf16, #tpu.memory_space<vmem>>, vector<16x128xbf16>,
    return
  }
}

module attributes {stable_mosaic.version = 11 : i64} {
  func.func @_bn_kernel(%arg0: memref<16x128xbf16, #tpu.memory_space<vmem>>, %arg1: memref<1x128xf32, #tpu.memory_space<vmem>>, %arg2: memref<1x128xf32, #tpu.memory_space<vmem>>, %arg3: memref<16x128xbf16, #tpu.memory_space<vmem>>) attributes {dimension_semantics = [], scalar_prefetch = 0 : i64, scratch_operands = 0 : i64, tpu.core_type = #tpu.core_type<tc>} {
    %c0 = arith.constant 0 : index
    %c0_0 = arith.constant 0 : index
    %0 = vector.load %arg0[%c0, %c0_0] : memref<16x128xbf16, #tpu.memory_space<vmem>>, vector<16x128xbf16>
    %1 = arith.extf %0 : vector<16x128xbf16> to vector<16x128xf32>
    %2 = tpu.iota {dimensions = array<i32: 0>} : vector<16x128xi32>
    %c8_i32 = arith.constant 8 : i32
    %3 = vector.broadcast %c8_i32 : i32 to vector<16x128xi32>
    %4 = arith.cmpi slt, %2, %3 : vector<16x128xi32>
    %5 = arith.extui %4 : vector<16x128xi1> to vector<16x128xi32>
    %6 = arith.sitofp %5 : vector<16x128xi32> to vector<16x128xf32>
    %cst = arith.constant dense<0.000000e+00> : vector<128xf32>
    %7 = vector.multi_reduction <add>, %1, %cst [0] : vector<16x128xf32> to vector<128xf32>
    %8 = vector.shape_cast %7 : vector<128xf32> to vector<1x128xf32>
    %cst_1 = arith.constant 1.250000e-01 : f32
    %9 = vector.broadcast %cst_1 : f32 to vector<1x128xf32>
    %10 = arith.mulf %8, %9 : vector<1x128xf32>
    %11 = vector.broadcast %10 : vector<1x128xf32> to vector<16x128xf32>
    %12 = arith.subf %1, %11 : vector<16x128xf32>
    %13 = arith.mulf %12, %6 : vector<16x128xf32>
    %14 = arith.mulf %13, %13 : vector<16x128xf32>
    %cst_2 = arith.constant dense<0.000000e+00> : vector<128xf32>
    %15 = vector.multi_reduction <add>, %14, %cst_2 [0] : vector<16x128xf32> to vector<128xf32>
    %16 = vector.shape_cast %15 : vector<128xf32> to vector<1x128xf32>
    %cst_3 = arith.constant 1.250000e-01 : f32
    %17 = vector.broadcast %cst_3 : f32 to vector<1x128xf32>
    %18 = arith.mulf %16, %17 : vector<1x128xf32>
    %c0_4 = arith.constant 0 : index
    %c0_5 = arith.constant 0 : index
    %19 = vector.load %arg1[%c0_4, %c0_5] : memref<1x128xf32, #tpu.memory_space<vmem>>, vector<1x128xf32>
    %cst_6 = arith.constant 9.99999974E-6 : f32
    %20 = vector.broadcast %cst_6 : f32 to vector<1x128xf32>
    %21 = arith.addf %18, %20 : vector<1x128xf32>
    %22 = math.rsqrt %21 : vector<1x128xf32>
    %23 = arith.mulf %19, %22 : vector<1x128xf32>
    %c0_7 = arith.constant 0 : index
    %c0_8 = arith.constant 0 : index
    %24 = vector.load %arg2[%c0_7, %c0_8] : memref<1x128xf32, #tpu.memory_space<vmem>>, vector<1x128xf32>
    %25 = arith.mulf %10, %23 : vector<1x128xf32>
    %26 = arith.subf %24, %25 : vector<1x128xf32>
    %27 = vector.broadcast %23 : vector<1x128xf32> to vector<16x128xf32>
    %28 = arith.mulf %1, %27 : vector<16x128xf32>
    %29 = vector.broadcast %26 : vector<1x128xf32> to vector<16x128xf32>
    %30 = arith.addf %28, %29 : vector<16x128xf32>
    %31 = arith.truncf %30 : vector<16x128xf32> to vector<16x128xbf16>
    %c0_9 = arith.constant 0 : index
    %c0_10 = arith.constant 0 : index
    %32 = vector.load %arg3[%c0_9, %c0_10] : memref<16x128xbf16, #tpu.memory_space<vmem>>, vector<16x128xbf16>
    tpu.vector_store %arg3[%c0_9, %c0_10], %31 {strides = array<i32>} : memref<16x128xbf16, #tpu.memory_space<vmem>>, vector<16x128xbf16>,
    return
  }
}

module attributes {stable_mosaic.version = 11 : i64} {
  func.func @_matmul_bias_act_kernel(%arg0: memref<16x384xbf16, #tpu.memory_space<vmem>>, %arg1: memref<384x128xbf16, #tpu.memory_space<vmem>>, %arg2: memref<1x128xf32, #tpu.memory_space<vmem>>, %arg3: memref<16x128xbf16, #tpu.memory_space<vmem>>) attributes {dimension_semantics = [], scalar_prefetch = 0 : i64, scratch_operands = 0 : i64, tpu.core_type = #tpu.core_type<tc>} {
    %c0 = arith.constant 0 : index
    %c0_0 = arith.constant 0 : index
    %0 = vector.load %arg0[%c0, %c0_0] : memref<16x384xbf16, #tpu.memory_space<vmem>>, vector<16x384xbf16>
    %c0_1 = arith.constant 0 : index
    %c0_2 = arith.constant 0 : index
    %1 = vector.load %arg1[%c0_1, %c0_2] : memref<384x128xbf16, #tpu.memory_space<vmem>>, vector<384x128xbf16>
    %cst = arith.constant dense<0.000000e+00> : vector<16x128xf32>
    %2 = tpu.matmul %0, %1, %cst {dimension_numbers = #tpu.dot_dimension_numbers<[1], [0], [0], [1], [0, 0, 1, 1], [], []>} : vector<16x384xbf16>, vector<384x128xbf16>, vector<16x128xf32> -> vector<16x128xf32>
    %c0_3 = arith.constant 0 : index
    %c0_4 = arith.constant 0 : index
    %3 = vector.load %arg2[%c0_3, %c0_4] : memref<1x128xf32, #tpu.memory_space<vmem>>, vector<1x128xf32>
    %4 = vector.broadcast %3 : vector<1x128xf32> to vector<16x128xf32>
    %5 = arith.addf %2, %4 : vector<16x128xf32>
    %cst_5 = arith.constant 0.000000e+00 : f32
    %6 = vector.broadcast %cst_5 : f32 to vector<16x128xf32>
    %7 = arith.maximumf %5, %6 : vector<16x128xf32>
    %8 = arith.truncf %7 : vector<16x128xf32> to vector<16x128xbf16>
    %c0_6 = arith.constant 0 : index
    %c0_7 = arith.constant 0 : index
    %9 = vector.load %arg3[%c0_6, %c0_7] : memref<16x128xbf16, #tpu.memory_space<vmem>>, vector<16x128xbf16>
    tpu.vector_store %arg3[%c0_6, %c0_7], %8 {strides = array<i32>} : memref<16x128xbf16, #tpu.memory_space<vmem>>, vector<16x128xbf16>,
    return
  }
}

module attributes {stable_mosaic.version = 11 : i64} {
  func.func @_matmul_bias_act_kernel(%arg0: memref<16x128xbf16, #tpu.memory_space<vmem>>, %arg1: memref<128x128xbf16, #tpu.memory_space<vmem>>, %arg2: memref<1x128xf32, #tpu.memory_space<vmem>>, %arg3: memref<16x128xbf16, #tpu.memory_space<vmem>>) attributes {dimension_semantics = [], scalar_prefetch = 0 : i64, scratch_operands = 0 : i64, tpu.core_type = #tpu.core_type<tc>} {
    %c0 = arith.constant 0 : index
    %c0_0 = arith.constant 0 : index
    %0 = vector.load %arg0[%c0, %c0_0] : memref<16x128xbf16, #tpu.memory_space<vmem>>, vector<16x128xbf16>
    %c0_1 = arith.constant 0 : index
    %c0_2 = arith.constant 0 : index
    %1 = vector.load %arg1[%c0_1, %c0_2] : memref<128x128xbf16, #tpu.memory_space<vmem>>, vector<128x128xbf16>
    %cst = arith.constant dense<0.000000e+00> : vector<16x128xf32>
    %2 = tpu.matmul %0, %1, %cst {dimension_numbers = #tpu.dot_dimension_numbers<[1], [0], [0], [1], [0, 0, 1, 1], [], []>} : vector<16x128xbf16>, vector<128x128xbf16>, vector<16x128xf32> -> vector<16x128xf32>
    %c0_3 = arith.constant 0 : index
    %c0_4 = arith.constant 0 : index
    %3 = vector.load %arg2[%c0_3, %c0_4] : memref<1x128xf32, #tpu.memory_space<vmem>>, vector<1x128xf32>
    %4 = vector.broadcast %3 : vector<1x128xf32> to vector<16x128xf32>
    %5 = arith.addf %2, %4 : vector<16x128xf32>
    %cst_5 = arith.constant 0.000000e+00 : f32
    %6 = vector.broadcast %cst_5 : f32 to vector<16x128xf32>
    %7 = arith.maximumf %5, %6 : vector<16x128xf32>
    %8 = arith.truncf %7 : vector<16x128xf32> to vector<16x128xbf16>
    %c0_6 = arith.constant 0 : index
    %c0_7 = arith.constant 0 : index
    %9 = vector.load %arg3[%c0_6, %c0_7] : memref<16x128xbf16, #tpu.memory_space<vmem>>, vector<16x128xbf16>
    tpu.vector_store %arg3[%c0_6, %c0_7], %8 {strides = array<i32>} : memref<16x128xbf16, #tpu.memory_space<vmem>>, vector<16x128xbf16>,
    return
  }
}

module attributes {stable_mosaic.version = 11 : i64} {
  func.func @_matmul_bias_act_kernel(%arg0: memref<16x128xbf16, #tpu.memory_space<vmem>>, %arg1: memref<128x256xbf16, #tpu.memory_space<vmem>>, %arg2: memref<1x256xf32, #tpu.memory_space<vmem>>, %arg3: memref<16x256xbf16, #tpu.memory_space<vmem>>) attributes {dimension_semantics = [], scalar_prefetch = 0 : i64, scratch_operands = 0 : i64, tpu.core_type = #tpu.core_type<tc>} {
    %c0 = arith.constant 0 : index
    %c0_0 = arith.constant 0 : index
    %0 = vector.load %arg0[%c0, %c0_0] : memref<16x128xbf16, #tpu.memory_space<vmem>>, vector<16x128xbf16>
    %c0_1 = arith.constant 0 : index
    %c0_2 = arith.constant 0 : index
    %1 = vector.load %arg1[%c0_1, %c0_2] : memref<128x256xbf16, #tpu.memory_space<vmem>>, vector<128x256xbf16>
    %cst = arith.constant dense<0.000000e+00> : vector<16x256xf32>
    %2 = tpu.matmul %0, %1, %cst {dimension_numbers = #tpu.dot_dimension_numbers<[1], [0], [0], [1], [0, 0, 1, 1], [], []>} : vector<16x128xbf16>, vector<128x256xbf16>, vector<16x256xf32> -> vector<16x256xf32>
    %c0_3 = arith.constant 0 : index
    %c0_4 = arith.constant 0 : index
    %3 = vector.load %arg2[%c0_3, %c0_4] : memref<1x256xf32, #tpu.memory_space<vmem>>, vector<1x256xf32>
    %4 = vector.broadcast %3 : vector<1x256xf32> to vector<16x256xf32>
    %5 = arith.addf %2, %4 : vector<16x256xf32>
    %cst_5 = arith.constant 0.000000e+00 : f32
    %6 = vector.broadcast %cst_5 : f32 to vector<16x256xf32>
    %7 = arith.maximumf %5, %6 : vector<16x256xf32>
    %8 = arith.truncf %7 : vector<16x256xf32> to vector<16x256xbf16>
    %c0_6 = arith.constant 0 : index
    %c0_7 = arith.constant 0 : index
    %9 = vector.load %arg3[%c0_6, %c0_7] : memref<16x256xbf16, #tpu.memory_space<vmem>>, vector<16x256xbf16>
    tpu.vector_store %arg3[%c0_6, %c0_7], %8 {strides = array<i32>} : memref<16x256xbf16, #tpu.memory_space<vmem>>, vector<16x256xbf16>,
    return
  }
}

module attributes {stable_mosaic.version = 11 : i64} {
  func.func @_matmul_bias_act_kernel(%arg0: memref<16x256xbf16, #tpu.memory_space<vmem>>, %arg1: memref<256x512xbf16, #tpu.memory_space<vmem>>, %arg2: memref<1x512xf32, #tpu.memory_space<vmem>>, %arg3: memref<16x512xbf16, #tpu.memory_space<vmem>>) attributes {dimension_semantics = [], scalar_prefetch = 0 : i64, scratch_operands = 0 : i64, tpu.core_type = #tpu.core_type<tc>} {
    %c0 = arith.constant 0 : index
    %c0_0 = arith.constant 0 : index
    %0 = vector.load %arg0[%c0, %c0_0] : memref<16x256xbf16, #tpu.memory_space<vmem>>, vector<16x256xbf16>
    %c0_1 = arith.constant 0 : index
    %c0_2 = arith.constant 0 : index
    %1 = vector.load %arg1[%c0_1, %c0_2] : memref<256x512xbf16, #tpu.memory_space<vmem>>, vector<256x512xbf16>
    %cst = arith.constant dense<0.000000e+00> : vector<16x512xf32>
    %2 = tpu.matmul %0, %1, %cst {dimension_numbers = #tpu.dot_dimension_numbers<[1], [0], [0], [1], [0, 0, 1, 1], [], []>} : vector<16x256xbf16>, vector<256x512xbf16>, vector<16x512xf32> -> vector<16x512xf32>
    %c0_3 = arith.constant 0 : index
    %c0_4 = arith.constant 0 : index
    %3 = vector.load %arg2[%c0_3, %c0_4] : memref<1x512xf32, #tpu.memory_space<vmem>>, vector<1x512xf32>
    %4 = vector.broadcast %3 : vector<1x512xf32> to vector<16x512xf32>
    %5 = arith.addf %2, %4 : vector<16x512xf32>
    %cst_5 = arith.constant 0.000000e+00 : f32
    %6 = vector.broadcast %cst_5 : f32 to vector<16x512xf32>
    %7 = arith.maximumf %5, %6 : vector<16x512xf32>
    %8 = arith.truncf %7 : vector<16x512xf32> to vector<16x512xbf16>
    %c0_6 = arith.constant 0 : index
    %c0_7 = arith.constant 0 : index
    %9 = vector.load %arg3[%c0_6, %c0_7] : memref<16x512xbf16, #tpu.memory_space<vmem>>, vector<16x512xbf16>
    tpu.vector_store %arg3[%c0_6, %c0_7], %8 {strides = array<i32>} : memref<16x512xbf16, #tpu.memory_space<vmem>>, vector<16x512xbf16>,
    return
  }
}

module attributes {stable_mosaic.version = 11 : i64} {
  func.func @_bn_kernel(%arg0: memref<16x512xbf16, #tpu.memory_space<vmem>>, %arg1: memref<1x512xf32, #tpu.memory_space<vmem>>, %arg2: memref<1x512xf32, #tpu.memory_space<vmem>>, %arg3: memref<16x512xbf16, #tpu.memory_space<vmem>>) attributes {dimension_semantics = [], scalar_prefetch = 0 : i64, scratch_operands = 0 : i64, tpu.core_type = #tpu.core_type<tc>} {
    %c0 = arith.constant 0 : index
    %c0_0 = arith.constant 0 : index
    %0 = vector.load %arg0[%c0, %c0_0] : memref<16x512xbf16, #tpu.memory_space<vmem>>, vector<16x512xbf16>
    %1 = arith.extf %0 : vector<16x512xbf16> to vector<16x512xf32>
    %2 = tpu.iota {dimensions = array<i32: 0>} : vector<16x512xi32>
    %c2_i32 = arith.constant 2 : i32
    %3 = vector.broadcast %c2_i32 : i32 to vector<16x512xi32>
    %4 = arith.cmpi slt, %2, %3 : vector<16x512xi32>
    %5 = arith.extui %4 : vector<16x512xi1> to vector<16x512xi32>
    %6 = arith.sitofp %5 : vector<16x512xi32> to vector<16x512xf32>
    %cst = arith.constant dense<0.000000e+00> : vector<512xf32>
    %7 = vector.multi_reduction <add>, %1, %cst [0] : vector<16x512xf32> to vector<512xf32>
    %8 = vector.shape_cast %7 : vector<512xf32> to vector<1x512xf32>
    %cst_1 = arith.constant 5.000000e-01 : f32
    %9 = vector.broadcast %cst_1 : f32 to vector<1x512xf32>
    %10 = arith.mulf %8, %9 : vector<1x512xf32>
    %11 = vector.broadcast %10 : vector<1x512xf32> to vector<16x512xf32>
    %12 = arith.subf %1, %11 : vector<16x512xf32>
    %13 = arith.mulf %12, %6 : vector<16x512xf32>
    %14 = arith.mulf %13, %13 : vector<16x512xf32>
    %cst_2 = arith.constant dense<0.000000e+00> : vector<512xf32>
    %15 = vector.multi_reduction <add>, %14, %cst_2 [0] : vector<16x512xf32> to vector<512xf32>
    %16 = vector.shape_cast %15 : vector<512xf32> to vector<1x512xf32>
    %cst_3 = arith.constant 5.000000e-01 : f32
    %17 = vector.broadcast %cst_3 : f32 to vector<1x512xf32>
    %18 = arith.mulf %16, %17 : vector<1x512xf32>
    %c0_4 = arith.constant 0 : index
    %c0_5 = arith.constant 0 : index
    %19 = vector.load %arg1[%c0_4, %c0_5] : memref<1x512xf32, #tpu.memory_space<vmem>>, vector<1x512xf32>
    %cst_6 = arith.constant 9.99999974E-6 : f32
    %20 = vector.broadcast %cst_6 : f32 to vector<1x512xf32>
    %21 = arith.addf %18, %20 : vector<1x512xf32>
    %22 = math.rsqrt %21 : vector<1x512xf32>
    %23 = arith.mulf %19, %22 : vector<1x512xf32>
    %c0_7 = arith.constant 0 : index
    %c0_8 = arith.constant 0 : index
    %24 = vector.load %arg2[%c0_7, %c0_8] : memref<1x512xf32, #tpu.memory_space<vmem>>, vector<1x512xf32>
    %25 = arith.mulf %10, %23 : vector<1x512xf32>
    %26 = arith.subf %24, %25 : vector<1x512xf32>
    %27 = vector.broadcast %23 : vector<1x512xf32> to vector<16x512xf32>
    %28 = arith.mulf %1, %27 : vector<16x512xf32>
    %29 = vector.broadcast %26 : vector<1x512xf32> to vector<16x512xf32>
    %30 = arith.addf %28, %29 : vector<16x512xf32>
    %31 = arith.truncf %30 : vector<16x512xf32> to vector<16x512xbf16>
    %c0_9 = arith.constant 0 : index
    %c0_10 = arith.constant 0 : index
    %32 = vector.load %arg3[%c0_9, %c0_10] : memref<16x512xbf16, #tpu.memory_space<vmem>>, vector<16x512xbf16>
    tpu.vector_store %arg3[%c0_9, %c0_10], %31 {strides = array<i32>} : memref<16x512xbf16, #tpu.memory_space<vmem>>, vector<16x512xbf16>,
    return
  }
}

module attributes {stable_mosaic.version = 11 : i64} {
  func.func @_matmul_bias_act_kernel(%arg0: memref<32x128xbf16, #tpu.memory_space<vmem>>, %arg1: memref<128x128xbf16, #tpu.memory_space<vmem>>, %arg2: memref<1x128xf32, #tpu.memory_space<vmem>>, %arg3: memref<32x128xbf16, #tpu.memory_space<vmem>>) attributes {dimension_semantics = [], scalar_prefetch = 0 : i64, scratch_operands = 0 : i64, tpu.core_type = #tpu.core_type<tc>} {
    %c0 = arith.constant 0 : index
    %c0_0 = arith.constant 0 : index
    %0 = vector.load %arg0[%c0, %c0_0] : memref<32x128xbf16, #tpu.memory_space<vmem>>, vector<32x128xbf16>
    %c0_1 = arith.constant 0 : index
    %c0_2 = arith.constant 0 : index
    %1 = vector.load %arg1[%c0_1, %c0_2] : memref<128x128xbf16, #tpu.memory_space<vmem>>, vector<128x128xbf16>
    %cst = arith.constant dense<0.000000e+00> : vector<32x128xf32>
    %2 = tpu.matmul %0, %1, %cst {dimension_numbers = #tpu.dot_dimension_numbers<[1], [0], [0], [1], [0, 0, 1, 1], [], []>} : vector<32x128xbf16>, vector<128x128xbf16>, vector<32x128xf32> -> vector<32x128xf32>
    %c0_3 = arith.constant 0 : index
    %c0_4 = arith.constant 0 : index
    %3 = vector.load %arg2[%c0_3, %c0_4] : memref<1x128xf32, #tpu.memory_space<vmem>>, vector<1x128xf32>
    %4 = vector.broadcast %3 : vector<1x128xf32> to vector<32x128xf32>
    %5 = arith.addf %2, %4 : vector<32x128xf32>
    %cst_5 = arith.constant 0.000000e+00 : f32
    %6 = vector.broadcast %cst_5 : f32 to vector<32x128xf32>
    %7 = arith.maximumf %5, %6 : vector<32x128xf32>
    %8 = arith.truncf %7 : vector<32x128xf32> to vector<32x128xbf16>
    %c0_6 = arith.constant 0 : index
    %c0_7 = arith.constant 0 : index
    %9 = vector.load %arg3[%c0_6, %c0_7] : memref<32x128xbf16, #tpu.memory_space<vmem>>, vector<32x128xbf16>
    tpu.vector_store %arg3[%c0_6, %c0_7], %8 {strides = array<i32>} : memref<32x128xbf16, #tpu.memory_space<vmem>>, vector<32x128xbf16>,
    return
  }
}

module attributes {stable_mosaic.version = 11 : i64} {
  func.func @_matmul_bias_act_kernel(%arg0: memref<16x1152xbf16, #tpu.memory_space<vmem>>, %arg1: memref<1152x512xbf16, #tpu.memory_space<vmem>>, %arg2: memref<1x512xf32, #tpu.memory_space<vmem>>, %arg3: memref<16x512xbf16, #tpu.memory_space<vmem>>) attributes {dimension_semantics = [], scalar_prefetch = 0 : i64, scratch_operands = 0 : i64, tpu.core_type = #tpu.core_type<tc>} {
    %c0 = arith.constant 0 : index
    %c0_0 = arith.constant 0 : index
    %0 = vector.load %arg0[%c0, %c0_0] : memref<16x1152xbf16, #tpu.memory_space<vmem>>, vector<16x1152xbf16>
    %c0_1 = arith.constant 0 : index
    %c0_2 = arith.constant 0 : index
    %1 = vector.load %arg1[%c0_1, %c0_2] : memref<1152x512xbf16, #tpu.memory_space<vmem>>, vector<1152x512xbf16>
    %cst = arith.constant dense<0.000000e+00> : vector<16x512xf32>
    %2 = tpu.matmul %0, %1, %cst {dimension_numbers = #tpu.dot_dimension_numbers<[1], [0], [0], [1], [0, 0, 1, 1], [], []>} : vector<16x1152xbf16>, vector<1152x512xbf16>, vector<16x512xf32> -> vector<16x512xf32>
    %c0_3 = arith.constant 0 : index
    %c0_4 = arith.constant 0 : index
    %3 = vector.load %arg2[%c0_3, %c0_4] : memref<1x512xf32, #tpu.memory_space<vmem>>, vector<1x512xf32>
    %4 = vector.broadcast %3 : vector<1x512xf32> to vector<16x512xf32>
    %5 = arith.addf %2, %4 : vector<16x512xf32>
    %cst_5 = arith.constant 0.000000e+00 : f32
    %6 = vector.broadcast %cst_5 : f32 to vector<16x512xf32>
    %7 = arith.maximumf %5, %6 : vector<16x512xf32>
    %8 = arith.truncf %7 : vector<16x512xf32> to vector<16x512xbf16>
    %c0_6 = arith.constant 0 : index
    %c0_7 = arith.constant 0 : index
    %9 = vector.load %arg3[%c0_6, %c0_7] : memref<16x512xbf16, #tpu.memory_space<vmem>>, vector<16x512xbf16>
    tpu.vector_store %arg3[%c0_6, %c0_7], %8 {strides = array<i32>} : memref<16x512xbf16, #tpu.memory_space<vmem>>, vector<16x512xbf16>,
    return
  }
}

module attributes {stable_mosaic.version = 11 : i64} {
  func.func @_layer4_chain_kernel(%arg0: memref<16x512xbf16, #tpu.memory_space<vmem>>, %arg1: memref<512x256xbf16, #tpu.memory_space<vmem>>, %arg2: memref<1x256xf32, #tpu.memory_space<vmem>>, %arg3: memref<256x128xbf16, #tpu.memory_space<vmem>>, %arg4: memref<1x128xf32, #tpu.memory_space<vmem>>, %arg5: memref<128x128xbf16, #tpu.memory_space<vmem>>, %arg6: memref<1x128xf32, #tpu.memory_space<vmem>>, %arg7: memref<128x128xbf16, #tpu.memory_space<vmem>>, %arg8: memref<1x128xf32, #tpu.memory_space<vmem>>, %arg9: memref<128x128xbf16, #tpu.memory_space<vmem>>, %arg10: memref<1x128xf32, #tpu.memory_space<vmem>>, %arg11: memref<128x128xbf16, #tpu.memory_space<vmem>>, %arg12: memref<1x128xf32, #tpu.memory_space<vmem>>, %arg13: memref<128x128xbf16, #tpu.memory_space<vmem>>, %arg14: memref<1x128xf32, #tpu.memory_space<vmem>>, %arg15: memref<128x128xbf16, #tpu.memory_space<vmem>>, %arg16: memref<1x128xf32, #tpu.memory_space<vmem>>, %arg17: memref<16x128xbf16, #tpu.memory_space<vmem>>) attributes {dimension_semantics = [], scalar_prefetch = 0 : i64, scratch_operands = 0 : i64, tpu.core_type = #tpu.core_type<tc>} {
    %c0 = arith.constant 0 : index
    %c0_0 = arith.constant 0 : index
    %0 = vector.load %arg0[%c0, %c0_0] : memref<16x512xbf16, #tpu.memory_space<vmem>>, vector<16x512xbf16>
    %c0_1 = arith.constant 0 : index
    %c0_2 = arith.constant 0 : index
    %1 = vector.load %arg1[%c0_1, %c0_2] : memref<512x256xbf16, #tpu.memory_space<vmem>>, vector<512x256xbf16>
    %cst = arith.constant dense<0.000000e+00> : vector<16x256xf32>
    %2 = tpu.matmul %0, %1, %cst {dimension_numbers = #tpu.dot_dimension_numbers<[1], [0], [0], [1], [0, 0, 1, 1], [], []>} : vector<16x512xbf16>, vector<512x256xbf16>, vector<16x256xf32> -> vector<16x256xf32>
    %c0_3 = arith.constant 0 : index
    %c0_4 = arith.constant 0 : index
    %3 = vector.load %arg2[%c0_3, %c0_4] : memref<1x256xf32, #tpu.memory_space<vmem>>, vector<1x256xf32>
    %4 = vector.broadcast %3 : vector<1x256xf32> to vector<16x256xf32>
    %5 = arith.addf %2, %4 : vector<16x256xf32>
    %cst_5 = arith.constant 0.000000e+00 : f32
    %6 = vector.broadcast %cst_5 : f32 to vector<16x256xf32>
    %7 = arith.maximumf %5, %6 : vector<16x256xf32>
    %8 = arith.truncf %7 : vector<16x256xf32> to vector<16x256xbf16>
    %c0_6 = arith.constant 0 : index
    %c0_7 = arith.constant 0 : index
    %9 = vector.load %arg3[%c0_6, %c0_7] : memref<256x128xbf16, #tpu.memory_space<vmem>>, vector<256x128xbf16>
    %cst_8 = arith.constant dense<0.000000e+00> : vector<16x128xf32>
    %10 = tpu.matmul %8, %9, %cst_8 {dimension_numbers = #tpu.dot_dimension_numbers<[1], [0], [0], [1], [0, 0, 1, 1], [], []>} : vector<16x256xbf16>, vector<256x128xbf16>, vector<16x128xf32> -> vector<16x128xf32>
    %c0_9 = arith.constant 0 : index
    %c0_10 = arith.constant 0 : index
    %11 = vector.load %arg4[%c0_9, %c0_10] : memref<1x128xf32, #tpu.memory_space<vmem>>, vector<1x128xf32>
    %12 = vector.broadcast %11 : vector<1x128xf32> to vector<16x128xf32>
    %13 = arith.addf %10, %12 : vector<16x128xf32>
    %cst_11 = arith.constant 0.000000e+00 : f32
    %14 = vector.broadcast %cst_11 : f32 to vector<16x128xf32>
    %15 = arith.maximumf %13, %14 : vector<16x128xf32>
    %16 = arith.truncf %15 : vector<16x128xf32> to vector<16x128xbf16>
    %c0_12 = arith.constant 0 : index
    %c0_13 = arith.constant 0 : index
    %17 = vector.load %arg5[%c0_12, %c0_13] : memref<128x128xbf16, #tpu.memory_space<vmem>>, vector<128x128xbf16>
    %cst_14 = arith.constant dense<0.000000e+00> : vector<16x128xf32>
    %18 = tpu.matmul %16, %17, %cst_14 {dimension_numbers = #tpu.dot_dimension_numbers<[1], [0], [0], [1], [0, 0, 1, 1], [], []>} : vector<16x128xbf16>, vector<128x128xbf16>, vector<16x128xf32> -> vector<16x128xf32>
    %c0_15 = arith.constant 0 : index
    %c0_16 = arith.constant 0 : index
    %19 = vector.load %arg6[%c0_15, %c0_16] : memref<1x128xf32, #tpu.memory_space<vmem>>, vector<1x128xf32>
    %20 = vector.broadcast %19 : vector<1x128xf32> to vector<16x128xf32>
    %21 = arith.addf %18, %20 : vector<16x128xf32>
    %cst_17 = arith.constant 0.000000e+00 : f32
    %22 = vector.broadcast %cst_17 : f32 to vector<16x128xf32>
    %23 = arith.maximumf %21, %22 : vector<16x128xf32>
    %24 = arith.truncf %23 : vector<16x128xf32> to vector<16x128xbf16>
    %c0_18 = arith.constant 0 : index
    %c0_19 = arith.constant 0 : index
    %25 = vector.load %arg7[%c0_18, %c0_19] : memref<128x128xbf16, #tpu.memory_space<vmem>>, vector<128x128xbf16>
    %cst_20 = arith.constant dense<0.000000e+00> : vector<16x128xf32>
    %26 = tpu.matmul %24, %25, %cst_20 {dimension_numbers = #tpu.dot_dimension_numbers<[1], [0], [0], [1], [0, 0, 1, 1], [], []>} : vector<16x128xbf16>, vector<128x128xbf16>, vector<16x128xf32> -> vector<16x128xf32>
    %c0_21 = arith.constant 0 : index
    %c0_22 = arith.constant 0 : index
    %27 = vector.load %arg8[%c0_21, %c0_22] : memref<1x128xf32, #tpu.memory_space<vmem>>, vector<1x128xf32>
    %28 = vector.broadcast %27 : vector<1x128xf32> to vector<16x128xf32>
    %29 = arith.addf %26, %28 : vector<16x128xf32>
    %cst_23 = arith.constant 0.000000e+00 : f32
    %30 = vector.broadcast %cst_23 : f32 to vector<16x128xf32>
    %31 = arith.maximumf %29, %30 : vector<16x128xf32>
    %32 = arith.truncf %31 : vector<16x128xf32> to vector<16x128xbf16>
    %c0_24 = arith.constant 0 : index
    %c0_25 = arith.constant 0 : index
    %33 = vector.load %arg9[%c0_24, %c0_25] : memref<128x128xbf16, #tpu.memory_space<vmem>>, vector<128x128xbf16>
    %cst_26 = arith.constant dense<0.000000e+00> : vector<16x128xf32>
    %34 = tpu.matmul %32, %33, %cst_26 {dimension_numbers = #tpu.dot_dimension_numbers<[1], [0], [0], [1], [0, 0, 1, 1], [], []>} : vector<16x128xbf16>, vector<128x128xbf16>, vector<16x128xf32> -> vector<16x128xf32>
    %c0_27 = arith.constant 0 : index
    %c0_28 = arith.constant 0 : index
    %35 = vector.load %arg10[%c0_27, %c0_28] : memref<1x128xf32, #tpu.memory_space<vmem>>, vector<1x128xf32>
    %36 = vector.broadcast %35 : vector<1x128xf32> to vector<16x128xf32>
    %37 = arith.addf %34, %36 : vector<16x128xf32>
    %cst_29 = arith.constant 0.000000e+00 : f32
    %38 = vector.broadcast %cst_29 : f32 to vector<16x128xf32>
    %39 = arith.maximumf %37, %38 : vector<16x128xf32>
    %40 = arith.truncf %39 : vector<16x128xf32> to vector<16x128xbf16>
    %c0_30 = arith.constant 0 : index
    %c0_31 = arith.constant 0 : index
    %41 = vector.load %arg11[%c0_30, %c0_31] : memref<128x128xbf16, #tpu.memory_space<vmem>>, vector<128x128xbf16>
    %cst_32 = arith.constant dense<0.000000e+00> : vector<16x128xf32>
    %42 = tpu.matmul %40, %41, %cst_32 {dimension_numbers = #tpu.dot_dimension_numbers<[1], [0], [0], [1], [0, 0, 1, 1], [], []>} : vector<16x128xbf16>, vector<128x128xbf16>, vector<16x128xf32> -> vector<16x128xf32>
    %c0_33 = arith.constant 0 : index
    %c0_34 = arith.constant 0 : index
    %43 = vector.load %arg12[%c0_33, %c0_34] : memref<1x128xf32, #tpu.memory_space<vmem>>, vector<1x128xf32>
    %44 = vector.broadcast %43 : vector<1x128xf32> to vector<16x128xf32>
    %45 = arith.addf %42, %44 : vector<16x128xf32>
    %cst_35 = arith.constant 0.000000e+00 : f32
    %46 = vector.broadcast %cst_35 : f32 to vector<16x128xf32>
    %47 = arith.maximumf %45, %46 : vector<16x128xf32>
    %48 = arith.truncf %47 : vector<16x128xf32> to vector<16x128xbf16>
    %c0_36 = arith.constant 0 : index
    %c0_37 = arith.constant 0 : index
    %49 = vector.load %arg13[%c0_36, %c0_37] : memref<128x128xbf16, #tpu.memory_space<vmem>>, vector<128x128xbf16>
    %cst_38 = arith.constant dense<0.000000e+00> : vector<16x128xf32>
    %50 = tpu.matmul %48, %49, %cst_38 {dimension_numbers = #tpu.dot_dimension_numbers<[1], [0], [0], [1], [0, 0, 1, 1], [], []>} : vector<16x128xbf16>, vector<128x128xbf16>, vector<16x128xf32> -> vector<16x128xf32>
    %c0_39 = arith.constant 0 : index
    %c0_40 = arith.constant 0 : index
    %51 = vector.load %arg14[%c0_39, %c0_40] : memref<1x128xf32, #tpu.memory_space<vmem>>, vector<1x128xf32>
    %52 = vector.broadcast %51 : vector<1x128xf32> to vector<16x128xf32>
    %53 = arith.addf %50, %52 : vector<16x128xf32>
    %cst_41 = arith.constant 0.000000e+00 : f32
    %54 = vector.broadcast %cst_41 : f32 to vector<16x128xf32>
    %55 = arith.maximumf %53, %54 : vector<16x128xf32>
    %56 = arith.truncf %55 : vector<16x128xf32> to vector<16x128xbf16>
    %c0_42 = arith.constant 0 : index
    %c0_43 = arith.constant 0 : index
    %57 = vector.load %arg15[%c0_42, %c0_43] : memref<128x128xbf16, #tpu.memory_space<vmem>>, vector<128x128xbf16>
    %cst_44 = arith.constant dense<0.000000e+00> : vector<16x128xf32>
    %58 = tpu.matmul %56, %57, %cst_44 {dimension_numbers = #tpu.dot_dimension_numbers<[1], [0], [0], [1], [0, 0, 1, 1], [], []>} : vector<16x128xbf16>, vector<128x128xbf16>, vector<16x128xf32> -> vector<16x128xf32>
    %c0_45 = arith.constant 0 : index
    %c0_46 = arith.constant 0 : index
    %59 = vector.load %arg16[%c0_45, %c0_46] : memref<1x128xf32, #tpu.memory_space<vmem>>, vector<1x128xf32>
    %60 = vector.broadcast %59 : vector<1x128xf32> to vector<16x128xf32>
    %61 = arith.addf %58, %60 : vector<16x128xf32>
    %cst_47 = arith.constant 0.000000e+00 : f32
    %62 = vector.broadcast %cst_47 : f32 to vector<16x128xf32>
    %63 = arith.maximumf %61, %62 : vector<16x128xf32>
    %64 = arith.truncf %63 : vector<16x128xf32> to vector<16x128xbf16>
    %c0_48 = arith.constant 0 : index
    %c0_49 = arith.constant 0 : index
    %65 = vector.load %arg17[%c0_48, %c0_49] : memref<16x128xbf16, #tpu.memory_space<vmem>>, vector<16x128xbf16>
    tpu.vector_store %arg17[%c0_48, %c0_49], %64 {strides = array<i32>} : memref<16x128xbf16, #tpu.memory_space<vmem>>, vector<16x128xbf16>,
    return
  }
}

</mosaic_0001>

<llo_original>
// kernel: drdnet_forward.21
$region0: #{drdnet_forward.21}
  #allocation0 [shape = 'u32[]', space=smem, size = 0x4, offset = 0x4, fixed_abs, tag = 'smem constant byte address 0x4 - core index']
  #allocation1 [shape = 'u32[144,128]{1,0:T(1,128)}', space=vmem, size = 0x12000, scoped, tag = 'internal scratch']
  %s0 = inlined_call_operand.vmem [shape: bf16[512,384], index: 0, kind: input, shape index: {}]
  %s1 = inlined_call_operand.vmem [shape: bf16[384,128], index: 1, kind: input, shape index: {}]
  %s2 = inlined_call_operand.vmem [shape: f32[1,128], index: 2, kind: input, shape index: {}]
  %s3 = inlined_call_operand.vmem [shape: bf16[512,128], index: 3, kind: output, shape index: {}]
  %s4 = sld [smem:[#allocation0]]
  $region22: #{drdnet_forward.21} parent=0
    _
  %s6 = ssub.s32 1, %s4
  %s7 = scalar_select 0, %s6, %s4
  // Predicated region
  $region2: #{drdnet_forward.21} parent=0 // pred_check
    _
  $region3: #{drdnet_forward.21} parent=0 // pred_check_branch
    %9 = sbr.rel (0) target = $region5
  $region4: #{drdnet_forward.21} parent=0 // pred_region
    _
  $region5: #{drdnet_forward.21} parent=0 // pred_fallthru
    _
  // Predicated region
  $region6: #{drdnet_forward.21} parent=0 // pred_check
    _
  $region7: #{drdnet_forward.21} parent=0 // pred_check_branch
    %11 = sbr.rel (0) target = $region9
  $region8: #{drdnet_forward.21} parent=0 // pred_region
    _
  $region9: #{drdnet_forward.21} parent=0 // pred_fallthru
    _
  // Predicated region
  $region10: #{drdnet_forward.21} parent=0 // pred_check
    _
  $region11: #{drdnet_forward.21} parent=0 // pred_check_branch
    %13 = sbr.rel (0) target = $region13
  $region12: #{drdnet_forward.21} parent=0 // pred_region
    _
  $region13: #{drdnet_forward.21} parent=0 // pred_fallthru
    _
  %v15 = vld [vmem:[%s0] sm:$0xff]
  %v16 = vld [vmem:[%s0 + $0x8] sm:$0xf]
  %v17 = vld [vmem:[%s0 + $0xc] sm:$0xff]
  %v18 = vld [vmem:[%s0 + $0x14] sm:$0xf]
  %v19 = vld [vmem:[%s0 + $0x18] sm:$0xff]
  %v20 = vld [vmem:[%s0 + $0x20] sm:$0xf]
  %v21 = vld [vmem:[%s0 + $0x24] sm:$0xff]
  %v22 = vld [vmem:[%s0 + $0x2c] sm:$0xf]
  %v23 = vld [vmem:[%s0 + $0x30] sm:$0xff]
  %v24 = vld [vmem:[%s0 + $0x38] sm:$0xf]
  %v25 = vld [vmem:[%s0 + $0x3c] sm:$0xff]
  %v26 = vld [vmem:[%s0 + $0x44] sm:$0xf]
  %v27 = vld [vmem:[%s0 + $0x48] sm:$0xff]
  %v28 = vld [vmem:[%s0 + $0x50] sm:$0xf]
  %v29 = vld [vmem:[%s0 + $0x54] sm:$0xff]
  %v30 = vld [vmem:[%s0 + $0x5c] sm:$0xf]
  %v31 = vld [vmem:[%s0 + $0x60] sm:$0xff]
  %v32 = vld [vmem:[%s0 + $0x68] sm:$0xf]
  %v33 = vld [vmem:[%s0 + $0x6c] sm:$0xff]
  %v34 = vld [vmem:[%s0 + $0x74] sm:$0xf]
  %v35 = vld [vmem:[%s0 + $0x78] sm:$0xff]
  %v36 = vld [vmem:[%s0 + $0x80] sm:$0xf]
  %v37 = vld [vmem:[%s0 + $0x84] sm:$0xff]
  %v38 = vld [vmem:[%s0 + $0x8c] sm:$0xf]
  %v39 = vld [vmem:[%s0 + $0x90] sm:$0xff]
  %v40 = vld [vmem:[%s0 + $0x98] sm:$0xf]
  %v41 = vld [vmem:[%s0 + $0x9c] sm:$0xff]
  %v42 = vld [vmem:[%s0 + $0xa4] sm:$0xf]
  %v43 = vld [vmem:[%s0 + $0xa8] sm:$0xff]
  %v44 = vld [vmem:[%s0 + $0xb0] sm:$0xf]
  %v45 = vld [vmem:[%s0 + $0xb4] sm:$0xff]
  %v46 = vld [vmem:[%s0 + $0xbc] sm:$0xf]
  %v47 = vld [vmem:[%s0 + $0xc0] sm:$0xff]
  %v48 = vld [vmem:[%s0 + $0xc8] sm:$0xf]
  %v49 = vld [vmem:[%s0 + $0xcc] sm:$0xff]
  %v50 = vld [vmem:[%s0 + $0xd4] sm:$0xf]
  %v51 = vld [vmem:[%s0 + $0xd8] sm:$0xff]
  %v52 = vld [vmem:[%s0 + $0xe0] sm:$0xf]
  %v53 = vld [vmem:[%s0 + $0xe4] sm:$0xff]
  %v54 = vld [vmem:[%s0 + $0xec] sm:$0xf]
  %v55 = vld [vmem:[%s0 + $0xf0] sm:$0xff]
  %v56 = vld [vmem:[%s0 + $0xf8] sm:$0xf]
  %v57 = vld [vmem:[%s0 + $0xfc] sm:$0xff]
  %v58 = vld [vmem:[%s0 + $0x104] sm:$0xf]
  %v59 = vld [vmem:[%s0 + $0x108] sm:$0xff]
  %v60 = vld [vmem:[%s0 + $0x110] sm:$0xf]
  %v61 = vld [vmem:[%s0 + $0x114] sm:$0xff]
  %v62 = vld [vmem:[%s0 + $0x11c] sm:$0xf]
  %v63 = vld [vmem:[%s0 + $0x120] sm:$0xff]
  %v64 = vld [vmem:[%s0 + $0x128] sm:$0xf]
  %v65 = vld [vmem:[%s0 + $0x12c] sm:$0xff]
  %v66 = vld [vmem:[%s0 + $0x134] sm:$0xf]
  %v67 = vld [vmem:[%s0 + $0x138] sm:$0xff]
  %v68 = vld [vmem:[%s0 + $0x140] sm:$0xf]
  %v69 = vld [vmem:[%s0 + $0x144] sm:$0xff]
  %v70 = vld [vmem:[%s0 + $0x14c] sm:$0xf]
  %v71 = vld [vmem:[%s0 + $0x150] sm:$0xff]
  %v72 = vld [vmem:[%s0 + $0x158] sm:$0xf]
  %v73 = vld [vmem:[%s0 + $0x15c] sm:$0xff]
  %v74 = vld [vmem:[%s0 + $0x164] sm:$0xf]
  %v75 = vld [vmem:[%s0 + $0x168] sm:$0xff]
  %v76 = vld [vmem:[%s0 + $0x170] sm:$0xf]
  %v77 = vld [vmem:[%s0 + $0x174] sm:$0xff]
  %v78 = vld [vmem:[%s0 + $0x17c] sm:$0xf]
  %v79 = vld [vmem:[%s0 + $0x180] sm:$0xff]
  %v80 = vld [vmem:[%s0 + $0x188] sm:$0xf]
  %v81 = vld [vmem:[%s0 + $0x18c] sm:$0xff]
  %v82 = vld [vmem:[%s0 + $0x194] sm:$0xf]
  %v83 = vld [vmem:[%s0 + $0x198] sm:$0xff]
  %v84 = vld [vmem:[%s0 + $0x1a0] sm:$0xf]
  %v85 = vld [vmem:[%s0 + $0x1a4] sm:$0xff]
  %v86 = vld [vmem:[%s0 + $0x1ac] sm:$0xf]
  %v87 = vld [vmem:[%s0 + $0x1b0] sm:$0xff]
  %v88 = vld [vmem:[%s0 + $0x1b8] sm:$0xf]
  %v89 = vld [vmem:[%s0 + $0x1bc] sm:$0xff]
  %v90 = vld [vmem:[%s0 + $0x1c4] sm:$0xf]
  %v91 = vld [vmem:[%s0 + $0x1c8] sm:$0xff]
  %v92 = vld [vmem:[%s0 + $0x1d0] sm:$0xf]
  %v93 = vld [vmem:[%s0 + $0x1d4] sm:$0xff]
  %v94 = vld [vmem:[%s0 + $0x1dc] sm:$0xf]
  %v95 = vld [vmem:[%s0 + $0x1e0] sm:$0xff]
  %v96 = vld [vmem:[%s0 + $0x1e8] sm:$0xf]
  %v97 = vld [vmem:[%s0 + $0x1ec] sm:$0xff]
  %v98 = vld [vmem:[%s0 + $0x1f4] sm:$0xf]
  %v99 = vld [vmem:[%s0 + $0x1f8] sm:$0xff]
  %v100 = vld [vmem:[%s0 + $0x200] sm:$0xf]
  %v101 = vld [vmem:[%s0 + $0x204] sm:$0xff]
  %v102 = vld [vmem:[%s0 + $0x20c] sm:$0xf]
  %v103 = vld [vmem:[%s0 + $0x210] sm:$0xff]
  %v104 = vld [vmem:[%s0 + $0x218] sm:$0xf]
  %v105 = vld [vmem:[%s0 + $0x21c] sm:$0xff]
  %v106 = vld [vmem:[%s0 + $0x224] sm:$0xf]
  %v107 = vld [vmem:[%s0 + $0x228] sm:$0xff]
  %v108 = vld [vmem:[%s0 + $0x230] sm:$0xf]
  %v109 = vld [vmem:[%s0 + $0x234] sm:$0xff]
  %v110 = vld [vmem:[%s0 + $0x23c] sm:$0xf]
  %v111 = vld [vmem:[%s0 + $0x240] sm:$0xff]
  %v112 = vld [vmem:[%s0 + $0x248] sm:$0xf]
  %v113 = vld [vmem:[%s0 + $0x24c] sm:$0xff]
  %v114 = vld [vmem:[%s0 + $0x254] sm:$0xf]
  %v115 = vld [vmem:[%s0 + $0x258] sm:$0xff]
  %v116 = vld [vmem:[%s0 + $0x260] sm:$0xf]
  %v117 = vld [vmem:[%s0 + $0x264] sm:$0xff]
  %v118 = vld [vmem:[%s0 + $0x26c] sm:$0xf]
  %v119 = vld [vmem:[%s0 + $0x270] sm:$0xff]
  %v120 = vld [vmem:[%s0 + $0x278] sm:$0xf]
  %v121 = vld [vmem:[%s0 + $0x27c] sm:$0xff]
  %v122 = vld [vmem:[%s0 + $0x284] sm:$0xf]
  %v123 = vld [vmem:[%s0 + $0x288] sm:$0xff]
  %v124 = vld [vmem:[%s0 + $0x290] sm:$0xf]
  %v125 = vld [vmem:[%s0 + $0x294] sm:$0xff]
  %v126 = vld [vmem:[%s0 + $0x29c] sm:$0xf]
  %v127 = vld [vmem:[%s0 + $0x2a0] sm:$0xff]
  %v128 = vld [vmem:[%s0 + $0x2a8] sm:$0xf]
  %v129 = vld [vmem:[%s0 + $0x2ac] sm:$0xff]
  %v130 = vld [vmem:[%s0 + $0x2b4] sm:$0xf]
  %v131 = vld [vmem:[%s0 + $0x2b8] sm:$0xff]
  %v132 = vld [vmem:[%s0 + $0x2c0] sm:$0xf]
  %v133 = vld [vmem:[%s0 + $0x2c4] sm:$0xff]
  %v134 = vld [vmem:[%s0 + $0x2cc] sm:$0xf]
  %v135 = vld [vmem:[%s0 + $0x2d0] sm:$0xff]
  %v136 = vld [vmem:[%s0 + $0x2d8] sm:$0xf]
  %v137 = vld [vmem:[%s0 + $0x2dc] sm:$0xff]
  %v138 = vld [vmem:[%s0 + $0x2e4] sm:$0xf]
  %v139 = vld [vmem:[%s0 + $0x2e8] sm:$0xff]
  %v140 = vld [vmem:[%s0 + $0x2f0] sm:$0xf]
  %v141 = vld [vmem:[%s0 + $0x2f4] sm:$0xff]
  %v142 = vld [vmem:[%s0 + $0x2fc] sm:$0xf]
  %v143 = vld [vmem:[%s1] sm:$0xf]
  %v144 = vld [vmem:[%s1 + $0x4] sm:$0xf]
  %v145 = vld [vmem:[%s1 + $0x8] sm:$0xf]
  %v146 = vld [vmem:[%s1 + $0xc] sm:$0xf]
  %v147 = vld [vmem:[%s1 + $0x10] sm:$0xf]
  %v148 = vld [vmem:[%s1 + $0x14] sm:$0xf]
  %v149 = vld [vmem:[%s1 + $0x18] sm:$0xf]
  %v150 = vld [vmem:[%s1 + $0x1c] sm:$0xf]
  %v151 = vld [vmem:[%s1 + $0x20] sm:$0xf]
  %v152 = vld [vmem:[%s1 + $0x24] sm:$0xf]
  %v153 = vld [vmem:[%s1 + $0x28] sm:$0xf]
  %v154 = vld [vmem:[%s1 + $0x2c] sm:$0xf]
  %v155 = vld [vmem:[%s1 + $0x30] sm:$0xf]
  %v156 = vld [vmem:[%s1 + $0x34] sm:$0xf]
  %v157 = vld [vmem:[%s1 + $0x38] sm:$0xf]
  %v158 = vld [vmem:[%s1 + $0x3c] sm:$0xf]
  %v159 = vld [vmem:[%s1 + $0x40] sm:$0xf]
  %v160 = vld [vmem:[%s1 + $0x44] sm:$0xf]
  %v161 = vld [vmem:[%s1 + $0x48] sm:$0xf]
  %v162 = vld [vmem:[%s1 + $0x4c] sm:$0xf]
  %v163 = vld [vmem:[%s1 + $0x50] sm:$0xf]
  %v164 = vld [vmem:[%s1 + $0x54] sm:$0xf]
  %v165 = vld [vmem:[%s1 + $0x58] sm:$0xf]
  %v166 = vld [vmem:[%s1 + $0x5c] sm:$0xf]
  %v167 = vld [vmem:[%s1 + $0x60] sm:$0xf]
  %v168 = vld [vmem:[%s1 + $0x64] sm:$0xf]
  %v169 = vld [vmem:[%s1 + $0x68] sm:$0xf]
  %v170 = vld [vmem:[%s1 + $0x6c] sm:$0xf]
  %v171 = vld [vmem:[%s1 + $0x70] sm:$0xf]
  %v172 = vld [vmem:[%s1 + $0x74] sm:$0xf]
  %v173 = vld [vmem:[%s1 + $0x78] sm:$0xf]
  %v174 = vld [vmem:[%s1 + $0x7c] sm:$0xf]
  %v175 = vld [vmem:[%s1 + $0x80] sm:$0xf]
  %v176 = vld [vmem:[%s1 + $0x84] sm:$0xf]
  %v177 = vld [vmem:[%s1 + $0x88] sm:$0xf]
  %v178 = vld [vmem:[%s1 + $0x8c] sm:$0xf]
  %v179 = vld [vmem:[%s1 + $0x90] sm:$0xf]
  %v180 = vld [vmem:[%s1 + $0x94] sm:$0xf]
  %v181 = vld [vmem:[%s1 + $0x98] sm:$0xf]
  %v182 = vld [vmem:[%s1 + $0x9c] sm:$0xf]
  %v183 = vld [vmem:[%s1 + $0xa0] sm:$0xf]
  %v184 = vld [vmem:[%s1 + $0xa4] sm:$0xf]
  %v185 = vld [vmem:[%s1 + $0xa8] sm:$0xf]
  %v186 = vld [vmem:[%s1 + $0xac] sm:$0xf]
  %v187 = vld [vmem:[%s1 + $0xb0] sm:$0xf]
  %v188 = vld [vmem:[%s1 + $0xb4] sm:$0xf]
  %v189 = vld [vmem:[%s1 + $0xb8] sm:$0xf]
  %v190 = vld [vmem:[%s1 + $0xbc] sm:$0xf]
  %v191 = vld [vmem:[%s2] sm:$0x1]
  %v193 = vlaneseq
  %v194 = vshrl.u32 %v193, 7
  %v195 = vsub.s32 0, %v194
  %v196 = vrot.slane %v191, %v195
  %v326 = vunpack.c.l.b16 %v15
  %v327 = vunpack.c.h.b16 %v15
  %v328 = vunpack.c.l.b16 %v16
  %v329 = vunpack.c.l.b16 %v17
  %v330 = vunpack.c.h.b16 %v17
  %v331 = vunpack.c.l.b16 %v18
  %v332 = vunpack.c.l.b16 %v19
  %v333 = vunpack.c.h.b16 %v19
  %v334 = vunpack.c.l.b16 %v20
  %v335 = vunpack.c.l.b16 %v21
  %v336 = vunpack.c.h.b16 %v21
  %v337 = vunpack.c.l.b16 %v22
  %v338 = vunpack.c.l.b16 %v23
  %v339 = vunpack.c.h.b16 %v23
  %v340 = vunpack.c.l.b16 %v24
  %v341 = vunpack.c.l.b16 %v25
  %v342 = vunpack.c.h.b16 %v25
  %v343 = vunpack.c.l.b16 %v26
  %v344 = vunpack.c.l.b16 %v27
  %v345 = vunpack.c.h.b16 %v27
  %v346 = vunpack.c.l.b16 %v28
  %v347 = vunpack.c.l.b16 %v29
  %v348 = vunpack.c.h.b16 %v29
  %v349 = vunpack.c.l.b16 %v30
  %v350 = vunpack.c.l.b16 %v31
  %v351 = vunpack.c.h.b16 %v31
  %v352 = vunpack.c.l.b16 %v32
  %v353 = vunpack.c.l.b16 %v33
  %v354 = vunpack.c.h.b16 %v33
  %v355 = vunpack.c.l.b16 %v34
  %v356 = vunpack.c.l.b16 %v35
  %v357 = vunpack.c.h.b16 %v35
  %v358 = vunpack.c.l.b16 %v36
  %v359 = vunpack.c.l.b16 %v37
  %v360 = vunpack.c.h.b16 %v37
  %v361 = vunpack.c.l.b16 %v38
  %v362 = vunpack.c.l.b16 %v39
  %v363 = vunpack.c.h.b16 %v39
  %v364 = vunpack.c.l.b16 %v40
  %v365 = vunpack.c.l.b16 %v41
  %v366 = vunpack.c.h.b16 %v41
  %v367 = vunpack.c.l.b16 %v42
  %v368 = vunpack.c.l.b16 %v43
  %v369 = vunpack.c.h.b16 %v43
  %v370 = vunpack.c.l.b16 %v44
  %v371 = vunpack.c.l.b16 %v45
  %v372 = vunpack.c.h.b16 %v45
  %v373 = vunpack.c.l.b16 %v46
  %v374 = vunpack.c.l.b16 %v47
  %v375 = vunpack.c.h.b16 %v47
  %v376 = vunpack.c.l.b16 %v48
  %v377 = vunpack.c.l.b16 %v49
  %v378 = vunpack.c.h.b16 %v49
  %v379 = vunpack.c.l.b16 %v50
  %v380 = vunpack.c.l.b16 %v51
  %v381 = vunpack.c.h.b16 %v51
  %v382 = vunpack.c.l.b16 %v52
  %v383 = vunpack.c.l.b16 %v53
  %v384 = vunpack.c.h.b16 %v53
  %v385 = vunpack.c.l.b16 %v54
  %v386 = vunpack.c.l.b16 %v55
  %v387 = vunpack.c.h.b16 %v55
  %v388 = vunpack.c.l.b16 %v56
  %v389 = vunpack.c.l.b16 %v57
  %v390 = vunpack.c.h.b16 %v57
  %v391 = vunpack.c.l.b16 %v58
  %v392 = vunpack.c.l.b16 %v59
  %v393 = vunpack.c.h.b16 %v59
  %v394 = vunpack.c.l.b16 %v60
  %v395 = vunpack.c.l.b16 %v61
  %v396 = vunpack.c.h.b16 %v61
  %v397 = vunpack.c.l.b16 %v62
  %v398 = vunpack.c.l.b16 %v63
  %v399 = vunpack.c.h.b16 %v63
  %v400 = vunpack.c.l.b16 %v64
  %v401 = vunpack.c.l.b16 %v65
  %v402 = vunpack.c.h.b16 %v65
  %v403 = vunpack.c.l.b16 %v66
  %v404 = vunpack.c.l.b16 %v67
  %v405 = vunpack.c.h.b16 %v67
  %v406 = vunpack.c.l.b16 %v68
  %v407 = vunpack.c.l.b16 %v69
  %v408 = vunpack.c.h.b16 %v69
  %v409 = vunpack.c.l.b16 %v70
  %v410 = vunpack.c.l.b16 %v71
  %v411 = vunpack.c.h.b16 %v71
  %v412 = vunpack.c.l.b16 %v72
  %v413 = vunpack.c.l.b16 %v73
  %v414 = vunpack.c.h.b16 %v73
  %v415 = vunpack.c.l.b16 %v74
  %v416 = vunpack.c.l.b16 %v75
  %v417 = vunpack.c.h.b16 %v75
  %v418 = vunpack.c.l.b16 %v76
  %v419 = vunpack.c.l.b16 %v77
  %v420 = vunpack.c.h.b16 %v77
  %v421 = vunpack.c.l.b16 %v78
  %v422 = vunpack.c.l.b16 %v79
  %v423 = vunpack.c.h.b16 %v79
  %v424 = vunpack.c.l.b16 %v80
  %v425 = vunpack.c.l.b16 %v81
  %v426 = vunpack.c.h.b16 %v81
  %v427 = vunpack.c.l.b16 %v82
  %v428 = vunpack.c.l.b16 %v83
  %v429 = vunpack.c.h.b16 %v83
  %v430 = vunpack.c.l.b16 %v84
  %v431 = vunpack.c.l.b16 %v85
  %v432 = vunpack.c.h.b16 %v85
  %v433 = vunpack.c.l.b16 %v86
  %v434 = vunpack.c.l.b16 %v87
  %v435 = vunpack.c.h.b16 %v87
  %v436 = vunpack.c.l.b16 %v88
  %v437 = vunpack.c.l.b16 %v89
  %v438 = vunpack.c.h.b16 %v89
  %v439 = vunpack.c.l.b16 %v90
  %v440 = vunpack.c.l.b16 %v91
  %v441 = vunpack.c.h.b16 %v91
  %v442 = vunpack.c.l.b16 %v92
  %v443 = vunpack.c.l.b16 %v93
  %v444 = vunpack.c.h.b16 %v93
  %v445 = vunpack.c.l.b16 %v94
  %v446 = vunpack.c.l.b16 %v95
  %v447 = vunpack.c.h.b16 %v95
  %v448 = vunpack.c.l.b16 %v96
  %v449 = vunpack.c.l.b16 %v97
  %v450 = vunpack.c.h.b16 %v97
  %v451 = vunpack.c.l.b16 %v98
  %v452 = vunpack.c.l.b16 %v99
  %v453 = vunpack.c.h.b16 %v99
  %v454 = vunpack.c.l.b16 %v100
  %v455 = vunpack.c.l.b16 %v101
  %v456 = vunpack.c.h.b16 %v101
  %v457 = vunpack.c.l.b16 %v102
  %v458 = vunpack.c.l.b16 %v103
  %v459 = vunpack.c.h.b16 %v103
  %v460 = vunpack.c.l.b16 %v104
  %v461 = vunpack.c.l.b16 %v105
  %v462 = vunpack.c.h.b16 %v105
  %v463 = vunpack.c.l.b16 %v106
  %v464 = vunpack.c.l.b16 %v107
  %v465 = vunpack.c.h.b16 %v107
  %v466 = vunpack.c.l.b16 %v108
  %v467 = vunpack.c.l.b16 %v109
  %v468 = vunpack.c.h.b16 %v109
  %v469 = vunpack.c.l.b16 %v110
  %v470 = vunpack.c.l.b16 %v111
  %v471 = vunpack.c.h.b16 %v111
  %v472 = vunpack.c.l.b16 %v112
  %v473 = vunpack.c.l.b16 %v113
  %v474 = vunpack.c.h.b16 %v113
  %v475 = vunpack.c.l.b16 %v114
  %v476 = vunpack.c.l.b16 %v115
  %v477 = vunpack.c.h.b16 %v115
  %v478 = vunpack.c.l.b16 %v116
  %v479 = vunpack.c.l.b16 %v117
  %v480 = vunpack.c.h.b16 %v117
  %v481 = vunpack.c.l.b16 %v118
  %v482 = vunpack.c.l.b16 %v119
  %v483 = vunpack.c.h.b16 %v119
  %v484 = vunpack.c.l.b16 %v120
  %v485 = vunpack.c.l.b16 %v121
  %v486 = vunpack.c.h.b16 %v121
  %v487 = vunpack.c.l.b16 %v122
  %v488 = vunpack.c.l.b16 %v123
  %v489 = vunpack.c.h.b16 %v123
  %v490 = vunpack.c.l.b16 %v124
  %v491 = vunpack.c.l.b16 %v125
  %v492 = vunpack.c.h.b16 %v125
  %v493 = vunpack.c.l.b16 %v126
  %v494 = vunpack.c.l.b16 %v127
  %v495 = vunpack.c.h.b16 %v127
  %v496 = vunpack.c.l.b16 %v128
  %v497 = vunpack.c.l.b16 %v129
  %v498 = vunpack.c.h.b16 %v129
  %v499 = vunpack.c.l.b16 %v130
  %v500 = vunpack.c.l.b16 %v131
  %v501 = vunpack.c.h.b16 %v131
  %v502 = vunpack.c.l.b16 %v132
  %v503 = vunpack.c.l.b16 %v133
  %v504 = vunpack.c.h.b16 %v133
  %v505 = vunpack.c.l.b16 %v134
  %v506 = vunpack.c.l.b16 %v135
  %v507 = vunpack.c.h.b16 %v135
  %v508 = vunpack.c.l.b16 %v136
  %v509 = vunpack.c.l.b16 %v137
  %v510 = vunpack.c.h.b16 %v137
  %v511 = vunpack.c.l.b16 %v138
  %v512 = vunpack.c.l.b16 %v139
  %v513 = vunpack.c.h.b16 %v139
  %v514 = vunpack.c.l.b16 %v140
  %v515 = vunpack.c.l.b16 %v141
  %v516 = vunpack.c.h.b16 %v141
  %v517 = vunpack.c.l.b16 %v142
  %v518 = vpack.c.b16 %v329, %v326
  %v519 = vpack.c.b16 %v330, %v327
  %v520 = vpack.c.b16 %v331, %v328
  %v521 = vpack.c.b16 %v335, %v332
  %v522 = vpack.c.b16 %v336, %v333
  %v523 = vpack.c.b16 %v337, %v334
  %v524 = vpack.c.b16 %v341, %v338
  %v525 = vpack.c.b16 %v342, %v339
  %v526 = vpack.c.b16 %v343, %v340
  %v527 = vpack.c.b16 %v347, %v344
  %v528 = vpack.c.b16 %v348, %v345
  %v529 = vpack.c.b16 %v349, %v346
  %v530 = vpack.c.b16 %v353, %v350
  %v531 = vpack.c.b16 %v354, %v351
  %v532 = vpack.c.b16 %v355, %v352
  %v533 = vpack.c.b16 %v359, %v356
  %v534 = vpack.c.b16 %v360, %v357
  %v535 = vpack.c.b16 %v361, %v358
  %v536 = vpack.c.b16 %v365, %v362
  %v537 = vpack.c.b16 %v366, %v363
  %v538 = vpack.c.b16 %v367, %v364
  %v539 = vpack.c.b16 %v371, %v368
  %v540 = vpack.c.b16 %v372, %v369
  %v541 = vpack.c.b16 %v373, %v370
  %v542 = vpack.c.b16 %v377, %v374
  %v543 = vpack.c.b16 %v378, %v375
  %v544 = vpack.c.b16 %v379, %v376
  %v545 = vpack.c.b16 %v383, %v380
  %v546 = vpack.c.b16 %v384, %v381
  %v547 = vpack.c.b16 %v385, %v382
  %v548 = vpack.c.b16 %v389, %v386
  %v549 = vpack.c.b16 %v390, %v387
  %v550 = vpack.c.b16 %v391, %v388
  %v551 = vpack.c.b16 %v395, %v392
  %v552 = vpack.c.b16 %v396, %v393
  %v553 = vpack.c.b16 %v397, %v394
  %v554 = vpack.c.b16 %v401, %v398
  %v555 = vpack.c.b16 %v402, %v399
  %v556 = vpack.c.b16 %v403, %v400
  %v557 = vpack.c.b16 %v407, %v404
  %v558 = vpack.c.b16 %v408, %v405
  %v559 = vpack.c.b16 %v409, %v406
  %v560 = vpack.c.b16 %v413, %v410
  %v561 = vpack.c.b16 %v414, %v411
  %v562 = vpack.c.b16 %v415, %v412
  %v563 = vpack.c.b16 %v419, %v416
  %v564 = vpack.c.b16 %v420, %v417
  %v565 = vpack.c.b16 %v421, %v418
  %v566 = vpack.c.b16 %v425, %v422
  %v567 = vpack.c.b16 %v426, %v423
  %v568 = vpack.c.b16 %v427, %v424
  %v569 = vpack.c.b16 %v431, %v428
  %v570 = vpack.c.b16 %v432, %v429
  %v571 = vpack.c.b16 %v433, %v430
  %v572 = vpack.c.b16 %v437, %v434
  %v573 = vpack.c.b16 %v438, %v435
  %v574 = vpack.c.b16 %v439, %v436
  %v575 = vpack.c.b16 %v443, %v440
  %v576 = vpack.c.b16 %v444, %v441
  %v577 = vpack.c.b16 %v445, %v442
  %v578 = vpack.c.b16 %v449, %v446
  %v579 = vpack.c.b16 %v450, %v447
  %v580 = vpack.c.b16 %v451, %v448
  %v581 = vpack.c.b16 %v455, %v452
  %v582 = vpack.c.b16 %v456, %v453
  %v583 = vpack.c.b16 %v457, %v454
  %v584 = vpack.c.b16 %v461, %v458
  %v585 = vpack.c.b16 %v462, %v459
  %v586 = vpack.c.b16 %v463, %v460
  %v587 = vpack.c.b16 %v467, %v464
  %v588 = vpack.c.b16 %v468, %v465
  %v589 = vpack.c.b16 %v469, %v466
  %v590 = vpack.c.b16 %v473, %v470
  %v591 = vpack.c.b16 %v474, %v471
  %v592 = vpack.c.b16 %v475, %v472
  %v593 = vpack.c.b16 %v479, %v476
  %v594 = vpack.c.b16 %v480, %v477
  %v595 = vpack.c.b16 %v481, %v478
  %v596 = vpack.c.b16 %v485, %v482
  %v597 = vpack.c.b16 %v486, %v483
  %v598 = vpack.c.b16 %v487, %v484
  %v599 = vpack.c.b16 %v491, %v488
  %v600 = vpack.c.b16 %v492, %v489
  %v601 = vpack.c.b16 %v493, %v490
  %v602 = vpack.c.b16 %v497, %v494
  %v603 = vpack.c.b16 %v498, %v495
  %v604 = vpack.c.b16 %v499, %v496
  %v605 = vpack.c.b16 %v503, %v500
  %v606 = vpack.c.b16 %v504, %v501
  %v607 = vpack.c.b16 %v505, %v502
  %v608 = vpack.c.b16 %v509, %v506
  %v609 = vpack.c.b16 %v510, %v507
  %v610 = vpack.c.b16 %v511, %v508
  %v611 = vpack.c.b16 %v515, %v512
  %v612 = vpack.c.b16 %v516, %v513
  %v613 = vpack.c.b16 %v517, %v514
  %v758 = vunpack.c.l.b16 %v143
  %v759 = vunpack.c.l.b16 %v144
  %v760 = vunpack.c.l.b16 %v145
  %v761 = vunpack.c.l.b16 %v146
  %v762 = vunpack.c.l.b16 %v147
  %v763 = vunpack.c.l.b16 %v148
  %v764 = vunpack.c.l.b16 %v149
  %v765 = vunpack.c.l.b16 %v150
  %v766 = vunpack.c.l.b16 %v151
  %v767 = vunpack.c.l.b16 %v152
  %v768 = vunpack.c.l.b16 %v153
  %v769 = vunpack.c.l.b16 %v154
  %v770 = vunpack.c.l.b16 %v155
  %v771 = vunpack.c.l.b16 %v156
  %v772 = vunpack.c.l.b16 %v157
  %v773 = vunpack.c.l.b16 %v158
  %v774 = vunpack.c.l.b16 %v159
  %v775 = vunpack.c.l.b16 %v160
  %v776 = vunpack.c.l.b16 %v161
  %v777 = vunpack.c.l.b16 %v162
  %v778 = vunpack.c.l.b16 %v163
  %v779 = vunpack.c.l.b16 %v164
  %v780 = vunpack.c.l.b16 %v165
  %v781 = vunpack.c.l.b16 %v166
  %v782 = vunpack.c.l.b16 %v167
  %v783 = vunpack.c.l.b16 %v168
  %v784 = vunpack.c.l.b16 %v169
  %v785 = vunpack.c.l.b16 %v170
  %v786 = vunpack.c.l.b16 %v171
  %v787 = vunpack.c.l.b16 %v172
  %v788 = vunpack.c.l.b16 %v173
  %v789 = vunpack.c.l.b16 %v174
  %v790 = vunpack.c.l.b16 %v175
  %v791 = vunpack.c.l.b16 %v176
  %v792 = vunpack.c.l.b16 %v177
  %v793 = vunpack.c.l.b16 %v178
  %v794 = vunpack.c.l.b16 %v179
  %v795 = vunpack.c.l.b16 %v180
  %v796 = vunpack.c.l.b16 %v181
  %v797 = vunpack.c.l.b16 %v182
  %v798 = vunpack.c.l.b16 %v183
  %v799 = vunpack.c.l.b16 %v184
  %v800 = vunpack.c.l.b16 %v185
  %v801 = vunpack.c.l.b16 %v186
  %v802 = vunpack.c.l.b16 %v187
  %v803 = vunpack.c.l.b16 %v188
  %v804 = vunpack.c.l.b16 %v189
  %v805 = vunpack.c.l.b16 %v190
  %v806 = vpack.c.b16 %v759, %v758
  %v807 = vpack.c.b16 %v761, %v760
  %v808 = vpack.c.b16 %v763, %v762
  %v809 = vpack.c.b16 %v765, %v764
  %v810 = vpack.c.b16 %v767, %v766
  %v811 = vpack.c.b16 %v769, %v768
  %v812 = vpack.c.b16 %v771, %v770
  %v813 = vpack.c.b16 %v773, %v772
  %v814 = vpack.c.b16 %v775, %v774
  %v815 = vpack.c.b16 %v777, %v776
  %v816 = vpack.c.b16 %v779, %v778
  %v817 = vpack.c.b16 %v781, %v780
  %v818 = vpack.c.b16 %v783, %v782
  %v819 = vpack.c.b16 %v785, %v784
  %v820 = vpack.c.b16 %v787, %v786
  %v821 = vpack.c.b16 %v789, %v788
  %v822 = vpack.c.b16 %v791, %v790
  %v823 = vpack.c.b16 %v793, %v792
  %v824 = vpack.c.b16 %v795, %v794
  %v825 = vpack.c.b16 %v797, %v796
  %v826 = vpack.c.b16 %v799, %v798
  %v827 = vpack.c.b16 %v801, %v800
  %v828 = vpack.c.b16 %v803, %v802
  %v829 = vpack.c.b16 %v805, %v804
  %854 = vmatprep.subr.bf16.mxu0 0
  %855 = vmatpush1.bf16.msra.mxu0 %v806
  %856 = vmatprep.subr.bf16.mxu0 0
  %857 = vmatpush1.bf16.msra.mxu0 %v807
  %858 = vmatprep.subr.bf16.mxu0 0
  %859 = vmatpush1.bf16.msra.mxu0 %v808
  %860 = vmatprep.subr.bf16.mxu0 0
  %861 = vmatpush1.bf16.msra.mxu0 %v809
  %862 = vmatprep.subr.bf16.mxu0 0
  %863 = vmatpush1.bf16.msra.mxu0 %v810
  %864 = vmatprep.subr.bf16.mxu0 0
  %865 = vmatpush1.bf16.msra.mxu0 %v811
  %866 = vmatprep.subr.bf16.mxu0 0
  %867 = vmatpush1.bf16.msra.mxu0 %v812
  %868 = vmatprep.subr.bf16.mxu0 0
  %869 = vmatpush1.bf16.msra.mxu0 %v813
  %870 = vmatprep.subr.bf16.mxu0 0
  %871 = vmatpush1.bf16.msra.mxu0 %v814
  %872 = vmatprep.subr.bf16.mxu0 0
  %873 = vmatpush1.bf16.msra.mxu0 %v815
  %874 = vmatprep.subr.bf16.mxu0 0
  %875 = vmatpush1.bf16.msra.mxu0 %v816
  %876 = vmatprep.subr.bf16.mxu0 0
  %877 = vmatpush1.bf16.msra.mxu0 %v817
  %878 = vmatprep.subr.bf16.mxu0 0
  %879 = vmatpush1.bf16.msra.mxu0 %v818
  %880 = vmatprep.subr.bf16.mxu0 0
  %881 = vmatpush1.bf16.msra.mxu0 %v819
  %882 = vmatprep.subr.bf16.mxu0 0
  %883 = vmatpush1.bf16.msra.mxu0 %v820
  %884 = vmatprep.subr.bf16.mxu0 0
  %885 = vmatpush1.bf16.msra.mxu0 %v821
  %886 = vmatprep.mubr.bf16.mxu0 %v519
  %887 = vmatmul.mubr.bf16.gmra.mrb[0].mxu0 %v518
  %v888 = vpop.f32.mrb[0].mxu0
  %v889 = vadd.f32 %v196, %v888
  %v890 = vpop.f32.mrb[0].mxu0
  %v891 = vpop.f32.mrb[0].mxu0
  %v892 = vadd.f32 %v196, %v891
  %v893 = vpop.f32.mrb[0].mxu0
  %894 = vmatprep.mubr.bf16.mxu0 %v522
  %895 = vmatmul.mubr.bf16.gmra.mrb[0].mxu0 %v521
  %v896 = vpop.f32.mrb[0].mxu0
  %v897 = vadd.f32 %v196, %v896
  %v898 = vpop.f32.mrb[0].mxu0
  %v899 = vpop.f32.mrb[0].mxu0
  %v900 = vadd.f32 %v196, %v899
  %v901 = vpop.f32.mrb[0].mxu0
  %902 = vmatprep.mubr.bf16.mxu0 %v525
  %903 = vmatmul.mubr.bf16.gmra.mrb[0].mxu0 %v524
  %v904 = vpop.f32.mrb[0].mxu0
  %v905 = vadd.f32 %v196, %v904
  %v906 = vpop.f32.mrb[0].mxu0
  %v907 = vpop.f32.mrb[0].mxu0
  %v908 = vadd.f32 %v196, %v907
  %v909 = vpop.f32.mrb[0].mxu0
  %910 = vmatprep.mubr.bf16.mxu0 %v528
  %911 = vmatmul.mubr.bf16.gmra.mrb[0].mxu0 %v527
  %v912 = vpop.f32.mrb[0].mxu0
  %v913 = vadd.f32 %v196, %v912
  %v914 = vpop.f32.mrb[0].mxu0
  %v915 = vpop.f32.mrb[0].mxu0
  %v916 = vadd.f32 %v196, %v915
  %v917 = vpop.f32.mrb[0].mxu0
  %918 = vmatprep.mubr.bf16.mxu0 %v531
  %919 = vmatmul.mubr.bf16.gmra.mrb[0].mxu0 %v530
  %v920 = vpop.f32.mrb[0].mxu0
  %v921 = vadd.f32 %v196, %v920
  %v922 = vpop.f32.mrb[0].mxu0
  %v923 = vpop.f32.mrb[0].mxu0
  %v924 = vadd.f32 %v196, %v923
  %v925 = vpop.f32.mrb[0].mxu0
  %926 = vmatprep.mubr.bf16.mxu0 %v534
  %927 = vmatmul.mubr.bf16.gmra.mrb[0].mxu0 %v533
  %v928 = vpop.f32.mrb[0].mxu0
  %v929 = vadd.f32 %v196, %v928
  %v930 = vpop.f32.mrb[0].mxu0
  %v931 = vpop.f32.mrb[0].mxu0
  %v932 = vadd.f32 %v196, %v931
  %v933 = vpop.f32.mrb[0].mxu0
  %934 = vmatprep.mubr.bf16.mxu0 %v537
  %935 = vmatmul.mubr.bf16.gmra.mrb[0].mxu0 %v536
  %v936 = vpop.f32.mrb[0].mxu0
  %v937 = vadd.f32 %v196, %v936
  %v938 = vpop.f32.mrb[0].mxu0
  %v939 = vpop.f32.mrb[0].mxu0
  %v940 = vadd.f32 %v196, %v939
  %v941 = vpop.f32.mrb[0].mxu0
  %942 = vmatprep.mubr.bf16.mxu0 %v540
  %943 = vmatmul.mubr.bf16.gmra.mrb[0].mxu0 %v539
  %v944 = vpop.f32.mrb[0].mxu0
  %v945 = vadd.f32 %v196, %v944
  %v946 = vpop.f32.mrb[0].mxu0
  %v947 = vpop.f32.mrb[0].mxu0
  %v948 = vadd.f32 %v196, %v947
  %v949 = vpop.f32.mrb[0].mxu0
  %950 = vmatprep.mubr.bf16.mxu0 %v543
  %951 = vmatmul.mubr.bf16.gmra.mrb[0].mxu0 %v542
  %v952 = vpop.f32.mrb[0].mxu0
  %v953 = vadd.f32 %v196, %v952
  %v954 = vpop.f32.mrb[0].mxu0
  %v955 = vpop.f32.mrb[0].mxu0
  %v956 = vadd.f32 %v196, %v955
  %v957 = vpop.f32.mrb[0].mxu0
  %958 = vmatprep.mubr.bf16.mxu0 %v546
  %959 = vmatmul.mubr.bf16.gmra.mrb[0].mxu0 %v545
  %v960 = vpop.f32.mrb[0].mxu0
  %v961 = vadd.f32 %v196, %v960
  %v962 = vpop.f32.mrb[0].mxu0
  %v963 = vpop.f32.mrb[0].mxu0
  %v964 = vadd.f32 %v196, %v963
  %v965 = vpop.f32.mrb[0].mxu0
  %966 = vmatprep.mubr.bf16.mxu0 %v549
  %967 = vmatmul.mubr.bf16.gmra.mrb[0].mxu0 %v548
  %v968 = vpop.f32.mrb[0].mxu0
  %v969 = vadd.f32 %v196, %v968
  %v970 = vpop.f32.mrb[0].mxu0
  %v971 = vpop.f32.mrb[0].mxu0
  %v972 = vadd.f32 %v196, %v971
  %v973 = vpop.f32.mrb[0].mxu0
  %974 = vmatprep.mubr.bf16.mxu0 %v552
  %975 = vmatmul.mubr.bf16.gmra.mrb[0].mxu0 %v551
  %v976 = vpop.f32.mrb[0].mxu0
  %v977 = vadd.f32 %v196, %v976
  %v978 = vpop.f32.mrb[0].mxu0
  %v979 = vpop.f32.mrb[0].mxu0
  %v980 = vadd.f32 %v196, %v979
  %v981 = vpop.f32.mrb[0].mxu0
  %982 = vmatprep.mubr.bf16.mxu0 %v555
  %983 = vmatmul.mubr.bf16.gmra.mrb[0].mxu0 %v554
  %v984 = vpop.f32.mrb[0].mxu0
  %v985 = vadd.f32 %v196, %v984
  %v986 = vpop.f32.mrb[0].mxu0
  %v987 = vpop.f32.mrb[0].mxu0
  %v988 = vadd.f32 %v196, %v987
  %v989 = vpop.f32.mrb[0].mxu0
  %990 = vmatprep.mubr.bf16.mxu0 %v558
  %991 = vmatmul.mubr.bf16.gmra.mrb[0].mxu0 %v557
  %v992 = vpop.f32.mrb[0].mxu0
  %v993 = vadd.f32 %v196, %v992
  %v994 = vpop.f32.mrb[0].mxu0
  %v995 = vpop.f32.mrb[0].mxu0
  %v996 = vadd.f32 %v196, %v995
  %v997 = vpop.f32.mrb[0].mxu0
  %998 = vmatprep.mubr.bf16.mxu0 %v561
  %999 = vmatmul.mubr.bf16.gmra.mrb[0].mxu0 %v560
  %v1000 = vpop.f32.mrb[0].mxu0
  %v1001 = vadd.f32 %v196, %v1000
  %v1002 = vpop.f32.mrb[0].mxu0
  %v1003 = vpop.f32.mrb[0].mxu0
  %v1004 = vadd.f32 %v196, %v1003
  %v1005 = vpop.f32.mrb[0].mxu0
  %1006 = vmatprep.mubr.bf16.mxu0 %v564
  %1007 = vmatmul.mubr.bf16.gmra.mrb[0].mxu0 %v563
  %v1008 = vpop.f32.mrb[0].mxu0
  %v1009 = vadd.f32 %v196, %v1008
  %v1010 = vpop.f32.mrb[0].mxu0
  %v1011 = vpop.f32.mrb[0].mxu0
  %v1012 = vadd.f32 %v196, %v1011
  %v1013 = vpop.f32.mrb[0].mxu0
  %1014 = vmatprep.mubr.bf16.mxu0 %v567
  %1015 = vmatmul.mubr.bf16.gmra.mrb[0].mxu0 %v566
  %v1016 = vpop.f32.mrb[0].mxu0
  %v1017 = vadd.f32 %v196, %v1016
  %v1018 = vpop.f32.mrb[0].mxu0
  %v1019 = vpop.f32.mrb[0].mxu0
  %v1020 = vadd.f32 %v196, %v1019
  %v1021 = vpop.f32.mrb[0].mxu0
  %1022 = vmatprep.mubr.bf16.mxu0 %v570
  %1023 = vmatmul.mubr.bf16.gmra.mrb[0].mxu0 %v569
  %v1024 = vpop.f32.mrb[0].mxu0
  %v1025 = vadd.f32 %v196, %v1024
  %v1026 = vpop.f32.mrb[0].mxu0
  %v1027 = vpop.f32.mrb[0].mxu0
  %v1028 = vadd.f32 %v196, %v1027
  %v1029 = vpop.f32.mrb[0].mxu0
  %1030 = vmatprep.mubr.bf16.mxu0 %v573
  %1031 = vmatmul.mubr.bf16.gmra.mrb[0].mxu0 %v572
  %v1032 = vpop.f32.mrb[0].mxu0
  %v1033 = vadd.f32 %v196, %v1032
  %v1034 = vpop.f32.mrb[0].mxu0
  %v1035 = vpop.f32.mrb[0].mxu0
  %v1036 = vadd.f32 %v196, %v1035
  %v1037 = vpop.f32.mrb[0].mxu0
  %1038 = vmatprep.mubr.bf16.mxu0 %v576
  %1039 = vmatmul.mubr.bf16.gmra.mrb[0].mxu0 %v575
  %v1040 = vpop.f32.mrb[0].mxu0
  %v1041 = vadd.f32 %v196, %v1040
  %v1042 = vpop.f32.mrb[0].mxu0
  %v1043 = vpop.f32.mrb[0].mxu0
  %v1044 = vadd.f32 %v196, %v1043
  %v1045 = vpop.f32.mrb[0].mxu0
  %1046 = vmatprep.mubr.bf16.mxu0 %v579
  %1047 = vmatmul.mubr.bf16.gmra.mrb[0].mxu0 %v578
  %v1048 = vpop.f32.mrb[0].mxu0
  %v1049 = vadd.f32 %v196, %v1048
  %v1050 = vpop.f32.mrb[0].mxu0
  %v1051 = vpop.f32.mrb[0].mxu0
  %v1052 = vadd.f32 %v196, %v1051
  %v1053 = vpop.f32.mrb[0].mxu0
  %1054 = vmatprep.mubr.bf16.mxu0 %v582
  %1055 = vmatmul.mubr.bf16.gmra.mrb[0].mxu0 %v581
  %v1056 = vpop.f32.mrb[0].mxu0
  %v1057 = vadd.f32 %v196, %v1056
  %v1058 = vpop.f32.mrb[0].mxu0
  %v1059 = vpop.f32.mrb[0].mxu0
  %v1060 = vadd.f32 %v196, %v1059
  %v1061 = vpop.f32.mrb[0].mxu0
  %1062 = vmatprep.mubr.bf16.mxu0 %v585
  %1063 = vmatmul.mubr.bf16.gmra.mrb[0].mxu0 %v584
  %v1064 = vpop.f32.mrb[0].mxu0
  %v1065 = vadd.f32 %v196, %v1064
  %v1066 = vpop.f32.mrb[0].mxu0
  %v1067 = vpop.f32.mrb[0].mxu0
  %v1068 = vadd.f32 %v196, %v1067
  %v1069 = vpop.f32.mrb[0].mxu0
  %1070 = vmatprep.mubr.bf16.mxu0 %v588
  %1071 = vmatmul.mubr.bf16.gmra.mrb[0].mxu0 %v587
  %v1072 = vpop.f32.mrb[0].mxu0
  %v1073 = vadd.f32 %v196, %v1072
  %v1074 = vpop.f32.mrb[0].mxu0
  %v1075 = vpop.f32.mrb[0].mxu0
  %v1076 = vadd.f32 %v196, %v1075
  %v1077 = vpop.f32.mrb[0].mxu0
  %1078 = vmatprep.mubr.bf16.mxu0 %v591
  %1079 = vmatmul.mubr.bf16.gmra.mrb[0].mxu0 %v590
  %v1080 = vpop.f32.mrb[0].mxu0
  %v1081 = vadd.f32 %v196, %v1080
  %v1082 = vpop.f32.mrb[0].mxu0
  %v1083 = vpop.f32.mrb[0].mxu0
  %v1084 = vadd.f32 %v196, %v1083
  %v1085 = vpop.f32.mrb[0].mxu0
  %1086 = vmatprep.mubr.bf16.mxu0 %v594
  %1087 = vmatmul.mubr.bf16.gmra.mrb[0].mxu0 %v593
  %v1088 = vpop.f32.mrb[0].mxu0
  %v1089 = vadd.f32 %v196, %v1088
  %v1090 = vpop.f32.mrb[0].mxu0
  %v1091 = vpop.f32.mrb[0].mxu0
  %v1092 = vadd.f32 %v196, %v1091
  %v1093 = vpop.f32.mrb[0].mxu0
  %1094 = vmatprep.mubr.bf16.mxu0 %v597
  %1095 = vmatmul.mubr.bf16.gmra.mrb[0].mxu0 %v596
  %v1096 = vpop.f32.mrb[0].mxu0
  %v1097 = vadd.f32 %v196, %v1096
  %v1098 = vpop.f32.mrb[0].mxu0
  %v1099 = vpop.f32.mrb[0].mxu0
  %v1100 = vadd.f32 %v196, %v1099
  %v1101 = vpop.f32.mrb[0].mxu0
  %1102 = vmatprep.mubr.bf16.mxu0 %v600
  %1103 = vmatmul.mubr.bf16.gmra.mrb[0].mxu0 %v599
  %v1104 = vpop.f32.mrb[0].mxu0
  %v1105 = vadd.f32 %v196, %v1104
  %v1106 = vpop.f32.mrb[0].mxu0
  %v1107 = vpop.f32.mrb[0].mxu0
  %v1108 = vadd.f32 %v196, %v1107
  %v1109 = vpop.f32.mrb[0].mxu0
  %1110 = vmatprep.mubr.bf16.mxu0 %v603
  %1111 = vmatmul.mubr.bf16.gmra.mrb[0].mxu0 %v602
  %v1112 = vpop.f32.mrb[0].mxu0
  %v1113 = vadd.f32 %v196, %v1112
  %v1114 = vpop.f32.mrb[0].mxu0
  %v1115 = vpop.f32.mrb[0].mxu0
  %v1116 = vadd.f32 %v196, %v1115
  %v1117 = vpop.f32.mrb[0].mxu0
  %1118 = vmatprep.mubr.bf16.mxu0 %v606
  %1119 = vmatmul.mubr.bf16.gmra.mrb[0].mxu0 %v605
  %v1120 = vpop.f32.mrb[0].mxu0
  %v1121 = vadd.f32 %v196, %v1120
  %v1122 = vpop.f32.mrb[0].mxu0
  %v1123 = vpop.f32.mrb[0].mxu0
  %v1124 = vadd.f32 %v196, %v1123
  %v1125 = vpop.f32.mrb[0].mxu0
  %1126 = vmatprep.mubr.bf16.mxu0 %v609
  %1127 = vmatmul.mubr.bf16.gmra.mrb[0].mxu0 %v608
  %v1128 = vpop.f32.mrb[0].mxu0
  %v1129 = vadd.f32 %v196, %v1128
  %v1130 = vpop.f32.mrb[0].mxu0
  %v1131 = vpop.f32.mrb[0].mxu0
  %v1132 = vadd.f32 %v196, %v1131
  %v1133 = vpop.f32.mrb[0].mxu0
  %1134 = vmatprep.mubr.bf16.mxu0 %v612
  %1135 = vmatmul.mubr.bf16.gmra.mrb[0].mxu0 %v611
  %v1136 = vpop.f32.mrb[0].mxu0
  %v1137 = vadd.f32 %v196, %v1136
  %v1138 = vpop.f32.mrb[0].mxu0
  %v1139 = vpop.f32.mrb[0].mxu0
  %v1140 = vadd.f32 %v196, %v1139
  %v1141 = vpop.f32.mrb[0].mxu0
  %1142 = vdwg.mxu0
  %1143 = vmatprep.subr.bf16.mxu0 0
  %1144 = vmatpush1.bf16.msra.mxu0 %v822
  %1145 = vmatprep.subr.bf16.mxu0 0
  %1146 = vmatpush1.bf16.msra.mxu0 %v823
  %1147 = vmatprep.subr.bf16.mxu0 0
  %1148 = vmatpush1.bf16.msra.mxu0 %v824
  %1149 = vmatprep.subr.bf16.mxu0 0
  %1150 = vmatpush1.bf16.msra.mxu0 %v825
  %1151 = vmatprep.subr.bf16.mxu0 0
  %1152 = vmatpush1.bf16.msra.mxu0 %v826
  %1153 = vmatprep.subr.bf16.mxu0 0
  %1154 = vmatpush1.bf16.msra.mxu0 %v827
  %1155 = vmatprep.subr.bf16.mxu0 0
  %1156 = vmatpush1.bf16.msra.mxu0 %v828
  %1157 = vmatprep.subr.bf16.mxu0 0
  %1158 = vmatpush1.bf16.msra.mxu0 %v829
  %1159 = vmatprep.subr.bf16.mxu0 0
  %1160 = vmatpush1.bf16.msra.mxu0 0
  %1161 = vmatprep.subr.bf16.mxu0 0
  %1162 = vmatpush1.bf16.msra.mxu0 0
  %1163 = vmatprep.subr.bf16.mxu0 0
  %1164 = vmatpush1.bf16.msra.mxu0 0
  %1165 = vmatprep.subr.bf16.mxu0 0
  %1166 = vmatpush1.bf16.msra.mxu0 0
  %1167 = vmatprep.subr.bf16.mxu0 0
  %1168 = vmatpush1.bf16.msra.mxu0 0
  %1169 = vmatprep.subr.bf16.mxu0 0
  %1170 = vmatpush1.bf16.msra.mxu0 0
  %1171 = vmatprep.subr.bf16.mxu0 0
  %1172 = vmatpush1.bf16.msra.mxu0 0
  %1173 = vmatprep.subr.bf16.mxu0 0
  %1174 = vmatpush1.bf16.msra.mxu0 0
  %1175 = vmatprep.mubr.bf16.mxu0 0
  %1176 = vmatmul.mubr.bf16.gmra.mrb[0].mxu0 %v520
  %v1177 = vpop.f32.mrb[0].mxu0
  %v1178 = vadd.f32 %v889, %v1177
  %v1179 = vpop.f32.mrb[0].mxu0
  %v1180 = vpop.f32.mrb[0].mxu0
  %v1181 = vadd.f32 %v892, %v1180
  %v1182 = vpop.f32.mrb[0].mxu0
  %1183 = vmatprep.mubr.bf16.mxu0 0
  %1184 = vmatmul.mubr.bf16.gmra.mrb[0].mxu0 %v523
  %v1185 = vpop.f32.mrb[0].mxu0
  %v1186 = vadd.f32 %v897, %v1185
  %v1187 = vpop.f32.mrb[0].mxu0
  %v1188 = vpop.f32.mrb[0].mxu0
  %v1189 = vadd.f32 %v900, %v1188
  %v1190 = vpop.f32.mrb[0].mxu0
  %1191 = vmatprep.mubr.bf16.mxu0 0
  %1192 = vmatmul.mubr.bf16.gmra.mrb[0].mxu0 %v526
  %v1193 = vpop.f32.mrb[0].mxu0
  %v1194 = vadd.f32 %v905, %v1193
  %v1195 = vpop.f32.mrb[0].mxu0
  %v1196 = vpop.f32.mrb[0].mxu0
  %v1197 = vadd.f32 %v908, %v1196
  %v1198 = vpop.f32.mrb[0].mxu0
  %1199 = vmatprep.mubr.bf16.mxu0 0
  %1200 = vmatmul.mubr.bf16.gmra.mrb[0].mxu0 %v529
  %v1201 = vpop.f32.mrb[0].mxu0
  %v1202 = vadd.f32 %v913, %v1201
  %v1203 = vpop.f32.mrb[0].mxu0
  %v1204 = vpop.f32.mrb[0].mxu0
  %v1205 = vadd.f32 %v916, %v1204
  %v1206 = vpop.f32.mrb[0].mxu0
  %1207 = vmatprep.mubr.bf16.mxu0 0
  %1208 = vmatmul.mubr.bf16.gmra.mrb[0].mxu0 %v532
  %v1209 = vpop.f32.mrb[0].mxu0
  %v1210 = vadd.f32 %v921, %v1209
  %v1211 = vpop.f32.mrb[0].mxu0
  %v1212 = vpop.f32.mrb[0].mxu0
  %v1213 = vadd.f32 %v924, %v1212
  %v1214 = vpop.f32.mrb[0].mxu0
  %1215 = vmatprep.mubr.bf16.mxu0 0
  %1216 = vmatmul.mubr.bf16.gmra.mrb[0].mxu0 %v535
  %v1217 = vpop.f32.mrb[0].mxu0
  %v1218 = vadd.f32 %v929, %v1217
  %v1219 = vpop.f32.mrb[0].mxu0
  %v1220 = vpop.f32.mrb[0].mxu0
  %v1221 = vadd.f32 %v932, %v1220
  %v1222 = vpop.f32.mrb[0].mxu0
  %1223 = vmatprep.mubr.bf16.mxu0 0
  %1224 = vmatmul.mubr.bf16.gmra.mrb[0].mxu0 %v538
  %v1225 = vpop.f32.mrb[0].mxu0
  %v1226 = vadd.f32 %v937, %v1225
  %v1227 = vpop.f32.mrb[0].mxu0
  %v1228 = vpop.f32.mrb[0].mxu0
  %v1229 = vadd.f32 %v940, %v1228
  %v1230 = vpop.f32.mrb[0].mxu0
  %1231 = vmatprep.mubr.bf16.mxu0 0
  %1232 = vmatmul.mubr.bf16.gmra.mrb[0].mxu0 %v541
  %v1233 = vpop.f32.mrb[0].mxu0
  %v1234 = vadd.f32 %v945, %v1233
  %v1235 = vpop.f32.mrb[0].mxu0
  %v1236 = vpop.f32.mrb[0].mxu0
  %v1237 = vadd.f32 %v948, %v1236
  %v1238 = vpop.f32.mrb[0].mxu0
  %1239 = vmatprep.mubr.bf16.mxu0 0
  %1240 = vmatmul.mubr.bf16.gmra.mrb[0].mxu0 %v544
  %v1241 = vpop.f32.mrb[0].mxu0
  %v1242 = vadd.f32 %v953, %v1241
  %v1243 = vpop.f32.mrb[0].mxu0
  %v1244 = vpop.f32.mrb[0].mxu0
  %v1245 = vadd.f32 %v956, %v1244
  %v1246 = vpop.f32.mrb[0].mxu0
  %1247 = vmatprep.mubr.bf16.mxu0 0
  %1248 = vmatmul.mubr.bf16.gmra.mrb[0].mxu0 %v547
  %v1249 = vpop.f32.mrb[0].mxu0
  %v1250 = vadd.f32 %v961, %v1249
  %v1251 = vpop.f32.mrb[0].mxu0
  %v1252 = vpop.f32.mrb[0].mxu0
  %v1253 = vadd.f32 %v964, %v1252
  %v1254 = vpop.f32.mrb[0].mxu0
  %1255 = vmatprep.mubr.bf16.mxu0 0
  %1256 = vmatmul.mubr.bf16.gmra.mrb[0].mxu0 %v550
  %v1257 = vpop.f32.mrb[0].mxu0
  %v1258 = vadd.f32 %v969, %v1257
  %v1259 = vpop.f32.mrb[0].mxu0
  %v1260 = vpop.f32.mrb[0].mxu0
  %v1261 = vadd.f32 %v972, %v1260
  %v1262 = vpop.f32.mrb[0].mxu0
  %1263 = vmatprep.mubr.bf16.mxu0 0
  %1264 = vmatmul.mubr.bf16.gmra.mrb[0].mxu0 %v553
  %v1265 = vpop.f32.mrb[0].mxu0
  %v1266 = vadd.f32 %v977, %v1265
  %v1267 = vpop.f32.mrb[0].mxu0
  %v1268 = vpop.f32.mrb[0].mxu0
  %v1269 = vadd.f32 %v980, %v1268
  %v1270 = vpop.f32.mrb[0].mxu0
  %1271 = vmatprep.mubr.bf16.mxu0 0
  %1272 = vmatmul.mubr.bf16.gmra.mrb[0].mxu0 %v556
  %v1273 = vpop.f32.mrb[0].mxu0
  %v1274 = vadd.f32 %v985, %v1273
  %v1275 = vpop.f32.mrb[0].mxu0
  %v1276 = vpop.f32.mrb[0].mxu0
  %v1277 = vadd.f32 %v988, %v1276
  %v1278 = vpop.f32.mrb[0].mxu0
  %1279 = vmatprep.mubr.bf16.mxu0 0
  %1280 = vmatmul.mubr.bf16.gmra.mrb[0].mxu0 %v559
  %v1281 = vpop.f32.mrb[0].mxu0
  %v1282 = vadd.f32 %v993, %v1281
  %v1283 = vpop.f32.mrb[0].mxu0
  %v1284 = vpop.f32.mrb[0].mxu0
  %v1285 = vadd.f32 %v996, %v1284
  %v1286 = vpop.f32.mrb[0].mxu0
  %1287 = vmatprep.mubr.bf16.mxu0 0
  %1288 = vmatmul.mubr.bf16.gmra.mrb[0].mxu0 %v562
  %v1289 = vpop.f32.mrb[0].mxu0
  %v1290 = vadd.f32 %v1001, %v1289
  %v1291 = vpop.f32.mrb[0].mxu0
  %v1292 = vpop.f32.mrb[0].mxu0
  %v1293 = vadd.f32 %v1004, %v1292
  %v1294 = vpop.f32.mrb[0].mxu0
  %1295 = vmatprep.mubr.bf16.mxu0 0
  %1296 = vmatmul.mubr.bf16.gmra.mrb[0].mxu0 %v565
  %v1297 = vpop.f32.mrb[0].mxu0
  %v1298 = vadd.f32 %v1009, %v1297
  %v1299 = vpop.f32.mrb[0].mxu0
  %v1300 = vpop.f32.mrb[0].mxu0
  %v1301 = vadd.f32 %v1012, %v1300
  %v1302 = vpop.f32.mrb[0].mxu0
  %1303 = vmatprep.mubr.bf16.mxu0 0
  %1304 = vmatmul.mubr.bf16.gmra.mrb[0].mxu0 %v568
  %v1305 = vpop.f32.mrb[0].mxu0
  %v1306 = vadd.f32 %v1017, %v1305
  %v1307 = vpop.f32.mrb[0].mxu0
  %v1308 = vpop.f32.mrb[0].mxu0
  %v1309 = vadd.f32 %v1020, %v1308
  %v1310 = vpop.f32.mrb[0].mxu0
  %1311 = vmatprep.mubr.bf16.mxu0 0
  %1312 = vmatmul.mubr.bf16.gmra.mrb[0].mxu0 %v571
  %v1313 = vpop.f32.mrb[0].mxu0
  %v1314 = vadd.f32 %v1025, %v1313
  %v1315 = vpop.f32.mrb[0].mxu0
  %v1316 = vpop.f32.mrb[0].mxu0
  %v1317 = vadd.f32 %v1028, %v1316
  %v1318 = vpop.f32.mrb[0].mxu0
  %1319 = vmatprep.mubr.bf16.mxu0 0
  %1320 = vmatmul.mubr.bf16.gmra.mrb[0].mxu0 %v574
  %v1321 = vpop.f32.mrb[0].mxu0
  %v1322 = vadd.f32 %v1033, %v1321
  %v1323 = vpop.f32.mrb[0].mxu0
  %v1324 = vpop.f32.mrb[0].mxu0
  %v1325 = vadd.f32 %v1036, %v1324
  %v1326 = vpop.f32.mrb[0].mxu0
  %1327 = vmatprep.mubr.bf16.mxu0 0
  %1328 = vmatmul.mubr.bf16.gmra.mrb[0].mxu0 %v577
  %v1329 = vpop.f32.mrb[0].mxu0
  %v1330 = vadd.f32 %v1041, %v1329
  %v1331 = vpop.f32.mrb[0].mxu0
  %v1332 = vpop.f32.mrb[0].mxu0
  %v1333 = vadd.f32 %v1044, %v1332
  %v1334 = vpop.f32.mrb[0].mxu0
  %1335 = vmatprep.mubr.bf16.mxu0 0
  %1336 = vmatmul.mubr.bf16.gmra.mrb[0].mxu0 %v580
  %v1337 = vpop.f32.mrb[0].mxu0
  %v1338 = vadd.f32 %v1049, %v1337
  %v1339 = vpop.f32.mrb[0].mxu0
  %v1340 = vpop.f32.mrb[0].mxu0
  %v1341 = vadd.f32 %v1052, %v1340
  %v1342 = vpop.f32.mrb[0].mxu0
  %1343 = vmatprep.mubr.bf16.mxu0 0
  %1344 = vmatmul.mubr.bf16.gmra.mrb[0].mxu0 %v583
  %v1345 = vpop.f32.mrb[0].mxu0
  %v1346 = vadd.f32 %v1057, %v1345
  %v1347 = vpop.f32.mrb[0].mxu0
  %v1348 = vpop.f32.mrb[0].mxu0
  %v1349 = vadd.f32 %v1060, %v1348
  %v1350 = vpop.f32.mrb[0].mxu0
  %1351 = vmatprep.mubr.bf16.mxu0 0
  %1352 = vmatmul.mubr.bf16.gmra.mrb[0].mxu0 %v586
  %v1353 = vpop.f32.mrb[0].mxu0
  %v1354 = vadd.f32 %v1065, %v1353
  %v1355 = vpop.f32.mrb[0].mxu0
  %v1356 = vpop.f32.mrb[0].mxu0
  %v1357 = vadd.f32 %v1068, %v1356
  %v1358 = vpop.f32.mrb[0].mxu0
  %1359 = vmatprep.mubr.bf16.mxu0 0
  %1360 = vmatmul.mubr.bf16.gmra.mrb[0].mxu0 %v589
  %v1361 = vpop.f32.mrb[0].mxu0
  %v1362 = vadd.f32 %v1073, %v1361
  %v1363 = vpop.f32.mrb[0].mxu0
  %v1364 = vpop.f32.mrb[0].mxu0
  %v1365 = vadd.f32 %v1076, %v1364
  %v1366 = vpop.f32.mrb[0].mxu0
  %1367 = vmatprep.mubr.bf16.mxu0 0
  %1368 = vmatmul.mubr.bf16.gmra.mrb[0].mxu0 %v592
  %v1369 = vpop.f32.mrb[0].mxu0
  %v1370 = vadd.f32 %v1081, %v1369
  %v1371 = vpop.f32.mrb[0].mxu0
  %v1372 = vpop.f32.mrb[0].mxu0
  %v1373 = vadd.f32 %v1084, %v1372
  %v1374 = vpop.f32.mrb[0].mxu0
  %1375 = vmatprep.mubr.bf16.mxu0 0
  %1376 = vmatmul.mubr.bf16.gmra.mrb[0].mxu0 %v595
  %v1377 = vpop.f32.mrb[0].mxu0
  %v1378 = vadd.f32 %v1089, %v1377
  %v1379 = vpop.f32.mrb[0].mxu0
  %v1380 = vpop.f32.mrb[0].mxu0
  %v1381 = vadd.f32 %v1092, %v1380
  %v1382 = vpop.f32.mrb[0].mxu0
  %1383 = vmatprep.mubr.bf16.mxu0 0
  %1384 = vmatmul.mubr.bf16.gmra.mrb[0].mxu0 %v598
  %v1385 = vpop.f32.mrb[0].mxu0
  %v1386 = vadd.f32 %v1097, %v1385
  %v1387 = vpop.f32.mrb[0].mxu0
  %v1388 = vpop.f32.mrb[0].mxu0
  %v1389 = vadd.f32 %v1100, %v1388
  %v1390 = vpop.f32.mrb[0].mxu0
  %1391 = vmatprep.mubr.bf16.mxu0 0
  %1392 = vmatmul.mubr.bf16.gmra.mrb[0].mxu0 %v601
  %v1393 = vpop.f32.mrb[0].mxu0
  %v1394 = vadd.f32 %v1105, %v1393
  %v1395 = vpop.f32.mrb[0].mxu0
  %v1396 = vpop.f32.mrb[0].mxu0
  %v1397 = vadd.f32 %v1108, %v1396
  %v1398 = vpop.f32.mrb[0].mxu0
  %1399 = vmatprep.mubr.bf16.mxu0 0
  %1400 = vmatmul.mubr.bf16.gmra.mrb[0].mxu0 %v604
  %v1401 = vpop.f32.mrb[0].mxu0
  %v1402 = vadd.f32 %v1113, %v1401
  %v1403 = vpop.f32.mrb[0].mxu0
  %v1404 = vpop.f32.mrb[0].mxu0
  %v1405 = vadd.f32 %v1116, %v1404
  %v1406 = vpop.f32.mrb[0].mxu0
  %1407 = vmatprep.mubr.bf16.mxu0 0
  %1408 = vmatmul.mubr.bf16.gmra.mrb[0].mxu0 %v607
  %v1409 = vpop.f32.mrb[0].mxu0
  %v1410 = vadd.f32 %v1121, %v1409
  %v1411 = vpop.f32.mrb[0].mxu0
  %v1412 = vpop.f32.mrb[0].mxu0
  %v1413 = vadd.f32 %v1124, %v1412
  %v1414 = vpop.f32.mrb[0].mxu0
  %1415 = vmatprep.mubr.bf16.mxu0 0
  %1416 = vmatmul.mubr.bf16.gmra.mrb[0].mxu0 %v610
  %v1417 = vpop.f32.mrb[0].mxu0
  %v1418 = vadd.f32 %v1129, %v1417
  %v1419 = vpop.f32.mrb[0].mxu0
  %v1420 = vpop.f32.mrb[0].mxu0
  %v1421 = vadd.f32 %v1132, %v1420
  %v1422 = vpop.f32.mrb[0].mxu0
  %1423 = vmatprep.mubr.bf16.mxu0 0
  %1424 = vmatmul.mubr.bf16.gmra.mrb[0].mxu0 %v613
  %v1425 = vpop.f32.mrb[0].mxu0
  %v1426 = vadd.f32 %v1137, %v1425
  %v1427 = vpop.f32.mrb[0].mxu0
  %v1428 = vpop.f32.mrb[0].mxu0
  %v1429 = vadd.f32 %v1140, %v1428
  %v1430 = vpop.f32.mrb[0].mxu0
  %1431 = vdwg.mxu0
  %v1432 = vmax.f32 %v1178, 0.0
  %v1433 = vmax.f32 %v1181, 0.0
  %v1434 = vmax.f32 %v1186, 0.0
  %v1435 = vmax.f32 %v1189, 0.0
  %v1436 = vmax.f32 %v1194, 0.0
  %v1437 = vmax.f32 %v1197, 0.0
  %v1438 = vmax.f32 %v1202, 0.0
  %v1439 = vmax.f32 %v1205, 0.0
  %v1440 = vmax.f32 %v1210, 0.0
  %v1441 = vmax.f32 %v1213, 0.0
  %v1442 = vmax.f32 %v1218, 0.0
  %v1443 = vmax.f32 %v1221, 0.0
  %v1444 = vmax.f32 %v1226, 0.0
  %v1445 = vmax.f32 %v1229, 0.0
  %v1446 = vmax.f32 %v1234, 0.0
  %v1447 = vmax.f32 %v1237, 0.0
  %v1448 = vmax.f32 %v1242, 0.0
  %v1449 = vmax.f32 %v1245, 0.0
  %v1450 = vmax.f32 %v1250, 0.0
  %v1451 = vmax.f32 %v1253, 0.0
  %v1452 = vmax.f32 %v1258, 0.0
  %v1453 = vmax.f32 %v1261, 0.0
  %v1454 = vmax.f32 %v1266, 0.0
  %v1455 = vmax.f32 %v1269, 0.0
  %v1456 = vmax.f32 %v1274, 0.0
  %v1457 = vmax.f32 %v1277, 0.0
  %v1458 = vmax.f32 %v1282, 0.0
  %v1459 = vmax.f32 %v1285, 0.0
  %v1460 = vmax.f32 %v1290, 0.0
  %v1461 = vmax.f32 %v1293, 0.0
  %v1462 = vmax.f32 %v1298, 0.0
  %v1463 = vmax.f32 %v1301, 0.0
  %v1464 = vmax.f32 %v1306, 0.0
  %v1465 = vmax.f32 %v1309, 0.0
  %v1466 = vmax.f32 %v1314, 0.0
  %v1467 = vmax.f32 %v1317, 0.0
  %v1468 = vmax.f32 %v1322, 0.0
  %v1469 = vmax.f32 %v1325, 0.0
  %v1470 = vmax.f32 %v1330, 0.0
  %v1471 = vmax.f32 %v1333, 0.0
  %v1472 = vmax.f32 %v1338, 0.0
  %v1473 = vmax.f32 %v1341, 0.0
  %v1474 = vmax.f32 %v1346, 0.0
  %v1475 = vmax.f32 %v1349, 0.0
  %v1476 = vmax.f32 %v1354, 0.0
  %v1477 = vmax.f32 %v1357, 0.0
  %v1478 = vmax.f32 %v1362, 0.0
  %v1479 = vmax.f32 %v1365, 0.0
  %v1480 = vmax.f32 %v1370, 0.0
  %v1481 = vmax.f32 %v1373, 0.0
  %v1482 = vmax.f32 %v1378, 0.0
  %v1483 = vmax.f32 %v1381, 0.0
  %v1484 = vmax.f32 %v1386, 0.0
  %v1485 = vmax.f32 %v1389, 0.0
  %v1486 = vmax.f32 %v1394, 0.0
  %v1487 = vmax.f32 %v1397, 0.0
  %v1488 = vmax.f32 %v1402, 0.0
  %v1489 = vmax.f32 %v1405, 0.0
  %v1490 = vmax.f32 %v1410, 0.0
  %v1491 = vmax.f32 %v1413, 0.0
  %v1492 = vmax.f32 %v1418, 0.0
  %v1493 = vmax.f32 %v1421, 0.0
  %v1494 = vmax.f32 %v1426, 0.0
  %v1495 = vmax.f32 %v1429, 0.0
  %v1496 = vpack.c.bf16 %v1433, %v1432
  %v1497 = vpack.c.bf16 %v1435, %v1434
  %v1498 = vpack.c.bf16 %v1437, %v1436
  %v1499 = vpack.c.bf16 %v1439, %v1438
  %v1500 = vpack.c.bf16 %v1441, %v1440
  %v1501 = vpack.c.bf16 %v1443, %v1442
  %v1502 = vpack.c.bf16 %v1445, %v1444
  %v1503 = vpack.c.bf16 %v1447, %v1446
  %v1504 = vpack.c.bf16 %v1449, %v1448
  %v1505 = vpack.c.bf16 %v1451, %v1450
  %v1506 = vpack.c.bf16 %v1453, %v1452
  %v1507 = vpack.c.bf16 %v1455, %v1454
  %v1508 = vpack.c.bf16 %v1457, %v1456
  %v1509 = vpack.c.bf16 %v1459, %v1458
  %v1510 = vpack.c.bf16 %v1461, %v1460
  %v1511 = vpack.c.bf16 %v1463, %v1462
  %v1512 = vpack.c.bf16 %v1465, %v1464
  %v1513 = vpack.c.bf16 %v1467, %v1466
  %v1514 = vpack.c.bf16 %v1469, %v1468
  %v1515 = vpack.c.bf16 %v1471, %v1470
  %v1516 = vpack.c.bf16 %v1473, %v1472
  %v1517 = vpack.c.bf16 %v1475, %v1474
  %v1518 = vpack.c.bf16 %v1477, %v1476
  %v1519 = vpack.c.bf16 %v1479, %v1478
  %v1520 = vpack.c.bf16 %v1481, %v1480
  %v1521 = vpack.c.bf16 %v1483, %v1482
  %v1522 = vpack.c.bf16 %v1485, %v1484
  %v1523 = vpack.c.bf16 %v1487, %v1486
  %v1524 = vpack.c.bf16 %v1489, %v1488
  %v1525 = vpack.c.bf16 %v1491, %v1490
  %v1526 = vpack.c.bf16 %v1493, %v1492
  %v1527 = vpack.c.bf16 %v1495, %v1494
  %v1560 = vunpack.c.l.b16 %v1496
  %v1561 = vunpack.c.h.b16 %v1496
  %v1562 = vunpack.c.l.b16 %v1497
  %v1563 = vunpack.c.h.b16 %v1497
  %v1564 = vunpack.c.l.b16 %v1498
  %v1565 = vunpack.c.h.b16 %v1498
  %v1566 = vunpack.c.l.b16 %v1499
  %v1567 = vunpack.c.h.b16 %v1499
  %v1568 = vunpack.c.l.b16 %v1500
  %v1569 = vunpack.c.h.b16 %v1500
  %v1570 = vunpack.c.l.b16 %v1501
  %v1571 = vunpack.c.h.b16 %v1501
  %v1572 = vunpack.c.l.b16 %v1502
  %v1573 = vunpack.c.h.b16 %v1502
  %v1574 = vunpack.c.l.b16 %v1503
  %v1575 = vunpack.c.h.b16 %v1503
  %v1576 = vunpack.c.l.b16 %v1504
  %v1577 = vunpack.c.h.b16 %v1504
  %v1578 = vunpack.c.l.b16 %v1505
  %v1579 = vunpack.c.h.b16 %v1505
  %v1580 = vunpack.c.l.b16 %v1506
  %v1581 = vunpack.c.h.b16 %v1506
  %v1582 = vunpack.c.l.b16 %v1507
  %v1583 = vunpack.c.h.b16 %v1507
  %v1584 = vunpack.c.l.b16 %v1508
  %v1585 = vunpack.c.h.b16 %v1508
  %v1586 = vunpack.c.l.b16 %v1509
  %v1587 = vunpack.c.h.b16 %v1509
  %v1588 = vunpack.c.l.b16 %v1510
  %v1589 = vunpack.c.h.b16 %v1510
  %v1590 = vunpack.c.l.b16 %v1511
  %v1591 = vunpack.c.h.b16 %v1511
  %v1592 = vunpack.c.l.b16 %v1512
  %v1593 = vunpack.c.h.b16 %v1512
  %v1594 = vunpack.c.l.b16 %v1513
  %v1595 = vunpack.c.h.b16 %v1513
  %v1596 = vunpack.c.l.b16 %v1514
  %v1597 = vunpack.c.h.b16 %v1514
  %v1598 = vunpack.c.l.b16 %v1515
  %v1599 = vunpack.c.h.b16 %v1515
  %v1600 = vunpack.c.l.b16 %v1516
  %v1601 = vunpack.c.h.b16 %v1516
  %v1602 = vunpack.c.l.b16 %v1517
  %v1603 = vunpack.c.h.b16 %v1517
  %v1604 = vunpack.c.l.b16 %v1518
  %v1605 = vunpack.c.h.b16 %v1518
  %v1606 = vunpack.c.l.b16 %v1519
  %v1607 = vunpack.c.h.b16 %v1519
  %v1608 = vunpack.c.l.b16 %v1520
  %v1609 = vunpack.c.h.b16 %v1520
  %v1610 = vunpack.c.l.b16 %v1521
  %v1611 = vunpack.c.h.b16 %v1521
  %v1612 = vunpack.c.l.b16 %v1522
  %v1613 = vunpack.c.h.b16 %v1522
  %v1614 = vunpack.c.l.b16 %v1523
  %v1615 = vunpack.c.h.b16 %v1523
  %v1616 = vunpack.c.l.b16 %v1524
  %v1617 = vunpack.c.h.b16 %v1524
  %v1618 = vunpack.c.l.b16 %v1525
  %v1619 = vunpack.c.h.b16 %v1525
  %v1620 = vunpack.c.l.b16 %v1526
  %v1621 = vunpack.c.h.b16 %v1526
  %v1622 = vunpack.c.l.b16 %v1527
  %v1623 = vunpack.c.h.b16 %v1527
  %v1624 = vpack.c.b16 %v1560, %v1560
  %v1625 = vpack.c.b16 %v1561, %v1561
  %v1626 = vpack.c.b16 %v1562, %v1562
  %v1627 = vpack.c.b16 %v1563, %v1563
  %v1628 = vpack.c.b16 %v1564, %v1564
  %v1629 = vpack.c.b16 %v1565, %v1565
  %v1630 = vpack.c.b16 %v1566, %v1566
  %v1631 = vpack.c.b16 %v1567, %v1567
  %v1632 = vpack.c.b16 %v1568, %v1568
  %v1633 = vpack.c.b16 %v1569, %v1569
  %v1634 = vpack.c.b16 %v1570, %v1570
  %v1635 = vpack.c.b16 %v1571, %v1571
  %v1636 = vpack.c.b16 %v1572, %v1572
  %v1637 = vpack.c.b16 %v1573, %v1573
  %v1638 = vpack.c.b16 %v1574, %v1574
  %v1639 = vpack.c.b16 %v1575, %v1575
  %v1640 = vpack.c.b16 %v1576, %v1576
  %v1641 = vpack.c.b16 %v1577, %v1577
  %v1642 = vpack.c.b16 %v1578, %v1578
  %v1643 = vpack.c.b16 %v1579, %v1579
  %v1644 = vpack.c.b16 %v1580, %v1580
  %v1645 = vpack.c.b16 %v1581, %v1581
  %v1646 = vpack.c.b16 %v1582, %v1582
  %v1647 = vpack.c.b16 %v1583, %v1583
  %v1648 = vpack.c.b16 %v1584, %v1584
  %v1649 = vpack.c.b16 %v1585, %v1585
  %v1650 = vpack.c.b16 %v1586, %v1586
  %v1651 = vpack.c.b16 %v1587, %v1587
  %v1652 = vpack.c.b16 %v1588, %v1588
  %v1653 = vpack.c.b16 %v1589, %v1589
  %v1654 = vpack.c.b16 %v1590, %v1590
  %v1655 = vpack.c.b16 %v1591, %v1591
  %v1656 = vpack.c.b16 %v1592, %v1592
  %v1657 = vpack.c.b16 %v1593, %v1593
  %v1658 = vpack.c.b16 %v1594, %v1594
  %v1659 = vpack.c.b16 %v1595, %v1595
  %v1660 = vpack.c.b16 %v1596, %v1596
  %v1661 = vpack.c.b16 %v1597, %v1597
  %v1662 = vpack.c.b16 %v1598, %v1598
  %v1663 = vpack.c.b16 %v1599, %v1599
  %v1664 = vpack.c.b16 %v1600, %v1600
  %v1665 = vpack.c.b16 %v1601, %v1601
  %v1666 = vpack.c.b16 %v1602, %v1602
  %v1667 = vpack.c.b16 %v1603, %v1603
  %v1668 = vpack.c.b16 %v1604, %v1604
  %v1669 = vpack.c.b16 %v1605, %v1605
  %v1670 = vpack.c.b16 %v1606, %v1606
  %v1671 = vpack.c.b16 %v1607, %v1607
  %v1672 = vpack.c.b16 %v1608, %v1608
  %v1673 = vpack.c.b16 %v1609, %v1609
  %v1674 = vpack.c.b16 %v1610, %v1610
  %v1675 = vpack.c.b16 %v1611, %v1611
  %v1676 = vpack.c.b16 %v1612, %v1612
  %v1677 = vpack.c.b16 %v1613, %v1613
  %v1678 = vpack.c.b16 %v1614, %v1614
  %v1679 = vpack.c.b16 %v1615, %v1615
  %v1680 = vpack.c.b16 %v1616, %v1616
  %v1681 = vpack.c.b16 %v1617, %v1617
  %v1682 = vpack.c.b16 %v1618, %v1618
  %v1683 = vpack.c.b16 %v1619, %v1619
  %v1684 = vpack.c.b16 %v1620, %v1620
  %v1685 = vpack.c.b16 %v1621, %v1621
  %v1686 = vpack.c.b16 %v1622, %v1622
  %v1687 = vpack.c.b16 %v1623, %v1623
  %1752 = vst [vmem:[%s3] sm:$0xf] %v1624
  %1753 = vst [vmem:[%s3 + $0x4] sm:$0xf] %v1625
  %1754 = vst [vmem:[%s3 + $0x8] sm:$0xf] %v1626
  %1755 = vst [vmem:[%s3 + $0xc] sm:$0xf] %v1627
  %1756 = vst [vmem:[%s3 + $0x10] sm:$0xf] %v1628
  %1757 = vst [vmem:[%s3 + $0x14] sm:$0xf] %v1629
  %1758 = vst [vmem:[%s3 + $0x18] sm:$0xf] %v1630
  %1759 = vst [vmem:[%s3 + $0x1c] sm:$0xf] %v1631
  %1760 = vst [vmem:[%s3 + $0x20] sm:$0xf] %v1632
  %1761 = vst [vmem:[%s3 + $0x24] sm:$0xf] %v1633
  %1762 = vst [vmem:[%s3 + $0x28] sm:$0xf] %v1634
  %1763 = vst [vmem:[%s3 + $0x2c] sm:$0xf] %v1635
  %1764 = vst [vmem:[%s3 + $0x30] sm:$0xf] %v1636
  %1765 = vst [vmem:[%s3 + $0x34] sm:$0xf] %v1637
  %1766 = vst [vmem:[%s3 + $0x38] sm:$0xf] %v1638
  %1767 = vst [vmem:[%s3 + $0x3c] sm:$0xf] %v1639
  %1768 = vst [vmem:[%s3 + $0x40] sm:$0xf] %v1640
  %1769 = vst [vmem:[%s3 + $0x44] sm:$0xf] %v1641
  %1770 = vst [vmem:[%s3 + $0x48] sm:$0xf] %v1642
  %1771 = vst [vmem:[%s3 + $0x4c] sm:$0xf] %v1643
  %1772 = vst [vmem:[%s3 + $0x50] sm:$0xf] %v1644
  %1773 = vst [vmem:[%s3 + $0x54] sm:$0xf] %v1645
  %1774 = vst [vmem:[%s3 + $0x58] sm:$0xf] %v1646
  %1775 = vst [vmem:[%s3 + $0x5c] sm:$0xf] %v1647
  %1776 = vst [vmem:[%s3 + $0x60] sm:$0xf] %v1648
  %1777 = vst [vmem:[%s3 + $0x64] sm:$0xf] %v1649
  %1778 = vst [vmem:[%s3 + $0x68] sm:$0xf] %v1650
  %1779 = vst [vmem:[%s3 + $0x6c] sm:$0xf] %v1651
  %1780 = vst [vmem:[%s3 + $0x70] sm:$0xf] %v1652
  %1781 = vst [vmem:[%s3 + $0x74] sm:$0xf] %v1653
  %1782 = vst [vmem:[%s3 + $0x78] sm:$0xf] %v1654
  %1783 = vst [vmem:[%s3 + $0x7c] sm:$0xf] %v1655
  %1784 = vst [vmem:[%s3 + $0x80] sm:$0xf] %v1656
  %1785 = vst [vmem:[%s3 + $0x84] sm:$0xf] %v1657
  %1786 = vst [vmem:[%s3 + $0x88] sm:$0xf] %v1658
  %1787 = vst [vmem:[%s3 + $0x8c] sm:$0xf] %v1659
  %1788 = vst [vmem:[%s3 + $0x90] sm:$0xf] %v1660
  %1789 = vst [vmem:[%s3 + $0x94] sm:$0xf] %v1661
  %1790 = vst [vmem:[%s3 + $0x98] sm:$0xf] %v1662
  %1791 = vst [vmem:[%s3 + $0x9c] sm:$0xf] %v1663
  %1792 = vst [vmem:[%s3 + $0xa0] sm:$0xf] %v1664
  %1793 = vst [vmem:[%s3 + $0xa4] sm:$0xf] %v1665
  %1794 = vst [vmem:[%s3 + $0xa8] sm:$0xf] %v1666
  %1795 = vst [vmem:[%s3 + $0xac] sm:$0xf] %v1667
  %1796 = vst [vmem:[%s3 + $0xb0] sm:$0xf] %v1668
  %1797 = vst [vmem:[%s3 + $0xb4] sm:$0xf] %v1669
  %1798 = vst [vmem:[%s3 + $0xb8] sm:$0xf] %v1670
  %1799 = vst [vmem:[%s3 + $0xbc] sm:$0xf] %v1671
  %1800 = vst [vmem:[%s3 + $0xc0] sm:$0xf] %v1672
  %1801 = vst [vmem:[%s3 + $0xc4] sm:$0xf] %v1673
  %1802 = vst [vmem:[%s3 + $0xc8] sm:$0xf] %v1674
  %1803 = vst [vmem:[%s3 + $0xcc] sm:$0xf] %v1675
  %1804 = vst [vmem:[%s3 + $0xd0] sm:$0xf] %v1676
  %1805 = vst [vmem:[%s3 + $0xd4] sm:$0xf] %v1677
  %1806 = vst [vmem:[%s3 + $0xd8] sm:$0xf] %v1678
  %1807 = vst [vmem:[%s3 + $0xdc] sm:$0xf] %v1679
  %1808 = vst [vmem:[%s3 + $0xe0] sm:$0xf] %v1680
  %1809 = vst [vmem:[%s3 + $0xe4] sm:$0xf] %v1681
  %1810 = vst [vmem:[%s3 + $0xe8] sm:$0xf] %v1682
  %1811 = vst [vmem:[%s3 + $0xec] sm:$0xf] %v1683
  %1812 = vst [vmem:[%s3 + $0xf0] sm:$0xf] %v1684
  %1813 = vst [vmem:[%s3 + $0xf4] sm:$0xf] %v1685
  %1814 = vst [vmem:[%s3 + $0xf8] sm:$0xf] %v1686
  %1815 = vst [vmem:[%s3 + $0xfc] sm:$0xf] %v1687
  // Predicated region
  $region14: #{drdnet_forward.21} parent=0 // pred_check
    _
  $region15: #{drdnet_forward.21} parent=0 // pred_check_branch
    %1817 = sbr.rel (0) target = $region17
  $region16: #{drdnet_forward.21} parent=0 // pred_region
    _
  $region17: #{drdnet_forward.21} parent=0 // pred_fallthru
    _
  // Predicated region
  $region18: #{drdnet_forward.21} parent=0 // pred_check
    _
  $region19: #{drdnet_forward.21} parent=0 // pred_check_branch
    %1819 = sbr.rel (0) target = $region21
  $region20: #{drdnet_forward.21} parent=0 // pred_region
    _
  $region21: #{drdnet_forward.21} parent=0 // pred_fallthru
    _

// kernel: drdnet_forward.22
$region0: #{drdnet_forward.22}
  #allocation0 [shape = 'u32[]', space=smem, size = 0x4, offset = 0x4, fixed_abs, tag = 'smem constant byte address 0x4 - core index']
  #allocation1 [shape = 'u32[144,128]{1,0:T(1,128)}', space=vmem, size = 0x12000, scoped, tag = 'internal scratch']
  %s0 = inlined_call_operand.vmem [shape: bf16[512,256], index: 0, kind: input, shape index: {}]
  %s1 = inlined_call_operand.vmem [shape: bf16[256,128], index: 1, kind: input, shape index: {}]
  %s2 = inlined_call_operand.vmem [shape: f32[1,128], index: 2, kind: input, shape index: {}]
  %s3 = inlined_call_operand.vmem [shape: bf16[512,128], index: 3, kind: output, shape index: {}]
  %s4 = sld [smem:[#allocation0]]
  $region22: #{drdnet_forward.22} parent=0
    _
  %s6 = ssub.s32 1, %s4
  %s7 = scalar_select 0, %s6, %s4
  // Predicated region
  $region2: #{drdnet_forward.22} parent=0 // pred_check
    _
  $region3: #{drdnet_forward.22} parent=0 // pred_check_branch
    %9 = sbr.rel (0) target = $region5
  $region4: #{drdnet_forward.22} parent=0 // pred_region
    _
  $region5: #{drdnet_forward.22} parent=0 // pred_fallthru
    _
  // Predicated region
  $region6: #{drdnet_forward.22} parent=0 // pred_check
    _
  $region7: #{drdnet_forward.22} parent=0 // pred_check_branch
    %11 = sbr.rel (0) target = $region9
  $region8: #{drdnet_forward.22} parent=0 // pred_region
    _
  $region9: #{drdnet_forward.22} parent=0 // pred_fallthru
    _
  // Predicated region
  $region10: #{drdnet_forward.22} parent=0 // pred_check
    _
  $region11: #{drdnet_forward.22} parent=0 // pred_check_branch
    %13 = sbr.rel (0) target = $region13
  $region12: #{drdnet_forward.22} parent=0 // pred_region
    _
  $region13: #{drdnet_forward.22} parent=0 // pred_fallthru
    _
  %v15 = vld [vmem:[%s0] sm:$0xff]
  %v16 = vld [vmem:[%s0 + $0x8] sm:$0xff]
  %v17 = vld [vmem:[%s0 + $0x10] sm:$0xff]
  %v18 = vld [vmem:[%s0 + $0x18] sm:$0xff]
  %v19 = vld [vmem:[%s0 + $0x20] sm:$0xff]
  %v20 = vld [vmem:[%s0 + $0x28] sm:$0xff]
  %v21 = vld [vmem:[%s0 + $0x30] sm:$0xff]
  %v22 = vld [vmem:[%s0 + $0x38] sm:$0xff]
  %v23 = vld [vmem:[%s0 + $0x40] sm:$0xff]
  %v24 = vld [vmem:[%s0 + $0x48] sm:$0xff]
  %v25 = vld [vmem:[%s0 + $0x50] sm:$0xff]
  %v26 = vld [vmem:[%s0 + $0x58] sm:$0xff]
  %v27 = vld [vmem:[%s0 + $0x60] sm:$0xff]
  %v28 = vld [vmem:[%s0 + $0x68] sm:$0xff]
  %v29 = vld [vmem:[%s0 + $0x70] sm:$0xff]
  %v30 = vld [vmem:[%s0 + $0x78] sm:$0xff]
  %v31 = vld [vmem:[%s0 + $0x80] sm:$0xff]
  %v32 = vld [vmem:[%s0 + $0x88] sm:$0xff]
  %v33 = vld [vmem:[%s0 + $0x90] sm:$0xff]
  %v34 = vld [vmem:[%s0 + $0x98] sm:$0xff]
  %v35 = vld [vmem:[%s0 + $0xa0] sm:$0xff]
  %v36 = vld [vmem:[%s0 + $0xa8] sm:$0xff]
  %v37 = vld [vmem:[%s0 + $0xb0] sm:$0xff]
  %v38 = vld [vmem:[%s0 + $0xb8] sm:$0xff]
  %v39 = vld [vmem:[%s0 + $0xc0] sm:$0xff]
  %v40 = vld [vmem:[%s0 + $0xc8] sm:$0xff]
  %v41 = vld [vmem:[%s0 + $0xd0] sm:$0xff]
  %v42 = vld [vmem:[%s0 + $0xd8] sm:$0xff]
  %v43 = vld [vmem:[%s0 + $0xe0] sm:$0xff]
  %v44 = vld [vmem:[%s0 + $0xe8] sm:$0xff]
  %v45 = vld [vmem:[%s0 + $0xf0] sm:$0xff]
  %v46 = vld [vmem:[%s0 + $0xf8] sm:$0xff]
  %v47 = vld [vmem:[%s0 + $0x100] sm:$0xff]
  %v48 = vld [vmem:[%s0 + $0x108] sm:$0xff]
  %v49 = vld [vmem:[%s0 + $0x110] sm:$0xff]
  %v50 = vld [vmem:[%s0 + $0x118] sm:$0xff]
  %v51 = vld [vmem:[%s0 + $0x120] sm:$0xff]
  %v52 = vld [vmem:[%s0 + $0x128] sm:$0xff]
  %v53 = vld [vmem:[%s0 + $0x130] sm:$0xff]
  %v54 = vld [vmem:[%s0 + $0x138] sm:$0xff]
  %v55 = vld [vmem:[%s0 + $0x140] sm:$0xff]
  %v56 = vld [vmem:[%s0 + $0x148] sm:$0xff]
  %v57 = vld [vmem:[%s0 + $0x150] sm:$0xff]
  %v58 = vld [vmem:[%s0 + $0x158] sm:$0xff]
  %v59 = vld [vmem:[%s0 + $0x160] sm:$0xff]
  %v60 = vld [vmem:[%s0 + $0x168] sm:$0xff]
  %v61 = vld [vmem:[%s0 + $0x170] sm:$0xff]
  %v62 = vld [vmem:[%s0 + $0x178] sm:$0xff]
  %v63 = vld [vmem:[%s0 + $0x180] sm:$0xff]
  %v64 = vld [vmem:[%s0 + $0x188] sm:$0xff]
  %v65 = vld [vmem:[%s0 + $0x190] sm:$0xff]
  %v66 = vld [vmem:[%s0 + $0x198] sm:$0xff]
  %v67 = vld [vmem:[%s0 + $0x1a0] sm:$0xff]
  %v68 = vld [vmem:[%s0 + $0x1a8] sm:$0xff]
  %v69 = vld [vmem:[%s0 + $0x1b0] sm:$0xff]
  %v70 = vld [vmem:[%s0 + $0x1b8] sm:$0xff]
  %v71 = vld [vmem:[%s0 + $0x1c0] sm:$0xff]
  %v72 = vld [vmem:[%s0 + $0x1c8] sm:$0xff]
  %v73 = vld [vmem:[%s0 + $0x1d0] sm:$0xff]
  %v74 = vld [vmem:[%s0 + $0x1d8] sm:$0xff]
  %v75 = vld [vmem:[%s0 + $0x1e0] sm:$0xff]
  %v76 = vld [vmem:[%s0 + $0x1e8] sm:$0xff]
  %v77 = vld [vmem:[%s0 + $0x1f0] sm:$0xff]
  %v78 = vld [vmem:[%s0 + $0x1f8] sm:$0xff]
  %v79 = vld [vmem:[%s1] sm:$0xf]
  %v80 = vld [vmem:[%s1 + $0x4] sm:$0xf]
  %v81 = vld [vmem:[%s1 + $0x8] sm:$0xf]
  %v82 = vld [vmem:[%s1 + $0xc] sm:$0xf]
  %v83 = vld [vmem:[%s1 + $0x10] sm:$0xf]
  %v84 = vld [vmem:[%s1 + $0x14] sm:$0xf]
  %v85 = vld [vmem:[%s1 + $0x18] sm:$0xf]
  %v86 = vld [vmem:[%s1 + $0x1c] sm:$0xf]
  %v87 = vld [vmem:[%s1 + $0x20] sm:$0xf]
  %v88 = vld [vmem:[%s1 + $0x24] sm:$0xf]
  %v89 = vld [vmem:[%s1 + $0x28] sm:$0xf]
  %v90 = vld [vmem:[%s1 + $0x2c] sm:$0xf]
  %v91 = vld [vmem:[%s1 + $0x30] sm:$0xf]
  %v92 = vld [vmem:[%s1 + $0x34] sm:$0xf]
  %v93 = vld [vmem:[%s1 + $0x38] sm:$0xf]
  %v94 = vld [vmem:[%s1 + $0x3c] sm:$0xf]
  %v95 = vld [vmem:[%s1 + $0x40] sm:$0xf]
  %v96 = vld [vmem:[%s1 + $0x44] sm:$0xf]
  %v97 = vld [vmem:[%s1 + $0x48] sm:$0xf]
  %v98 = vld [vmem:[%s1 + $0x4c] sm:$0xf]
  %v99 = vld [vmem:[%s1 + $0x50] sm:$0xf]
  %v100 = vld [vmem:[%s1 + $0x54] sm:$0xf]
  %v101 = vld [vmem:[%s1 + $0x58] sm:$0xf]
  %v102 = vld [vmem:[%s1 + $0x5c] sm:$0xf]
  %v103 = vld [vmem:[%s1 + $0x60] sm:$0xf]
  %v104 = vld [vmem:[%s1 + $0x64] sm:$0xf]
  %v105 = vld [vmem:[%s1 + $0x68] sm:$0xf]
  %v106 = vld [vmem:[%s1 + $0x6c] sm:$0xf]
  %v107 = vld [vmem:[%s1 + $0x70] sm:$0xf]
  %v108 = vld [vmem:[%s1 + $0x74] sm:$0xf]
  %v109 = vld [vmem:[%s1 + $0x78] sm:$0xf]
  %v110 = vld [vmem:[%s1 + $0x7c] sm:$0xf]
  %v111 = vld [vmem:[%s2] sm:$0x1]
  %v113 = vlaneseq
  %v114 = vshrl.u32 %v113, 7
  %v115 = vsub.s32 0, %v114
  %v116 = vrot.slane %v111, %v115
  %v182 = vunpack.c.l.b16 %v15
  %v183 = vunpack.c.h.b16 %v15
  %v184 = vunpack.c.l.b16 %v16
  %v185 = vunpack.c.h.b16 %v16
  %v186 = vunpack.c.l.b16 %v17
  %v187 = vunpack.c.h.b16 %v17
  %v188 = vunpack.c.l.b16 %v18
  %v189 = vunpack.c.h.b16 %v18
  %v190 = vunpack.c.l.b16 %v19
  %v191 = vunpack.c.h.b16 %v19
  %v192 = vunpack.c.l.b16 %v20
  %v193 = vunpack.c.h.b16 %v20
  %v194 = vunpack.c.l.b16 %v21
  %v195 = vunpack.c.h.b16 %v21
  %v196 = vunpack.c.l.b16 %v22
  %v197 = vunpack.c.h.b16 %v22
  %v198 = vunpack.c.l.b16 %v23
  %v199 = vunpack.c.h.b16 %v23
  %v200 = vunpack.c.l.b16 %v24
  %v201 = vunpack.c.h.b16 %v24
  %v202 = vunpack.c.l.b16 %v25
  %v203 = vunpack.c.h.b16 %v25
  %v204 = vunpack.c.l.b16 %v26
  %v205 = vunpack.c.h.b16 %v26
  %v206 = vunpack.c.l.b16 %v27
  %v207 = vunpack.c.h.b16 %v27
  %v208 = vunpack.c.l.b16 %v28
  %v209 = vunpack.c.h.b16 %v28
  %v210 = vunpack.c.l.b16 %v29
  %v211 = vunpack.c.h.b16 %v29
  %v212 = vunpack.c.l.b16 %v30
  %v213 = vunpack.c.h.b16 %v30
  %v214 = vunpack.c.l.b16 %v31
  %v215 = vunpack.c.h.b16 %v31
  %v216 = vunpack.c.l.b16 %v32
  %v217 = vunpack.c.h.b16 %v32
  %v218 = vunpack.c.l.b16 %v33
  %v219 = vunpack.c.h.b16 %v33
  %v220 = vunpack.c.l.b16 %v34
  %v221 = vunpack.c.h.b16 %v34
  %v222 = vunpack.c.l.b16 %v35
  %v223 = vunpack.c.h.b16 %v35
  %v224 = vunpack.c.l.b16 %v36
  %v225 = vunpack.c.h.b16 %v36
  %v226 = vunpack.c.l.b16 %v37
  %v227 = vunpack.c.h.b16 %v37
  %v228 = vunpack.c.l.b16 %v38
  %v229 = vunpack.c.h.b16 %v38
  %v230 = vunpack.c.l.b16 %v39
  %v231 = vunpack.c.h.b16 %v39
  %v232 = vunpack.c.l.b16 %v40
  %v233 = vunpack.c.h.b16 %v40
  %v234 = vunpack.c.l.b16 %v41
  %v235 = vunpack.c.h.b16 %v41
  %v236 = vunpack.c.l.b16 %v42
  %v237 = vunpack.c.h.b16 %v42
  %v238 = vunpack.c.l.b16 %v43
  %v239 = vunpack.c.h.b16 %v43
  %v240 = vunpack.c.l.b16 %v44
  %v241 = vunpack.c.h.b16 %v44
  %v242 = vunpack.c.l.b16 %v45
  %v243 = vunpack.c.h.b16 %v45
  %v244 = vunpack.c.l.b16 %v46
  %v245 = vunpack.c.h.b16 %v46
  %v246 = vunpack.c.l.b16 %v47
  %v247 = vunpack.c.h.b16 %v47
  %v248 = vunpack.c.l.b16 %v48
  %v249 = vunpack.c.h.b16 %v48
  %v250 = vunpack.c.l.b16 %v49
  %v251 = vunpack.c.h.b16 %v49
  %v252 = vunpack.c.l.b16 %v50
  %v253 = vunpack.c.h.b16 %v50
  %v254 = vunpack.c.l.b16 %v51
  %v255 = vunpack.c.h.b16 %v51
  %v256 = vunpack.c.l.b16 %v52
  %v257 = vunpack.c.h.b16 %v52
  %v258 = vunpack.c.l.b16 %v53
  %v259 = vunpack.c.h.b16 %v53
  %v260 = vunpack.c.l.b16 %v54
  %v261 = vunpack.c.h.b16 %v54
  %v262 = vunpack.c.l.b16 %v55
  %v263 = vunpack.c.h.b16 %v55
  %v264 = vunpack.c.l.b16 %v56
  %v265 = vunpack.c.h.b16 %v56
  %v266 = vunpack.c.l.b16 %v57
  %v267 = vunpack.c.h.b16 %v57
  %v268 = vunpack.c.l.b16 %v58
  %v269 = vunpack.c.h.b16 %v58
  %v270 = vunpack.c.l.b16 %v59
  %v271 = vunpack.c.h.b16 %v59
  %v272 = vunpack.c.l.b16 %v60
  %v273 = vunpack.c.h.b16 %v60
  %v274 = vunpack.c.l.b16 %v61
  %v275 = vunpack.c.h.b16 %v61
  %v276 = vunpack.c.l.b16 %v62
  %v277 = vunpack.c.h.b16 %v62
  %v278 = vunpack.c.l.b16 %v63
  %v279 = vunpack.c.h.b16 %v63
  %v280 = vunpack.c.l.b16 %v64
  %v281 = vunpack.c.h.b16 %v64
  %v282 = vunpack.c.l.b16 %v65
  %v283 = vunpack.c.h.b16 %v65
  %v284 = vunpack.c.l.b16 %v66
  %v285 = vunpack.c.h.b16 %v66
  %v286 = vunpack.c.l.b16 %v67
  %v287 = vunpack.c.h.b16 %v67
  %v288 = vunpack.c.l.b16 %v68
  %v289 = vunpack.c.h.b16 %v68
  %v290 = vunpack.c.l.b16 %v69
  %v291 = vunpack.c.h.b16 %v69
  %v292 = vunpack.c.l.b16 %v70
  %v293 = vunpack.c.h.b16 %v70
  %v294 = vunpack.c.l.b16 %v71
  %v295 = vunpack.c.h.b16 %v71
  %v296 = vunpack.c.l.b16 %v72
  %v297 = vunpack.c.h.b16 %v72
  %v298 = vunpack.c.l.b16 %v73
  %v299 = vunpack.c.h.b16 %v73
  %v300 = vunpack.c.l.b16 %v74
  %v301 = vunpack.c.h.b16 %v74
  %v302 = vunpack.c.l.b16 %v75
  %v303 = vunpack.c.h.b16 %v75
  %v304 = vunpack.c.l.b16 %v76
  %v305 = vunpack.c.h.b16 %v76
  %v306 = vunpack.c.l.b16 %v77
  %v307 = vunpack.c.h.b16 %v77
  %v308 = vunpack.c.l.b16 %v78
  %v309 = vunpack.c.h.b16 %v78
  %v310 = vpack.c.b16 %v184, %v182
  %v311 = vpack.c.b16 %v185, %v183
  %v312 = vpack.c.b16 %v188, %v186
  %v313 = vpack.c.b16 %v189, %v187
  %v314 = vpack.c.b16 %v192, %v190
  %v315 = vpack.c.b16 %v193, %v191
  %v316 = vpack.c.b16 %v196, %v194
  %v317 = vpack.c.b16 %v197, %v195
  %v318 = vpack.c.b16 %v200, %v198
  %v319 = vpack.c.b16 %v201, %v199
  %v320 = vpack.c.b16 %v204, %v202
  %v321 = vpack.c.b16 %v205, %v203
  %v322 = vpack.c.b16 %v208, %v206
  %v323 = vpack.c.b16 %v209, %v207
  %v324 = vpack.c.b16 %v212, %v210
  %v325 = vpack.c.b16 %v213, %v211
  %v326 = vpack.c.b16 %v216, %v214
  %v327 = vpack.c.b16 %v217, %v215
  %v328 = vpack.c.b16 %v220, %v218
  %v329 = vpack.c.b16 %v221, %v219
  %v330 = vpack.c.b16 %v224, %v222
  %v331 = vpack.c.b16 %v225, %v223
  %v332 = vpack.c.b16 %v228, %v226
  %v333 = vpack.c.b16 %v229, %v227
  %v334 = vpack.c.b16 %v232, %v230
  %v335 = vpack.c.b16 %v233, %v231
  %v336 = vpack.c.b16 %v236, %v234
  %v337 = vpack.c.b16 %v237, %v235
  %v338 = vpack.c.b16 %v240, %v238
  %v339 = vpack.c.b16 %v241, %v239
  %v340 = vpack.c.b16 %v244, %v242
  %v341 = vpack.c.b16 %v245, %v243
  %v342 = vpack.c.b16 %v248, %v246
  %v343 = vpack.c.b16 %v249, %v247
  %v344 = vpack.c.b16 %v252, %v250
  %v345 = vpack.c.b16 %v253, %v251
  %v346 = vpack.c.b16 %v256, %v254
  %v347 = vpack.c.b16 %v257, %v255
  %v348 = vpack.c.b16 %v260, %v258
  %v349 = vpack.c.b16 %v261, %v259
  %v350 = vpack.c.b16 %v264, %v262
  %v351 = vpack.c.b16 %v265, %v263
  %v352 = vpack.c.b16 %v268, %v266
  %v353 = vpack.c.b16 %v269, %v267
  %v354 = vpack.c.b16 %v272, %v270
  %v355 = vpack.c.b16 %v273, %v271
  %v356 = vpack.c.b16 %v276, %v274
  %v357 = vpack.c.b16 %v277, %v275
  %v358 = vpack.c.b16 %v280, %v278
  %v359 = vpack.c.b16 %v281, %v279
  %v360 = vpack.c.b16 %v284, %v282
  %v361 = vpack.c.b16 %v285, %v283
  %v362 = vpack.c.b16 %v288, %v286
  %v363 = vpack.c.b16 %v289, %v287
  %v364 = vpack.c.b16 %v292, %v290
  %v365 = vpack.c.b16 %v293, %v291
  %v366 = vpack.c.b16 %v296, %v294
  %v367 = vpack.c.b16 %v297, %v295
  %v368 = vpack.c.b16 %v300, %v298
  %v369 = vpack.c.b16 %v301, %v299
  %v370 = vpack.c.b16 %v304, %v302
  %v371 = vpack.c.b16 %v305, %v303
  %v372 = vpack.c.b16 %v308, %v306
  %v373 = vpack.c.b16 %v309, %v307
  %v470 = vunpack.c.l.b16 %v79
  %v471 = vunpack.c.l.b16 %v80
  %v472 = vunpack.c.l.b16 %v81
  %v473 = vunpack.c.l.b16 %v82
  %v474 = vunpack.c.l.b16 %v83
  %v475 = vunpack.c.l.b16 %v84
  %v476 = vunpack.c.l.b16 %v85
  %v477 = vunpack.c.l.b16 %v86
  %v478 = vunpack.c.l.b16 %v87
  %v479 = vunpack.c.l.b16 %v88
  %v480 = vunpack.c.l.b16 %v89
  %v481 = vunpack.c.l.b16 %v90
  %v482 = vunpack.c.l.b16 %v91
  %v483 = vunpack.c.l.b16 %v92
  %v484 = vunpack.c.l.b16 %v93
  %v485 = vunpack.c.l.b16 %v94
  %v486 = vunpack.c.l.b16 %v95
  %v487 = vunpack.c.l.b16 %v96
  %v488 = vunpack.c.l.b16 %v97
  %v489 = vunpack.c.l.b16 %v98
  %v490 = vunpack.c.l.b16 %v99
  %v491 = vunpack.c.l.b16 %v100
  %v492 = vunpack.c.l.b16 %v101
  %v493 = vunpack.c.l.b16 %v102
  %v494 = vunpack.c.l.b16 %v103
  %v495 = vunpack.c.l.b16 %v104
  %v496 = vunpack.c.l.b16 %v105
  %v497 = vunpack.c.l.b16 %v106
  %v498 = vunpack.c.l.b16 %v107
  %v499 = vunpack.c.l.b16 %v108
  %v500 = vunpack.c.l.b16 %v109
  %v501 = vunpack.c.l.b16 %v110
  %v502 = vpack.c.b16 %v471, %v470
  %v503 = vpack.c.b16 %v473, %v472
  %v504 = vpack.c.b16 %v475, %v474
  %v505 = vpack.c.b16 %v477, %v476
  %v506 = vpack.c.b16 %v479, %v478
  %v507 = vpack.c.b16 %v481, %v480
  %v508 = vpack.c.b16 %v483, %v482
  %v509 = vpack.c.b16 %v485, %v484
  %v510 = vpack.c.b16 %v487, %v486
  %v511 = vpack.c.b16 %v489, %v488
  %v512 = vpack.c.b16 %v491, %v490
  %v513 = vpack.c.b16 %v493, %v492
  %v514 = vpack.c.b16 %v495, %v494
  %v515 = vpack.c.b16 %v497, %v496
  %v516 = vpack.c.b16 %v499, %v498
  %v517 = vpack.c.b16 %v501, %v500
  %534 = vmatprep.subr.bf16.mxu0 0
  %535 = vmatpush1.bf16.msra.mxu0 %v502
  %536 = vmatprep.subr.bf16.mxu0 0
  %537 = vmatpush1.bf16.msra.mxu0 %v503
  %538 = vmatprep.subr.bf16.mxu0 0
  %539 = vmatpush1.bf16.msra.mxu0 %v504
  %540 = vmatprep.subr.bf16.mxu0 0
  %541 = vmatpush1.bf16.msra.mxu0 %v505
  %542 = vmatprep.subr.bf16.mxu0 0
  %543 = vmatpush1.bf16.msra.mxu0 %v506
  %544 = vmatprep.subr.bf16.mxu0 0
  %545 = vmatpush1.bf16.msra.mxu0 %v507
  %546 = vmatprep.subr.bf16.mxu0 0
  %547 = vmatpush1.bf16.msra.mxu0 %v508
  %548 = vmatprep.subr.bf16.mxu0 0
  %549 = vmatpush1.bf16.msra.mxu0 %v509
  %550 = vmatprep.subr.bf16.mxu0 0
  %551 = vmatpush1.bf16.msra.mxu0 %v510
  %552 = vmatprep.subr.bf16.mxu0 0
  %553 = vmatpush1.bf16.msra.mxu0 %v511
  %554 = vmatprep.subr.bf16.mxu0 0
  %555 = vmatpush1.bf16.msra.mxu0 %v512
  %556 = vmatprep.subr.bf16.mxu0 0
  %557 = vmatpush1.bf16.msra.mxu0 %v513
  %558 = vmatprep.subr.bf16.mxu0 0
  %559 = vmatpush1.bf16.msra.mxu0 %v514
  %560 = vmatprep.subr.bf16.mxu0 0
  %561 = vmatpush1.bf16.msra.mxu0 %v515
  %562 = vmatprep.subr.bf16.mxu0 0
  %563 = vmatpush1.bf16.msra.mxu0 %v516
  %564 = vmatprep.subr.bf16.mxu0 0
  %565 = vmatpush1.bf16.msra.mxu0 %v517
  %566 = vmatprep.mubr.bf16.mxu0 %v311
  %567 = vmatmul.mubr.bf16.gmra.mrb[0].mxu0 %v310
  %v568 = vpop.f32.mrb[0].mxu0
  %v569 = vadd.f32 %v116, %v568
  %v570 = vpop.f32.mrb[0].mxu0
  %v571 = vpop.f32.mrb[0].mxu0
  %v572 = vadd.f32 %v116, %v571
  %v573 = vpop.f32.mrb[0].mxu0
  %574 = vmatprep.mubr.bf16.mxu0 %v313
  %575 = vmatmul.mubr.bf16.gmra.mrb[0].mxu0 %v312
  %v576 = vpop.f32.mrb[0].mxu0
  %v577 = vadd.f32 %v116, %v576
  %v578 = vpop.f32.mrb[0].mxu0
  %v579 = vpop.f32.mrb[0].mxu0
  %v580 = vadd.f32 %v116, %v579
  %v581 = vpop.f32.mrb[0].mxu0
  %582 = vmatprep.mubr.bf16.mxu0 %v315
  %583 = vmatmul.mubr.bf16.gmra.mrb[0].mxu0 %v314
  %v584 = vpop.f32.mrb[0].mxu0
  %v585 = vadd.f32 %v116, %v584
  %v586 = vpop.f32.mrb[0].mxu0
  %v587 = vpop.f32.mrb[0].mxu0
  %v588 = vadd.f32 %v116, %v587
  %v589 = vpop.f32.mrb[0].mxu0
  %590 = vmatprep.mubr.bf16.mxu0 %v317
  %591 = vmatmul.mubr.bf16.gmra.mrb[0].mxu0 %v316
  %v592 = vpop.f32.mrb[0].mxu0
  %v593 = vadd.f32 %v116, %v592
  %v594 = vpop.f32.mrb[0].mxu0
  %v595 = vpop.f32.mrb[0].mxu0
  %v596 = vadd.f32 %v116, %v595
  %v597 = vpop.f32.mrb[0].mxu0
  %598 = vmatprep.mubr.bf16.mxu0 %v319
  %599 = vmatmul.mubr.bf16.gmra.mrb[0].mxu0 %v318
  %v600 = vpop.f32.mrb[0].mxu0
  %v601 = vadd.f32 %v116, %v600
  %v602 = vpop.f32.mrb[0].mxu0
  %v603 = vpop.f32.mrb[0].mxu0
  %v604 = vadd.f32 %v116, %v603
  %v605 = vpop.f32.mrb[0].mxu0
  %606 = vmatprep.mubr.bf16.mxu0 %v321
  %607 = vmatmul.mubr.bf16.gmra.mrb[0].mxu0 %v320
  %v608 = vpop.f32.mrb[0].mxu0
  %v609 = vadd.f32 %v116, %v608
  %v610 = vpop.f32.mrb[0].mxu0
  %v611 = vpop.f32.mrb[0].mxu0
  %v612 = vadd.f32 %v116, %v611
  %v613 = vpop.f32.mrb[0].mxu0
  %614 = vmatprep.mubr.bf16.mxu0 %v323
  %615 = vmatmul.mubr.bf16.gmra.mrb[0].mxu0 %v322
  %v616 = vpop.f32.mrb[0].mxu0
  %v617 = vadd.f32 %v116, %v616
  %v618 = vpop.f32.mrb[0].mxu0
  %v619 = vpop.f32.mrb[0].mxu0
  %v620 = vadd.f32 %v116, %v619
  %v621 = vpop.f32.mrb[0].mxu0
  %622 = vmatprep.mubr.bf16.mxu0 %v325
  %623 = vmatmul.mubr.bf16.gmra.mrb[0].mxu0 %v324
  %v624 = vpop.f32.mrb[0].mxu0
  %v625 = vadd.f32 %v116, %v624
  %v626 = vpop.f32.mrb[0].mxu0
  %v627 = vpop.f32.mrb[0].mxu0
  %v628 = vadd.f32 %v116, %v627
  %v629 = vpop.f32.mrb[0].mxu0
  %630 = vmatprep.mubr.bf16.mxu0 %v327
  %631 = vmatmul.mubr.bf16.gmra.mrb[0].mxu0 %v326
  %v632 = vpop.f32.mrb[0].mxu0
  %v633 = vadd.f32 %v116, %v632
  %v634 = vpop.f32.mrb[0].mxu0
  %v635 = vpop.f32.mrb[0].mxu0
  %v636 = vadd.f32 %v116, %v635
  %v637 = vpop.f32.mrb[0].mxu0
  %638 = vmatprep.mubr.bf16.mxu0 %v329
  %639 = vmatmul.mubr.bf16.gmra.mrb[0].mxu0 %v328
  %v640 = vpop.f32.mrb[0].mxu0
  %v641 = vadd.f32 %v116, %v640
  %v642 = vpop.f32.mrb[0].mxu0
  %v643 = vpop.f32.mrb[0].mxu0
  %v644 = vadd.f32 %v116, %v643
  %v645 = vpop.f32.mrb[0].mxu0
  %646 = vmatprep.mubr.bf16.mxu0 %v331
  %647 = vmatmul.mubr.bf16.gmra.mrb[0].mxu0 %v330
  %v648 = vpop.f32.mrb[0].mxu0
  %v649 = vadd.f32 %v116, %v648
  %v650 = vpop.f32.mrb[0].mxu0
  %v651 = vpop.f32.mrb[0].mxu0
  %v652 = vadd.f32 %v116, %v651
  %v653 = vpop.f32.mrb[0].mxu0
  %654 = vmatprep.mubr.bf16.mxu0 %v333
  %655 = vmatmul.mubr.bf16.gmra.mrb[0].mxu0 %v332
  %v656 = vpop.f32.mrb[0].mxu0
  %v657 = vadd.f32 %v116, %v656
  %v658 = vpop.f32.mrb[0].mxu0
  %v659 = vpop.f32.mrb[0].mxu0
  %v660 = vadd.f32 %v116, %v659
  %v661 = vpop.f32.mrb[0].mxu0
  %662 = vmatprep.mubr.bf16.mxu0 %v335
  %663 = vmatmul.mubr.bf16.gmra.mrb[0].mxu0 %v334
  %v664 = vpop.f32.mrb[0].mxu0
  %v665 = vadd.f32 %v116, %v664
  %v666 = vpop.f32.mrb[0].mxu0
  %v667 = vpop.f32.mrb[0].mxu0
  %v668 = vadd.f32 %v116, %v667
  %v669 = vpop.f32.mrb[0].mxu0
  %670 = vmatprep.mubr.bf16.mxu0 %v337
  %671 = vmatmul.mubr.bf16.gmra.mrb[0].mxu0 %v336
  %v672 = vpop.f32.mrb[0].mxu0
  %v673 = vadd.f32 %v116, %v672
  %v674 = vpop.f32.mrb[0].mxu0
  %v675 = vpop.f32.mrb[0].mxu0
  %v676 = vadd.f32 %v116, %v675
  %v677 = vpop.f32.mrb[0].mxu0
  %678 = vmatprep.mubr.bf16.mxu0 %v339
  %679 = vmatmul.mubr.bf16.gmra.mrb[0].mxu0 %v338
  %v680 = vpop.f32.mrb[0].mxu0
  %v681 = vadd.f32 %v116, %v680
  %v682 = vpop.f32.mrb[0].mxu0
  %v683 = vpop.f32.mrb[0].mxu0
  %v684 = vadd.f32 %v116, %v683
  %v685 = vpop.f32.mrb[0].mxu0
  %686 = vmatprep.mubr.bf16.mxu0 %v341
  %687 = vmatmul.mubr.bf16.gmra.mrb[0].mxu0 %v340
  %v688 = vpop.f32.mrb[0].mxu0
  %v689 = vadd.f32 %v116, %v688
  %v690 = vpop.f32.mrb[0].mxu0
  %v691 = vpop.f32.mrb[0].mxu0
  %v692 = vadd.f32 %v116, %v691
  %v693 = vpop.f32.mrb[0].mxu0
  %694 = vmatprep.mubr.bf16.mxu0 %v343
  %695 = vmatmul.mubr.bf16.gmra.mrb[0].mxu0 %v342
  %v696 = vpop.f32.mrb[0].mxu0
  %v697 = vadd.f32 %v116, %v696
  %v698 = vpop.f32.mrb[0].mxu0
  %v699 = vpop.f32.mrb[0].mxu0
  %v700 = vadd.f32 %v116, %v699
  %v701 = vpop.f32.mrb[0].mxu0
  %702 = vmatprep.mubr.bf16.mxu0 %v345
  %703 = vmatmul.mubr.bf16.gmra.mrb[0].mxu0 %v344
  %v704 = vpop.f32.mrb[0].mxu0
  %v705 = vadd.f32 %v116, %v704
  %v706 = vpop.f32.mrb[0].mxu0
  %v707 = vpop.f32.mrb[0].mxu0
  %v708 = vadd.f32 %v116, %v707
  %v709 = vpop.f32.mrb[0].mxu0
  %710 = vmatprep.mubr.bf16.mxu0 %v347
  %711 = vmatmul.mubr.bf16.gmra.mrb[0].mxu0 %v346
  %v712 = vpop.f32.mrb[0].mxu0
  %v713 = vadd.f32 %v116, %v712
  %v714 = vpop.f32.mrb[0].mxu0
  %v715 = vpop.f32.mrb[0].mxu0
  %v716 = vadd.f32 %v116, %v715
  %v717 = vpop.f32.mrb[0].mxu0
  %718 = vmatprep.mubr.bf16.mxu0 %v349
  %719 = vmatmul.mubr.bf16.gmra.mrb[0].mxu0 %v348
  %v720 = vpop.f32.mrb[0].mxu0
  %v721 = vadd.f32 %v116, %v720
  %v722 = vpop.f32.mrb[0].mxu0
  %v723 = vpop.f32.mrb[0].mxu0
  %v724 = vadd.f32 %v116, %v723
  %v725 = vpop.f32.mrb[0].mxu0
  %726 = vmatprep.mubr.bf16.mxu0 %v351
  %727 = vmatmul.mubr.bf16.gmra.mrb[0].mxu0 %v350
  %v728 = vpop.f32.mrb[0].mxu0
  %v729 = vadd.f32 %v116, %v728
  %v730 = vpop.f32.mrb[0].mxu0
  %v731 = vpop.f32.mrb[0].mxu0
  %v732 = vadd.f32 %v116, %v731
  %v733 = vpop.f32.mrb[0].mxu0
  %734 = vmatprep.mubr.bf16.mxu0 %v353
  %735 = vmatmul.mubr.bf16.gmra.mrb[0].mxu0 %v352
  %v736 = vpop.f32.mrb[0].mxu0
  %v737 = vadd.f32 %v116, %v736
  %v738 = vpop.f32.mrb[0].mxu0
  %v739 = vpop.f32.mrb[0].mxu0
  %v740 = vadd.f32 %v116, %v739
  %v741 = vpop.f32.mrb[0].mxu0
  %742 = vmatprep.mubr.bf16.mxu0 %v355
  %743 = vmatmul.mubr.bf16.gmra.mrb[0].mxu0 %v354
  %v744 = vpop.f32.mrb[0].mxu0
  %v745 = vadd.f32 %v116, %v744
  %v746 = vpop.f32.mrb[0].mxu0
  %v747 = vpop.f32.mrb[0].mxu0
  %v748 = vadd.f32 %v116, %v747
  %v749 = vpop.f32.mrb[0].mxu0
  %750 = vmatprep.mubr.bf16.mxu0 %v357
  %751 = vmatmul.mubr.bf16.gmra.mrb[0].mxu0 %v356
  %v752 = vpop.f32.mrb[0].mxu0
  %v753 = vadd.f32 %v116, %v752
  %v754 = vpop.f32.mrb[0].mxu0
  %v755 = vpop.f32.mrb[0].mxu0
  %v756 = vadd.f32 %v116, %v755
  %v757 = vpop.f32.mrb[0].mxu0
  %758 = vmatprep.mubr.bf16.mxu0 %v359
  %759 = vmatmul.mubr.bf16.gmra.mrb[0].mxu0 %v358
  %v760 = vpop.f32.mrb[0].mxu0
  %v761 = vadd.f32 %v116, %v760
  %v762 = vpop.f32.mrb[0].mxu0
  %v763 = vpop.f32.mrb[0].mxu0
  %v764 = vadd.f32 %v116, %v763
  %v765 = vpop.f32.mrb[0].mxu0
  %766 = vmatprep.mubr.bf16.mxu0 %v361
  %767 = vmatmul.mubr.bf16.gmra.mrb[0].mxu0 %v360
  %v768 = vpop.f32.mrb[0].mxu0
  %v769 = vadd.f32 %v116, %v768
  %v770 = vpop.f32.mrb[0].mxu0
  %v771 = vpop.f32.mrb[0].mxu0
  %v772 = vadd.f32 %v116, %v771
  %v773 = vpop.f32.mrb[0].mxu0
  %774 = vmatprep.mubr.bf16.mxu0 %v363
  %775 = vmatmul.mubr.bf16.gmra.mrb[0].mxu0 %v362
  %v776 = vpop.f32.mrb[0].mxu0
  %v777 = vadd.f32 %v116, %v776
  %v778 = vpop.f32.mrb[0].mxu0
  %v779 = vpop.f32.mrb[0].mxu0
  %v780 = vadd.f32 %v116, %v779
  %v781 = vpop.f32.mrb[0].mxu0
  %782 = vmatprep.mubr.bf16.mxu0 %v365
  %783 = vmatmul.mubr.bf16.gmra.mrb[0].mxu0 %v364
  %v784 = vpop.f32.mrb[0].mxu0
  %v785 = vadd.f32 %v116, %v784
  %v786 = vpop.f32.mrb[0].mxu0
  %v787 = vpop.f32.mrb[0].mxu0
  %v788 = vadd.f32 %v116, %v787
  %v789 = vpop.f32.mrb[0].mxu0
  %790 = vmatprep.mubr.bf16.mxu0 %v367
  %791 = vmatmul.mubr.bf16.gmra.mrb[0].mxu0 %v366
  %v792 = vpop.f32.mrb[0].mxu0
  %v793 = vadd.f32 %v116, %v792
  %v794 = vpop.f32.mrb[0].mxu0
  %v795 = vpop.f32.mrb[0].mxu0
  %v796 = vadd.f32 %v116, %v795
  %v797 = vpop.f32.mrb[0].mxu0
  %798 = vmatprep.mubr.bf16.mxu0 %v369
  %799 = vmatmul.mubr.bf16.gmra.mrb[0].mxu0 %v368
  %v800 = vpop.f32.mrb[0].mxu0
  %v801 = vadd.f32 %v116, %v800
  %v802 = vpop.f32.mrb[0].mxu0
  %v803 = vpop.f32.mrb[0].mxu0
  %v804 = vadd.f32 %v116, %v803
  %v805 = vpop.f32.mrb[0].mxu0
  %806 = vmatprep.mubr.bf16.mxu0 %v371
  %807 = vmatmul.mubr.bf16.gmra.mrb[0].mxu0 %v370
  %v808 = vpop.f32.mrb[0].mxu0
  %v809 = vadd.f32 %v116, %v808
  %v810 = vpop.f32.mrb[0].mxu0
  %v811 = vpop.f32.mrb[0].mxu0
  %v812 = vadd.f32 %v116, %v811
  %v813 = vpop.f32.mrb[0].mxu0
  %814 = vmatprep.mubr.bf16.mxu0 %v373
  %815 = vmatmul.mubr.bf16.gmra.mrb[0].mxu0 %v372
  %v816 = vpop.f32.mrb[0].mxu0
  %v817 = vadd.f32 %v116, %v816
  %v818 = vpop.f32.mrb[0].mxu0
  %v819 = vpop.f32.mrb[0].mxu0
  %v820 = vadd.f32 %v116, %v819
  %v821 = vpop.f32.mrb[0].mxu0
  %822 = vdwg.mxu0
  %v823 = vmax.f32 %v569, 0.0
  %v824 = vmax.f32 %v572, 0.0
  %v825 = vmax.f32 %v577, 0.0
  %v826 = vmax.f32 %v580, 0.0
  %v827 = vmax.f32 %v585, 0.0
  %v828 = vmax.f32 %v588, 0.0
  %v829 = vmax.f32 %v593, 0.0
  %v830 = vmax.f32 %v596, 0.0
  %v831 = vmax.f32 %v601, 0.0
  %v832 = vmax.f32 %v604, 0.0
  %v833 = vmax.f32 %v609, 0.0
  %v834 = vmax.f32 %v612, 0.0
  %v835 = vmax.f32 %v617, 0.0
  %v836 = vmax.f32 %v620, 0.0
  %v837 = vmax.f32 %v625, 0.0
  %v838 = vmax.f32 %v628, 0.0
  %v839 = vmax.f32 %v633, 0.0
  %v840 = vmax.f32 %v636, 0.0
  %v841 = vmax.f32 %v641, 0.0
  %v842 = vmax.f32 %v644, 0.0
  %v843 = vmax.f32 %v649, 0.0
  %v844 = vmax.f32 %v652, 0.0
  %v845 = vmax.f32 %v657, 0.0
  %v846 = vmax.f32 %v660, 0.0
  %v847 = vmax.f32 %v665, 0.0
  %v848 = vmax.f32 %v668, 0.0
  %v849 = vmax.f32 %v673, 0.0
  %v850 = vmax.f32 %v676, 0.0
  %v851 = vmax.f32 %v681, 0.0
  %v852 = vmax.f32 %v684, 0.0
  %v853 = vmax.f32 %v689, 0.0
  %v854 = vmax.f32 %v692, 0.0
  %v855 = vmax.f32 %v697, 0.0
  %v856 = vmax.f32 %v700, 0.0
  %v857 = vmax.f32 %v705, 0.0
  %v858 = vmax.f32 %v708, 0.0
  %v859 = vmax.f32 %v713, 0.0
  %v860 = vmax.f32 %v716, 0.0
  %v861 = vmax.f32 %v721, 0.0
  %v862 = vmax.f32 %v724, 0.0
  %v863 = vmax.f32 %v729, 0.0
  %v864 = vmax.f32 %v732, 0.0
  %v865 = vmax.f32 %v737, 0.0
  %v866 = vmax.f32 %v740, 0.0
  %v867 = vmax.f32 %v745, 0.0
  %v868 = vmax.f32 %v748, 0.0
  %v869 = vmax.f32 %v753, 0.0
  %v870 = vmax.f32 %v756, 0.0
  %v871 = vmax.f32 %v761, 0.0
  %v872 = vmax.f32 %v764, 0.0
  %v873 = vmax.f32 %v769, 0.0
  %v874 = vmax.f32 %v772, 0.0
  %v875 = vmax.f32 %v777, 0.0
  %v876 = vmax.f32 %v780, 0.0
  %v877 = vmax.f32 %v785, 0.0
  %v878 = vmax.f32 %v788, 0.0
  %v879 = vmax.f32 %v793, 0.0
  %v880 = vmax.f32 %v796, 0.0
  %v881 = vmax.f32 %v801, 0.0
  %v882 = vmax.f32 %v804, 0.0
  %v883 = vmax.f32 %v809, 0.0
  %v884 = vmax.f32 %v812, 0.0
  %v885 = vmax.f32 %v817, 0.0
  %v886 = vmax.f32 %v820, 0.0
  %v887 = vpack.c.bf16 %v824, %v823
  %v888 = vpack.c.bf16 %v826, %v825
  %v889 = vpack.c.bf16 %v828, %v827
  %v890 = vpack.c.bf16 %v830, %v829
  %v891 = vpack.c.bf16 %v832, %v831
  %v892 = vpack.c.bf16 %v834, %v833
  %v893 = vpack.c.bf16 %v836, %v835
  %v894 = vpack.c.bf16 %v838, %v837
  %v895 = vpack.c.bf16 %v840, %v839
  %v896 = vpack.c.bf16 %v842, %v841
  %v897 = vpack.c.bf16 %v844, %v843
  %v898 = vpack.c.bf16 %v846, %v845
  %v899 = vpack.c.bf16 %v848, %v847
  %v900 = vpack.c.bf16 %v850, %v849
  %v901 = vpack.c.bf16 %v852, %v851
  %v902 = vpack.c.bf16 %v854, %v853
  %v903 = vpack.c.bf16 %v856, %v855
  %v904 = vpack.c.bf16 %v858, %v857
  %v905 = vpack.c.bf16 %v860, %v859
  %v906 = vpack.c.bf16 %v862, %v861
  %v907 = vpack.c.bf16 %v864, %v863
  %v908 = vpack.c.bf16 %v866, %v865
  %v909 = vpack.c.bf16 %v868, %v867
  %v910 = vpack.c.bf16 %v870, %v869
  %v911 = vpack.c.bf16 %v872, %v871
  %v912 = vpack.c.bf16 %v874, %v873
  %v913 = vpack.c.bf16 %v876, %v875
  %v914 = vpack.c.bf16 %v878, %v877
  %v915 = vpack.c.bf16 %v880, %v879
  %v916 = vpack.c.bf16 %v882, %v881
  %v917 = vpack.c.bf16 %v884, %v883
  %v918 = vpack.c.bf16 %v886, %v885
  %v951 = vunpack.c.l.b16 %v887
  %v952 = vunpack.c.h.b16 %v887
  %v953 = vunpack.c.l.b16 %v888
  %v954 = vunpack.c.h.b16 %v888
  %v955 = vunpack.c.l.b16 %v889
  %v956 = vunpack.c.h.b16 %v889
  %v957 = vunpack.c.l.b16 %v890
  %v958 = vunpack.c.h.b16 %v890
  %v959 = vunpack.c.l.b16 %v891
  %v960 = vunpack.c.h.b16 %v891
  %v961 = vunpack.c.l.b16 %v892
  %v962 = vunpack.c.h.b16 %v892
  %v963 = vunpack.c.l.b16 %v893
  %v964 = vunpack.c.h.b16 %v893
  %v965 = vunpack.c.l.b16 %v894
  %v966 = vunpack.c.h.b16 %v894
  %v967 = vunpack.c.l.b16 %v895
  %v968 = vunpack.c.h.b16 %v895
  %v969 = vunpack.c.l.b16 %v896
  %v970 = vunpack.c.h.b16 %v896
  %v971 = vunpack.c.l.b16 %v897
  %v972 = vunpack.c.h.b16 %v897
  %v973 = vunpack.c.l.b16 %v898
  %v974 = vunpack.c.h.b16 %v898
  %v975 = vunpack.c.l.b16 %v899
  %v976 = vunpack.c.h.b16 %v899
  %v977 = vunpack.c.l.b16 %v900
  %v978 = vunpack.c.h.b16 %v900
  %v979 = vunpack.c.l.b16 %v901
  %v980 = vunpack.c.h.b16 %v901
  %v981 = vunpack.c.l.b16 %v902
  %v982 = vunpack.c.h.b16 %v902
  %v983 = vunpack.c.l.b16 %v903
  %v984 = vunpack.c.h.b16 %v903
  %v985 = vunpack.c.l.b16 %v904
  %v986 = vunpack.c.h.b16 %v904
  %v987 = vunpack.c.l.b16 %v905
  %v988 = vunpack.c.h.b16 %v905
  %v989 = vunpack.c.l.b16 %v906
  %v990 = vunpack.c.h.b16 %v906
  %v991 = vunpack.c.l.b16 %v907
  %v992 = vunpack.c.h.b16 %v907
  %v993 = vunpack.c.l.b16 %v908
  %v994 = vunpack.c.h.b16 %v908
  %v995 = vunpack.c.l.b16 %v909
  %v996 = vunpack.c.h.b16 %v909
  %v997 = vunpack.c.l.b16 %v910
  %v998 = vunpack.c.h.b16 %v910
  %v999 = vunpack.c.l.b16 %v911
  %v1000 = vunpack.c.h.b16 %v911
  %v1001 = vunpack.c.l.b16 %v912
  %v1002 = vunpack.c.h.b16 %v912
  %v1003 = vunpack.c.l.b16 %v913
  %v1004 = vunpack.c.h.b16 %v913
  %v1005 = vunpack.c.l.b16 %v914
  %v1006 = vunpack.c.h.b16 %v914
  %v1007 = vunpack.c.l.b16 %v915
  %v1008 = vunpack.c.h.b16 %v915
  %v1009 = vunpack.c.l.b16 %v916
  %v1010 = vunpack.c.h.b16 %v916
  %v1011 = vunpack.c.l.b16 %v917
  %v1012 = vunpack.c.h.b16 %v917
  %v1013 = vunpack.c.l.b16 %v918
  %v1014 = vunpack.c.h.b16 %v918
  %v1015 = vpack.c.b16 %v951, %v951
  %v1016 = vpack.c.b16 %v952, %v952
  %v1017 = vpack.c.b16 %v953, %v953
  %v1018 = vpack.c.b16 %v954, %v954
  %v1019 = vpack.c.b16 %v955, %v955
  %v1020 = vpack.c.b16 %v956, %v956
  %v1021 = vpack.c.b16 %v957, %v957
  %v1022 = vpack.c.b16 %v958, %v958
  %v1023 = vpack.c.b16 %v959, %v959
  %v1024 = vpack.c.b16 %v960, %v960
  %v1025 = vpack.c.b16 %v961, %v961
  %v1026 = vpack.c.b16 %v962, %v962
  %v1027 = vpack.c.b16 %v963, %v963
  %v1028 = vpack.c.b16 %v964, %v964
  %v1029 = vpack.c.b16 %v965, %v965
  %v1030 = vpack.c.b16 %v966, %v966
  %v1031 = vpack.c.b16 %v967, %v967
  %v1032 = vpack.c.b16 %v968, %v968
  %v1033 = vpack.c.b16 %v969, %v969
  %v1034 = vpack.c.b16 %v970, %v970
  %v1035 = vpack.c.b16 %v971, %v971
  %v1036 = vpack.c.b16 %v972, %v972
  %v1037 = vpack.c.b16 %v973, %v973
  %v1038 = vpack.c.b16 %v974, %v974
  %v1039 = vpack.c.b16 %v975, %v975
  %v1040 = vpack.c.b16 %v976, %v976
  %v1041 = vpack.c.b16 %v977, %v977
  %v1042 = vpack.c.b16 %v978, %v978
  %v1043 = vpack.c.b16 %v979, %v979
  %v1044 = vpack.c.b16 %v980, %v980
  %v1045 = vpack.c.b16 %v981, %v981
  %v1046 = vpack.c.b16 %v982, %v982
  %v1047 = vpack.c.b16 %v983, %v983
  %v1048 = vpack.c.b16 %v984, %v984
  %v1049 = vpack.c.b16 %v985, %v985
  %v1050 = vpack.c.b16 %v986, %v986
  %v1051 = vpack.c.b16 %v987, %v987
  %v1052 = vpack.c.b16 %v988, %v988
  %v1053 = vpack.c.b16 %v989, %v989
  %v1054 = vpack.c.b16 %v990, %v990
  %v1055 = vpack.c.b16 %v991, %v991
  %v1056 = vpack.c.b16 %v992, %v992
  %v1057 = vpack.c.b16 %v993, %v993
  %v1058 = vpack.c.b16 %v994, %v994
  %v1059 = vpack.c.b16 %v995, %v995
  %v1060 = vpack.c.b16 %v996, %v996
  %v1061 = vpack.c.b16 %v997, %v997
  %v1062 = vpack.c.b16 %v998, %v998
  %v1063 = vpack.c.b16 %v999, %v999
  %v1064 = vpack.c.b16 %v1000, %v1000
  %v1065 = vpack.c.b16 %v1001, %v1001
  %v1066 = vpack.c.b16 %v1002, %v1002
  %v1067 = vpack.c.b16 %v1003, %v1003
  %v1068 = vpack.c.b16 %v1004, %v1004
  %v1069 = vpack.c.b16 %v1005, %v1005
  %v1070 = vpack.c.b16 %v1006, %v1006
  %v1071 = vpack.c.b16 %v1007, %v1007
  %v1072 = vpack.c.b16 %v1008, %v1008
  %v1073 = vpack.c.b16 %v1009, %v1009
  %v1074 = vpack.c.b16 %v1010, %v1010
  %v1075 = vpack.c.b16 %v1011, %v1011
  %v1076 = vpack.c.b16 %v1012, %v1012
  %v1077 = vpack.c.b16 %v1013, %v1013
  %v1078 = vpack.c.b16 %v1014, %v1014
  %1143 = vst [vmem:[%s3] sm:$0xf] %v1015
  %1144 = vst [vmem:[%s3 + $0x4] sm:$0xf] %v1016
  %1145 = vst [vmem:[%s3 + $0x8] sm:$0xf] %v1017
  %1146 = vst [vmem:[%s3 + $0xc] sm:$0xf] %v1018
  %1147 = vst [vmem:[%s3 + $0x10] sm:$0xf] %v1019
  %1148 = vst [vmem:[%s3 + $0x14] sm:$0xf] %v1020
  %1149 = vst [vmem:[%s3 + $0x18] sm:$0xf] %v1021
  %1150 = vst [vmem:[%s3 + $0x1c] sm:$0xf] %v1022
  %1151 = vst [vmem:[%s3 + $0x20] sm:$0xf] %v1023
  %1152 = vst [vmem:[%s3 + $0x24] sm:$0xf] %v1024
  %1153 = vst [vmem:[%s3 + $0x28] sm:$0xf] %v1025
  %1154 = vst [vmem:[%s3 + $0x2c] sm:$0xf] %v1026
  %1155 = vst [vmem:[%s3 + $0x30] sm:$0xf] %v1027
  %1156 = vst [vmem:[%s3 + $0x34] sm:$0xf] %v1028
  %1157 = vst [vmem:[%s3 + $0x38] sm:$0xf] %v1029
  %1158 = vst [vmem:[%s3 + $0x3c] sm:$0xf] %v1030
  %1159 = vst [vmem:[%s3 + $0x40] sm:$0xf] %v1031
  %1160 = vst [vmem:[%s3 + $0x44] sm:$0xf] %v1032
  %1161 = vst [vmem:[%s3 + $0x48] sm:$0xf] %v1033
  %1162 = vst [vmem:[%s3 + $0x4c] sm:$0xf] %v1034
  %1163 = vst [vmem:[%s3 + $0x50] sm:$0xf] %v1035
  %1164 = vst [vmem:[%s3 + $0x54] sm:$0xf] %v1036
  %1165 = vst [vmem:[%s3 + $0x58] sm:$0xf] %v1037
  %1166 = vst [vmem:[%s3 + $0x5c] sm:$0xf] %v1038
  %1167 = vst [vmem:[%s3 + $0x60] sm:$0xf] %v1039
  %1168 = vst [vmem:[%s3 + $0x64] sm:$0xf] %v1040
  %1169 = vst [vmem:[%s3 + $0x68] sm:$0xf] %v1041
  %1170 = vst [vmem:[%s3 + $0x6c] sm:$0xf] %v1042
  %1171 = vst [vmem:[%s3 + $0x70] sm:$0xf] %v1043
  %1172 = vst [vmem:[%s3 + $0x74] sm:$0xf] %v1044
  %1173 = vst [vmem:[%s3 + $0x78] sm:$0xf] %v1045
  %1174 = vst [vmem:[%s3 + $0x7c] sm:$0xf] %v1046
  %1175 = vst [vmem:[%s3 + $0x80] sm:$0xf] %v1047
  %1176 = vst [vmem:[%s3 + $0x84] sm:$0xf] %v1048
  %1177 = vst [vmem:[%s3 + $0x88] sm:$0xf] %v1049
  %1178 = vst [vmem:[%s3 + $0x8c] sm:$0xf] %v1050
  %1179 = vst [vmem:[%s3 + $0x90] sm:$0xf] %v1051
  %1180 = vst [vmem:[%s3 + $0x94] sm:$0xf] %v1052
  %1181 = vst [vmem:[%s3 + $0x98] sm:$0xf] %v1053
  %1182 = vst [vmem:[%s3 + $0x9c] sm:$0xf] %v1054
  %1183 = vst [vmem:[%s3 + $0xa0] sm:$0xf] %v1055
  %1184 = vst [vmem:[%s3 + $0xa4] sm:$0xf] %v1056
  %1185 = vst [vmem:[%s3 + $0xa8] sm:$0xf] %v1057
  %1186 = vst [vmem:[%s3 + $0xac] sm:$0xf] %v1058
  %1187 = vst [vmem:[%s3 + $0xb0] sm:$0xf] %v1059
  %1188 = vst [vmem:[%s3 + $0xb4] sm:$0xf] %v1060
  %1189 = vst [vmem:[%s3 + $0xb8] sm:$0xf] %v1061
  %1190 = vst [vmem:[%s3 + $0xbc] sm:$0xf] %v1062
  %1191 = vst [vmem:[%s3 + $0xc0] sm:$0xf] %v1063
  %1192 = vst [vmem:[%s3 + $0xc4] sm:$0xf] %v1064
  %1193 = vst [vmem:[%s3 + $0xc8] sm:$0xf] %v1065
  %1194 = vst [vmem:[%s3 + $0xcc] sm:$0xf] %v1066
  %1195 = vst [vmem:[%s3 + $0xd0] sm:$0xf] %v1067
  %1196 = vst [vmem:[%s3 + $0xd4] sm:$0xf] %v1068
  %1197 = vst [vmem:[%s3 + $0xd8] sm:$0xf] %v1069
  %1198 = vst [vmem:[%s3 + $0xdc] sm:$0xf] %v1070
  %1199 = vst [vmem:[%s3 + $0xe0] sm:$0xf] %v1071
  %1200 = vst [vmem:[%s3 + $0xe4] sm:$0xf] %v1072
  %1201 = vst [vmem:[%s3 + $0xe8] sm:$0xf] %v1073
  %1202 = vst [vmem:[%s3 + $0xec] sm:$0xf] %v1074
  %1203 = vst [vmem:[%s3 + $0xf0] sm:$0xf] %v1075
  %1204 = vst [vmem:[%s3 + $0xf4] sm:$0xf] %v1076
  %1205 = vst [vmem:[%s3 + $0xf8] sm:$0xf] %v1077
  %1206 = vst [vmem:[%s3 + $0xfc] sm:$0xf] %v1078
  // Predicated region
  $region14: #{drdnet_forward.22} parent=0 // pred_check
    _
  $region15: #{drdnet_forward.22} parent=0 // pred_check_branch
    %1208 = sbr.rel (0) target = $region17
  $region16: #{drdnet_forward.22} parent=0 // pred_region
    _
  $region17: #{drdnet_forward.22} parent=0 // pred_fallthru
    _
  // Predicated region
  $region18: #{drdnet_forward.22} parent=0 // pred_check
    _
  $region19: #{drdnet_forward.22} parent=0 // pred_check_branch
    %1210 = sbr.rel (0) target = $region21
  $region20: #{drdnet_forward.22} parent=0 // pred_region
    _
  $region21: #{drdnet_forward.22} parent=0 // pred_fallthru
    _

// kernel: drdnet_forward.23
$region0: #{drdnet_forward.23}
  #allocation0 [shape = 'u32[]', space=smem, size = 0x4, offset = 0x4, fixed_abs, tag = 'smem constant byte address 0x4 - core index']
  #allocation1 [shape = 'u32[144,128]{1,0:T(1,128)}', space=vmem, size = 0x12000, scoped, tag = 'internal scratch']
  %s0 = inlined_call_operand.vmem [shape: bf16[128,768], index: 0, kind: input, shape index: {}]
  %s1 = inlined_call_operand.vmem [shape: bf16[768,128], index: 1, kind: input, shape index: {}]
  %s2 = inlined_call_operand.vmem [shape: f32[1,128], index: 2, kind: input, shape index: {}]
  %s3 = inlined_call_operand.vmem [shape: bf16[128,128], index: 3, kind: output, shape index: {}]
  %s4 = sld [smem:[#allocation0]]
  $region22: #{drdnet_forward.23} parent=0
    _
  %s6 = ssub.s32 1, %s4
  %s7 = scalar_select 0, %s6, %s4
  // Predicated region
  $region2: #{drdnet_forward.23} parent=0 // pred_check
    _
  $region3: #{drdnet_forward.23} parent=0 // pred_check_branch
    %9 = sbr.rel (0) target = $region5
  $region4: #{drdnet_forward.23} parent=0 // pred_region
    _
  $region5: #{drdnet_forward.23} parent=0 // pred_fallthru
    _
  // Predicated region
  $region6: #{drdnet_forward.23} parent=0 // pred_check
    _
  $region7: #{drdnet_forward.23} parent=0 // pred_check_branch
    %11 = sbr.rel (0) target = $region9
  $region8: #{drdnet_forward.23} parent=0 // pred_region
    _
  $region9: #{drdnet_forward.23} parent=0 // pred_fallthru
    _
  // Predicated region
  $region10: #{drdnet_forward.23} parent=0 // pred_check
    _
  $region11: #{drdnet_forward.23} parent=0 // pred_check_branch
    %13 = sbr.rel (0) target = $region13
  $region12: #{drdnet_forward.23} parent=0 // pred_region
    _
  $region13: #{drdnet_forward.23} parent=0 // pred_fallthru
    _
  %v15 = vld [vmem:[%s0] sm:$0xff]
  %v16 = vld [vmem:[%s0 + $0x8] sm:$0xff]
  %v17 = vld [vmem:[%s0 + $0x10] sm:$0xff]
  %v18 = vld [vmem:[%s0 + $0x18] sm:$0xff]
  %v19 = vld [vmem:[%s0 + $0x20] sm:$0xff]
  %v20 = vld [vmem:[%s0 + $0x28] sm:$0xff]
  %v21 = vld [vmem:[%s0 + $0x30] sm:$0xff]
  %v22 = vld [vmem:[%s0 + $0x38] sm:$0xff]
  %v23 = vld [vmem:[%s0 + $0x40] sm:$0xff]
  %v24 = vld [vmem:[%s0 + $0x48] sm:$0xff]
  %v25 = vld [vmem:[%s0 + $0x50] sm:$0xff]
  %v26 = vld [vmem:[%s0 + $0x58] sm:$0xff]
  %v27 = vld [vmem:[%s0 + $0x60] sm:$0xff]
  %v28 = vld [vmem:[%s0 + $0x68] sm:$0xff]
  %v29 = vld [vmem:[%s0 + $0x70] sm:$0xff]
  %v30 = vld [vmem:[%s0 + $0x78] sm:$0xff]
  %v31 = vld [vmem:[%s0 + $0x80] sm:$0xff]
  %v32 = vld [vmem:[%s0 + $0x88] sm:$0xff]
  %v33 = vld [vmem:[%s0 + $0x90] sm:$0xff]
  %v34 = vld [vmem:[%s0 + $0x98] sm:$0xff]
  %v35 = vld [vmem:[%s0 + $0xa0] sm:$0xff]
  %v36 = vld [vmem:[%s0 + $0xa8] sm:$0xff]
  %v37 = vld [vmem:[%s0 + $0xb0] sm:$0xff]
  %v38 = vld [vmem:[%s0 + $0xb8] sm:$0xff]
  %v39 = vld [vmem:[%s0 + $0xc0] sm:$0xff]
  %v40 = vld [vmem:[%s0 + $0xc8] sm:$0xff]
  %v41 = vld [vmem:[%s0 + $0xd0] sm:$0xff]
  %v42 = vld [vmem:[%s0 + $0xd8] sm:$0xff]
  %v43 = vld [vmem:[%s0 + $0xe0] sm:$0xff]
  %v44 = vld [vmem:[%s0 + $0xe8] sm:$0xff]
  %v45 = vld [vmem:[%s0 + $0xf0] sm:$0xff]
  %v46 = vld [vmem:[%s0 + $0xf8] sm:$0xff]
  %v47 = vld [vmem:[%s0 + $0x100] sm:$0xff]
  %v48 = vld [vmem:[%s0 + $0x108] sm:$0xff]
  %v49 = vld [vmem:[%s0 + $0x110] sm:$0xff]
  %v50 = vld [vmem:[%s0 + $0x118] sm:$0xff]
  %v51 = vld [vmem:[%s0 + $0x120] sm:$0xff]
  %v52 = vld [vmem:[%s0 + $0x128] sm:$0xff]
  %v53 = vld [vmem:[%s0 + $0x130] sm:$0xff]
  %v54 = vld [vmem:[%s0 + $0x138] sm:$0xff]
  %v55 = vld [vmem:[%s0 + $0x140] sm:$0xff]
  %v56 = vld [vmem:[%s0 + $0x148] sm:$0xff]
  %v57 = vld [vmem:[%s0 + $0x150] sm:$0xff]
  %v58 = vld [vmem:[%s0 + $0x158] sm:$0xff]
  %v59 = vld [vmem:[%s0 + $0x160] sm:$0xff]
  %v60 = vld [vmem:[%s0 + $0x168] sm:$0xff]
  %v61 = vld [vmem:[%s0 + $0x170] sm:$0xff]
  %v62 = vld [vmem:[%s0 + $0x178] sm:$0xff]
  %v63 = vld [vmem:[%s1] sm:$0xf]
  %v64 = vld [vmem:[%s1 + $0x4] sm:$0xf]
  %v65 = vld [vmem:[%s1 + $0x8] sm:$0xf]
  %v66 = vld [vmem:[%s1 + $0xc] sm:$0xf]
  %v67 = vld [vmem:[%s1 + $0x10] sm:$0xf]
  %v68 = vld [vmem:[%s1 + $0x14] sm:$0xf]
  %v69 = vld [vmem:[%s1 + $0x18] sm:$0xf]
  %v70 = vld [vmem:[%s1 + $0x1c] sm:$0xf]
  %v71 = vld [vmem:[%s1 + $0x20] sm:$0xf]
  %v72 = vld [vmem:[%s1 + $0x24] sm:$0xf]
  %v73 = vld [vmem:[%s1 + $0x28] sm:$0xf]
  %v74 = vld [vmem:[%s1 + $0x2c] sm:$0xf]
  %v75 = vld [vmem:[%s1 + $0x30] sm:$0xf]
  %v76 = vld [vmem:[%s1 + $0x34] sm:$0xf]
  %v77 = vld [vmem:[%s1 + $0x38] sm:$0xf]
  %v78 = vld [vmem:[%s1 + $0x3c] sm:$0xf]
  %v79 = vld [vmem:[%s1 + $0x40] sm:$0xf]
  %v80 = vld [vmem:[%s1 + $0x44] sm:$0xf]
  %v81 = vld [vmem:[%s1 + $0x48] sm:$0xf]
  %v82 = vld [vmem:[%s1 + $0x4c] sm:$0xf]
  %v83 = vld [vmem:[%s1 + $0x50] sm:$0xf]
  %v84 = vld [vmem:[%s1 + $0x54] sm:$0xf]
  %v85 = vld [vmem:[%s1 + $0x58] sm:$0xf]
  %v86 = vld [vmem:[%s1 + $0x5c] sm:$0xf]
  %v87 = vld [vmem:[%s1 + $0x60] sm:$0xf]
  %v88 = vld [vmem:[%s1 + $0x64] sm:$0xf]
  %v89 = vld [vmem:[%s1 + $0x68] sm:$0xf]
  %v90 = vld [vmem:[%s1 + $0x6c] sm:$0xf]
  %v91 = vld [vmem:[%s1 + $0x70] sm:$0xf]
  %v92 = vld [vmem:[%s1 + $0x74] sm:$0xf]
  %v93 = vld [vmem:[%s1 + $0x78] sm:$0xf]
  %v94 = vld [vmem:[%s1 + $0x7c] sm:$0xf]
  %v95 = vld [vmem:[%s1 + $0x80] sm:$0xf]
  %v96 = vld [vmem:[%s1 + $0x84] sm:$0xf]
  %v97 = vld [vmem:[%s1 + $0x88] sm:$0xf]
  %v98 = vld [vmem:[%s1 + $0x8c] sm:$0xf]
  %v99 = vld [vmem:[%s1 + $0x90] sm:$0xf]
  %v100 = vld [vmem:[%s1 + $0x94] sm:$0xf]
  %v101 = vld [vmem:[%s1 + $0x98] sm:$0xf]
  %v102 = vld [vmem:[%s1 + $0x9c] sm:$0xf]
  %v103 = vld [vmem:[%s1 + $0xa0] sm:$0xf]
  %v104 = vld [vmem:[%s1 + $0xa4] sm:$0xf]
  %v105 = vld [vmem:[%s1 + $0xa8] sm:$0xf]
  %v106 = vld [vmem:[%s1 + $0xac] sm:$0xf]
  %v107 = vld [vmem:[%s1 + $0xb0] sm:$0xf]
  %v108 = vld [vmem:[%s1 + $0xb4] sm:$0xf]
  %v109 = vld [vmem:[%s1 + $0xb8] sm:$0xf]
  %v110 = vld [vmem:[%s1 + $0xbc] sm:$0xf]
  %v111 = vld [vmem:[%s1 + $0xc0] sm:$0xf]
  %v112 = vld [vmem:[%s1 + $0xc4] sm:$0xf]
  %v113 = vld [vmem:[%s1 + $0xc8] sm:$0xf]
  %v114 = vld [vmem:[%s1 + $0xcc] sm:$0xf]
  %v115 = vld [vmem:[%s1 + $0xd0] sm:$0xf]
  %v116 = vld [vmem:[%s1 + $0xd4] sm:$0xf]
  %v117 = vld [vmem:[%s1 + $0xd8] sm:$0xf]
  %v118 = vld [vmem:[%s1 + $0xdc] sm:$0xf]
  %v119 = vld [vmem:[%s1 + $0xe0] sm:$0xf]
  %v120 = vld [vmem:[%s1 + $0xe4] sm:$0xf]
  %v121 = vld [vmem:[%s1 + $0xe8] sm:$0xf]
  %v122 = vld [vmem:[%s1 + $0xec] sm:$0xf]
  %v123 = vld [vmem:[%s1 + $0xf0] sm:$0xf]
  %v124 = vld [vmem:[%s1 + $0xf4] sm:$0xf]
  %v125 = vld [vmem:[%s1 + $0xf8] sm:$0xf]
  %v126 = vld [vmem:[%s1 + $0xfc] sm:$0xf]
  %v127 = vld [vmem:[%s1 + $0x100] sm:$0xf]
  %v128 = vld [vmem:[%s1 + $0x104] sm:$0xf]
  %v129 = vld [vmem:[%s1 + $0x108] sm:$0xf]
  %v130 = vld [vmem:[%s1 + $0x10c] sm:$0xf]
  %v131 = vld [vmem:[%s1 + $0x110] sm:$0xf]
  %v132 = vld [vmem:[%s1 + $0x114] sm:$0xf]
  %v133 = vld [vmem:[%s1 + $0x118] sm:$0xf]
  %v134 = vld [vmem:[%s1 + $0x11c] sm:$0xf]
  %v135 = vld [vmem:[%s1 + $0x120] sm:$0xf]
  %v136 = vld [vmem:[%s1 + $0x124] sm:$0xf]
  %v137 = vld [vmem:[%s1 + $0x128] sm:$0xf]
  %v138 = vld [vmem:[%s1 + $0x12c] sm:$0xf]
  %v139 = vld [vmem:[%s1 + $0x130] sm:$0xf]
  %v140 = vld [vmem:[%s1 + $0x134] sm:$0xf]
  %v141 = vld [vmem:[%s1 + $0x138] sm:$0xf]
  %v142 = vld [vmem:[%s1 + $0x13c] sm:$0xf]
  %v143 = vld [vmem:[%s1 + $0x140] sm:$0xf]
  %v144 = vld [vmem:[%s1 + $0x144] sm:$0xf]
  %v145 = vld [vmem:[%s1 + $0x148] sm:$0xf]
  %v146 = vld [vmem:[%s1 + $0x14c] sm:$0xf]
  %v147 = vld [vmem:[%s1 + $0x150] sm:$0xf]
  %v148 = vld [vmem:[%s1 + $0x154] sm:$0xf]
  %v149 = vld [vmem:[%s1 + $0x158] sm:$0xf]
  %v150 = vld [vmem:[%s1 + $0x15c] sm:$0xf]
  %v151 = vld [vmem:[%s1 + $0x160] sm:$0xf]
  %v152 = vld [vmem:[%s1 + $0x164] sm:$0xf]
  %v153 = vld [vmem:[%s1 + $0x168] sm:$0xf]
  %v154 = vld [vmem:[%s1 + $0x16c] sm:$0xf]
  %v155 = vld [vmem:[%s1 + $0x170] sm:$0xf]
  %v156 = vld [vmem:[%s1 + $0x174] sm:$0xf]
  %v157 = vld [vmem:[%s1 + $0x178] sm:$0xf]
  %v158 = vld [vmem:[%s1 + $0x17c] sm:$0xf]
  %v159 = vld [vmem:[%s2] sm:$0x1]
  %v161 = vlaneseq
  %v162 = vshrl.u32 %v161, 7
  %v163 = vsub.s32 0, %v162
  %v164 = vrot.slane %v159, %v163
  %v214 = vunpack.c.l.b16 %v15
  %v215 = vunpack.c.h.b16 %v15
  %v216 = vunpack.c.l.b16 %v16
  %v217 = vunpack.c.h.b16 %v16
  %v218 = vunpack.c.l.b16 %v17
  %v219 = vunpack.c.h.b16 %v17
  %v220 = vunpack.c.l.b16 %v18
  %v221 = vunpack.c.h.b16 %v18
  %v222 = vunpack.c.l.b16 %v19
  %v223 = vunpack.c.h.b16 %v19
  %v224 = vunpack.c.l.b16 %v20
  %v225 = vunpack.c.h.b16 %v20
  %v226 = vunpack.c.l.b16 %v21
  %v227 = vunpack.c.h.b16 %v21
  %v228 = vunpack.c.l.b16 %v22
  %v229 = vunpack.c.h.b16 %v22
  %v230 = vunpack.c.l.b16 %v23
  %v231 = vunpack.c.h.b16 %v23
  %v232 = vunpack.c.l.b16 %v24
  %v233 = vunpack.c.h.b16 %v24
  %v234 = vunpack.c.l.b16 %v25
  %v235 = vunpack.c.h.b16 %v25
  %v236 = vunpack.c.l.b16 %v26
  %v237 = vunpack.c.h.b16 %v26
  %v238 = vunpack.c.l.b16 %v27
  %v239 = vunpack.c.h.b16 %v27
  %v240 = vunpack.c.l.b16 %v28
  %v241 = vunpack.c.h.b16 %v28
  %v242 = vunpack.c.l.b16 %v29
  %v243 = vunpack.c.h.b16 %v29
  %v244 = vunpack.c.l.b16 %v30
  %v245 = vunpack.c.h.b16 %v30
  %v246 = vunpack.c.l.b16 %v31
  %v247 = vunpack.c.h.b16 %v31
  %v248 = vunpack.c.l.b16 %v32
  %v249 = vunpack.c.h.b16 %v32
  %v250 = vunpack.c.l.b16 %v33
  %v251 = vunpack.c.h.b16 %v33
  %v252 = vunpack.c.l.b16 %v34
  %v253 = vunpack.c.h.b16 %v34
  %v254 = vunpack.c.l.b16 %v35
  %v255 = vunpack.c.h.b16 %v35
  %v256 = vunpack.c.l.b16 %v36
  %v257 = vunpack.c.h.b16 %v36
  %v258 = vunpack.c.l.b16 %v37
  %v259 = vunpack.c.h.b16 %v37
  %v260 = vunpack.c.l.b16 %v38
  %v261 = vunpack.c.h.b16 %v38
  %v262 = vunpack.c.l.b16 %v39
  %v263 = vunpack.c.h.b16 %v39
  %v264 = vunpack.c.l.b16 %v40
  %v265 = vunpack.c.h.b16 %v40
  %v266 = vunpack.c.l.b16 %v41
  %v267 = vunpack.c.h.b16 %v41
  %v268 = vunpack.c.l.b16 %v42
  %v269 = vunpack.c.h.b16 %v42
  %v270 = vunpack.c.l.b16 %v43
  %v271 = vunpack.c.h.b16 %v43
  %v272 = vunpack.c.l.b16 %v44
  %v273 = vunpack.c.h.b16 %v44
  %v274 = vunpack.c.l.b16 %v45
  %v275 = vunpack.c.h.b16 %v45
  %v276 = vunpack.c.l.b16 %v46
  %v277 = vunpack.c.h.b16 %v46
  %v278 = vunpack.c.l.b16 %v47
  %v279 = vunpack.c.h.b16 %v47
  %v280 = vunpack.c.l.b16 %v48
  %v281 = vunpack.c.h.b16 %v48
  %v282 = vunpack.c.l.b16 %v49
  %v283 = vunpack.c.h.b16 %v49
  %v284 = vunpack.c.l.b16 %v50
  %v285 = vunpack.c.h.b16 %v50
  %v286 = vunpack.c.l.b16 %v51
  %v287 = vunpack.c.h.b16 %v51
  %v288 = vunpack.c.l.b16 %v52
  %v289 = vunpack.c.h.b16 %v52
  %v290 = vunpack.c.l.b16 %v53
  %v291 = vunpack.c.h.b16 %v53
  %v292 = vunpack.c.l.b16 %v54
  %v293 = vunpack.c.h.b16 %v54
  %v294 = vunpack.c.l.b16 %v55
  %v295 = vunpack.c.h.b16 %v55
  %v296 = vunpack.c.l.b16 %v56
  %v297 = vunpack.c.h.b16 %v56
  %v298 = vunpack.c.l.b16 %v57
  %v299 = vunpack.c.h.b16 %v57
  %v300 = vunpack.c.l.b16 %v58
  %v301 = vunpack.c.h.b16 %v58
  %v302 = vunpack.c.l.b16 %v59
  %v303 = vunpack.c.h.b16 %v59
  %v304 = vunpack.c.l.b16 %v60
  %v305 = vunpack.c.h.b16 %v60
  %v306 = vunpack.c.l.b16 %v61
  %v307 = vunpack.c.h.b16 %v61
  %v308 = vunpack.c.l.b16 %v62
  %v309 = vunpack.c.h.b16 %v62
  %v310 = vpack.c.b16 %v220, %v214
  %v311 = vpack.c.b16 %v221, %v215
  %v312 = vpack.c.b16 %v222, %v216
  %v313 = vpack.c.b16 %v223, %v217
  %v314 = vpack.c.b16 %v224, %v218
  %v315 = vpack.c.b16 %v225, %v219
  %v316 = vpack.c.b16 %v232, %v226
  %v317 = vpack.c.b16 %v233, %v227
  %v318 = vpack.c.b16 %v234, %v228
  %v319 = vpack.c.b16 %v235, %v229
  %v320 = vpack.c.b16 %v236, %v230
  %v321 = vpack.c.b16 %v237, %v231
  %v322 = vpack.c.b16 %v244, %v238
  %v323 = vpack.c.b16 %v245, %v239
  %v324 = vpack.c.b16 %v246, %v240
  %v325 = vpack.c.b16 %v247, %v241
  %v326 = vpack.c.b16 %v248, %v242
  %v327 = vpack.c.b16 %v249, %v243
  %v328 = vpack.c.b16 %v256, %v250
  %v329 = vpack.c.b16 %v257, %v251
  %v330 = vpack.c.b16 %v258, %v252
  %v331 = vpack.c.b16 %v259, %v253
  %v332 = vpack.c.b16 %v260, %v254
  %v333 = vpack.c.b16 %v261, %v255
  %v334 = vpack.c.b16 %v268, %v262
  %v335 = vpack.c.b16 %v269, %v263
  %v336 = vpack.c.b16 %v270, %v264
  %v337 = vpack.c.b16 %v271, %v265
  %v338 = vpack.c.b16 %v272, %v266
  %v339 = vpack.c.b16 %v273, %v267
  %v340 = vpack.c.b16 %v280, %v274
  %v341 = vpack.c.b16 %v281, %v275
  %v342 = vpack.c.b16 %v282, %v276
  %v343 = vpack.c.b16 %v283, %v277
  %v344 = vpack.c.b16 %v284, %v278
  %v345 = vpack.c.b16 %v285, %v279
  %v346 = vpack.c.b16 %v292, %v286
  %v347 = vpack.c.b16 %v293, %v287
  %v348 = vpack.c.b16 %v294, %v288
  %v349 = vpack.c.b16 %v295, %v289
  %v350 = vpack.c.b16 %v296, %v290
  %v351 = vpack.c.b16 %v297, %v291
  %v352 = vpack.c.b16 %v304, %v298
  %v353 = vpack.c.b16 %v305, %v299
  %v354 = vpack.c.b16 %v306, %v300
  %v355 = vpack.c.b16 %v307, %v301
  %v356 = vpack.c.b16 %v308, %v302
  %v357 = vpack.c.b16 %v309, %v303
  %v502 = vunpack.c.l.b16 %v63
  %v503 = vunpack.c.l.b16 %v64
  %v504 = vunpack.c.l.b16 %v65
  %v505 = vunpack.c.l.b16 %v66
  %v506 = vunpack.c.l.b16 %v67
  %v507 = vunpack.c.l.b16 %v68
  %v508 = vunpack.c.l.b16 %v69
  %v509 = vunpack.c.l.b16 %v70
  %v510 = vunpack.c.l.b16 %v71
  %v511 = vunpack.c.l.b16 %v72
  %v512 = vunpack.c.l.b16 %v73
  %v513 = vunpack.c.l.b16 %v74
  %v514 = vunpack.c.l.b16 %v75
  %v515 = vunpack.c.l.b16 %v76
  %v516 = vunpack.c.l.b16 %v77
  %v517 = vunpack.c.l.b16 %v78
  %v518 = vunpack.c.l.b16 %v79
  %v519 = vunpack.c.l.b16 %v80
  %v520 = vunpack.c.l.b16 %v81
  %v521 = vunpack.c.l.b16 %v82
  %v522 = vunpack.c.l.b16 %v83
  %v523 = vunpack.c.l.b16 %v84
  %v524 = vunpack.c.l.b16 %v85
  %v525 = vunpack.c.l.b16 %v86
  %v526 = vunpack.c.l.b16 %v87
  %v527 = vunpack.c.l.b16 %v88
  %v528 = vunpack.c.l.b16 %v89
  %v529 = vunpack.c.l.b16 %v90
  %v530 = vunpack.c.l.b16 %v91
  %v531 = vunpack.c.l.b16 %v92
  %v532 = vunpack.c.l.b16 %v93
  %v533 = vunpack.c.l.b16 %v94
  %v534 = vunpack.c.l.b16 %v95
  %v535 = vunpack.c.l.b16 %v96
  %v536 = vunpack.c.l.b16 %v97
  %v537 = vunpack.c.l.b16 %v98
  %v538 = vunpack.c.l.b16 %v99
  %v539 = vunpack.c.l.b16 %v100
  %v540 = vunpack.c.l.b16 %v101
  %v541 = vunpack.c.l.b16 %v102
  %v542 = vunpack.c.l.b16 %v103
  %v543 = vunpack.c.l.b16 %v104
  %v544 = vunpack.c.l.b16 %v105
  %v545 = vunpack.c.l.b16 %v106
  %v546 = vunpack.c.l.b16 %v107
  %v547 = vunpack.c.l.b16 %v108
  %v548 = vunpack.c.l.b16 %v109
  %v549 = vunpack.c.l.b16 %v110
  %v550 = vunpack.c.l.b16 %v111
  %v551 = vunpack.c.l.b16 %v112
  %v552 = vunpack.c.l.b16 %v113
  %v553 = vunpack.c.l.b16 %v114
  %v554 = vunpack.c.l.b16 %v115
  %v555 = vunpack.c.l.b16 %v116
  %v556 = vunpack.c.l.b16 %v117
  %v557 = vunpack.c.l.b16 %v118
  %v558 = vunpack.c.l.b16 %v119
  %v559 = vunpack.c.l.b16 %v120
  %v560 = vunpack.c.l.b16 %v121
  %v561 = vunpack.c.l.b16 %v122
  %v562 = vunpack.c.l.b16 %v123
  %v563 = vunpack.c.l.b16 %v124
  %v564 = vunpack.c.l.b16 %v125
  %v565 = vunpack.c.l.b16 %v126
  %v566 = vunpack.c.l.b16 %v127
  %v567 = vunpack.c.l.b16 %v128
  %v568 = vunpack.c.l.b16 %v129
  %v569 = vunpack.c.l.b16 %v130
  %v570 = vunpack.c.l.b16 %v131
  %v571 = vunpack.c.l.b16 %v132
  %v572 = vunpack.c.l.b16 %v133
  %v573 = vunpack.c.l.b16 %v134
  %v574 = vunpack.c.l.b16 %v135
  %v575 = vunpack.c.l.b16 %v136
  %v576 = vunpack.c.l.b16 %v137
  %v577 = vunpack.c.l.b16 %v138
  %v578 = vunpack.c.l.b16 %v139
  %v579 = vunpack.c.l.b16 %v140
  %v580 = vunpack.c.l.b16 %v141
  %v581 = vunpack.c.l.b16 %v142
  %v582 = vunpack.c.l.b16 %v143
  %v583 = vunpack.c.l.b16 %v144
  %v584 = vunpack.c.l.b16 %v145
  %v585 = vunpack.c.l.b16 %v146
  %v586 = vunpack.c.l.b16 %v147
  %v587 = vunpack.c.l.b16 %v148
  %v588 = vunpack.c.l.b16 %v149
  %v589 = vunpack.c.l.b16 %v150
  %v590 = vunpack.c.l.b16 %v151
  %v591 = vunpack.c.l.b16 %v152
  %v592 = vunpack.c.l.b16 %v153
  %v593 = vunpack.c.l.b16 %v154
  %v594 = vunpack.c.l.b16 %v155
  %v595 = vunpack.c.l.b16 %v156
  %v596 = vunpack.c.l.b16 %v157
  %v597 = vunpack.c.l.b16 %v158
  %v598 = vpack.c.b16 %v503, %v502
  %v599 = vpack.c.b16 %v505, %v504
  %v600 = vpack.c.b16 %v507, %v506
  %v601 = vpack.c.b16 %v509, %v508
  %v602 = vpack.c.b16 %v511, %v510
  %v603 = vpack.c.b16 %v513, %v512
  %v604 = vpack.c.b16 %v515, %v514
  %v605 = vpack.c.b16 %v517, %v516
  %v606 = vpack.c.b16 %v519, %v518
  %v607 = vpack.c.b16 %v521, %v520
  %v608 = vpack.c.b16 %v523, %v522
  %v609 = vpack.c.b16 %v525, %v524
  %v610 = vpack.c.b16 %v527, %v526
  %v611 = vpack.c.b16 %v529, %v528
  %v612 = vpack.c.b16 %v531, %v530
  %v613 = vpack.c.b16 %v533, %v532
  %v614 = vpack.c.b16 %v535, %v534
  %v615 = vpack.c.b16 %v537, %v536
  %v616 = vpack.c.b16 %v539, %v538
  %v617 = vpack.c.b16 %v541, %v540
  %v618 = vpack.c.b16 %v543, %v542
  %v619 = vpack.c.b16 %v545, %v544
  %v620 = vpack.c.b16 %v547, %v546
  %v621 = vpack.c.b16 %v549, %v548
  %v622 = vpack.c.b16 %v551, %v550
  %v623 = vpack.c.b16 %v553, %v552
  %v624 = vpack.c.b16 %v555, %v554
  %v625 = vpack.c.b16 %v557, %v556
  %v626 = vpack.c.b16 %v559, %v558
  %v627 = vpack.c.b16 %v561, %v560
  %v628 = vpack.c.b16 %v563, %v562
  %v629 = vpack.c.b16 %v565, %v564
  %v630 = vpack.c.b16 %v567, %v566
  %v631 = vpack.c.b16 %v569, %v568
  %v632 = vpack.c.b16 %v571, %v570
  %v633 = vpack.c.b16 %v573, %v572
  %v634 = vpack.c.b16 %v575, %v574
  %v635 = vpack.c.b16 %v577, %v576
  %v636 = vpack.c.b16 %v579, %v578
  %v637 = vpack.c.b16 %v581, %v580
  %v638 = vpack.c.b16 %v583, %v582
  %v639 = vpack.c.b16 %v585, %v584
  %v640 = vpack.c.b16 %v587, %v586
  %v641 = vpack.c.b16 %v589, %v588
  %v642 = vpack.c.b16 %v591, %v590
  %v643 = vpack.c.b16 %v593, %v592
  %v644 = vpack.c.b16 %v595, %v594
  %v645 = vpack.c.b16 %v597, %v596
  %694 = vmatprep.subr.bf16.mxu0 0
  %695 = vmatpush1.bf16.msra.mxu0 %v598
  %696 = vmatprep.subr.bf16.mxu0 0
  %697 = vmatpush1.bf16.msra.mxu0 %v599
  %698 = vmatprep.subr.bf16.mxu0 0
  %699 = vmatpush1.bf16.msra.mxu0 %v600
  %700 = vmatprep.subr.bf16.mxu0 0
  %701 = vmatpush1.bf16.msra.mxu0 %v601
  %702 = vmatprep.subr.bf16.mxu0 0
  %703 = vmatpush1.bf16.msra.mxu0 %v602
  %704 = vmatprep.subr.bf16.mxu0 0
  %705 = vmatpush1.bf16.msra.mxu0 %v603
  %706 = vmatprep.subr.bf16.mxu0 0
  %707 = vmatpush1.bf16.msra.mxu0 %v604
  %708 = vmatprep.subr.bf16.mxu0 0
  %709 = vmatpush1.bf16.msra.mxu0 %v605
  %710 = vmatprep.subr.bf16.mxu0 0
  %711 = vmatpush1.bf16.msra.mxu0 %v606
  %712 = vmatprep.subr.bf16.mxu0 0
  %713 = vmatpush1.bf16.msra.mxu0 %v607
  %714 = vmatprep.subr.bf16.mxu0 0
  %715 = vmatpush1.bf16.msra.mxu0 %v608
  %716 = vmatprep.subr.bf16.mxu0 0
  %717 = vmatpush1.bf16.msra.mxu0 %v609
  %718 = vmatprep.subr.bf16.mxu0 0
  %719 = vmatpush1.bf16.msra.mxu0 %v610
  %720 = vmatprep.subr.bf16.mxu0 0
  %721 = vmatpush1.bf16.msra.mxu0 %v611
  %722 = vmatprep.subr.bf16.mxu0 0
  %723 = vmatpush1.bf16.msra.mxu0 %v612
  %724 = vmatprep.subr.bf16.mxu0 0
  %725 = vmatpush1.bf16.msra.mxu0 %v613
  %726 = vmatprep.mubr.bf16.mxu0 %v311
  %727 = vmatmul.mubr.bf16.gmra.mrb[0].mxu0 %v310
  %v728 = vpop.f32.mrb[0].mxu0
  %v729 = vadd.f32 %v164, %v728
  %v730 = vpop.f32.mrb[0].mxu0
  %v731 = vpop.f32.mrb[0].mxu0
  %v732 = vadd.f32 %v164, %v731
  %v733 = vpop.f32.mrb[0].mxu0
  %734 = vmatprep.mubr.bf16.mxu0 %v317
  %735 = vmatmul.mubr.bf16.gmra.mrb[0].mxu0 %v316
  %v736 = vpop.f32.mrb[0].mxu0
  %v737 = vadd.f32 %v164, %v736
  %v738 = vpop.f32.mrb[0].mxu0
  %v739 = vpop.f32.mrb[0].mxu0
  %v740 = vadd.f32 %v164, %v739
  %v741 = vpop.f32.mrb[0].mxu0
  %742 = vmatprep.mubr.bf16.mxu0 %v323
  %743 = vmatmul.mubr.bf16.gmra.mrb[0].mxu0 %v322
  %v744 = vpop.f32.mrb[0].mxu0
  %v745 = vadd.f32 %v164, %v744
  %v746 = vpop.f32.mrb[0].mxu0
  %v747 = vpop.f32.mrb[0].mxu0
  %v748 = vadd.f32 %v164, %v747
  %v749 = vpop.f32.mrb[0].mxu0
  %750 = vmatprep.mubr.bf16.mxu0 %v329
  %751 = vmatmul.mubr.bf16.gmra.mrb[0].mxu0 %v328
  %v752 = vpop.f32.mrb[0].mxu0
  %v753 = vadd.f32 %v164, %v752
  %v754 = vpop.f32.mrb[0].mxu0
  %v755 = vpop.f32.mrb[0].mxu0
  %v756 = vadd.f32 %v164, %v755
  %v757 = vpop.f32.mrb[0].mxu0
  %758 = vmatprep.mubr.bf16.mxu0 %v335
  %759 = vmatmul.mubr.bf16.gmra.mrb[0].mxu0 %v334
  %v760 = vpop.f32.mrb[0].mxu0
  %v761 = vadd.f32 %v164, %v760
  %v762 = vpop.f32.mrb[0].mxu0
  %v763 = vpop.f32.mrb[0].mxu0
  %v764 = vadd.f32 %v164, %v763
  %v765 = vpop.f32.mrb[0].mxu0
  %766 = vmatprep.mubr.bf16.mxu0 %v341
  %767 = vmatmul.mubr.bf16.gmra.mrb[0].mxu0 %v340
  %v768 = vpop.f32.mrb[0].mxu0
  %v769 = vadd.f32 %v164, %v768
  %v770 = vpop.f32.mrb[0].mxu0
  %v771 = vpop.f32.mrb[0].mxu0
  %v772 = vadd.f32 %v164, %v771
  %v773 = vpop.f32.mrb[0].mxu0
  %774 = vmatprep.mubr.bf16.mxu0 %v347
  %775 = vmatmul.mubr.bf16.gmra.mrb[0].mxu0 %v346
  %v776 = vpop.f32.mrb[0].mxu0
  %v777 = vadd.f32 %v164, %v776
  %v778 = vpop.f32.mrb[0].mxu0
  %v779 = vpop.f32.mrb[0].mxu0
  %v780 = vadd.f32 %v164, %v779
  %v781 = vpop.f32.mrb[0].mxu0
  %782 = vmatprep.mubr.bf16.mxu0 %v353
  %783 = vmatmul.mubr.bf16.gmra.mrb[0].mxu0 %v352
  %v784 = vpop.f32.mrb[0].mxu0
  %v785 = vadd.f32 %v164, %v784
  %v786 = vpop.f32.mrb[0].mxu0
  %v787 = vpop.f32.mrb[0].mxu0
  %v788 = vadd.f32 %v164, %v787
  %v789 = vpop.f32.mrb[0].mxu0
  %790 = vdwg.mxu0
  %791 = vmatprep.subr.bf16.mxu0 0
  %792 = vmatpush1.bf16.msra.mxu0 %v614
  %793 = vmatprep.subr.bf16.mxu0 0
  %794 = vmatpush1.bf16.msra.mxu0 %v615
  %795 = vmatprep.subr.bf16.mxu0 0
  %796 = vmatpush1.bf16.msra.mxu0 %v616
  %797 = vmatprep.subr.bf16.mxu0 0
  %798 = vmatpush1.bf16.msra.mxu0 %v617
  %799 = vmatprep.subr.bf16.mxu0 0
  %800 = vmatpush1.bf16.msra.mxu0 %v618
  %801 = vmatprep.subr.bf16.mxu0 0
  %802 = vmatpush1.bf16.msra.mxu0 %v619
  %803 = vmatprep.subr.bf16.mxu0 0
  %804 = vmatpush1.bf16.msra.mxu0 %v620
  %805 = vmatprep.subr.bf16.mxu0 0
  %806 = vmatpush1.bf16.msra.mxu0 %v621
  %807 = vmatprep.subr.bf16.mxu0 0
  %808 = vmatpush1.bf16.msra.mxu0 %v622
  %809 = vmatprep.subr.bf16.mxu0 0
  %810 = vmatpush1.bf16.msra.mxu0 %v623
  %811 = vmatprep.subr.bf16.mxu0 0
  %812 = vmatpush1.bf16.msra.mxu0 %v624
  %813 = vmatprep.subr.bf16.mxu0 0
  %814 = vmatpush1.bf16.msra.mxu0 %v625
  %815 = vmatprep.subr.bf16.mxu0 0
  %816 = vmatpush1.bf16.msra.mxu0 %v626
  %817 = vmatprep.subr.bf16.mxu0 0
  %818 = vmatpush1.bf16.msra.mxu0 %v627
  %819 = vmatprep.subr.bf16.mxu0 0
  %820 = vmatpush1.bf16.msra.mxu0 %v628
  %821 = vmatprep.subr.bf16.mxu0 0
  %822 = vmatpush1.bf16.msra.mxu0 %v629
  %823 = vmatprep.mubr.bf16.mxu0 %v313
  %824 = vmatmul.mubr.bf16.gmra.mrb[0].mxu0 %v312
  %v825 = vpop.f32.mrb[0].mxu0
  %v826 = vadd.f32 %v729, %v825
  %v827 = vpop.f32.mrb[0].mxu0
  %v828 = vpop.f32.mrb[0].mxu0
  %v829 = vadd.f32 %v732, %v828
  %v830 = vpop.f32.mrb[0].mxu0
  %831 = vmatprep.mubr.bf16.mxu0 %v319
  %832 = vmatmul.mubr.bf16.gmra.mrb[0].mxu0 %v318
  %v833 = vpop.f32.mrb[0].mxu0
  %v834 = vadd.f32 %v737, %v833
  %v835 = vpop.f32.mrb[0].mxu0
  %v836 = vpop.f32.mrb[0].mxu0
  %v837 = vadd.f32 %v740, %v836
  %v838 = vpop.f32.mrb[0].mxu0
  %839 = vmatprep.mubr.bf16.mxu0 %v325
  %840 = vmatmul.mubr.bf16.gmra.mrb[0].mxu0 %v324
  %v841 = vpop.f32.mrb[0].mxu0
  %v842 = vadd.f32 %v745, %v841
  %v843 = vpop.f32.mrb[0].mxu0
  %v844 = vpop.f32.mrb[0].mxu0
  %v845 = vadd.f32 %v748, %v844
  %v846 = vpop.f32.mrb[0].mxu0
  %847 = vmatprep.mubr.bf16.mxu0 %v331
  %848 = vmatmul.mubr.bf16.gmra.mrb[0].mxu0 %v330
  %v849 = vpop.f32.mrb[0].mxu0
  %v850 = vadd.f32 %v753, %v849
  %v851 = vpop.f32.mrb[0].mxu0
  %v852 = vpop.f32.mrb[0].mxu0
  %v853 = vadd.f32 %v756, %v852
  %v854 = vpop.f32.mrb[0].mxu0
  %855 = vmatprep.mubr.bf16.mxu0 %v337
  %856 = vmatmul.mubr.bf16.gmra.mrb[0].mxu0 %v336
  %v857 = vpop.f32.mrb[0].mxu0
  %v858 = vadd.f32 %v761, %v857
  %v859 = vpop.f32.mrb[0].mxu0
  %v860 = vpop.f32.mrb[0].mxu0
  %v861 = vadd.f32 %v764, %v860
  %v862 = vpop.f32.mrb[0].mxu0
  %863 = vmatprep.mubr.bf16.mxu0 %v343
  %864 = vmatmul.mubr.bf16.gmra.mrb[0].mxu0 %v342
  %v865 = vpop.f32.mrb[0].mxu0
  %v866 = vadd.f32 %v769, %v865
  %v867 = vpop.f32.mrb[0].mxu0
  %v868 = vpop.f32.mrb[0].mxu0
  %v869 = vadd.f32 %v772, %v868
  %v870 = vpop.f32.mrb[0].mxu0
  %871 = vmatprep.mubr.bf16.mxu0 %v349
  %872 = vmatmul.mubr.bf16.gmra.mrb[0].mxu0 %v348
  %v873 = vpop.f32.mrb[0].mxu0
  %v874 = vadd.f32 %v777, %v873
  %v875 = vpop.f32.mrb[0].mxu0
  %v876 = vpop.f32.mrb[0].mxu0
  %v877 = vadd.f32 %v780, %v876
  %v878 = vpop.f32.mrb[0].mxu0
  %879 = vmatprep.mubr.bf16.mxu0 %v355
  %880 = vmatmul.mubr.bf16.gmra.mrb[0].mxu0 %v354
  %v881 = vpop.f32.mrb[0].mxu0
  %v882 = vadd.f32 %v785, %v881
  %v883 = vpop.f32.mrb[0].mxu0
  %v884 = vpop.f32.mrb[0].mxu0
  %v885 = vadd.f32 %v788, %v884
  %v886 = vpop.f32.mrb[0].mxu0
  %887 = vdwg.mxu0
  %888 = vmatprep.subr.bf16.mxu0 0
  %889 = vmatpush1.bf16.msra.mxu0 %v630
  %890 = vmatprep.subr.bf16.mxu0 0
  %891 = vmatpush1.bf16.msra.mxu0 %v631
  %892 = vmatprep.subr.bf16.mxu0 0
  %893 = vmatpush1.bf16.msra.mxu0 %v632
  %894 = vmatprep.subr.bf16.mxu0 0
  %895 = vmatpush1.bf16.msra.mxu0 %v633
  %896 = vmatprep.subr.bf16.mxu0 0
  %897 = vmatpush1.bf16.msra.mxu0 %v634
  %898 = vmatprep.subr.bf16.mxu0 0
  %899 = vmatpush1.bf16.msra.mxu0 %v635
  %900 = vmatprep.subr.bf16.mxu0 0
  %901 = vmatpush1.bf16.msra.mxu0 %v636
  %902 = vmatprep.subr.bf16.mxu0 0
  %903 = vmatpush1.bf16.msra.mxu0 %v637
  %904 = vmatprep.subr.bf16.mxu0 0
  %905 = vmatpush1.bf16.msra.mxu0 %v638
  %906 = vmatprep.subr.bf16.mxu0 0
  %907 = vmatpush1.bf16.msra.mxu0 %v639
  %908 = vmatprep.subr.bf16.mxu0 0
  %909 = vmatpush1.bf16.msra.mxu0 %v640
  %910 = vmatprep.subr.bf16.mxu0 0
  %911 = vmatpush1.bf16.msra.mxu0 %v641
  %912 = vmatprep.subr.bf16.mxu0 0
  %913 = vmatpush1.bf16.msra.mxu0 %v642
  %914 = vmatprep.subr.bf16.mxu0 0
  %915 = vmatpush1.bf16.msra.mxu0 %v643
  %916 = vmatprep.subr.bf16.mxu0 0
  %917 = vmatpush1.bf16.msra.mxu0 %v644
  %918 = vmatprep.subr.bf16.mxu0 0
  %919 = vmatpush1.bf16.msra.mxu0 %v645
  %920 = vmatprep.mubr.bf16.mxu0 %v315
  %921 = vmatmul.mubr.bf16.gmra.mrb[0].mxu0 %v314
  %v922 = vpop.f32.mrb[0].mxu0
  %v923 = vadd.f32 %v826, %v922
  %v924 = vpop.f32.mrb[0].mxu0
  %v925 = vpop.f32.mrb[0].mxu0
  %v926 = vadd.f32 %v829, %v925
  %v927 = vpop.f32.mrb[0].mxu0
  %928 = vmatprep.mubr.bf16.mxu0 %v321
  %929 = vmatmul.mubr.bf16.gmra.mrb[0].mxu0 %v320
  %v930 = vpop.f32.mrb[0].mxu0
  %v931 = vadd.f32 %v834, %v930
  %v932 = vpop.f32.mrb[0].mxu0
  %v933 = vpop.f32.mrb[0].mxu0
  %v934 = vadd.f32 %v837, %v933
  %v935 = vpop.f32.mrb[0].mxu0
  %936 = vmatprep.mubr.bf16.mxu0 %v327
  %937 = vmatmul.mubr.bf16.gmra.mrb[0].mxu0 %v326
  %v938 = vpop.f32.mrb[0].mxu0
  %v939 = vadd.f32 %v842, %v938
  %v940 = vpop.f32.mrb[0].mxu0
  %v941 = vpop.f32.mrb[0].mxu0
  %v942 = vadd.f32 %v845, %v941
  %v943 = vpop.f32.mrb[0].mxu0
  %944 = vmatprep.mubr.bf16.mxu0 %v333
  %945 = vmatmul.mubr.bf16.gmra.mrb[0].mxu0 %v332
  %v946 = vpop.f32.mrb[0].mxu0
  %v947 = vadd.f32 %v850, %v946
  %v948 = vpop.f32.mrb[0].mxu0
  %v949 = vpop.f32.mrb[0].mxu0
  %v950 = vadd.f32 %v853, %v949
  %v951 = vpop.f32.mrb[0].mxu0
  %952 = vmatprep.mubr.bf16.mxu0 %v339
  %953 = vmatmul.mubr.bf16.gmra.mrb[0].mxu0 %v338
  %v954 = vpop.f32.mrb[0].mxu0
  %v955 = vadd.f32 %v858, %v954
  %v956 = vpop.f32.mrb[0].mxu0
  %v957 = vpop.f32.mrb[0].mxu0
  %v958 = vadd.f32 %v861, %v957
  %v959 = vpop.f32.mrb[0].mxu0
  %960 = vmatprep.mubr.bf16.mxu0 %v345
  %961 = vmatmul.mubr.bf16.gmra.mrb[0].mxu0 %v344
  %v962 = vpop.f32.mrb[0].mxu0
  %v963 = vadd.f32 %v866, %v962
  %v964 = vpop.f32.mrb[0].mxu0
  %v965 = vpop.f32.mrb[0].mxu0
  %v966 = vadd.f32 %v869, %v965
  %v967 = vpop.f32.mrb[0].mxu0
  %968 = vmatprep.mubr.bf16.mxu0 %v351
  %969 = vmatmul.mubr.bf16.gmra.mrb[0].mxu0 %v350
  %v970 = vpop.f32.mrb[0].mxu0
  %v971 = vadd.f32 %v874, %v970
  %v972 = vpop.f32.mrb[0].mxu0
  %v973 = vpop.f32.mrb[0].mxu0
  %v974 = vadd.f32 %v877, %v973
  %v975 = vpop.f32.mrb[0].mxu0
  %976 = vmatprep.mubr.bf16.mxu0 %v357
  %977 = vmatmul.mubr.bf16.gmra.mrb[0].mxu0 %v356
  %v978 = vpop.f32.mrb[0].mxu0
  %v979 = vadd.f32 %v882, %v978
  %v980 = vpop.f32.mrb[0].mxu0
  %v981 = vpop.f32.mrb[0].mxu0
  %v982 = vadd.f32 %v885, %v981
  %v983 = vpop.f32.mrb[0].mxu0
  %984 = vdwg.mxu0
  %v985 = vmax.f32 %v923, 0.0
  %v986 = vmax.f32 %v926, 0.0
  %v987 = vmax.f32 %v931, 0.0
  %v988 = vmax.f32 %v934, 0.0
  %v989 = vmax.f32 %v939, 0.0
  %v990 = vmax.f32 %v942, 0.0
  %v991 = vmax.f32 %v947, 0.0
  %v992 = vmax.f32 %v950, 0.0
  %v993 = vmax.f32 %v955, 0.0
  %v994 = vmax.f32 %v958, 0.0
  %v995 = vmax.f32 %v963, 0.0
  %v996 = vmax.f32 %v966, 0.0
  %v997 = vmax.f32 %v971, 0.0
  %v998 = vmax.f32 %v974, 0.0
  %v999 = vmax.f32 %v979, 0.0
  %v1000 = vmax.f32 %v982, 0.0
  %v1001 = vpack.c.bf16 %v986, %v985
  %v1002 = vpack.c.bf16 %v988, %v987
  %v1003 = vpack.c.bf16 %v990, %v989
  %v1004 = vpack.c.bf16 %v992, %v991
  %v1005 = vpack.c.bf16 %v994, %v993
  %v1006 = vpack.c.bf16 %v996, %v995
  %v1007 = vpack.c.bf16 %v998, %v997
  %v1008 = vpack.c.bf16 %v1000, %v999
  %v1017 = vunpack.c.l.b16 %v1001
  %v1018 = vunpack.c.h.b16 %v1001
  %v1019 = vunpack.c.l.b16 %v1002
  %v1020 = vunpack.c.h.b16 %v1002
  %v1021 = vunpack.c.l.b16 %v1003
  %v1022 = vunpack.c.h.b16 %v1003
  %v1023 = vunpack.c.l.b16 %v1004
  %v1024 = vunpack.c.h.b16 %v1004
  %v1025 = vunpack.c.l.b16 %v1005
  %v1026 = vunpack.c.h.b16 %v1005
  %v1027 = vunpack.c.l.b16 %v1006
  %v1028 = vunpack.c.h.b16 %v1006
  %v1029 = vunpack.c.l.b16 %v1007
  %v1030 = vunpack.c.h.b16 %v1007
  %v1031 = vunpack.c.l.b16 %v1008
  %v1032 = vunpack.c.h.b16 %v1008
  %v1033 = vpack.c.b16 %v1017, %v1017
  %v1034 = vpack.c.b16 %v1018, %v1018
  %v1035 = vpack.c.b16 %v1019, %v1019
  %v1036 = vpack.c.b16 %v1020, %v1020
  %v1037 = vpack.c.b16 %v1021, %v1021
  %v1038 = vpack.c.b16 %v1022, %v1022
  %v1039 = vpack.c.b16 %v1023, %v1023
  %v1040 = vpack.c.b16 %v1024, %v1024
  %v1041 = vpack.c.b16 %v1025, %v1025
  %v1042 = vpack.c.b16 %v1026, %v1026
  %v1043 = vpack.c.b16 %v1027, %v1027
  %v1044 = vpack.c.b16 %v1028, %v1028
  %v1045 = vpack.c.b16 %v1029, %v1029
  %v1046 = vpack.c.b16 %v1030, %v1030
  %v1047 = vpack.c.b16 %v1031, %v1031
  %v1048 = vpack.c.b16 %v1032, %v1032
  %1065 = vst [vmem:[%s3] sm:$0xf] %v1033
  %1066 = vst [vmem:[%s3 + $0x4] sm:$0xf] %v1034
  %1067 = vst [vmem:[%s3 + $0x8] sm:$0xf] %v1035
  %1068 = vst [vmem:[%s3 + $0xc] sm:$0xf] %v1036
  %1069 = vst [vmem:[%s3 + $0x10] sm:$0xf] %v1037
  %1070 = vst [vmem:[%s3 + $0x14] sm:$0xf] %v1038
  %1071 = vst [vmem:[%s3 + $0x18] sm:$0xf] %v1039
  %1072 = vst [vmem:[%s3 + $0x1c] sm:$0xf] %v1040
  %1073 = vst [vmem:[%s3 + $0x20] sm:$0xf] %v1041
  %1074 = vst [vmem:[%s3 + $0x24] sm:$0xf] %v1042
  %1075 = vst [vmem:[%s3 + $0x28] sm:$0xf] %v1043
  %1076 = vst [vmem:[%s3 + $0x2c] sm:$0xf] %v1044
  %1077 = vst [vmem:[%s3 + $0x30] sm:$0xf] %v1045
  %1078 = vst [vmem:[%s3 + $0x34] sm:$0xf] %v1046
  %1079 = vst [vmem:[%s3 + $0x38] sm:$0xf] %v1047
  %1080 = vst [vmem:[%s3 + $0x3c] sm:$0xf] %v1048
  // Predicated region
  $region14: #{drdnet_forward.23} parent=0 // pred_check
    _
  $region15: #{drdnet_forward.23} parent=0 // pred_check_branch
    %1082 = sbr.rel (0) target = $region17
  $region16: #{drdnet_forward.23} parent=0 // pred_region
    _
  $region17: #{drdnet_forward.23} parent=0 // pred_fallthru
    _
  // Predicated region
  $region18: #{drdnet_forward.23} parent=0 // pred_check
    _
  $region19: #{drdnet_forward.23} parent=0 // pred_check_branch
    %1084 = sbr.rel (0) target = $region21
  $region20: #{drdnet_forward.23} parent=0 // pred_region
    _
  $region21: #{drdnet_forward.23} parent=0 // pred_fallthru
    _

// kernel: drdnet_forward.24
$region0: #{drdnet_forward.24}
  #allocation0 [shape = 'u32[]', space=smem, size = 0x4, offset = 0x4, fixed_abs, tag = 'smem constant byte address 0x4 - core index']
  #allocation1 [shape = 'u32[144,128]{1,0:T(1,128)}', space=vmem, size = 0x12000, scoped, tag = 'internal scratch']
  %s0 = inlined_call_operand.vmem [shape: bf16[128,128], index: 0, kind: input, shape index: {}]
  %s1 = inlined_call_operand.vmem [shape: f32[1,128], index: 1, kind: input, shape index: {}]
  %s2 = inlined_call_operand.vmem [shape: f32[1,128], index: 2, kind: input, shape index: {}]
  %s3 = inlined_call_operand.vmem [shape: bf16[128,128], index: 3, kind: output, shape index: {}]
  %s4 = sld [smem:[#allocation0]]
  $region22: #{drdnet_forward.24} parent=0
    _
  %s6 = ssub.s32 1, %s4
  %s7 = scalar_select 0, %s6, %s4
  // Predicated region
  $region2: #{drdnet_forward.24} parent=0 // pred_check
    _
  $region3: #{drdnet_forward.24} parent=0 // pred_check_branch
    %9 = sbr.rel (0) target = $region5
  $region4: #{drdnet_forward.24} parent=0 // pred_region
    _
  $region5: #{drdnet_forward.24} parent=0 // pred_fallthru
    _
  // Predicated region
  $region6: #{drdnet_forward.24} parent=0 // pred_check
    _
  $region7: #{drdnet_forward.24} parent=0 // pred_check_branch
    %11 = sbr.rel (0) target = $region9
  $region8: #{drdnet_forward.24} parent=0 // pred_region
    _
  $region9: #{drdnet_forward.24} parent=0 // pred_fallthru
    _
  // Predicated region
  $region10: #{drdnet_forward.24} parent=0 // pred_check
    _
  $region11: #{drdnet_forward.24} parent=0 // pred_check_branch
    %13 = sbr.rel (0) target = $region13
  $region12: #{drdnet_forward.24} parent=0 // pred_region
    _
  $region13: #{drdnet_forward.24} parent=0 // pred_fallthru
    _
  %v14 = vld [vmem:[%s0] sm:$0xf]
  %v15 = vld [vmem:[%s0 + $0x4] sm:$0xf]
  %v16 = vld [vmem:[%s0 + $0x8] sm:$0xf]
  %v17 = vld [vmem:[%s0 + $0xc] sm:$0xf]
  %v18 = vld [vmem:[%s0 + $0x10] sm:$0xf]
  %v19 = vld [vmem:[%s0 + $0x14] sm:$0xf]
  %v20 = vld [vmem:[%s0 + $0x18] sm:$0xf]
  %v21 = vld [vmem:[%s0 + $0x1c] sm:$0xf]
  %v22 = vld [vmem:[%s0 + $0x20] sm:$0xf]
  %v23 = vld [vmem:[%s0 + $0x24] sm:$0xf]
  %v24 = vld [vmem:[%s0 + $0x28] sm:$0xf]
  %v25 = vld [vmem:[%s0 + $0x2c] sm:$0xf]
  %v26 = vld [vmem:[%s0 + $0x30] sm:$0xf]
  %v27 = vld [vmem:[%s0 + $0x34] sm:$0xf]
  %v28 = vld [vmem:[%s0 + $0x38] sm:$0xf]
  %v29 = vld [vmem:[%s0 + $0x3c] sm:$0xf]
  %v30 = vunpack.c.l.bf16 %v14
  %v31 = vunpack.c.l.bf16 %v15
  %v32 = vunpack.c.l.bf16 %v16
  %v33 = vunpack.c.l.bf16 %v17
  %v34 = vunpack.c.l.bf16 %v18
  %v35 = vunpack.c.l.bf16 %v19
  %v36 = vunpack.c.l.bf16 %v20
  %v37 = vunpack.c.l.bf16 %v21
  %v38 = vunpack.c.l.bf16 %v22
  %v39 = vunpack.c.l.bf16 %v23
  %v40 = vunpack.c.l.bf16 %v24
  %v41 = vunpack.c.l.bf16 %v25
  %v42 = vunpack.c.l.bf16 %v26
  %v43 = vunpack.c.l.bf16 %v27
  %v44 = vunpack.c.l.bf16 %v28
  %v45 = vunpack.c.l.bf16 %v29
  %v46 = vlaneseq
  %v47 = vshrl.u32 %v46, 7
  %v48 = vadd.s32 %v47, 8
  %v49 = vadd.s32 %v47, 16
  %v50 = vadd.s32 %v47, 24
  %v51 = vadd.s32 %v47, 32
  %v52 = vadd.s32 %v47, 40
  %v53 = vadd.s32 %v47, 48
  %v54 = vadd.s32 %v47, 56
  %v55 = vadd.s32 %v47, 64
  %v56 = vadd.s32 %v47, 72
  %v57 = vadd.s32 %v47, 80
  %v58 = vadd.s32 %v47, 88
  %v59 = vadd.s32 %v47, 96
  %v60 = vadd.s32 %v47, 104
  %v61 = vadd.s32 %v47, 112
  %v62 = vadd.s32 %v47, 120
  %vm63 = vcmp.lt.s32.totalorder %v47, 128
  %vm64 = vcmp.lt.s32.totalorder %v48, 128
  %vm65 = vcmp.lt.s32.totalorder %v49, 128
  %vm66 = vcmp.lt.s32.totalorder %v50, 128
  %vm67 = vcmp.lt.s32.totalorder %v51, 128
  %vm68 = vcmp.lt.s32.totalorder %v52, 128
  %vm69 = vcmp.lt.s32.totalorder %v53, 128
  %vm70 = vcmp.lt.s32.totalorder %v54, 128
  %vm71 = vcmp.lt.s32.totalorder %v55, 128
  %vm72 = vcmp.lt.s32.totalorder %v56, 128
  %vm73 = vcmp.lt.s32.totalorder %v57, 128
  %vm74 = vcmp.lt.s32.totalorder %v58, 128
  %vm75 = vcmp.lt.s32.totalorder %v59, 128
  %vm76 = vcmp.lt.s32.totalorder %v60, 128
  %vm77 = vcmp.lt.s32.totalorder %v61, 128
  %vm78 = vcmp.lt.s32.totalorder %v62, 128
  %v79 = vsel %vm63, 1, 0
  %v80 = vsel %vm64, 1, 0
  %v81 = vsel %vm65, 1, 0
  %v82 = vsel %vm66, 1, 0
  %v83 = vsel %vm67, 1, 0
  %v84 = vsel %vm68, 1, 0
  %v85 = vsel %vm69, 1, 0
  %v86 = vsel %vm70, 1, 0
  %v87 = vsel %vm71, 1, 0
  %v88 = vsel %vm72, 1, 0
  %v89 = vsel %vm73, 1, 0
  %v90 = vsel %vm74, 1, 0
  %v91 = vsel %vm75, 1, 0
  %v92 = vsel %vm76, 1, 0
  %v93 = vsel %vm77, 1, 0
  %v94 = vsel %vm78, 1, 0
  %v95 = vcvt.s32.f32 %v79
  %v96 = vcvt.s32.f32 %v80
  %v97 = vcvt.s32.f32 %v81
  %v98 = vcvt.s32.f32 %v82
  %v99 = vcvt.s32.f32 %v83
  %v100 = vcvt.s32.f32 %v84
  %v101 = vcvt.s32.f32 %v85
  %v102 = vcvt.s32.f32 %v86
  %v103 = vcvt.s32.f32 %v87
  %v104 = vcvt.s32.f32 %v88
  %v105 = vcvt.s32.f32 %v89
  %v106 = vcvt.s32.f32 %v90
  %v107 = vcvt.s32.f32 %v91
  %v108 = vcvt.s32.f32 %v92
  %v109 = vcvt.s32.f32 %v93
  %v110 = vcvt.s32.f32 %v94
  %v111 = vadd.f32 %v30, %v31
  %v112 = vadd.f32 %v111, %v32
  %v113 = vadd.f32 %v112, %v33
  %v114 = vadd.f32 %v113, %v34
  %v115 = vadd.f32 %v114, %v35
  %v116 = vadd.f32 %v115, %v36
  %v117 = vadd.f32 %v116, %v37
  %v118 = vadd.f32 %v117, %v38
  %v119 = vadd.f32 %v118, %v39
  %v120 = vadd.f32 %v119, %v40
  %v121 = vadd.f32 %v120, %v41
  %v122 = vadd.f32 %v121, %v42
  %v123 = vadd.f32 %v122, %v43
  %v124 = vadd.f32 %v123, %v44
  %v125 = vadd.f32 %v124, %v45
  %v126 = vrot.slane %v125, 4
  %v127 = vadd.f32 %v125, %v126
  %v128 = vrot.slane %v127, 2
  %v129 = vadd.f32 %v127, %v128
  %v130 = vrot.slane %v129, 1
  %v131 = vadd.f32 %v129, %v130
  %v132 = vmul.f32 %v131, 0.0078125
  %v133 = vsub.f32 %v30, %v132
  %v134 = vsub.f32 %v31, %v132
  %v135 = vsub.f32 %v32, %v132
  %v136 = vsub.f32 %v33, %v132
  %v137 = vsub.f32 %v34, %v132
  %v138 = vsub.f32 %v35, %v132
  %v139 = vsub.f32 %v36, %v132
  %v140 = vsub.f32 %v37, %v132
  %v141 = vsub.f32 %v38, %v132
  %v142 = vsub.f32 %v39, %v132
  %v143 = vsub.f32 %v40, %v132
  %v144 = vsub.f32 %v41, %v132
  %v145 = vsub.f32 %v42, %v132
  %v146 = vsub.f32 %v43, %v132
  %v147 = vsub.f32 %v44, %v132
  %v148 = vsub.f32 %v45, %v132
  %v149 = vmul.f32 %v133, %v95
  %v150 = vmul.f32 %v134, %v96
  %v151 = vmul.f32 %v135, %v97
  %v152 = vmul.f32 %v136, %v98
  %v153 = vmul.f32 %v137, %v99
  %v154 = vmul.f32 %v138, %v100
  %v155 = vmul.f32 %v139, %v101
  %v156 = vmul.f32 %v140, %v102
  %v157 = vmul.f32 %v141, %v103
  %v158 = vmul.f32 %v142, %v104
  %v159 = vmul.f32 %v143, %v105
  %v160 = vmul.f32 %v144, %v106
  %v161 = vmul.f32 %v145, %v107
  %v162 = vmul.f32 %v146, %v108
  %v163 = vmul.f32 %v147, %v109
  %v164 = vmul.f32 %v148, %v110
  %v165 = vmul.f32 %v149, %v149
  %v166 = vmul.f32 %v150, %v150
  %v167 = vmul.f32 %v151, %v151
  %v168 = vmul.f32 %v152, %v152
  %v169 = vmul.f32 %v153, %v153
  %v170 = vmul.f32 %v154, %v154
  %v171 = vmul.f32 %v155, %v155
  %v172 = vmul.f32 %v156, %v156
  %v173 = vmul.f32 %v157, %v157
  %v174 = vmul.f32 %v158, %v158
  %v175 = vmul.f32 %v159, %v159
  %v176 = vmul.f32 %v160, %v160
  %v177 = vmul.f32 %v161, %v161
  %v178 = vmul.f32 %v162, %v162
  %v179 = vmul.f32 %v163, %v163
  %v180 = vmul.f32 %v164, %v164
  %v181 = vadd.f32 %v165, %v166
  %v182 = vadd.f32 %v181, %v167
  %v183 = vadd.f32 %v182, %v168
  %v184 = vadd.f32 %v183, %v169
  %v185 = vadd.f32 %v184, %v170
  %v186 = vadd.f32 %v185, %v171
  %v187 = vadd.f32 %v186, %v172
  %v188 = vadd.f32 %v187, %v173
  %v189 = vadd.f32 %v188, %v174
  %v190 = vadd.f32 %v189, %v175
  %v191 = vadd.f32 %v190, %v176
  %v192 = vadd.f32 %v191, %v177
  %v193 = vadd.f32 %v192, %v178
  %v194 = vadd.f32 %v193, %v179
  %v195 = vadd.f32 %v194, %v180
  %v196 = vrot.slane %v195, 4
  %v197 = vadd.f32 %v195, %v196
  %v198 = vrot.slane %v197, 2
  %v199 = vadd.f32 %v197, %v198
  %v200 = vrot.slane %v199, 1
  %v201 = vadd.f32 %v199, %v200
  %v202 = vmul.f32 %v201, 0.0078125
  %v203 = vld [vmem:[%s1] sm:$0x1]
  %v204 = vadd.f32 %v202, 1e-05
  %v205 = vrsqrt.pop %v204
  %v206 = vmul.f32 %v203, %v205
  %v207 = vld [vmem:[%s2] sm:$0x1]
  %v208 = vmul.f32 %v132, %v206
  %v209 = vsub.f32 %v207, %v208
  %v211 = vlaneseq
  %v212 = vshrl.u32 %v211, 7
  %v213 = vsub.s32 0, %v212
  %v214 = vrot.slane %v206, %v213
  %v216 = vmul.f32 %v30, %v214
  %v217 = vmul.f32 %v31, %v214
  %v218 = vmul.f32 %v32, %v214
  %v219 = vmul.f32 %v33, %v214
  %v220 = vmul.f32 %v34, %v214
  %v221 = vmul.f32 %v35, %v214
  %v222 = vmul.f32 %v36, %v214
  %v223 = vmul.f32 %v37, %v214
  %v224 = vmul.f32 %v38, %v214
  %v225 = vmul.f32 %v39, %v214
  %v226 = vmul.f32 %v40, %v214
  %v227 = vmul.f32 %v41, %v214
  %v228 = vmul.f32 %v42, %v214
  %v229 = vmul.f32 %v43, %v214
  %v230 = vmul.f32 %v44, %v214
  %v231 = vmul.f32 %v45, %v214
  %v233 = vlaneseq
  %v234 = vshrl.u32 %v233, 7
  %v235 = vsub.s32 0, %v234
  %v236 = vrot.slane %v209, %v235
  %v238 = vadd.f32 %v216, %v236
  %v239 = vadd.f32 %v217, %v236
  %v240 = vadd.f32 %v218, %v236
  %v241 = vadd.f32 %v219, %v236
  %v242 = vadd.f32 %v220, %v236
  %v243 = vadd.f32 %v221, %v236
  %v244 = vadd.f32 %v222, %v236
  %v245 = vadd.f32 %v223, %v236
  %v246 = vadd.f32 %v224, %v236
  %v247 = vadd.f32 %v225, %v236
  %v248 = vadd.f32 %v226, %v236
  %v249 = vadd.f32 %v227, %v236
  %v250 = vadd.f32 %v228, %v236
  %v251 = vadd.f32 %v229, %v236
  %v252 = vadd.f32 %v230, %v236
  %v253 = vadd.f32 %v231, %v236
  %v254 = vpack.c.bf16 %v239, %v238
  %v255 = vpack.c.bf16 %v241, %v240
  %v256 = vpack.c.bf16 %v243, %v242
  %v257 = vpack.c.bf16 %v245, %v244
  %v258 = vpack.c.bf16 %v247, %v246
  %v259 = vpack.c.bf16 %v249, %v248
  %v260 = vpack.c.bf16 %v251, %v250
  %v261 = vpack.c.bf16 %v253, %v252
  %v270 = vunpack.c.l.b16 %v254
  %v271 = vunpack.c.h.b16 %v254
  %v272 = vunpack.c.l.b16 %v255
  %v273 = vunpack.c.h.b16 %v255
  %v274 = vunpack.c.l.b16 %v256
  %v275 = vunpack.c.h.b16 %v256
  %v276 = vunpack.c.l.b16 %v257
  %v277 = vunpack.c.h.b16 %v257
  %v278 = vunpack.c.l.b16 %v258
  %v279 = vunpack.c.h.b16 %v258
  %v280 = vunpack.c.l.b16 %v259
  %v281 = vunpack.c.h.b16 %v259
  %v282 = vunpack.c.l.b16 %v260
  %v283 = vunpack.c.h.b16 %v260
  %v284 = vunpack.c.l.b16 %v261
  %v285 = vunpack.c.h.b16 %v261
  %v286 = vpack.c.b16 %v270, %v270
  %v287 = vpack.c.b16 %v271, %v271
  %v288 = vpack.c.b16 %v272, %v272
  %v289 = vpack.c.b16 %v273, %v273
  %v290 = vpack.c.b16 %v274, %v274
  %v291 = vpack.c.b16 %v275, %v275
  %v292 = vpack.c.b16 %v276, %v276
  %v293 = vpack.c.b16 %v277, %v277
  %v294 = vpack.c.b16 %v278, %v278
  %v295 = vpack.c.b16 %v279, %v279
  %v296 = vpack.c.b16 %v280, %v280
  %v297 = vpack.c.b16 %v281, %v281
  %v298 = vpack.c.b16 %v282, %v282
  %v299 = vpack.c.b16 %v283, %v283
  %v300 = vpack.c.b16 %v284, %v284
  %v301 = vpack.c.b16 %v285, %v285
  %318 = vst [vmem:[%s3] sm:$0xf] %v286
  %319 = vst [vmem:[%s3 + $0x4] sm:$0xf] %v287
  %320 = vst [vmem:[%s3 + $0x8] sm:$0xf] %v288
  %321 = vst [vmem:[%s3 + $0xc] sm:$0xf] %v289
  %322 = vst [vmem:[%s3 + $0x10] sm:$0xf] %v290
  %323 = vst [vmem:[%s3 + $0x14] sm:$0xf] %v291
  %324 = vst [vmem:[%s3 + $0x18] sm:$0xf] %v292
  %325 = vst [vmem:[%s3 + $0x1c] sm:$0xf] %v293
  %326 = vst [vmem:[%s3 + $0x20] sm:$0xf] %v294
  %327 = vst [vmem:[%s3 + $0x24] sm:$0xf] %v295
  %328 = vst [vmem:[%s3 + $0x28] sm:$0xf] %v296
  %329 = vst [vmem:[%s3 + $0x2c] sm:$0xf] %v297
  %330 = vst [vmem:[%s3 + $0x30] sm:$0xf] %v298
  %331 = vst [vmem:[%s3 + $0x34] sm:$0xf] %v299
  %332 = vst [vmem:[%s3 + $0x38] sm:$0xf] %v300
  %333 = vst [vmem:[%s3 + $0x3c] sm:$0xf] %v301
  // Predicated region
  $region14: #{drdnet_forward.24} parent=0 // pred_check
    _
  $region15: #{drdnet_forward.24} parent=0 // pred_check_branch
    %335 = sbr.rel (0) target = $region17
  $region16: #{drdnet_forward.24} parent=0 // pred_region
    _
  $region17: #{drdnet_forward.24} parent=0 // pred_fallthru
    _
  // Predicated region
  $region18: #{drdnet_forward.24} parent=0 // pred_check
    _
  $region19: #{drdnet_forward.24} parent=0 // pred_check_branch
    %337 = sbr.rel (0) target = $region21
  $region20: #{drdnet_forward.24} parent=0 // pred_region
    _
  $region21: #{drdnet_forward.24} parent=0 // pred_fallthru
    _

// kernel: drdnet_forward.25
$region0: #{drdnet_forward.25}
  #allocation0 [shape = 'u32[]', space=smem, size = 0x4, offset = 0x4, fixed_abs, tag = 'smem constant byte address 0x4 - core index']
  #allocation1 [shape = 'u32[144,128]{1,0:T(1,128)}', space=vmem, size = 0x12000, scoped, tag = 'internal scratch']
  %s0 = inlined_call_operand.vmem [shape: bf16[128,256], index: 0, kind: input, shape index: {}]
  %s1 = inlined_call_operand.vmem [shape: bf16[256,128], index: 1, kind: input, shape index: {}]
  %s2 = inlined_call_operand.vmem [shape: f32[1,128], index: 2, kind: input, shape index: {}]
  %s3 = inlined_call_operand.vmem [shape: bf16[128,128], index: 3, kind: output, shape index: {}]
  %s4 = sld [smem:[#allocation0]]
  $region22: #{drdnet_forward.25} parent=0
    _
  %s6 = ssub.s32 1, %s4
  %s7 = scalar_select 0, %s6, %s4
  // Predicated region
  $region2: #{drdnet_forward.25} parent=0 // pred_check
    _
  $region3: #{drdnet_forward.25} parent=0 // pred_check_branch
    %9 = sbr.rel (0) target = $region5
  $region4: #{drdnet_forward.25} parent=0 // pred_region
    _
  $region5: #{drdnet_forward.25} parent=0 // pred_fallthru
    _
  // Predicated region
  $region6: #{drdnet_forward.25} parent=0 // pred_check
    _
  $region7: #{drdnet_forward.25} parent=0 // pred_check_branch
    %11 = sbr.rel (0) target = $region9
  $region8: #{drdnet_forward.25} parent=0 // pred_region
    _
  $region9: #{drdnet_forward.25} parent=0 // pred_fallthru
    _
  // Predicated region
  $region10: #{drdnet_forward.25} parent=0 // pred_check
    _
  $region11: #{drdnet_forward.25} parent=0 // pred_check_branch
    %13 = sbr.rel (0) target = $region13
  $region12: #{drdnet_forward.25} parent=0 // pred_region
    _
  $region13: #{drdnet_forward.25} parent=0 // pred_fallthru
    _
  %v15 = vld [vmem:[%s0] sm:$0xff]
  %v16 = vld [vmem:[%s0 + $0x8] sm:$0xff]
  %v17 = vld [vmem:[%s0 + $0x10] sm:$0xff]
  %v18 = vld [vmem:[%s0 + $0x18] sm:$0xff]
  %v19 = vld [vmem:[%s0 + $0x20] sm:$0xff]
  %v20 = vld [vmem:[%s0 + $0x28] sm:$0xff]
  %v21 = vld [vmem:[%s0 + $0x30] sm:$0xff]
  %v22 = vld [vmem:[%s0 + $0x38] sm:$0xff]
  %v23 = vld [vmem:[%s0 + $0x40] sm:$0xff]
  %v24 = vld [vmem:[%s0 + $0x48] sm:$0xff]
  %v25 = vld [vmem:[%s0 + $0x50] sm:$0xff]
  %v26 = vld [vmem:[%s0 + $0x58] sm:$0xff]
  %v27 = vld [vmem:[%s0 + $0x60] sm:$0xff]
  %v28 = vld [vmem:[%s0 + $0x68] sm:$0xff]
  %v29 = vld [vmem:[%s0 + $0x70] sm:$0xff]
  %v30 = vld [vmem:[%s0 + $0x78] sm:$0xff]
  %v31 = vld [vmem:[%s1] sm:$0xf]
  %v32 = vld [vmem:[%s1 + $0x4] sm:$0xf]
  %v33 = vld [vmem:[%s1 + $0x8] sm:$0xf]
  %v34 = vld [vmem:[%s1 + $0xc] sm:$0xf]
  %v35 = vld [vmem:[%s1 + $0x10] sm:$0xf]
  %v36 = vld [vmem:[%s1 + $0x14] sm:$0xf]
  %v37 = vld [vmem:[%s1 + $0x18] sm:$0xf]
  %v38 = vld [vmem:[%s1 + $0x1c] sm:$0xf]
  %v39 = vld [vmem:[%s1 + $0x20] sm:$0xf]
  %v40 = vld [vmem:[%s1 + $0x24] sm:$0xf]
  %v41 = vld [vmem:[%s1 + $0x28] sm:$0xf]
  %v42 = vld [vmem:[%s1 + $0x2c] sm:$0xf]
  %v43 = vld [vmem:[%s1 + $0x30] sm:$0xf]
  %v44 = vld [vmem:[%s1 + $0x34] sm:$0xf]
  %v45 = vld [vmem:[%s1 + $0x38] sm:$0xf]
  %v46 = vld [vmem:[%s1 + $0x3c] sm:$0xf]
  %v47 = vld [vmem:[%s1 + $0x40] sm:$0xf]
  %v48 = vld [vmem:[%s1 + $0x44] sm:$0xf]
  %v49 = vld [vmem:[%s1 + $0x48] sm:$0xf]
  %v50 = vld [vmem:[%s1 + $0x4c] sm:$0xf]
  %v51 = vld [vmem:[%s1 + $0x50] sm:$0xf]
  %v52 = vld [vmem:[%s1 + $0x54] sm:$0xf]
  %v53 = vld [vmem:[%s1 + $0x58] sm:$0xf]
  %v54 = vld [vmem:[%s1 + $0x5c] sm:$0xf]
  %v55 = vld [vmem:[%s1 + $0x60] sm:$0xf]
  %v56 = vld [vmem:[%s1 + $0x64] sm:$0xf]
  %v57 = vld [vmem:[%s1 + $0x68] sm:$0xf]
  %v58 = vld [vmem:[%s1 + $0x6c] sm:$0xf]
  %v59 = vld [vmem:[%s1 + $0x70] sm:$0xf]
  %v60 = vld [vmem:[%s1 + $0x74] sm:$0xf]
  %v61 = vld [vmem:[%s1 + $0x78] sm:$0xf]
  %v62 = vld [vmem:[%s1 + $0x7c] sm:$0xf]
  %v63 = vld [vmem:[%s2] sm:$0x1]
  %v65 = vlaneseq
  %v66 = vshrl.u32 %v65, 7
  %v67 = vsub.s32 0, %v66
  %v68 = vrot.slane %v63, %v67
  %v86 = vunpack.c.l.b16 %v15
  %v87 = vunpack.c.h.b16 %v15
  %v88 = vunpack.c.l.b16 %v16
  %v89 = vunpack.c.h.b16 %v16
  %v90 = vunpack.c.l.b16 %v17
  %v91 = vunpack.c.h.b16 %v17
  %v92 = vunpack.c.l.b16 %v18
  %v93 = vunpack.c.h.b16 %v18
  %v94 = vunpack.c.l.b16 %v19
  %v95 = vunpack.c.h.b16 %v19
  %v96 = vunpack.c.l.b16 %v20
  %v97 = vunpack.c.h.b16 %v20
  %v98 = vunpack.c.l.b16 %v21
  %v99 = vunpack.c.h.b16 %v21
  %v100 = vunpack.c.l.b16 %v22
  %v101 = vunpack.c.h.b16 %v22
  %v102 = vunpack.c.l.b16 %v23
  %v103 = vunpack.c.h.b16 %v23
  %v104 = vunpack.c.l.b16 %v24
  %v105 = vunpack.c.h.b16 %v24
  %v106 = vunpack.c.l.b16 %v25
  %v107 = vunpack.c.h.b16 %v25
  %v108 = vunpack.c.l.b16 %v26
  %v109 = vunpack.c.h.b16 %v26
  %v110 = vunpack.c.l.b16 %v27
  %v111 = vunpack.c.h.b16 %v27
  %v112 = vunpack.c.l.b16 %v28
  %v113 = vunpack.c.h.b16 %v28
  %v114 = vunpack.c.l.b16 %v29
  %v115 = vunpack.c.h.b16 %v29
  %v116 = vunpack.c.l.b16 %v30
  %v117 = vunpack.c.h.b16 %v30
  %v118 = vpack.c.b16 %v88, %v86
  %v119 = vpack.c.b16 %v89, %v87
  %v120 = vpack.c.b16 %v92, %v90
  %v121 = vpack.c.b16 %v93, %v91
  %v122 = vpack.c.b16 %v96, %v94
  %v123 = vpack.c.b16 %v97, %v95
  %v124 = vpack.c.b16 %v100, %v98
  %v125 = vpack.c.b16 %v101, %v99
  %v126 = vpack.c.b16 %v104, %v102
  %v127 = vpack.c.b16 %v105, %v103
  %v128 = vpack.c.b16 %v108, %v106
  %v129 = vpack.c.b16 %v109, %v107
  %v130 = vpack.c.b16 %v112, %v110
  %v131 = vpack.c.b16 %v113, %v111
  %v132 = vpack.c.b16 %v116, %v114
  %v133 = vpack.c.b16 %v117, %v115
  %v182 = vunpack.c.l.b16 %v31
  %v183 = vunpack.c.l.b16 %v32
  %v184 = vunpack.c.l.b16 %v33
  %v185 = vunpack.c.l.b16 %v34
  %v186 = vunpack.c.l.b16 %v35
  %v187 = vunpack.c.l.b16 %v36
  %v188 = vunpack.c.l.b16 %v37
  %v189 = vunpack.c.l.b16 %v38
  %v190 = vunpack.c.l.b16 %v39
  %v191 = vunpack.c.l.b16 %v40
  %v192 = vunpack.c.l.b16 %v41
  %v193 = vunpack.c.l.b16 %v42
  %v194 = vunpack.c.l.b16 %v43
  %v195 = vunpack.c.l.b16 %v44
  %v196 = vunpack.c.l.b16 %v45
  %v197 = vunpack.c.l.b16 %v46
  %v198 = vunpack.c.l.b16 %v47
  %v199 = vunpack.c.l.b16 %v48
  %v200 = vunpack.c.l.b16 %v49
  %v201 = vunpack.c.l.b16 %v50
  %v202 = vunpack.c.l.b16 %v51
  %v203 = vunpack.c.l.b16 %v52
  %v204 = vunpack.c.l.b16 %v53
  %v205 = vunpack.c.l.b16 %v54
  %v206 = vunpack.c.l.b16 %v55
  %v207 = vunpack.c.l.b16 %v56
  %v208 = vunpack.c.l.b16 %v57
  %v209 = vunpack.c.l.b16 %v58
  %v210 = vunpack.c.l.b16 %v59
  %v211 = vunpack.c.l.b16 %v60
  %v212 = vunpack.c.l.b16 %v61
  %v213 = vunpack.c.l.b16 %v62
  %v214 = vpack.c.b16 %v183, %v182
  %v215 = vpack.c.b16 %v185, %v184
  %v216 = vpack.c.b16 %v187, %v186
  %v217 = vpack.c.b16 %v189, %v188
  %v218 = vpack.c.b16 %v191, %v190
  %v219 = vpack.c.b16 %v193, %v192
  %v220 = vpack.c.b16 %v195, %v194
  %v221 = vpack.c.b16 %v197, %v196
  %v222 = vpack.c.b16 %v199, %v198
  %v223 = vpack.c.b16 %v201, %v200
  %v224 = vpack.c.b16 %v203, %v202
  %v225 = vpack.c.b16 %v205, %v204
  %v226 = vpack.c.b16 %v207, %v206
  %v227 = vpack.c.b16 %v209, %v208
  %v228 = vpack.c.b16 %v211, %v210
  %v229 = vpack.c.b16 %v213, %v212
  %246 = vmatprep.subr.bf16.mxu0 0
  %247 = vmatpush1.bf16.msra.mxu0 %v214
  %248 = vmatprep.subr.bf16.mxu0 0
  %249 = vmatpush1.bf16.msra.mxu0 %v215
  %250 = vmatprep.subr.bf16.mxu0 0
  %251 = vmatpush1.bf16.msra.mxu0 %v216
  %252 = vmatprep.subr.bf16.mxu0 0
  %253 = vmatpush1.bf16.msra.mxu0 %v217
  %254 = vmatprep.subr.bf16.mxu0 0
  %255 = vmatpush1.bf16.msra.mxu0 %v218
  %256 = vmatprep.subr.bf16.mxu0 0
  %257 = vmatpush1.bf16.msra.mxu0 %v219
  %258 = vmatprep.subr.bf16.mxu0 0
  %259 = vmatpush1.bf16.msra.mxu0 %v220
  %260 = vmatprep.subr.bf16.mxu0 0
  %261 = vmatpush1.bf16.msra.mxu0 %v221
  %262 = vmatprep.subr.bf16.mxu0 0
  %263 = vmatpush1.bf16.msra.mxu0 %v222
  %264 = vmatprep.subr.bf16.mxu0 0
  %265 = vmatpush1.bf16.msra.mxu0 %v223
  %266 = vmatprep.subr.bf16.mxu0 0
  %267 = vmatpush1.bf16.msra.mxu0 %v224
  %268 = vmatprep.subr.bf16.mxu0 0
  %269 = vmatpush1.bf16.msra.mxu0 %v225
  %270 = vmatprep.subr.bf16.mxu0 0
  %271 = vmatpush1.bf16.msra.mxu0 %v226
  %272 = vmatprep.subr.bf16.mxu0 0
  %273 = vmatpush1.bf16.msra.mxu0 %v227
  %274 = vmatprep.subr.bf16.mxu0 0
  %275 = vmatpush1.bf16.msra.mxu0 %v228
  %276 = vmatprep.subr.bf16.mxu0 0
  %277 = vmatpush1.bf16.msra.mxu0 %v229
  %278 = vmatprep.mubr.bf16.mxu0 %v119
  %279 = vmatmul.mubr.bf16.gmra.mrb[0].mxu0 %v118
  %v280 = vpop.f32.mrb[0].mxu0
  %v281 = vadd.f32 %v68, %v280
  %v282 = vpop.f32.mrb[0].mxu0
  %v283 = vpop.f32.mrb[0].mxu0
  %v284 = vadd.f32 %v68, %v283
  %v285 = vpop.f32.mrb[0].mxu0
  %286 = vmatprep.mubr.bf16.mxu0 %v121
  %287 = vmatmul.mubr.bf16.gmra.mrb[0].mxu0 %v120
  %v288 = vpop.f32.mrb[0].mxu0
  %v289 = vadd.f32 %v68, %v288
  %v290 = vpop.f32.mrb[0].mxu0
  %v291 = vpop.f32.mrb[0].mxu0
  %v292 = vadd.f32 %v68, %v291
  %v293 = vpop.f32.mrb[0].mxu0
  %294 = vmatprep.mubr.bf16.mxu0 %v123
  %295 = vmatmul.mubr.bf16.gmra.mrb[0].mxu0 %v122
  %v296 = vpop.f32.mrb[0].mxu0
  %v297 = vadd.f32 %v68, %v296
  %v298 = vpop.f32.mrb[0].mxu0
  %v299 = vpop.f32.mrb[0].mxu0
  %v300 = vadd.f32 %v68, %v299
  %v301 = vpop.f32.mrb[0].mxu0
  %302 = vmatprep.mubr.bf16.mxu0 %v125
  %303 = vmatmul.mubr.bf16.gmra.mrb[0].mxu0 %v124
  %v304 = vpop.f32.mrb[0].mxu0
  %v305 = vadd.f32 %v68, %v304
  %v306 = vpop.f32.mrb[0].mxu0
  %v307 = vpop.f32.mrb[0].mxu0
  %v308 = vadd.f32 %v68, %v307
  %v309 = vpop.f32.mrb[0].mxu0
  %310 = vmatprep.mubr.bf16.mxu0 %v127
  %311 = vmatmul.mubr.bf16.gmra.mrb[0].mxu0 %v126
  %v312 = vpop.f32.mrb[0].mxu0
  %v313 = vadd.f32 %v68, %v312
  %v314 = vpop.f32.mrb[0].mxu0
  %v315 = vpop.f32.mrb[0].mxu0
  %v316 = vadd.f32 %v68, %v315
  %v317 = vpop.f32.mrb[0].mxu0
  %318 = vmatprep.mubr.bf16.mxu0 %v129
  %319 = vmatmul.mubr.bf16.gmra.mrb[0].mxu0 %v128
  %v320 = vpop.f32.mrb[0].mxu0
  %v321 = vadd.f32 %v68, %v320
  %v322 = vpop.f32.mrb[0].mxu0
  %v323 = vpop.f32.mrb[0].mxu0
  %v324 = vadd.f32 %v68, %v323
  %v325 = vpop.f32.mrb[0].mxu0
  %326 = vmatprep.mubr.bf16.mxu0 %v131
  %327 = vmatmul.mubr.bf16.gmra.mrb[0].mxu0 %v130
  %v328 = vpop.f32.mrb[0].mxu0
  %v329 = vadd.f32 %v68, %v328
  %v330 = vpop.f32.mrb[0].mxu0
  %v331 = vpop.f32.mrb[0].mxu0
  %v332 = vadd.f32 %v68, %v331
  %v333 = vpop.f32.mrb[0].mxu0
  %334 = vmatprep.mubr.bf16.mxu0 %v133
  %335 = vmatmul.mubr.bf16.gmra.mrb[0].mxu0 %v132
  %v336 = vpop.f32.mrb[0].mxu0
  %v337 = vadd.f32 %v68, %v336
  %v338 = vpop.f32.mrb[0].mxu0
  %v339 = vpop.f32.mrb[0].mxu0
  %v340 = vadd.f32 %v68, %v339
  %v341 = vpop.f32.mrb[0].mxu0
  %342 = vdwg.mxu0
  %v343 = vmax.f32 %v281, 0.0
  %v344 = vmax.f32 %v284, 0.0
  %v345 = vmax.f32 %v289, 0.0
  %v346 = vmax.f32 %v292, 0.0
  %v347 = vmax.f32 %v297, 0.0
  %v348 = vmax.f32 %v300, 0.0
  %v349 = vmax.f32 %v305, 0.0
  %v350 = vmax.f32 %v308, 0.0
  %v351 = vmax.f32 %v313, 0.0
  %v352 = vmax.f32 %v316, 0.0
  %v353 = vmax.f32 %v321, 0.0
  %v354 = vmax.f32 %v324, 0.0
  %v355 = vmax.f32 %v329, 0.0
  %v356 = vmax.f32 %v332, 0.0
  %v357 = vmax.f32 %v337, 0.0
  %v358 = vmax.f32 %v340, 0.0
  %v359 = vpack.c.bf16 %v344, %v343
  %v360 = vpack.c.bf16 %v346, %v345
  %v361 = vpack.c.bf16 %v348, %v347
  %v362 = vpack.c.bf16 %v350, %v349
  %v363 = vpack.c.bf16 %v352, %v351
  %v364 = vpack.c.bf16 %v354, %v353
  %v365 = vpack.c.bf16 %v356, %v355
  %v366 = vpack.c.bf16 %v358, %v357
  %v375 = vunpack.c.l.b16 %v359
  %v376 = vunpack.c.h.b16 %v359
  %v377 = vunpack.c.l.b16 %v360
  %v378 = vunpack.c.h.b16 %v360
  %v379 = vunpack.c.l.b16 %v361
  %v380 = vunpack.c.h.b16 %v361
  %v381 = vunpack.c.l.b16 %v362
  %v382 = vunpack.c.h.b16 %v362
  %v383 = vunpack.c.l.b16 %v363
  %v384 = vunpack.c.h.b16 %v363
  %v385 = vunpack.c.l.b16 %v364
  %v386 = vunpack.c.h.b16 %v364
  %v387 = vunpack.c.l.b16 %v365
  %v388 = vunpack.c.h.b16 %v365
  %v389 = vunpack.c.l.b16 %v366
  %v390 = vunpack.c.h.b16 %v366
  %v391 = vpack.c.b16 %v375, %v375
  %v392 = vpack.c.b16 %v376, %v376
  %v393 = vpack.c.b16 %v377, %v377
  %v394 = vpack.c.b16 %v378, %v378
  %v395 = vpack.c.b16 %v379, %v379
  %v396 = vpack.c.b16 %v380, %v380
  %v397 = vpack.c.b16 %v381, %v381
  %v398 = vpack.c.b16 %v382, %v382
  %v399 = vpack.c.b16 %v383, %v383
  %v400 = vpack.c.b16 %v384, %v384
  %v401 = vpack.c.b16 %v385, %v385
  %v402 = vpack.c.b16 %v386, %v386
  %v403 = vpack.c.b16 %v387, %v387
  %v404 = vpack.c.b16 %v388, %v388
  %v405 = vpack.c.b16 %v389, %v389
  %v406 = vpack.c.b16 %v390, %v390
  %423 = vst [vmem:[%s3] sm:$0xf] %v391
  %424 = vst [vmem:[%s3 + $0x4] sm:$0xf] %v392
  %425 = vst [vmem:[%s3 + $0x8] sm:$0xf] %v393
  %426 = vst [vmem:[%s3 + $0xc] sm:$0xf] %v394
  %427 = vst [vmem:[%s3 + $0x10] sm:$0xf] %v395
  %428 = vst [vmem:[%s3 + $0x14] sm:$0xf] %v396
  %429 = vst [vmem:[%s3 + $0x18] sm:$0xf] %v397
  %430 = vst [vmem:[%s3 + $0x1c] sm:$0xf] %v398
  %431 = vst [vmem:[%s3 + $0x20] sm:$0xf] %v399
  %432 = vst [vmem:[%s3 + $0x24] sm:$0xf] %v400
  %433 = vst [vmem:[%s3 + $0x28] sm:$0xf] %v401
  %434 = vst [vmem:[%s3 + $0x2c] sm:$0xf] %v402
  %435 = vst [vmem:[%s3 + $0x30] sm:$0xf] %v403
  %436 = vst [vmem:[%s3 + $0x34] sm:$0xf] %v404
  %437 = vst [vmem:[%s3 + $0x38] sm:$0xf] %v405
  %438 = vst [vmem:[%s3 + $0x3c] sm:$0xf] %v406
  // Predicated region
  $region14: #{drdnet_forward.25} parent=0 // pred_check
    _
  $region15: #{drdnet_forward.25} parent=0 // pred_check_branch
    %440 = sbr.rel (0) target = $region17
  $region16: #{drdnet_forward.25} parent=0 // pred_region
    _
  $region17: #{drdnet_forward.25} parent=0 // pred_fallthru
    _
  // Predicated region
  $region18: #{drdnet_forward.25} parent=0 // pred_check
    _
  $region19: #{drdnet_forward.25} parent=0 // pred_check_branch
    %442 = sbr.rel (0) target = $region21
  $region20: #{drdnet_forward.25} parent=0 // pred_region
    _
  $region21: #{drdnet_forward.25} parent=0 // pred_fallthru
    _

// kernel: drdnet_forward.27
$region0: #{drdnet_forward.27}
  #allocation0 [shape = 'u32[]', space=smem, size = 0x4, offset = 0x4, fixed_abs, tag = 'smem constant byte address 0x4 - core index']
  #allocation1 [shape = 'u32[144,128]{1,0:T(1,128)}', space=vmem, size = 0x12000, scoped, tag = 'internal scratch']
  %s0 = inlined_call_operand.vmem [shape: bf16[32,512], index: 0, kind: input, shape index: {}]
  %s1 = inlined_call_operand.vmem [shape: bf16[512,128], index: 1, kind: input, shape index: {}]
  %s2 = inlined_call_operand.vmem [shape: f32[1,128], index: 2, kind: input, shape index: {}]
  %s3 = inlined_call_operand.vmem [shape: bf16[32,128], index: 3, kind: output, shape index: {}]
  %s4 = sld [smem:[#allocation0]]
  $region22: #{drdnet_forward.27} parent=0
    _
  %s6 = ssub.s32 1, %s4
  %s7 = scalar_select 0, %s6, %s4
  // Predicated region
  $region2: #{drdnet_forward.27} parent=0 // pred_check
    _
  $region3: #{drdnet_forward.27} parent=0 // pred_check_branch
    %9 = sbr.rel (0) target = $region5
  $region4: #{drdnet_forward.27} parent=0 // pred_region
    _
  $region5: #{drdnet_forward.27} parent=0 // pred_fallthru
    _
  // Predicated region
  $region6: #{drdnet_forward.27} parent=0 // pred_check
    _
  $region7: #{drdnet_forward.27} parent=0 // pred_check_branch
    %11 = sbr.rel (0) target = $region9
  $region8: #{drdnet_forward.27} parent=0 // pred_region
    _
  $region9: #{drdnet_forward.27} parent=0 // pred_fallthru
    _
  // Predicated region
  $region10: #{drdnet_forward.27} parent=0 // pred_check
    _
  $region11: #{drdnet_forward.27} parent=0 // pred_check_branch
    %13 = sbr.rel (0) target = $region13
  $region12: #{drdnet_forward.27} parent=0 // pred_region
    _
  $region13: #{drdnet_forward.27} parent=0 // pred_fallthru
    _
  %v15 = vld [vmem:[%s0] sm:$0xff]
  %v16 = vld [vmem:[%s0 + $0x8] sm:$0xff]
  %v17 = vld [vmem:[%s0 + $0x10] sm:$0xff]
  %v18 = vld [vmem:[%s0 + $0x18] sm:$0xff]
  %v19 = vld [vmem:[%s0 + $0x20] sm:$0xff]
  %v20 = vld [vmem:[%s0 + $0x28] sm:$0xff]
  %v21 = vld [vmem:[%s0 + $0x30] sm:$0xff]
  %v22 = vld [vmem:[%s0 + $0x38] sm:$0xff]
  %v23 = vld [vmem:[%s1] sm:$0xf]
  %v24 = vld [vmem:[%s1 + $0x4] sm:$0xf]
  %v25 = vld [vmem:[%s1 + $0x8] sm:$0xf]
  %v26 = vld [vmem:[%s1 + $0xc] sm:$0xf]
  %v27 = vld [vmem:[%s1 + $0x10] sm:$0xf]
  %v28 = vld [vmem:[%s1 + $0x14] sm:$0xf]
  %v29 = vld [vmem:[%s1 + $0x18] sm:$0xf]
  %v30 = vld [vmem:[%s1 + $0x1c] sm:$0xf]
  %v31 = vld [vmem:[%s1 + $0x20] sm:$0xf]
  %v32 = vld [vmem:[%s1 + $0x24] sm:$0xf]
  %v33 = vld [vmem:[%s1 + $0x28] sm:$0xf]
  %v34 = vld [vmem:[%s1 + $0x2c] sm:$0xf]
  %v35 = vld [vmem:[%s1 + $0x30] sm:$0xf]
  %v36 = vld [vmem:[%s1 + $0x34] sm:$0xf]
  %v37 = vld [vmem:[%s1 + $0x38] sm:$0xf]
  %v38 = vld [vmem:[%s1 + $0x3c] sm:$0xf]
  %v39 = vld [vmem:[%s1 + $0x40] sm:$0xf]
  %v40 = vld [vmem:[%s1 + $0x44] sm:$0xf]
  %v41 = vld [vmem:[%s1 + $0x48] sm:$0xf]
  %v42 = vld [vmem:[%s1 + $0x4c] sm:$0xf]
  %v43 = vld [vmem:[%s1 + $0x50] sm:$0xf]
  %v44 = vld [vmem:[%s1 + $0x54] sm:$0xf]
  %v45 = vld [vmem:[%s1 + $0x58] sm:$0xf]
  %v46 = vld [vmem:[%s1 + $0x5c] sm:$0xf]
  %v47 = vld [vmem:[%s1 + $0x60] sm:$0xf]
  %v48 = vld [vmem:[%s1 + $0x64] sm:$0xf]
  %v49 = vld [vmem:[%s1 + $0x68] sm:$0xf]
  %v50 = vld [vmem:[%s1 + $0x6c] sm:$0xf]
  %v51 = vld [vmem:[%s1 + $0x70] sm:$0xf]
  %v52 = vld [vmem:[%s1 + $0x74] sm:$0xf]
  %v53 = vld [vmem:[%s1 + $0x78] sm:$0xf]
  %v54 = vld [vmem:[%s1 + $0x7c] sm:$0xf]
  %v55 = vld [vmem:[%s1 + $0x80] sm:$0xf]
  %v56 = vld [vmem:[%s1 + $0x84] sm:$0xf]
  %v57 = vld [vmem:[%s1 + $0x88] sm:$0xf]
  %v58 = vld [vmem:[%s1 + $0x8c] sm:$0xf]
  %v59 = vld [vmem:[%s1 + $0x90] sm:$0xf]
  %v60 = vld [vmem:[%s1 + $0x94] sm:$0xf]
  %v61 = vld [vmem:[%s1 + $0x98] sm:$0xf]
  %v62 = vld [vmem:[%s1 + $0x9c] sm:$0xf]
  %v63 = vld [vmem:[%s1 + $0xa0] sm:$0xf]
  %v64 = vld [vmem:[%s1 + $0xa4] sm:$0xf]
  %v65 = vld [vmem:[%s1 + $0xa8] sm:$0xf]
  %v66 = vld [vmem:[%s1 + $0xac] sm:$0xf]
  %v67 = vld [vmem:[%s1 + $0xb0] sm:$0xf]
  %v68 = vld [vmem:[%s1 + $0xb4] sm:$0xf]
  %v69 = vld [vmem:[%s1 + $0xb8] sm:$0xf]
  %v70 = vld [vmem:[%s1 + $0xbc] sm:$0xf]
  %v71 = vld [vmem:[%s1 + $0xc0] sm:$0xf]
  %v72 = vld [vmem:[%s1 + $0xc4] sm:$0xf]
  %v73 = vld [vmem:[%s1 + $0xc8] sm:$0xf]
  %v74 = vld [vmem:[%s1 + $0xcc] sm:$0xf]
  %v75 = vld [vmem:[%s1 + $0xd0] sm:$0xf]
  %v76 = vld [vmem:[%s1 + $0xd4] sm:$0xf]
  %v77 = vld [vmem:[%s1 + $0xd8] sm:$0xf]
  %v78 = vld [vmem:[%s1 + $0xdc] sm:$0xf]
  %v79 = vld [vmem:[%s1 + $0xe0] sm:$0xf]
  %v80 = vld [vmem:[%s1 + $0xe4] sm:$0xf]
  %v81 = vld [vmem:[%s1 + $0xe8] sm:$0xf]
  %v82 = vld [vmem:[%s1 + $0xec] sm:$0xf]
  %v83 = vld [vmem:[%s1 + $0xf0] sm:$0xf]
  %v84 = vld [vmem:[%s1 + $0xf4] sm:$0xf]
  %v85 = vld [vmem:[%s1 + $0xf8] sm:$0xf]
  %v86 = vld [vmem:[%s1 + $0xfc] sm:$0xf]
  %v87 = vld [vmem:[%s2] sm:$0x1]
  %v89 = vlaneseq
  %v90 = vshrl.u32 %v89, 7
  %v91 = vsub.s32 0, %v90
  %v92 = vrot.slane %v87, %v91
  %v102 = vunpack.c.l.b16 %v15
  %v103 = vunpack.c.h.b16 %v15
  %v104 = vunpack.c.l.b16 %v16
  %v105 = vunpack.c.h.b16 %v16
  %v106 = vunpack.c.l.b16 %v17
  %v107 = vunpack.c.h.b16 %v17
  %v108 = vunpack.c.l.b16 %v18
  %v109 = vunpack.c.h.b16 %v18
  %v110 = vunpack.c.l.b16 %v19
  %v111 = vunpack.c.h.b16 %v19
  %v112 = vunpack.c.l.b16 %v20
  %v113 = vunpack.c.h.b16 %v20
  %v114 = vunpack.c.l.b16 %v21
  %v115 = vunpack.c.h.b16 %v21
  %v116 = vunpack.c.l.b16 %v22
  %v117 = vunpack.c.h.b16 %v22
  %v118 = vpack.c.b16 %v106, %v102
  %v119 = vpack.c.b16 %v107, %v103
  %v120 = vpack.c.b16 %v108, %v104
  %v121 = vpack.c.b16 %v109, %v105
  %v122 = vpack.c.b16 %v114, %v110
  %v123 = vpack.c.b16 %v115, %v111
  %v124 = vpack.c.b16 %v116, %v112
  %v125 = vpack.c.b16 %v117, %v113
  %v198 = vunpack.c.l.b16 %v23
  %v199 = vunpack.c.l.b16 %v24
  %v200 = vunpack.c.l.b16 %v25
  %v201 = vunpack.c.l.b16 %v26
  %v202 = vunpack.c.l.b16 %v27
  %v203 = vunpack.c.l.b16 %v28
  %v204 = vunpack.c.l.b16 %v29
  %v205 = vunpack.c.l.b16 %v30
  %v206 = vunpack.c.l.b16 %v31
  %v207 = vunpack.c.l.b16 %v32
  %v208 = vunpack.c.l.b16 %v33
  %v209 = vunpack.c.l.b16 %v34
  %v210 = vunpack.c.l.b16 %v35
  %v211 = vunpack.c.l.b16 %v36
  %v212 = vunpack.c.l.b16 %v37
  %v213 = vunpack.c.l.b16 %v38
  %v214 = vunpack.c.l.b16 %v39
  %v215 = vunpack.c.l.b16 %v40
  %v216 = vunpack.c.l.b16 %v41
  %v217 = vunpack.c.l.b16 %v42
  %v218 = vunpack.c.l.b16 %v43
  %v219 = vunpack.c.l.b16 %v44
  %v220 = vunpack.c.l.b16 %v45
  %v221 = vunpack.c.l.b16 %v46
  %v222 = vunpack.c.l.b16 %v47
  %v223 = vunpack.c.l.b16 %v48
  %v224 = vunpack.c.l.b16 %v49
  %v225 = vunpack.c.l.b16 %v50
  %v226 = vunpack.c.l.b16 %v51
  %v227 = vunpack.c.l.b16 %v52
  %v228 = vunpack.c.l.b16 %v53
  %v229 = vunpack.c.l.b16 %v54
  %v230 = vunpack.c.l.b16 %v55
  %v231 = vunpack.c.l.b16 %v56
  %v232 = vunpack.c.l.b16 %v57
  %v233 = vunpack.c.l.b16 %v58
  %v234 = vunpack.c.l.b16 %v59
  %v235 = vunpack.c.l.b16 %v60
  %v236 = vunpack.c.l.b16 %v61
  %v237 = vunpack.c.l.b16 %v62
  %v238 = vunpack.c.l.b16 %v63
  %v239 = vunpack.c.l.b16 %v64
  %v240 = vunpack.c.l.b16 %v65
  %v241 = vunpack.c.l.b16 %v66
  %v242 = vunpack.c.l.b16 %v67
  %v243 = vunpack.c.l.b16 %v68
  %v244 = vunpack.c.l.b16 %v69
  %v245 = vunpack.c.l.b16 %v70
  %v246 = vunpack.c.l.b16 %v71
  %v247 = vunpack.c.l.b16 %v72
  %v248 = vunpack.c.l.b16 %v73
  %v249 = vunpack.c.l.b16 %v74
  %v250 = vunpack.c.l.b16 %v75
  %v251 = vunpack.c.l.b16 %v76
  %v252 = vunpack.c.l.b16 %v77
  %v253 = vunpack.c.l.b16 %v78
  %v254 = vunpack.c.l.b16 %v79
  %v255 = vunpack.c.l.b16 %v80
  %v256 = vunpack.c.l.b16 %v81
  %v257 = vunpack.c.l.b16 %v82
  %v258 = vunpack.c.l.b16 %v83
  %v259 = vunpack.c.l.b16 %v84
  %v260 = vunpack.c.l.b16 %v85
  %v261 = vunpack.c.l.b16 %v86
  %v262 = vpack.c.b16 %v199, %v198
  %v263 = vpack.c.b16 %v201, %v200
  %v264 = vpack.c.b16 %v203, %v202
  %v265 = vpack.c.b16 %v205, %v204
  %v266 = vpack.c.b16 %v207, %v206
  %v267 = vpack.c.b16 %v209, %v208
  %v268 = vpack.c.b16 %v211, %v210
  %v269 = vpack.c.b16 %v213, %v212
  %v270 = vpack.c.b16 %v215, %v214
  %v271 = vpack.c.b16 %v217, %v216
  %v272 = vpack.c.b16 %v219, %v218
  %v273 = vpack.c.b16 %v221, %v220
  %v274 = vpack.c.b16 %v223, %v222
  %v275 = vpack.c.b16 %v225, %v224
  %v276 = vpack.c.b16 %v227, %v226
  %v277 = vpack.c.b16 %v229, %v228
  %v278 = vpack.c.b16 %v231, %v230
  %v279 = vpack.c.b16 %v233, %v232
  %v280 = vpack.c.b16 %v235, %v234
  %v281 = vpack.c.b16 %v237, %v236
  %v282 = vpack.c.b16 %v239, %v238
  %v283 = vpack.c.b16 %v241, %v240
  %v284 = vpack.c.b16 %v243, %v242
  %v285 = vpack.c.b16 %v245, %v244
  %v286 = vpack.c.b16 %v247, %v246
  %v287 = vpack.c.b16 %v249, %v248
  %v288 = vpack.c.b16 %v251, %v250
  %v289 = vpack.c.b16 %v253, %v252
  %v290 = vpack.c.b16 %v255, %v254
  %v291 = vpack.c.b16 %v257, %v256
  %v292 = vpack.c.b16 %v259, %v258
  %v293 = vpack.c.b16 %v261, %v260
  %326 = vmatprep.subr.bf16.mxu0 0
  %327 = vmatpush1.bf16.msra.mxu0 %v262
  %328 = vmatprep.subr.bf16.mxu0 0
  %329 = vmatpush1.bf16.msra.mxu0 %v263
  %330 = vmatprep.subr.bf16.mxu0 0
  %331 = vmatpush1.bf16.msra.mxu0 %v264
  %332 = vmatprep.subr.bf16.mxu0 0
  %333 = vmatpush1.bf16.msra.mxu0 %v265
  %334 = vmatprep.subr.bf16.mxu0 0
  %335 = vmatpush1.bf16.msra.mxu0 %v266
  %336 = vmatprep.subr.bf16.mxu0 0
  %337 = vmatpush1.bf16.msra.mxu0 %v267
  %338 = vmatprep.subr.bf16.mxu0 0
  %339 = vmatpush1.bf16.msra.mxu0 %v268
  %340 = vmatprep.subr.bf16.mxu0 0
  %341 = vmatpush1.bf16.msra.mxu0 %v269
  %342 = vmatprep.subr.bf16.mxu0 0
  %343 = vmatpush1.bf16.msra.mxu0 %v270
  %344 = vmatprep.subr.bf16.mxu0 0
  %345 = vmatpush1.bf16.msra.mxu0 %v271
  %346 = vmatprep.subr.bf16.mxu0 0
  %347 = vmatpush1.bf16.msra.mxu0 %v272
  %348 = vmatprep.subr.bf16.mxu0 0
  %349 = vmatpush1.bf16.msra.mxu0 %v273
  %350 = vmatprep.subr.bf16.mxu0 0
  %351 = vmatpush1.bf16.msra.mxu0 %v274
  %352 = vmatprep.subr.bf16.mxu0 0
  %353 = vmatpush1.bf16.msra.mxu0 %v275
  %354 = vmatprep.subr.bf16.mxu0 0
  %355 = vmatpush1.bf16.msra.mxu0 %v276
  %356 = vmatprep.subr.bf16.mxu0 0
  %357 = vmatpush1.bf16.msra.mxu0 %v277
  %358 = vmatprep.mubr.bf16.mxu0 %v119
  %359 = vmatmul.mubr.bf16.gmra.mrb[0].mxu0 %v118
  %v360 = vpop.f32.mrb[0].mxu0
  %v361 = vadd.f32 %v92, %v360
  %v362 = vpop.f32.mrb[0].mxu0
  %v363 = vpop.f32.mrb[0].mxu0
  %v364 = vadd.f32 %v92, %v363
  %v365 = vpop.f32.mrb[0].mxu0
  %366 = vmatprep.mubr.bf16.mxu0 %v123
  %367 = vmatmul.mubr.bf16.gmra.mrb[0].mxu0 %v122
  %v368 = vpop.f32.mrb[0].mxu0
  %v369 = vadd.f32 %v92, %v368
  %v370 = vpop.f32.mrb[0].mxu0
  %v371 = vpop.f32.mrb[0].mxu0
  %v372 = vadd.f32 %v92, %v371
  %v373 = vpop.f32.mrb[0].mxu0
  %374 = vdwg.mxu0
  %375 = vmatprep.subr.bf16.mxu0 0
  %376 = vmatpush1.bf16.msra.mxu0 %v278
  %377 = vmatprep.subr.bf16.mxu0 0
  %378 = vmatpush1.bf16.msra.mxu0 %v279
  %379 = vmatprep.subr.bf16.mxu0 0
  %380 = vmatpush1.bf16.msra.mxu0 %v280
  %381 = vmatprep.subr.bf16.mxu0 0
  %382 = vmatpush1.bf16.msra.mxu0 %v281
  %383 = vmatprep.subr.bf16.mxu0 0
  %384 = vmatpush1.bf16.msra.mxu0 %v282
  %385 = vmatprep.subr.bf16.mxu0 0
  %386 = vmatpush1.bf16.msra.mxu0 %v283
  %387 = vmatprep.subr.bf16.mxu0 0
  %388 = vmatpush1.bf16.msra.mxu0 %v284
  %389 = vmatprep.subr.bf16.mxu0 0
  %390 = vmatpush1.bf16.msra.mxu0 %v285
  %391 = vmatprep.subr.bf16.mxu0 0
  %392 = vmatpush1.bf16.msra.mxu0 %v286
  %393 = vmatprep.subr.bf16.mxu0 0
  %394 = vmatpush1.bf16.msra.mxu0 %v287
  %395 = vmatprep.subr.bf16.mxu0 0
  %396 = vmatpush1.bf16.msra.mxu0 %v288
  %397 = vmatprep.subr.bf16.mxu0 0
  %398 = vmatpush1.bf16.msra.mxu0 %v289
  %399 = vmatprep.subr.bf16.mxu0 0
  %400 = vmatpush1.bf16.msra.mxu0 %v290
  %401 = vmatprep.subr.bf16.mxu0 0
  %402 = vmatpush1.bf16.msra.mxu0 %v291
  %403 = vmatprep.subr.bf16.mxu0 0
  %404 = vmatpush1.bf16.msra.mxu0 %v292
  %405 = vmatprep.subr.bf16.mxu0 0
  %406 = vmatpush1.bf16.msra.mxu0 %v293
  %407 = vmatprep.mubr.bf16.mxu0 %v121
  %408 = vmatmul.mubr.bf16.gmra.mrb[0].mxu0 %v120
  %v409 = vpop.f32.mrb[0].mxu0
  %v410 = vadd.f32 %v361, %v409
  %v411 = vpop.f32.mrb[0].mxu0
  %v412 = vpop.f32.mrb[0].mxu0
  %v413 = vadd.f32 %v364, %v412
  %v414 = vpop.f32.mrb[0].mxu0
  %415 = vmatprep.mubr.bf16.mxu0 %v125
  %416 = vmatmul.mubr.bf16.gmra.mrb[0].mxu0 %v124
  %v417 = vpop.f32.mrb[0].mxu0
  %v418 = vadd.f32 %v369, %v417
  %v419 = vpop.f32.mrb[0].mxu0
  %v420 = vpop.f32.mrb[0].mxu0
  %v421 = vadd.f32 %v372, %v420
  %v422 = vpop.f32.mrb[0].mxu0
  %423 = vdwg.mxu0
  %v424 = vmax.f32 %v410, 0.0
  %v425 = vmax.f32 %v413, 0.0
  %v426 = vmax.f32 %v418, 0.0
  %v427 = vmax.f32 %v421, 0.0
  %v428 = vpack.c.bf16 %v425, %v424
  %v429 = vpack.c.bf16 %v427, %v426
  %v432 = vunpack.c.l.b16 %v428
  %v433 = vunpack.c.h.b16 %v428
  %v434 = vunpack.c.l.b16 %v429
  %v435 = vunpack.c.h.b16 %v429
  %v436 = vpack.c.b16 %v432, %v432
  %v437 = vpack.c.b16 %v433, %v433
  %v438 = vpack.c.b16 %v434, %v434
  %v439 = vpack.c.b16 %v435, %v435
  %444 = vst [vmem:[%s3] sm:$0xf] %v436
  %445 = vst [vmem:[%s3 + $0x4] sm:$0xf] %v437
  %446 = vst [vmem:[%s3 + $0x8] sm:$0xf] %v438
  %447 = vst [vmem:[%s3 + $0xc] sm:$0xf] %v439
  // Predicated region
  $region14: #{drdnet_forward.27} parent=0 // pred_check
    _
  $region15: #{drdnet_forward.27} parent=0 // pred_check_branch
    %449 = sbr.rel (0) target = $region17
  $region16: #{drdnet_forward.27} parent=0 // pred_region
    _
  $region17: #{drdnet_forward.27} parent=0 // pred_fallthru
    _
  // Predicated region
  $region18: #{drdnet_forward.27} parent=0 // pred_check
    _
  $region19: #{drdnet_forward.27} parent=0 // pred_check_branch
    %451 = sbr.rel (0) target = $region21
  $region20: #{drdnet_forward.27} parent=0 // pred_region
    _
  $region21: #{drdnet_forward.27} parent=0 // pred_fallthru
    _

// kernel: drdnet_forward.29
$region0: #{drdnet_forward.29}
  #allocation0 [shape = 'u32[]', space=smem, size = 0x4, offset = 0x4, fixed_abs, tag = 'smem constant byte address 0x4 - core index']
  #allocation1 [shape = 'u32[144,128]{1,0:T(1,128)}', space=vmem, size = 0x12000, scoped, tag = 'internal scratch']
  %s0 = inlined_call_operand.vmem [shape: bf16[16,128], index: 0, kind: input, shape index: {}]
  %s1 = inlined_call_operand.vmem [shape: f32[1,128], index: 1, kind: input, shape index: {}]
  %s2 = inlined_call_operand.vmem [shape: f32[1,128], index: 2, kind: input, shape index: {}]
  %s3 = inlined_call_operand.vmem [shape: bf16[16,128], index: 3, kind: output, shape index: {}]
  %s4 = sld [smem:[#allocation0]]
  $region22: #{drdnet_forward.29} parent=0
    _
  %s6 = ssub.s32 1, %s4
  %s7 = scalar_select 0, %s6, %s4
  // Predicated region
  $region2: #{drdnet_forward.29} parent=0 // pred_check
    _
  $region3: #{drdnet_forward.29} parent=0 // pred_check_branch
    %9 = sbr.rel (0) target = $region5
  $region4: #{drdnet_forward.29} parent=0 // pred_region
    _
  $region5: #{drdnet_forward.29} parent=0 // pred_fallthru
    _
  // Predicated region
  $region6: #{drdnet_forward.29} parent=0 // pred_check
    _
  $region7: #{drdnet_forward.29} parent=0 // pred_check_branch
    %11 = sbr.rel (0) target = $region9
  $region8: #{drdnet_forward.29} parent=0 // pred_region
    _
  $region9: #{drdnet_forward.29} parent=0 // pred_fallthru
    _
  // Predicated region
  $region10: #{drdnet_forward.29} parent=0 // pred_check
    _
  $region11: #{drdnet_forward.29} parent=0 // pred_check_branch
    %13 = sbr.rel (0) target = $region13
  $region12: #{drdnet_forward.29} parent=0 // pred_region
    _
  $region13: #{drdnet_forward.29} parent=0 // pred_fallthru
    _
  %v14 = vld [vmem:[%s0] sm:$0xf]
  %v15 = vld [vmem:[%s0 + $0x4] sm:$0xf]
  %v16 = vunpack.c.l.bf16 %v14
  %v17 = vunpack.c.l.bf16 %v15
  %v18 = vlaneseq
  %v19 = vshrl.u32 %v18, 7
  %v20 = vadd.s32 %v19, 8
  %vm21 = vcmp.lt.s32.totalorder %v19, 8
  %vm22 = vcmp.lt.s32.totalorder %v20, 8
  %v23 = vsel %vm21, 1, 0
  %v24 = vsel %vm22, 1, 0
  %v25 = vcvt.s32.f32 %v23
  %v26 = vcvt.s32.f32 %v24
  %v27 = vadd.f32 %v16, %v17
  %v28 = vrot.slane %v27, 4
  %v29 = vadd.f32 %v27, %v28
  %v30 = vrot.slane %v29, 2
  %v31 = vadd.f32 %v29, %v30
  %v32 = vrot.slane %v31, 1
  %v33 = vadd.f32 %v31, %v32
  %v34 = vmul.f32 %v33, 0.125
  %v35 = vsub.f32 %v16, %v34
  %v36 = vsub.f32 %v17, %v34
  %v37 = vmul.f32 %v35, %v25
  %v38 = vmul.f32 %v36, %v26
  %v39 = vmul.f32 %v37, %v37
  %v40 = vmul.f32 %v38, %v38
  %v41 = vadd.f32 %v39, %v40
  %v42 = vrot.slane %v41, 4
  %v43 = vadd.f32 %v41, %v42
  %v44 = vrot.slane %v43, 2
  %v45 = vadd.f32 %v43, %v44
  %v46 = vrot.slane %v45, 1
  %v47 = vadd.f32 %v45, %v46
  %v48 = vmul.f32 %v47, 0.125
  %v49 = vld [vmem:[%s1] sm:$0x1]
  %v50 = vadd.f32 %v48, 1e-05
  %v51 = vrsqrt.pop %v50
  %v52 = vmul.f32 %v49, %v51
  %v53 = vld [vmem:[%s2] sm:$0x1]
  %v54 = vmul.f32 %v34, %v52
  %v55 = vsub.f32 %v53, %v54
  %v57 = vlaneseq
  %v58 = vshrl.u32 %v57, 7
  %v59 = vsub.s32 0, %v58
  %v60 = vrot.slane %v52, %v59
  %v62 = vmul.f32 %v16, %v60
  %v63 = vmul.f32 %v17, %v60
  %v65 = vlaneseq
  %v66 = vshrl.u32 %v65, 7
  %v67 = vsub.s32 0, %v66
  %v68 = vrot.slane %v55, %v67
  %v70 = vadd.f32 %v62, %v68
  %v71 = vadd.f32 %v63, %v68
  %v72 = vpack.c.bf16 %v71, %v70
  %v74 = vunpack.c.l.b16 %v72
  %v75 = vunpack.c.h.b16 %v72
  %v76 = vpack.c.b16 %v74, %v74
  %v77 = vpack.c.b16 %v75, %v75
  %80 = vst [vmem:[%s3] sm:$0xf] %v76
  %81 = vst [vmem:[%s3 + $0x4] sm:$0xf] %v77
  // Predicated region
  $region14: #{drdnet_forward.29} parent=0 // pred_check
    _
  $region15: #{drdnet_forward.29} parent=0 // pred_check_branch
    %83 = sbr.rel (0) target = $region17
  $region16: #{drdnet_forward.29} parent=0 // pred_region
    _
  $region17: #{drdnet_forward.29} parent=0 // pred_fallthru
    _
  // Predicated region
  $region18: #{drdnet_forward.29} parent=0 // pred_check
    _
  $region19: #{drdnet_forward.29} parent=0 // pred_check_branch
    %85 = sbr.rel (0) target = $region21
  $region20: #{drdnet_forward.29} parent=0 // pred_region
    _
  $region21: #{drdnet_forward.29} parent=0 // pred_fallthru
    _

// kernel: drdnet_forward.28
$region0: #{drdnet_forward.28}
  #allocation0 [shape = 'u32[]', space=smem, size = 0x4, offset = 0x4, fixed_abs, tag = 'smem constant byte address 0x4 - core index']
  #allocation1 [shape = 'u32[144,128]{1,0:T(1,128)}', space=vmem, size = 0x12000, scoped, tag = 'internal scratch']
  %s0 = inlined_call_operand.vmem [shape: bf16[16,512], index: 0, kind: input, shape index: {}]
  %s1 = inlined_call_operand.vmem [shape: bf16[512,128], index: 1, kind: input, shape index: {}]
  %s2 = inlined_call_operand.vmem [shape: f32[1,128], index: 2, kind: input, shape index: {}]
  %s3 = inlined_call_operand.vmem [shape: bf16[16,128], index: 3, kind: output, shape index: {}]
  %s4 = sld [smem:[#allocation0]]
  $region22: #{drdnet_forward.28} parent=0
    _
  %s6 = ssub.s32 1, %s4
  %s7 = scalar_select 0, %s6, %s4
  // Predicated region
  $region2: #{drdnet_forward.28} parent=0 // pred_check
    _
  $region3: #{drdnet_forward.28} parent=0 // pred_check_branch
    %9 = sbr.rel (0) target = $region5
  $region4: #{drdnet_forward.28} parent=0 // pred_region
    _
  $region5: #{drdnet_forward.28} parent=0 // pred_fallthru
    _
  // Predicated region
  $region6: #{drdnet_forward.28} parent=0 // pred_check
    _
  $region7: #{drdnet_forward.28} parent=0 // pred_check_branch
    %11 = sbr.rel (0) target = $region9
  $region8: #{drdnet_forward.28} parent=0 // pred_region
    _
  $region9: #{drdnet_forward.28} parent=0 // pred_fallthru
    _
  // Predicated region
  $region10: #{drdnet_forward.28} parent=0 // pred_check
    _
  $region11: #{drdnet_forward.28} parent=0 // pred_check_branch
    %13 = sbr.rel (0) target = $region13
  $region12: #{drdnet_forward.28} parent=0 // pred_region
    _
  $region13: #{drdnet_forward.28} parent=0 // pred_fallthru
    _
  %v15 = vld [vmem:[%s0] sm:$0xff]
  %v16 = vld [vmem:[%s0 + $0x8] sm:$0xff]
  %v17 = vld [vmem:[%s0 + $0x10] sm:$0xff]
  %v18 = vld [vmem:[%s0 + $0x18] sm:$0xff]
  %v19 = vld [vmem:[%s1] sm:$0xf]
  %v20 = vld [vmem:[%s1 + $0x4] sm:$0xf]
  %v21 = vld [vmem:[%s1 + $0x8] sm:$0xf]
  %v22 = vld [vmem:[%s1 + $0xc] sm:$0xf]
  %v23 = vld [vmem:[%s1 + $0x10] sm:$0xf]
  %v24 = vld [vmem:[%s1 + $0x14] sm:$0xf]
  %v25 = vld [vmem:[%s1 + $0x18] sm:$0xf]
  %v26 = vld [vmem:[%s1 + $0x1c] sm:$0xf]
  %v27 = vld [vmem:[%s1 + $0x20] sm:$0xf]
  %v28 = vld [vmem:[%s1 + $0x24] sm:$0xf]
  %v29 = vld [vmem:[%s1 + $0x28] sm:$0xf]
  %v30 = vld [vmem:[%s1 + $0x2c] sm:$0xf]
  %v31 = vld [vmem:[%s1 + $0x30] sm:$0xf]
  %v32 = vld [vmem:[%s1 + $0x34] sm:$0xf]
  %v33 = vld [vmem:[%s1 + $0x38] sm:$0xf]
  %v34 = vld [vmem:[%s1 + $0x3c] sm:$0xf]
  %v35 = vld [vmem:[%s1 + $0x40] sm:$0xf]
  %v36 = vld [vmem:[%s1 + $0x44] sm:$0xf]
  %v37 = vld [vmem:[%s1 + $0x48] sm:$0xf]
  %v38 = vld [vmem:[%s1 + $0x4c] sm:$0xf]
  %v39 = vld [vmem:[%s1 + $0x50] sm:$0xf]
  %v40 = vld [vmem:[%s1 + $0x54] sm:$0xf]
  %v41 = vld [vmem:[%s1 + $0x58] sm:$0xf]
  %v42 = vld [vmem:[%s1 + $0x5c] sm:$0xf]
  %v43 = vld [vmem:[%s1 + $0x60] sm:$0xf]
  %v44 = vld [vmem:[%s1 + $0x64] sm:$0xf]
  %v45 = vld [vmem:[%s1 + $0x68] sm:$0xf]
  %v46 = vld [vmem:[%s1 + $0x6c] sm:$0xf]
  %v47 = vld [vmem:[%s1 + $0x70] sm:$0xf]
  %v48 = vld [vmem:[%s1 + $0x74] sm:$0xf]
  %v49 = vld [vmem:[%s1 + $0x78] sm:$0xf]
  %v50 = vld [vmem:[%s1 + $0x7c] sm:$0xf]
  %v51 = vld [vmem:[%s1 + $0x80] sm:$0xf]
  %v52 = vld [vmem:[%s1 + $0x84] sm:$0xf]
  %v53 = vld [vmem:[%s1 + $0x88] sm:$0xf]
  %v54 = vld [vmem:[%s1 + $0x8c] sm:$0xf]
  %v55 = vld [vmem:[%s1 + $0x90] sm:$0xf]
  %v56 = vld [vmem:[%s1 + $0x94] sm:$0xf]
  %v57 = vld [vmem:[%s1 + $0x98] sm:$0xf]
  %v58 = vld [vmem:[%s1 + $0x9c] sm:$0xf]
  %v59 = vld [vmem:[%s1 + $0xa0] sm:$0xf]
  %v60 = vld [vmem:[%s1 + $0xa4] sm:$0xf]
  %v61 = vld [vmem:[%s1 + $0xa8] sm:$0xf]
  %v62 = vld [vmem:[%s1 + $0xac] sm:$0xf]
  %v63 = vld [vmem:[%s1 + $0xb0] sm:$0xf]
  %v64 = vld [vmem:[%s1 + $0xb4] sm:$0xf]
  %v65 = vld [vmem:[%s1 + $0xb8] sm:$0xf]
  %v66 = vld [vmem:[%s1 + $0xbc] sm:$0xf]
  %v67 = vld [vmem:[%s1 + $0xc0] sm:$0xf]
  %v68 = vld [vmem:[%s1 + $0xc4] sm:$0xf]
  %v69 = vld [vmem:[%s1 + $0xc8] sm:$0xf]
  %v70 = vld [vmem:[%s1 + $0xcc] sm:$0xf]
  %v71 = vld [vmem:[%s1 + $0xd0] sm:$0xf]
  %v72 = vld [vmem:[%s1 + $0xd4] sm:$0xf]
  %v73 = vld [vmem:[%s1 + $0xd8] sm:$0xf]
  %v74 = vld [vmem:[%s1 + $0xdc] sm:$0xf]
  %v75 = vld [vmem:[%s1 + $0xe0] sm:$0xf]
  %v76 = vld [vmem:[%s1 + $0xe4] sm:$0xf]
  %v77 = vld [vmem:[%s1 + $0xe8] sm:$0xf]
  %v78 = vld [vmem:[%s1 + $0xec] sm:$0xf]
  %v79 = vld [vmem:[%s1 + $0xf0] sm:$0xf]
  %v80 = vld [vmem:[%s1 + $0xf4] sm:$0xf]
  %v81 = vld [vmem:[%s1 + $0xf8] sm:$0xf]
  %v82 = vld [vmem:[%s1 + $0xfc] sm:$0xf]
  %v83 = vld [vmem:[%s2] sm:$0x1]
  %v85 = vlaneseq
  %v86 = vshrl.u32 %v85, 7
  %v87 = vsub.s32 0, %v86
  %v88 = vrot.slane %v83, %v87
  %v94 = vunpack.c.l.b16 %v15
  %v95 = vunpack.c.h.b16 %v15
  %v96 = vunpack.c.l.b16 %v16
  %v97 = vunpack.c.h.b16 %v16
  %v98 = vunpack.c.l.b16 %v17
  %v99 = vunpack.c.h.b16 %v17
  %v100 = vunpack.c.l.b16 %v18
  %v101 = vunpack.c.h.b16 %v18
  %v102 = vpack.c.b16 %v98, %v94
  %v103 = vpack.c.b16 %v99, %v95
  %v104 = vpack.c.b16 %v100, %v96
  %v105 = vpack.c.b16 %v101, %v97
  %v174 = vunpack.c.l.b16 %v19
  %v175 = vunpack.c.l.b16 %v20
  %v176 = vunpack.c.l.b16 %v21
  %v177 = vunpack.c.l.b16 %v22
  %v178 = vunpack.c.l.b16 %v23
  %v179 = vunpack.c.l.b16 %v24
  %v180 = vunpack.c.l.b16 %v25
  %v181 = vunpack.c.l.b16 %v26
  %v182 = vunpack.c.l.b16 %v27
  %v183 = vunpack.c.l.b16 %v28
  %v184 = vunpack.c.l.b16 %v29
  %v185 = vunpack.c.l.b16 %v30
  %v186 = vunpack.c.l.b16 %v31
  %v187 = vunpack.c.l.b16 %v32
  %v188 = vunpack.c.l.b16 %v33
  %v189 = vunpack.c.l.b16 %v34
  %v190 = vunpack.c.l.b16 %v35
  %v191 = vunpack.c.l.b16 %v36
  %v192 = vunpack.c.l.b16 %v37
  %v193 = vunpack.c.l.b16 %v38
  %v194 = vunpack.c.l.b16 %v39
  %v195 = vunpack.c.l.b16 %v40
  %v196 = vunpack.c.l.b16 %v41
  %v197 = vunpack.c.l.b16 %v42
  %v198 = vunpack.c.l.b16 %v43
  %v199 = vunpack.c.l.b16 %v44
  %v200 = vunpack.c.l.b16 %v45
  %v201 = vunpack.c.l.b16 %v46
  %v202 = vunpack.c.l.b16 %v47
  %v203 = vunpack.c.l.b16 %v48
  %v204 = vunpack.c.l.b16 %v49
  %v205 = vunpack.c.l.b16 %v50
  %v206 = vunpack.c.l.b16 %v51
  %v207 = vunpack.c.l.b16 %v52
  %v208 = vunpack.c.l.b16 %v53
  %v209 = vunpack.c.l.b16 %v54
  %v210 = vunpack.c.l.b16 %v55
  %v211 = vunpack.c.l.b16 %v56
  %v212 = vunpack.c.l.b16 %v57
  %v213 = vunpack.c.l.b16 %v58
  %v214 = vunpack.c.l.b16 %v59
  %v215 = vunpack.c.l.b16 %v60
  %v216 = vunpack.c.l.b16 %v61
  %v217 = vunpack.c.l.b16 %v62
  %v218 = vunpack.c.l.b16 %v63
  %v219 = vunpack.c.l.b16 %v64
  %v220 = vunpack.c.l.b16 %v65
  %v221 = vunpack.c.l.b16 %v66
  %v222 = vunpack.c.l.b16 %v67
  %v223 = vunpack.c.l.b16 %v68
  %v224 = vunpack.c.l.b16 %v69
  %v225 = vunpack.c.l.b16 %v70
  %v226 = vunpack.c.l.b16 %v71
  %v227 = vunpack.c.l.b16 %v72
  %v228 = vunpack.c.l.b16 %v73
  %v229 = vunpack.c.l.b16 %v74
  %v230 = vunpack.c.l.b16 %v75
  %v231 = vunpack.c.l.b16 %v76
  %v232 = vunpack.c.l.b16 %v77
  %v233 = vunpack.c.l.b16 %v78
  %v234 = vunpack.c.l.b16 %v79
  %v235 = vunpack.c.l.b16 %v80
  %v236 = vunpack.c.l.b16 %v81
  %v237 = vunpack.c.l.b16 %v82
  %v238 = vpack.c.b16 %v175, %v174
  %v239 = vpack.c.b16 %v177, %v176
  %v240 = vpack.c.b16 %v179, %v178
  %v241 = vpack.c.b16 %v181, %v180
  %v242 = vpack.c.b16 %v183, %v182
  %v243 = vpack.c.b16 %v185, %v184
  %v244 = vpack.c.b16 %v187, %v186
  %v245 = vpack.c.b16 %v189, %v188
  %v246 = vpack.c.b16 %v191, %v190
  %v247 = vpack.c.b16 %v193, %v192
  %v248 = vpack.c.b16 %v195, %v194
  %v249 = vpack.c.b16 %v197, %v196
  %v250 = vpack.c.b16 %v199, %v198
  %v251 = vpack.c.b16 %v201, %v200
  %v252 = vpack.c.b16 %v203, %v202
  %v253 = vpack.c.b16 %v205, %v204
  %v254 = vpack.c.b16 %v207, %v206
  %v255 = vpack.c.b16 %v209, %v208
  %v256 = vpack.c.b16 %v211, %v210
  %v257 = vpack.c.b16 %v213, %v212
  %v258 = vpack.c.b16 %v215, %v214
  %v259 = vpack.c.b16 %v217, %v216
  %v260 = vpack.c.b16 %v219, %v218
  %v261 = vpack.c.b16 %v221, %v220
  %v262 = vpack.c.b16 %v223, %v222
  %v263 = vpack.c.b16 %v225, %v224
  %v264 = vpack.c.b16 %v227, %v226
  %v265 = vpack.c.b16 %v229, %v228
  %v266 = vpack.c.b16 %v231, %v230
  %v267 = vpack.c.b16 %v233, %v232
  %v268 = vpack.c.b16 %v235, %v234
  %v269 = vpack.c.b16 %v237, %v236
  %302 = vmatprep.subr.bf16.mxu0 0
  %303 = vmatpush1.bf16.msra.mxu0 %v238
  %304 = vmatprep.subr.bf16.mxu0 0
  %305 = vmatpush1.bf16.msra.mxu0 %v239
  %306 = vmatprep.subr.bf16.mxu0 0
  %307 = vmatpush1.bf16.msra.mxu0 %v240
  %308 = vmatprep.subr.bf16.mxu0 0
  %309 = vmatpush1.bf16.msra.mxu0 %v241
  %310 = vmatprep.subr.bf16.mxu0 0
  %311 = vmatpush1.bf16.msra.mxu0 %v242
  %312 = vmatprep.subr.bf16.mxu0 0
  %313 = vmatpush1.bf16.msra.mxu0 %v243
  %314 = vmatprep.subr.bf16.mxu0 0
  %315 = vmatpush1.bf16.msra.mxu0 %v244
  %316 = vmatprep.subr.bf16.mxu0 0
  %317 = vmatpush1.bf16.msra.mxu0 %v245
  %318 = vmatprep.subr.bf16.mxu0 0
  %319 = vmatpush1.bf16.msra.mxu0 %v246
  %320 = vmatprep.subr.bf16.mxu0 0
  %321 = vmatpush1.bf16.msra.mxu0 %v247
  %322 = vmatprep.subr.bf16.mxu0 0
  %323 = vmatpush1.bf16.msra.mxu0 %v248
  %324 = vmatprep.subr.bf16.mxu0 0
  %325 = vmatpush1.bf16.msra.mxu0 %v249
  %326 = vmatprep.subr.bf16.mxu0 0
  %327 = vmatpush1.bf16.msra.mxu0 %v250
  %328 = vmatprep.subr.bf16.mxu0 0
  %329 = vmatpush1.bf16.msra.mxu0 %v251
  %330 = vmatprep.subr.bf16.mxu0 0
  %331 = vmatpush1.bf16.msra.mxu0 %v252
  %332 = vmatprep.subr.bf16.mxu0 0
  %333 = vmatpush1.bf16.msra.mxu0 %v253
  %334 = vmatprep.mubr.bf16.mxu0 %v103
  %335 = vmatmul.mubr.bf16.gmra.mrb[0].mxu0 %v102
  %v336 = vpop.f32.mrb[0].mxu0
  %v337 = vadd.f32 %v88, %v336
  %v338 = vpop.f32.mrb[0].mxu0
  %v339 = vpop.f32.mrb[0].mxu0
  %v340 = vadd.f32 %v88, %v339
  %v341 = vpop.f32.mrb[0].mxu0
  %342 = vdwg.mxu0
  %343 = vmatprep.subr.bf16.mxu0 0
  %344 = vmatpush1.bf16.msra.mxu0 %v254
  %345 = vmatprep.subr.bf16.mxu0 0
  %346 = vmatpush1.bf16.msra.mxu0 %v255
  %347 = vmatprep.subr.bf16.mxu0 0
  %348 = vmatpush1.bf16.msra.mxu0 %v256
  %349 = vmatprep.subr.bf16.mxu0 0
  %350 = vmatpush1.bf16.msra.mxu0 %v257
  %351 = vmatprep.subr.bf16.mxu0 0
  %352 = vmatpush1.bf16.msra.mxu0 %v258
  %353 = vmatprep.subr.bf16.mxu0 0
  %354 = vmatpush1.bf16.msra.mxu0 %v259
  %355 = vmatprep.subr.bf16.mxu0 0
  %356 = vmatpush1.bf16.msra.mxu0 %v260
  %357 = vmatprep.subr.bf16.mxu0 0
  %358 = vmatpush1.bf16.msra.mxu0 %v261
  %359 = vmatprep.subr.bf16.mxu0 0
  %360 = vmatpush1.bf16.msra.mxu0 %v262
  %361 = vmatprep.subr.bf16.mxu0 0
  %362 = vmatpush1.bf16.msra.mxu0 %v263
  %363 = vmatprep.subr.bf16.mxu0 0
  %364 = vmatpush1.bf16.msra.mxu0 %v264
  %365 = vmatprep.subr.bf16.mxu0 0
  %366 = vmatpush1.bf16.msra.mxu0 %v265
  %367 = vmatprep.subr.bf16.mxu0 0
  %368 = vmatpush1.bf16.msra.mxu0 %v266
  %369 = vmatprep.subr.bf16.mxu0 0
  %370 = vmatpush1.bf16.msra.mxu0 %v267
  %371 = vmatprep.subr.bf16.mxu0 0
  %372 = vmatpush1.bf16.msra.mxu0 %v268
  %373 = vmatprep.subr.bf16.mxu0 0
  %374 = vmatpush1.bf16.msra.mxu0 %v269
  %375 = vmatprep.mubr.bf16.mxu0 %v105
  %376 = vmatmul.mubr.bf16.gmra.mrb[0].mxu0 %v104
  %v377 = vpop.f32.mrb[0].mxu0
  %v378 = vadd.f32 %v337, %v377
  %v379 = vpop.f32.mrb[0].mxu0
  %v380 = vpop.f32.mrb[0].mxu0
  %v381 = vadd.f32 %v340, %v380
  %v382 = vpop.f32.mrb[0].mxu0
  %383 = vdwg.mxu0
  %v384 = vmax.f32 %v378, 0.0
  %v385 = vmax.f32 %v381, 0.0
  %v386 = vpack.c.bf16 %v385, %v384
  %v388 = vunpack.c.l.b16 %v386
  %v389 = vunpack.c.h.b16 %v386
  %v390 = vpack.c.b16 %v388, %v388
  %v391 = vpack.c.b16 %v389, %v389
  %394 = vst [vmem:[%s3] sm:$0xf] %v390
  %395 = vst [vmem:[%s3 + $0x4] sm:$0xf] %v391
  // Predicated region
  $region14: #{drdnet_forward.28} parent=0 // pred_check
    _
  $region15: #{drdnet_forward.28} parent=0 // pred_check_branch
    %397 = sbr.rel (0) target = $region17
  $region16: #{drdnet_forward.28} parent=0 // pred_region
    _
  $region17: #{drdnet_forward.28} parent=0 // pred_fallthru
    _
  // Predicated region
  $region18: #{drdnet_forward.28} parent=0 // pred_check
    _
  $region19: #{drdnet_forward.28} parent=0 // pred_check_branch
    %399 = sbr.rel (0) target = $region21
  $region20: #{drdnet_forward.28} parent=0 // pred_region
    _
  $region21: #{drdnet_forward.28} parent=0 // pred_fallthru
    _

// kernel: drdnet_forward.30
$region0: #{drdnet_forward.30}
  #allocation0 [shape = 'u32[]', space=smem, size = 0x4, offset = 0x4, fixed_abs, tag = 'smem constant byte address 0x4 - core index']
  #allocation1 [shape = 'u32[144,128]{1,0:T(1,128)}', space=vmem, size = 0x12000, scoped, tag = 'internal scratch']
  %s0 = inlined_call_operand.vmem [shape: bf16[16,256], index: 0, kind: input, shape index: {}]
  %s1 = inlined_call_operand.vmem [shape: bf16[256,128], index: 1, kind: input, shape index: {}]
  %s2 = inlined_call_operand.vmem [shape: f32[1,128], index: 2, kind: input, shape index: {}]
  %s3 = inlined_call_operand.vmem [shape: bf16[16,128], index: 3, kind: output, shape index: {}]
  %s4 = sld [smem:[#allocation0]]
  $region22: #{drdnet_forward.30} parent=0
    _
  %s6 = ssub.s32 1, %s4
  %s7 = scalar_select 0, %s6, %s4
  // Predicated region
  $region2: #{drdnet_forward.30} parent=0 // pred_check
    _
  $region3: #{drdnet_forward.30} parent=0 // pred_check_branch
    %9 = sbr.rel (0) target = $region5
  $region4: #{drdnet_forward.30} parent=0 // pred_region
    _
  $region5: #{drdnet_forward.30} parent=0 // pred_fallthru
    _
  // Predicated region
  $region6: #{drdnet_forward.30} parent=0 // pred_check
    _
  $region7: #{drdnet_forward.30} parent=0 // pred_check_branch
    %11 = sbr.rel (0) target = $region9
  $region8: #{drdnet_forward.30} parent=0 // pred_region
    _
  $region9: #{drdnet_forward.30} parent=0 // pred_fallthru
    _
  // Predicated region
  $region10: #{drdnet_forward.30} parent=0 // pred_check
    _
  $region11: #{drdnet_forward.30} parent=0 // pred_check_branch
    %13 = sbr.rel (0) target = $region13
  $region12: #{drdnet_forward.30} parent=0 // pred_region
    _
  $region13: #{drdnet_forward.30} parent=0 // pred_fallthru
    _
  %v15 = vld [vmem:[%s0] sm:$0xff]
  %v16 = vld [vmem:[%s0 + $0x8] sm:$0xff]
  %v17 = vld [vmem:[%s1] sm:$0xf]
  %v18 = vld [vmem:[%s1 + $0x4] sm:$0xf]
  %v19 = vld [vmem:[%s1 + $0x8] sm:$0xf]
  %v20 = vld [vmem:[%s1 + $0xc] sm:$0xf]
  %v21 = vld [vmem:[%s1 + $0x10] sm:$0xf]
  %v22 = vld [vmem:[%s1 + $0x14] sm:$0xf]
  %v23 = vld [vmem:[%s1 + $0x18] sm:$0xf]
  %v24 = vld [vmem:[%s1 + $0x1c] sm:$0xf]
  %v25 = vld [vmem:[%s1 + $0x20] sm:$0xf]
  %v26 = vld [vmem:[%s1 + $0x24] sm:$0xf]
  %v27 = vld [vmem:[%s1 + $0x28] sm:$0xf]
  %v28 = vld [vmem:[%s1 + $0x2c] sm:$0xf]
  %v29 = vld [vmem:[%s1 + $0x30] sm:$0xf]
  %v30 = vld [vmem:[%s1 + $0x34] sm:$0xf]
  %v31 = vld [vmem:[%s1 + $0x38] sm:$0xf]
  %v32 = vld [vmem:[%s1 + $0x3c] sm:$0xf]
  %v33 = vld [vmem:[%s1 + $0x40] sm:$0xf]
  %v34 = vld [vmem:[%s1 + $0x44] sm:$0xf]
  %v35 = vld [vmem:[%s1 + $0x48] sm:$0xf]
  %v36 = vld [vmem:[%s1 + $0x4c] sm:$0xf]
  %v37 = vld [vmem:[%s1 + $0x50] sm:$0xf]
  %v38 = vld [vmem:[%s1 + $0x54] sm:$0xf]
  %v39 = vld [vmem:[%s1 + $0x58] sm:$0xf]
  %v40 = vld [vmem:[%s1 + $0x5c] sm:$0xf]
  %v41 = vld [vmem:[%s1 + $0x60] sm:$0xf]
  %v42 = vld [vmem:[%s1 + $0x64] sm:$0xf]
  %v43 = vld [vmem:[%s1 + $0x68] sm:$0xf]
  %v44 = vld [vmem:[%s1 + $0x6c] sm:$0xf]
  %v45 = vld [vmem:[%s1 + $0x70] sm:$0xf]
  %v46 = vld [vmem:[%s1 + $0x74] sm:$0xf]
  %v47 = vld [vmem:[%s1 + $0x78] sm:$0xf]
  %v48 = vld [vmem:[%s1 + $0x7c] sm:$0xf]
  %v49 = vld [vmem:[%s2] sm:$0x1]
  %v51 = vlaneseq
  %v52 = vshrl.u32 %v51, 7
  %v53 = vsub.s32 0, %v52
  %v54 = vrot.slane %v49, %v53
  %v58 = vunpack.c.l.b16 %v15
  %v59 = vunpack.c.h.b16 %v15
  %v60 = vunpack.c.l.b16 %v16
  %v61 = vunpack.c.h.b16 %v16
  %v62 = vpack.c.b16 %v60, %v58
  %v63 = vpack.c.b16 %v61, %v59
  %v98 = vunpack.c.l.b16 %v17
  %v99 = vunpack.c.l.b16 %v18
  %v100 = vunpack.c.l.b16 %v19
  %v101 = vunpack.c.l.b16 %v20
  %v102 = vunpack.c.l.b16 %v21
  %v103 = vunpack.c.l.b16 %v22
  %v104 = vunpack.c.l.b16 %v23
  %v105 = vunpack.c.l.b16 %v24
  %v106 = vunpack.c.l.b16 %v25
  %v107 = vunpack.c.l.b16 %v26
  %v108 = vunpack.c.l.b16 %v27
  %v109 = vunpack.c.l.b16 %v28
  %v110 = vunpack.c.l.b16 %v29
  %v111 = vunpack.c.l.b16 %v30
  %v112 = vunpack.c.l.b16 %v31
  %v113 = vunpack.c.l.b16 %v32
  %v114 = vunpack.c.l.b16 %v33
  %v115 = vunpack.c.l.b16 %v34
  %v116 = vunpack.c.l.b16 %v35
  %v117 = vunpack.c.l.b16 %v36
  %v118 = vunpack.c.l.b16 %v37
  %v119 = vunpack.c.l.b16 %v38
  %v120 = vunpack.c.l.b16 %v39
  %v121 = vunpack.c.l.b16 %v40
  %v122 = vunpack.c.l.b16 %v41
  %v123 = vunpack.c.l.b16 %v42
  %v124 = vunpack.c.l.b16 %v43
  %v125 = vunpack.c.l.b16 %v44
  %v126 = vunpack.c.l.b16 %v45
  %v127 = vunpack.c.l.b16 %v46
  %v128 = vunpack.c.l.b16 %v47
  %v129 = vunpack.c.l.b16 %v48
  %v130 = vpack.c.b16 %v99, %v98
  %v131 = vpack.c.b16 %v101, %v100
  %v132 = vpack.c.b16 %v103, %v102
  %v133 = vpack.c.b16 %v105, %v104
  %v134 = vpack.c.b16 %v107, %v106
  %v135 = vpack.c.b16 %v109, %v108
  %v136 = vpack.c.b16 %v111, %v110
  %v137 = vpack.c.b16 %v113, %v112
  %v138 = vpack.c.b16 %v115, %v114
  %v139 = vpack.c.b16 %v117, %v116
  %v140 = vpack.c.b16 %v119, %v118
  %v141 = vpack.c.b16 %v121, %v120
  %v142 = vpack.c.b16 %v123, %v122
  %v143 = vpack.c.b16 %v125, %v124
  %v144 = vpack.c.b16 %v127, %v126
  %v145 = vpack.c.b16 %v129, %v128
  %162 = vmatprep.subr.bf16.mxu0 0
  %163 = vmatpush1.bf16.msra.mxu0 %v130
  %164 = vmatprep.subr.bf16.mxu0 0
  %165 = vmatpush1.bf16.msra.mxu0 %v131
  %166 = vmatprep.subr.bf16.mxu0 0
  %167 = vmatpush1.bf16.msra.mxu0 %v132
  %168 = vmatprep.subr.bf16.mxu0 0
  %169 = vmatpush1.bf16.msra.mxu0 %v133
  %170 = vmatprep.subr.bf16.mxu0 0
  %171 = vmatpush1.bf16.msra.mxu0 %v134
  %172 = vmatprep.subr.bf16.mxu0 0
  %173 = vmatpush1.bf16.msra.mxu0 %v135
  %174 = vmatprep.subr.bf16.mxu0 0
  %175 = vmatpush1.bf16.msra.mxu0 %v136
  %176 = vmatprep.subr.bf16.mxu0 0
  %177 = vmatpush1.bf16.msra.mxu0 %v137
  %178 = vmatprep.subr.bf16.mxu0 0
  %179 = vmatpush1.bf16.msra.mxu0 %v138
  %180 = vmatprep.subr.bf16.mxu0 0
  %181 = vmatpush1.bf16.msra.mxu0 %v139
  %182 = vmatprep.subr.bf16.mxu0 0
  %183 = vmatpush1.bf16.msra.mxu0 %v140
  %184 = vmatprep.subr.bf16.mxu0 0
  %185 = vmatpush1.bf16.msra.mxu0 %v141
  %186 = vmatprep.subr.bf16.mxu0 0
  %187 = vmatpush1.bf16.msra.mxu0 %v142
  %188 = vmatprep.subr.bf16.mxu0 0
  %189 = vmatpush1.bf16.msra.mxu0 %v143
  %190 = vmatprep.subr.bf16.mxu0 0
  %191 = vmatpush1.bf16.msra.mxu0 %v144
  %192 = vmatprep.subr.bf16.mxu0 0
  %193 = vmatpush1.bf16.msra.mxu0 %v145
  %194 = vmatprep.mubr.bf16.mxu0 %v63
  %195 = vmatmul.mubr.bf16.gmra.mrb[0].mxu0 %v62
  %v196 = vpop.f32.mrb[0].mxu0
  %v197 = vadd.f32 %v54, %v196
  %v198 = vpop.f32.mrb[0].mxu0
  %v199 = vpop.f32.mrb[0].mxu0
  %v200 = vadd.f32 %v54, %v199
  %v201 = vpop.f32.mrb[0].mxu0
  %202 = vdwg.mxu0
  %v203 = vmax.f32 %v197, 0.0
  %v204 = vmax.f32 %v200, 0.0
  %v205 = vpack.c.bf16 %v204, %v203
  %v207 = vunpack.c.l.b16 %v205
  %v208 = vunpack.c.h.b16 %v205
  %v209 = vpack.c.b16 %v207, %v207
  %v210 = vpack.c.b16 %v208, %v208
  %213 = vst [vmem:[%s3] sm:$0xf] %v209
  %214 = vst [vmem:[%s3 + $0x4] sm:$0xf] %v210
  // Predicated region
  $region14: #{drdnet_forward.30} parent=0 // pred_check
    _
  $region15: #{drdnet_forward.30} parent=0 // pred_check_branch
    %216 = sbr.rel (0) target = $region17
  $region16: #{drdnet_forward.30} parent=0 // pred_region
    _
  $region17: #{drdnet_forward.30} parent=0 // pred_fallthru
    _
  // Predicated region
  $region18: #{drdnet_forward.30} parent=0 // pred_check
    _
  $region19: #{drdnet_forward.30} parent=0 // pred_check_branch
    %218 = sbr.rel (0) target = $region21
  $region20: #{drdnet_forward.30} parent=0 // pred_region
    _
  $region21: #{drdnet_forward.30} parent=0 // pred_fallthru
    _

// kernel: drdnet_forward.32
$region0: #{drdnet_forward.32}
  #allocation0 [shape = 'u32[]', space=smem, size = 0x4, offset = 0x4, fixed_abs, tag = 'smem constant byte address 0x4 - core index']
  #allocation1 [shape = 'u32[144,128]{1,0:T(1,128)}', space=vmem, size = 0x12000, scoped, tag = 'internal scratch']
  %s0 = inlined_call_operand.vmem [shape: bf16[16,384], index: 0, kind: input, shape index: {}]
  %s1 = inlined_call_operand.vmem [shape: bf16[384,128], index: 1, kind: input, shape index: {}]
  %s2 = inlined_call_operand.vmem [shape: f32[1,128], index: 2, kind: input, shape index: {}]
  %s3 = inlined_call_operand.vmem [shape: bf16[16,128], index: 3, kind: output, shape index: {}]
  %s4 = sld [smem:[#allocation0]]
  $region22: #{drdnet_forward.32} parent=0
    _
  %s6 = ssub.s32 1, %s4
  %s7 = scalar_select 0, %s6, %s4
  // Predicated region
  $region2: #{drdnet_forward.32} parent=0 // pred_check
    _
  $region3: #{drdnet_forward.32} parent=0 // pred_check_branch
    %9 = sbr.rel (0) target = $region5
  $region4: #{drdnet_forward.32} parent=0 // pred_region
    _
  $region5: #{drdnet_forward.32} parent=0 // pred_fallthru
    _
  // Predicated region
  $region6: #{drdnet_forward.32} parent=0 // pred_check
    _
  $region7: #{drdnet_forward.32} parent=0 // pred_check_branch
    %11 = sbr.rel (0) target = $region9
  $region8: #{drdnet_forward.32} parent=0 // pred_region
    _
  $region9: #{drdnet_forward.32} parent=0 // pred_fallthru
    _
  // Predicated region
  $region10: #{drdnet_forward.32} parent=0 // pred_check
    _
  $region11: #{drdnet_forward.32} parent=0 // pred_check_branch
    %13 = sbr.rel (0) target = $region13
  $region12: #{drdnet_forward.32} parent=0 // pred_region
    _
  $region13: #{drdnet_forward.32} parent=0 // pred_fallthru
    _
  %v15 = vld [vmem:[%s0] sm:$0xff]
  %v16 = vld [vmem:[%s0 + $0x8] sm:$0xf]
  %v17 = vld [vmem:[%s0 + $0xc] sm:$0xff]
  %v18 = vld [vmem:[%s0 + $0x14] sm:$0xf]
  %v19 = vld [vmem:[%s1] sm:$0xf]
  %v20 = vld [vmem:[%s1 + $0x4] sm:$0xf]
  %v21 = vld [vmem:[%s1 + $0x8] sm:$0xf]
  %v22 = vld [vmem:[%s1 + $0xc] sm:$0xf]
  %v23 = vld [vmem:[%s1 + $0x10] sm:$0xf]
  %v24 = vld [vmem:[%s1 + $0x14] sm:$0xf]
  %v25 = vld [vmem:[%s1 + $0x18] sm:$0xf]
  %v26 = vld [vmem:[%s1 + $0x1c] sm:$0xf]
  %v27 = vld [vmem:[%s1 + $0x20] sm:$0xf]
  %v28 = vld [vmem:[%s1 + $0x24] sm:$0xf]
  %v29 = vld [vmem:[%s1 + $0x28] sm:$0xf]
  %v30 = vld [vmem:[%s1 + $0x2c] sm:$0xf]
  %v31 = vld [vmem:[%s1 + $0x30] sm:$0xf]
  %v32 = vld [vmem:[%s1 + $0x34] sm:$0xf]
  %v33 = vld [vmem:[%s1 + $0x38] sm:$0xf]
  %v34 = vld [vmem:[%s1 + $0x3c] sm:$0xf]
  %v35 = vld [vmem:[%s1 + $0x40] sm:$0xf]
  %v36 = vld [vmem:[%s1 + $0x44] sm:$0xf]
  %v37 = vld [vmem:[%s1 + $0x48] sm:$0xf]
  %v38 = vld [vmem:[%s1 + $0x4c] sm:$0xf]
  %v39 = vld [vmem:[%s1 + $0x50] sm:$0xf]
  %v40 = vld [vmem:[%s1 + $0x54] sm:$0xf]
  %v41 = vld [vmem:[%s1 + $0x58] sm:$0xf]
  %v42 = vld [vmem:[%s1 + $0x5c] sm:$0xf]
  %v43 = vld [vmem:[%s1 + $0x60] sm:$0xf]
  %v44 = vld [vmem:[%s1 + $0x64] sm:$0xf]
  %v45 = vld [vmem:[%s1 + $0x68] sm:$0xf]
  %v46 = vld [vmem:[%s1 + $0x6c] sm:$0xf]
  %v47 = vld [vmem:[%s1 + $0x70] sm:$0xf]
  %v48 = vld [vmem:[%s1 + $0x74] sm:$0xf]
  %v49 = vld [vmem:[%s1 + $0x78] sm:$0xf]
  %v50 = vld [vmem:[%s1 + $0x7c] sm:$0xf]
  %v51 = vld [vmem:[%s1 + $0x80] sm:$0xf]
  %v52 = vld [vmem:[%s1 + $0x84] sm:$0xf]
  %v53 = vld [vmem:[%s1 + $0x88] sm:$0xf]
  %v54 = vld [vmem:[%s1 + $0x8c] sm:$0xf]
  %v55 = vld [vmem:[%s1 + $0x90] sm:$0xf]
  %v56 = vld [vmem:[%s1 + $0x94] sm:$0xf]
  %v57 = vld [vmem:[%s1 + $0x98] sm:$0xf]
  %v58 = vld [vmem:[%s1 + $0x9c] sm:$0xf]
  %v59 = vld [vmem:[%s1 + $0xa0] sm:$0xf]
  %v60 = vld [vmem:[%s1 + $0xa4] sm:$0xf]
  %v61 = vld [vmem:[%s1 + $0xa8] sm:$0xf]
  %v62 = vld [vmem:[%s1 + $0xac] sm:$0xf]
  %v63 = vld [vmem:[%s1 + $0xb0] sm:$0xf]
  %v64 = vld [vmem:[%s1 + $0xb4] sm:$0xf]
  %v65 = vld [vmem:[%s1 + $0xb8] sm:$0xf]
  %v66 = vld [vmem:[%s1 + $0xbc] sm:$0xf]
  %v67 = vld [vmem:[%s2] sm:$0x1]
  %v69 = vlaneseq
  %v70 = vshrl.u32 %v69, 7
  %v71 = vsub.s32 0, %v70
  %v72 = vrot.slane %v67, %v71
  %v78 = vunpack.c.l.b16 %v15
  %v79 = vunpack.c.h.b16 %v15
  %v80 = vunpack.c.l.b16 %v16
  %v81 = vunpack.c.l.b16 %v17
  %v82 = vunpack.c.h.b16 %v17
  %v83 = vunpack.c.l.b16 %v18
  %v84 = vpack.c.b16 %v81, %v78
  %v85 = vpack.c.b16 %v82, %v79
  %v86 = vpack.c.b16 %v83, %v80
  %v138 = vunpack.c.l.b16 %v19
  %v139 = vunpack.c.l.b16 %v20
  %v140 = vunpack.c.l.b16 %v21
  %v141 = vunpack.c.l.b16 %v22
  %v142 = vunpack.c.l.b16 %v23
  %v143 = vunpack.c.l.b16 %v24
  %v144 = vunpack.c.l.b16 %v25
  %v145 = vunpack.c.l.b16 %v26
  %v146 = vunpack.c.l.b16 %v27
  %v147 = vunpack.c.l.b16 %v28
  %v148 = vunpack.c.l.b16 %v29
  %v149 = vunpack.c.l.b16 %v30
  %v150 = vunpack.c.l.b16 %v31
  %v151 = vunpack.c.l.b16 %v32
  %v152 = vunpack.c.l.b16 %v33
  %v153 = vunpack.c.l.b16 %v34
  %v154 = vunpack.c.l.b16 %v35
  %v155 = vunpack.c.l.b16 %v36
  %v156 = vunpack.c.l.b16 %v37
  %v157 = vunpack.c.l.b16 %v38
  %v158 = vunpack.c.l.b16 %v39
  %v159 = vunpack.c.l.b16 %v40
  %v160 = vunpack.c.l.b16 %v41
  %v161 = vunpack.c.l.b16 %v42
  %v162 = vunpack.c.l.b16 %v43
  %v163 = vunpack.c.l.b16 %v44
  %v164 = vunpack.c.l.b16 %v45
  %v165 = vunpack.c.l.b16 %v46
  %v166 = vunpack.c.l.b16 %v47
  %v167 = vunpack.c.l.b16 %v48
  %v168 = vunpack.c.l.b16 %v49
  %v169 = vunpack.c.l.b16 %v50
  %v170 = vunpack.c.l.b16 %v51
  %v171 = vunpack.c.l.b16 %v52
  %v172 = vunpack.c.l.b16 %v53
  %v173 = vunpack.c.l.b16 %v54
  %v174 = vunpack.c.l.b16 %v55
  %v175 = vunpack.c.l.b16 %v56
  %v176 = vunpack.c.l.b16 %v57
  %v177 = vunpack.c.l.b16 %v58
  %v178 = vunpack.c.l.b16 %v59
  %v179 = vunpack.c.l.b16 %v60
  %v180 = vunpack.c.l.b16 %v61
  %v181 = vunpack.c.l.b16 %v62
  %v182 = vunpack.c.l.b16 %v63
  %v183 = vunpack.c.l.b16 %v64
  %v184 = vunpack.c.l.b16 %v65
  %v185 = vunpack.c.l.b16 %v66
  %v186 = vpack.c.b16 %v139, %v138
  %v187 = vpack.c.b16 %v141, %v140
  %v188 = vpack.c.b16 %v143, %v142
  %v189 = vpack.c.b16 %v145, %v144
  %v190 = vpack.c.b16 %v147, %v146
  %v191 = vpack.c.b16 %v149, %v148
  %v192 = vpack.c.b16 %v151, %v150
  %v193 = vpack.c.b16 %v153, %v152
  %v194 = vpack.c.b16 %v155, %v154
  %v195 = vpack.c.b16 %v157, %v156
  %v196 = vpack.c.b16 %v159, %v158
  %v197 = vpack.c.b16 %v161, %v160
  %v198 = vpack.c.b16 %v163, %v162
  %v199 = vpack.c.b16 %v165, %v164
  %v200 = vpack.c.b16 %v167, %v166
  %v201 = vpack.c.b16 %v169, %v168
  %v202 = vpack.c.b16 %v171, %v170
  %v203 = vpack.c.b16 %v173, %v172
  %v204 = vpack.c.b16 %v175, %v174
  %v205 = vpack.c.b16 %v177, %v176
  %v206 = vpack.c.b16 %v179, %v178
  %v207 = vpack.c.b16 %v181, %v180
  %v208 = vpack.c.b16 %v183, %v182
  %v209 = vpack.c.b16 %v185, %v184
  %234 = vmatprep.subr.bf16.mxu0 0
  %235 = vmatpush1.bf16.msra.mxu0 %v186
  %236 = vmatprep.subr.bf16.mxu0 0
  %237 = vmatpush1.bf16.msra.mxu0 %v187
  %238 = vmatprep.subr.bf16.mxu0 0
  %239 = vmatpush1.bf16.msra.mxu0 %v188
  %240 = vmatprep.subr.bf16.mxu0 0
  %241 = vmatpush1.bf16.msra.mxu0 %v189
  %242 = vmatprep.subr.bf16.mxu0 0
  %243 = vmatpush1.bf16.msra.mxu0 %v190
  %244 = vmatprep.subr.bf16.mxu0 0
  %245 = vmatpush1.bf16.msra.mxu0 %v191
  %246 = vmatprep.subr.bf16.mxu0 0
  %247 = vmatpush1.bf16.msra.mxu0 %v192
  %248 = vmatprep.subr.bf16.mxu0 0
  %249 = vmatpush1.bf16.msra.mxu0 %v193
  %250 = vmatprep.subr.bf16.mxu0 0
  %251 = vmatpush1.bf16.msra.mxu0 %v194
  %252 = vmatprep.subr.bf16.mxu0 0
  %253 = vmatpush1.bf16.msra.mxu0 %v195
  %254 = vmatprep.subr.bf16.mxu0 0
  %255 = vmatpush1.bf16.msra.mxu0 %v196
  %256 = vmatprep.subr.bf16.mxu0 0
  %257 = vmatpush1.bf16.msra.mxu0 %v197
  %258 = vmatprep.subr.bf16.mxu0 0
  %259 = vmatpush1.bf16.msra.mxu0 %v198
  %260 = vmatprep.subr.bf16.mxu0 0
  %261 = vmatpush1.bf16.msra.mxu0 %v199
  %262 = vmatprep.subr.bf16.mxu0 0
  %263 = vmatpush1.bf16.msra.mxu0 %v200
  %264 = vmatprep.subr.bf16.mxu0 0
  %265 = vmatpush1.bf16.msra.mxu0 %v201
  %266 = vmatprep.mubr.bf16.mxu0 %v85
  %267 = vmatmul.mubr.bf16.gmra.mrb[0].mxu0 %v84
  %v268 = vpop.f32.mrb[0].mxu0
  %v269 = vadd.f32 %v72, %v268
  %v270 = vpop.f32.mrb[0].mxu0
  %v271 = vpop.f32.mrb[0].mxu0
  %v272 = vadd.f32 %v72, %v271
  %v273 = vpop.f32.mrb[0].mxu0
  %274 = vdwg.mxu0
  %275 = vmatprep.subr.bf16.mxu0 0
  %276 = vmatpush1.bf16.msra.mxu0 %v202
  %277 = vmatprep.subr.bf16.mxu0 0
  %278 = vmatpush1.bf16.msra.mxu0 %v203
  %279 = vmatprep.subr.bf16.mxu0 0
  %280 = vmatpush1.bf16.msra.mxu0 %v204
  %281 = vmatprep.subr.bf16.mxu0 0
  %282 = vmatpush1.bf16.msra.mxu0 %v205
  %283 = vmatprep.subr.bf16.mxu0 0
  %284 = vmatpush1.bf16.msra.mxu0 %v206
  %285 = vmatprep.subr.bf16.mxu0 0
  %286 = vmatpush1.bf16.msra.mxu0 %v207
  %287 = vmatprep.subr.bf16.mxu0 0
  %288 = vmatpush1.bf16.msra.mxu0 %v208
  %289 = vmatprep.subr.bf16.mxu0 0
  %290 = vmatpush1.bf16.msra.mxu0 %v209
  %291 = vmatprep.subr.bf16.mxu0 0
  %292 = vmatpush1.bf16.msra.mxu0 0
  %293 = vmatprep.subr.bf16.mxu0 0
  %294 = vmatpush1.bf16.msra.mxu0 0
  %295 = vmatprep.subr.bf16.mxu0 0
  %296 = vmatpush1.bf16.msra.mxu0 0
  %297 = vmatprep.subr.bf16.mxu0 0
  %298 = vmatpush1.bf16.msra.mxu0 0
  %299 = vmatprep.subr.bf16.mxu0 0
  %300 = vmatpush1.bf16.msra.mxu0 0
  %301 = vmatprep.subr.bf16.mxu0 0
  %302 = vmatpush1.bf16.msra.mxu0 0
  %303 = vmatprep.subr.bf16.mxu0 0
  %304 = vmatpush1.bf16.msra.mxu0 0
  %305 = vmatprep.subr.bf16.mxu0 0
  %306 = vmatpush1.bf16.msra.mxu0 0
  %307 = vmatprep.mubr.bf16.mxu0 0
  %308 = vmatmul.mubr.bf16.gmra.mrb[0].mxu0 %v86
  %v309 = vpop.f32.mrb[0].mxu0
  %v310 = vadd.f32 %v269, %v309
  %v311 = vpop.f32.mrb[0].mxu0
  %v312 = vpop.f32.mrb[0].mxu0
  %v313 = vadd.f32 %v272, %v312
  %v314 = vpop.f32.mrb[0].mxu0
  %315 = vdwg.mxu0
  %v316 = vmax.f32 %v310, 0.0
  %v317 = vmax.f32 %v313, 0.0
  %v318 = vpack.c.bf16 %v317, %v316
  %v320 = vunpack.c.l.b16 %v318
  %v321 = vunpack.c.h.b16 %v318
  %v322 = vpack.c.b16 %v320, %v320
  %v323 = vpack.c.b16 %v321, %v321
  %326 = vst [vmem:[%s3] sm:$0xf] %v322
  %327 = vst [vmem:[%s3 + $0x4] sm:$0xf] %v323
  // Predicated region
  $region14: #{drdnet_forward.32} parent=0 // pred_check
    _
  $region15: #{drdnet_forward.32} parent=0 // pred_check_branch
    %329 = sbr.rel (0) target = $region17
  $region16: #{drdnet_forward.32} parent=0 // pred_region
    _
  $region17: #{drdnet_forward.32} parent=0 // pred_fallthru
    _
  // Predicated region
  $region18: #{drdnet_forward.32} parent=0 // pred_check
    _
  $region19: #{drdnet_forward.32} parent=0 // pred_check_branch
    %331 = sbr.rel (0) target = $region21
  $region20: #{drdnet_forward.32} parent=0 // pred_region
    _
  $region21: #{drdnet_forward.32} parent=0 // pred_fallthru
    _

// kernel: drdnet_forward.33
$region0: #{drdnet_forward.33}
  #allocation0 [shape = 'u32[]', space=smem, size = 0x4, offset = 0x4, fixed_abs, tag = 'smem constant byte address 0x4 - core index']
  #allocation1 [shape = 'u32[144,128]{1,0:T(1,128)}', space=vmem, size = 0x12000, scoped, tag = 'internal scratch']
  %s0 = inlined_call_operand.vmem [shape: bf16[16,128], index: 0, kind: input, shape index: {}]
  %s1 = inlined_call_operand.vmem [shape: bf16[128,128], index: 1, kind: input, shape index: {}]
  %s2 = inlined_call_operand.vmem [shape: f32[1,128], index: 2, kind: input, shape index: {}]
  %s3 = inlined_call_operand.vmem [shape: bf16[16,128], index: 3, kind: output, shape index: {}]
  %s4 = sld [smem:[#allocation0]]
  $region22: #{drdnet_forward.33} parent=0
    _
  %s6 = ssub.s32 1, %s4
  %s7 = scalar_select 0, %s6, %s4
  // Predicated region
  $region2: #{drdnet_forward.33} parent=0 // pred_check
    _
  $region3: #{drdnet_forward.33} parent=0 // pred_check_branch
    %9 = sbr.rel (0) target = $region5
  $region4: #{drdnet_forward.33} parent=0 // pred_region
    _
  $region5: #{drdnet_forward.33} parent=0 // pred_fallthru
    _
  // Predicated region
  $region6: #{drdnet_forward.33} parent=0 // pred_check
    _
  $region7: #{drdnet_forward.33} parent=0 // pred_check_branch
    %11 = sbr.rel (0) target = $region9
  $region8: #{drdnet_forward.33} parent=0 // pred_region
    _
  $region9: #{drdnet_forward.33} parent=0 // pred_fallthru
    _
  // Predicated region
  $region10: #{drdnet_forward.33} parent=0 // pred_check
    _
  $region11: #{drdnet_forward.33} parent=0 // pred_check_branch
    %13 = sbr.rel (0) target = $region13
  $region12: #{drdnet_forward.33} parent=0 // pred_region
    _
  $region13: #{drdnet_forward.33} parent=0 // pred_fallthru
    _
  %v15 = vld [vmem:[%s0] sm:$0xf]
  %v16 = vld [vmem:[%s0 + $0x4] sm:$0xf]
  %v17 = vld [vmem:[%s1] sm:$0xf]
  %v18 = vld [vmem:[%s1 + $0x4] sm:$0xf]
  %v19 = vld [vmem:[%s1 + $0x8] sm:$0xf]
  %v20 = vld [vmem:[%s1 + $0xc] sm:$0xf]
  %v21 = vld [vmem:[%s1 + $0x10] sm:$0xf]
  %v22 = vld [vmem:[%s1 + $0x14] sm:$0xf]
  %v23 = vld [vmem:[%s1 + $0x18] sm:$0xf]
  %v24 = vld [vmem:[%s1 + $0x1c] sm:$0xf]
  %v25 = vld [vmem:[%s1 + $0x20] sm:$0xf]
  %v26 = vld [vmem:[%s1 + $0x24] sm:$0xf]
  %v27 = vld [vmem:[%s1 + $0x28] sm:$0xf]
  %v28 = vld [vmem:[%s1 + $0x2c] sm:$0xf]
  %v29 = vld [vmem:[%s1 + $0x30] sm:$0xf]
  %v30 = vld [vmem:[%s1 + $0x34] sm:$0xf]
  %v31 = vld [vmem:[%s1 + $0x38] sm:$0xf]
  %v32 = vld [vmem:[%s1 + $0x3c] sm:$0xf]
  %v33 = vld [vmem:[%s2] sm:$0x1]
  %v35 = vlaneseq
  %v36 = vshrl.u32 %v35, 7
  %v37 = vsub.s32 0, %v36
  %v38 = vrot.slane %v33, %v37
  %v42 = vunpack.c.l.b16 %v15
  %v43 = vunpack.c.l.b16 %v16
  %v44 = vpack.c.b16 %v43, %v42
  %v62 = vunpack.c.l.b16 %v17
  %v63 = vunpack.c.l.b16 %v18
  %v64 = vunpack.c.l.b16 %v19
  %v65 = vunpack.c.l.b16 %v20
  %v66 = vunpack.c.l.b16 %v21
  %v67 = vunpack.c.l.b16 %v22
  %v68 = vunpack.c.l.b16 %v23
  %v69 = vunpack.c.l.b16 %v24
  %v70 = vunpack.c.l.b16 %v25
  %v71 = vunpack.c.l.b16 %v26
  %v72 = vunpack.c.l.b16 %v27
  %v73 = vunpack.c.l.b16 %v28
  %v74 = vunpack.c.l.b16 %v29
  %v75 = vunpack.c.l.b16 %v30
  %v76 = vunpack.c.l.b16 %v31
  %v77 = vunpack.c.l.b16 %v32
  %v78 = vpack.c.b16 %v63, %v62
  %v79 = vpack.c.b16 %v65, %v64
  %v80 = vpack.c.b16 %v67, %v66
  %v81 = vpack.c.b16 %v69, %v68
  %v82 = vpack.c.b16 %v71, %v70
  %v83 = vpack.c.b16 %v73, %v72
  %v84 = vpack.c.b16 %v75, %v74
  %v85 = vpack.c.b16 %v77, %v76
  %94 = vmatprep.subr.bf16.mxu0 0
  %95 = vmatpush1.bf16.msra.mxu0 %v78
  %96 = vmatprep.subr.bf16.mxu0 0
  %97 = vmatpush1.bf16.msra.mxu0 %v79
  %98 = vmatprep.subr.bf16.mxu0 0
  %99 = vmatpush1.bf16.msra.mxu0 %v80
  %100 = vmatprep.subr.bf16.mxu0 0
  %101 = vmatpush1.bf16.msra.mxu0 %v81
  %102 = vmatprep.subr.bf16.mxu0 0
  %103 = vmatpush1.bf16.msra.mxu0 %v82
  %104 = vmatprep.subr.bf16.mxu0 0
  %105 = vmatpush1.bf16.msra.mxu0 %v83
  %106 = vmatprep.subr.bf16.mxu0 0
  %107 = vmatpush1.bf16.msra.mxu0 %v84
  %108 = vmatprep.subr.bf16.mxu0 0
  %109 = vmatpush1.bf16.msra.mxu0 %v85
  %110 = vmatprep.subr.bf16.mxu0 0
  %111 = vmatpush1.bf16.msra.mxu0 0
  %112 = vmatprep.subr.bf16.mxu0 0
  %113 = vmatpush1.bf16.msra.mxu0 0
  %114 = vmatprep.subr.bf16.mxu0 0
  %115 = vmatpush1.bf16.msra.mxu0 0
  %116 = vmatprep.subr.bf16.mxu0 0
  %117 = vmatpush1.bf16.msra.mxu0 0
  %118 = vmatprep.subr.bf16.mxu0 0
  %119 = vmatpush1.bf16.msra.mxu0 0
  %120 = vmatprep.subr.bf16.mxu0 0
  %121 = vmatpush1.bf16.msra.mxu0 0
  %122 = vmatprep.subr.bf16.mxu0 0
  %123 = vmatpush1.bf16.msra.mxu0 0
  %124 = vmatprep.subr.bf16.mxu0 0
  %125 = vmatpush1.bf16.msra.mxu0 0
  %126 = vmatprep.mubr.bf16.mxu0 0
  %127 = vmatmul.mubr.bf16.gmra.mrb[0].mxu0 %v44
  %v128 = vpop.f32.mrb[0].mxu0
  %v129 = vadd.f32 %v38, %v128
  %v130 = vpop.f32.mrb[0].mxu0
  %v131 = vpop.f32.mrb[0].mxu0
  %v132 = vadd.f32 %v38, %v131
  %v133 = vpop.f32.mrb[0].mxu0
  %134 = vdwg.mxu0
  %v135 = vmax.f32 %v129, 0.0
  %v136 = vmax.f32 %v132, 0.0
  %v137 = vpack.c.bf16 %v136, %v135
  %v139 = vunpack.c.l.b16 %v137
  %v140 = vunpack.c.h.b16 %v137
  %v141 = vpack.c.b16 %v139, %v139
  %v142 = vpack.c.b16 %v140, %v140
  %145 = vst [vmem:[%s3] sm:$0xf] %v141
  %146 = vst [vmem:[%s3 + $0x4] sm:$0xf] %v142
  // Predicated region
  $region14: #{drdnet_forward.33} parent=0 // pred_check
    _
  $region15: #{drdnet_forward.33} parent=0 // pred_check_branch
    %148 = sbr.rel (0) target = $region17
  $region16: #{drdnet_forward.33} parent=0 // pred_region
    _
  $region17: #{drdnet_forward.33} parent=0 // pred_fallthru
    _
  // Predicated region
  $region18: #{drdnet_forward.33} parent=0 // pred_check
    _
  $region19: #{drdnet_forward.33} parent=0 // pred_check_branch
    %150 = sbr.rel (0) target = $region21
  $region20: #{drdnet_forward.33} parent=0 // pred_region
    _
  $region21: #{drdnet_forward.33} parent=0 // pred_fallthru
    _

// kernel: drdnet_forward.35
$region0: #{drdnet_forward.35}
  #allocation0 [shape = 'u32[]', space=smem, size = 0x4, offset = 0x4, fixed_abs, tag = 'smem constant byte address 0x4 - core index']
  #allocation1 [shape = 'u32[144,128]{1,0:T(1,128)}', space=vmem, size = 0x12000, scoped, tag = 'internal scratch']
  %s0 = inlined_call_operand.vmem [shape: bf16[16,128], index: 0, kind: input, shape index: {}]
  %s1 = inlined_call_operand.vmem [shape: bf16[128,256], index: 1, kind: input, shape index: {}]
  %s2 = inlined_call_operand.vmem [shape: f32[1,256], index: 2, kind: input, shape index: {}]
  %s3 = inlined_call_operand.vmem [shape: bf16[16,256], index: 3, kind: output, shape index: {}]
  %s4 = sld [smem:[#allocation0]]
  $region22: #{drdnet_forward.35} parent=0
    _
  %s6 = ssub.s32 1, %s4
  %s7 = scalar_select 0, %s6, %s4
  // Predicated region
  $region2: #{drdnet_forward.35} parent=0 // pred_check
    _
  $region3: #{drdnet_forward.35} parent=0 // pred_check_branch
    %9 = sbr.rel (0) target = $region5
  $region4: #{drdnet_forward.35} parent=0 // pred_region
    _
  $region5: #{drdnet_forward.35} parent=0 // pred_fallthru
    _
  // Predicated region
  $region6: #{drdnet_forward.35} parent=0 // pred_check
    _
  $region7: #{drdnet_forward.35} parent=0 // pred_check_branch
    %11 = sbr.rel (0) target = $region9
  $region8: #{drdnet_forward.35} parent=0 // pred_region
    _
  $region9: #{drdnet_forward.35} parent=0 // pred_fallthru
    _
  // Predicated region
  $region10: #{drdnet_forward.35} parent=0 // pred_check
    _
  $region11: #{drdnet_forward.35} parent=0 // pred_check_branch
    %13 = sbr.rel (0) target = $region13
  $region12: #{drdnet_forward.35} parent=0 // pred_region
    _
  $region13: #{drdnet_forward.35} parent=0 // pred_fallthru
    _
  %v15 = vld [vmem:[%s0] sm:$0xf]
  %v16 = vld [vmem:[%s0 + $0x4] sm:$0xf]
  %v17 = vld [vmem:[%s1] sm:$0xff]
  %v18 = vld [vmem:[%s1 + $0x8] sm:$0xff]
  %v19 = vld [vmem:[%s1 + $0x10] sm:$0xff]
  %v20 = vld [vmem:[%s1 + $0x18] sm:$0xff]
  %v21 = vld [vmem:[%s1 + $0x20] sm:$0xff]
  %v22 = vld [vmem:[%s1 + $0x28] sm:$0xff]
  %v23 = vld [vmem:[%s1 + $0x30] sm:$0xff]
  %v24 = vld [vmem:[%s1 + $0x38] sm:$0xff]
  %v25 = vld [vmem:[%s1 + $0x40] sm:$0xff]
  %v26 = vld [vmem:[%s1 + $0x48] sm:$0xff]
  %v27 = vld [vmem:[%s1 + $0x50] sm:$0xff]
  %v28 = vld [vmem:[%s1 + $0x58] sm:$0xff]
  %v29 = vld [vmem:[%s1 + $0x60] sm:$0xff]
  %v30 = vld [vmem:[%s1 + $0x68] sm:$0xff]
  %v31 = vld [vmem:[%s1 + $0x70] sm:$0xff]
  %v32 = vld [vmem:[%s1 + $0x78] sm:$0xff]
  %v33 = vld [vmem:[%s2] sm:$0x3]
  %v35 = vlaneseq
  %v36 = vshrl.u32 %v35, 7
  %v37 = vsub.s32 0, %v36
  %v38 = vrot.slane %v33, %v37
  %v39 = vlaneseq
  %v40 = vshrl.u32 %v39, 7
  %v41 = vsub.s32 1, %v40
  %v42 = vrot.slane %v33, %v41
  %v47 = vunpack.c.l.b16 %v15
  %v48 = vunpack.c.l.b16 %v16
  %v49 = vpack.c.b16 %v48, %v47
  %v67 = vunpack.c.l.b16 %v17
  %v68 = vunpack.c.h.b16 %v17
  %v69 = vunpack.c.l.b16 %v18
  %v70 = vunpack.c.h.b16 %v18
  %v71 = vunpack.c.l.b16 %v19
  %v72 = vunpack.c.h.b16 %v19
  %v73 = vunpack.c.l.b16 %v20
  %v74 = vunpack.c.h.b16 %v20
  %v75 = vunpack.c.l.b16 %v21
  %v76 = vunpack.c.h.b16 %v21
  %v77 = vunpack.c.l.b16 %v22
  %v78 = vunpack.c.h.b16 %v22
  %v79 = vunpack.c.l.b16 %v23
  %v80 = vunpack.c.h.b16 %v23
  %v81 = vunpack.c.l.b16 %v24
  %v82 = vunpack.c.h.b16 %v24
  %v83 = vunpack.c.l.b16 %v25
  %v84 = vunpack.c.h.b16 %v25
  %v85 = vunpack.c.l.b16 %v26
  %v86 = vunpack.c.h.b16 %v26
  %v87 = vunpack.c.l.b16 %v27
  %v88 = vunpack.c.h.b16 %v27
  %v89 = vunpack.c.l.b16 %v28
  %v90 = vunpack.c.h.b16 %v28
  %v91 = vunpack.c.l.b16 %v29
  %v92 = vunpack.c.h.b16 %v29
  %v93 = vunpack.c.l.b16 %v30
  %v94 = vunpack.c.h.b16 %v30
  %v95 = vunpack.c.l.b16 %v31
  %v96 = vunpack.c.h.b16 %v31
  %v97 = vunpack.c.l.b16 %v32
  %v98 = vunpack.c.h.b16 %v32
  %v99 = vpack.c.b16 %v69, %v67
  %v100 = vpack.c.b16 %v70, %v68
  %v101 = vpack.c.b16 %v73, %v71
  %v102 = vpack.c.b16 %v74, %v72
  %v103 = vpack.c.b16 %v77, %v75
  %v104 = vpack.c.b16 %v78, %v76
  %v105 = vpack.c.b16 %v81, %v79
  %v106 = vpack.c.b16 %v82, %v80
  %v107 = vpack.c.b16 %v85, %v83
  %v108 = vpack.c.b16 %v86, %v84
  %v109 = vpack.c.b16 %v89, %v87
  %v110 = vpack.c.b16 %v90, %v88
  %v111 = vpack.c.b16 %v93, %v91
  %v112 = vpack.c.b16 %v94, %v92
  %v113 = vpack.c.b16 %v97, %v95
  %v114 = vpack.c.b16 %v98, %v96
  %131 = vmatprep.subr.bf16.mxu0 %v100
  %132 = vmatpush1.bf16.msra.mxu0 %v99
  %133 = vmatprep.subr.bf16.mxu0 %v102
  %134 = vmatpush1.bf16.msra.mxu0 %v101
  %135 = vmatprep.subr.bf16.mxu0 %v104
  %136 = vmatpush1.bf16.msra.mxu0 %v103
  %137 = vmatprep.subr.bf16.mxu0 %v106
  %138 = vmatpush1.bf16.msra.mxu0 %v105
  %139 = vmatprep.subr.bf16.mxu0 %v108
  %140 = vmatpush1.bf16.msra.mxu0 %v107
  %141 = vmatprep.subr.bf16.mxu0 %v110
  %142 = vmatpush1.bf16.msra.mxu0 %v109
  %143 = vmatprep.subr.bf16.mxu0 %v112
  %144 = vmatpush1.bf16.msra.mxu0 %v111
  %145 = vmatprep.subr.bf16.mxu0 %v114
  %146 = vmatpush1.bf16.msra.mxu0 %v113
  %147 = vmatprep.subr.bf16.mxu0 0
  %148 = vmatpush1.bf16.msra.mxu0 0
  %149 = vmatprep.subr.bf16.mxu0 0
  %150 = vmatpush1.bf16.msra.mxu0 0
  %151 = vmatprep.subr.bf16.mxu0 0
  %152 = vmatpush1.bf16.msra.mxu0 0
  %153 = vmatprep.subr.bf16.mxu0 0
  %154 = vmatpush1.bf16.msra.mxu0 0
  %155 = vmatprep.subr.bf16.mxu0 0
  %156 = vmatpush1.bf16.msra.mxu0 0
  %157 = vmatprep.subr.bf16.mxu0 0
  %158 = vmatpush1.bf16.msra.mxu0 0
  %159 = vmatprep.subr.bf16.mxu0 0
  %160 = vmatpush1.bf16.msra.mxu0 0
  %161 = vmatprep.subr.bf16.mxu0 0
  %162 = vmatpush1.bf16.msra.mxu0 0
  %163 = vmatprep.mubr.bf16.mxu0 0
  %164 = vmatmul.mubr.bf16.gmra.mrb[0].mxu0 %v49
  %v165 = vpop.f32.mrb[0].mxu0
  %v166 = vadd.f32 %v38, %v165
  %v167 = vpop.f32.mrb[0].mxu0
  %v168 = vadd.f32 %v42, %v167
  %v169 = vpop.f32.mrb[0].mxu0
  %v170 = vadd.f32 %v38, %v169
  %v171 = vpop.f32.mrb[0].mxu0
  %v172 = vadd.f32 %v42, %v171
  %173 = vdwg.mxu0
  %v174 = vmax.f32 %v166, 0.0
  %v175 = vmax.f32 %v168, 0.0
  %v176 = vmax.f32 %v170, 0.0
  %v177 = vmax.f32 %v172, 0.0
  %v178 = vpack.c.bf16 %v176, %v174
  %v179 = vpack.c.bf16 %v177, %v175
  %v182 = vunpack.c.l.b16 %v178
  %v183 = vunpack.c.l.b16 %v179
  %v184 = vunpack.c.h.b16 %v178
  %v185 = vunpack.c.h.b16 %v179
  %v186 = vpack.c.b16 %v183, %v182
  %v187 = vpack.c.b16 %v185, %v184
  %190 = vst [vmem:[%s3] sm:$0xff] %v186
  %191 = vst [vmem:[%s3 + $0x8] sm:$0xff] %v187
  // Predicated region
  $region14: #{drdnet_forward.35} parent=0 // pred_check
    _
  $region15: #{drdnet_forward.35} parent=0 // pred_check_branch
    %193 = sbr.rel (0) target = $region17
  $region16: #{drdnet_forward.35} parent=0 // pred_region
    _
  $region17: #{drdnet_forward.35} parent=0 // pred_fallthru
    _
  // Predicated region
  $region18: #{drdnet_forward.35} parent=0 // pred_check
    _
  $region19: #{drdnet_forward.35} parent=0 // pred_check_branch
    %195 = sbr.rel (0) target = $region21
  $region20: #{drdnet_forward.35} parent=0 // pred_region
    _
  $region21: #{drdnet_forward.35} parent=0 // pred_fallthru
    _

// kernel: drdnet_forward.36
$region0: #{drdnet_forward.36}
  #allocation0 [shape = 'u32[]', space=smem, size = 0x4, offset = 0x4, fixed_abs, tag = 'smem constant byte address 0x4 - core index']
  #allocation1 [shape = 'u32[144,128]{1,0:T(1,128)}', space=vmem, size = 0x12000, scoped, tag = 'internal scratch']
  %s0 = inlined_call_operand.vmem [shape: bf16[16,256], index: 0, kind: input, shape index: {}]
  %s1 = inlined_call_operand.vmem [shape: bf16[256,512], index: 1, kind: input, shape index: {}]
  %s2 = inlined_call_operand.vmem [shape: f32[1,512], index: 2, kind: input, shape index: {}]
  %s3 = inlined_call_operand.vmem [shape: bf16[16,512], index: 3, kind: output, shape index: {}]
  %s4 = sld [smem:[#allocation0]]
  $region22: #{drdnet_forward.36} parent=0
    _
  %s6 = ssub.s32 1, %s4
  %s7 = scalar_select 0, %s6, %s4
  // Predicated region
  $region2: #{drdnet_forward.36} parent=0 // pred_check
    _
  $region3: #{drdnet_forward.36} parent=0 // pred_check_branch
    %9 = sbr.rel (0) target = $region5
  $region4: #{drdnet_forward.36} parent=0 // pred_region
    _
  $region5: #{drdnet_forward.36} parent=0 // pred_fallthru
    _
  // Predicated region
  $region6: #{drdnet_forward.36} parent=0 // pred_check
    _
  $region7: #{drdnet_forward.36} parent=0 // pred_check_branch
    %11 = sbr.rel (0) target = $region9
  $region8: #{drdnet_forward.36} parent=0 // pred_region
    _
  $region9: #{drdnet_forward.36} parent=0 // pred_fallthru
    _
  // Predicated region
  $region10: #{drdnet_forward.36} parent=0 // pred_check
    _
  $region11: #{drdnet_forward.36} parent=0 // pred_check_branch
    %13 = sbr.rel (0) target = $region13
  $region12: #{drdnet_forward.36} parent=0 // pred_region
    _
  $region13: #{drdnet_forward.36} parent=0 // pred_fallthru
    _
  %v14 = vld [vmem:[%s0] sm:$0xff]
  %v15 = vld [vmem:[%s0 + $0x8] sm:$0xff]
  %v16 = vld [vmem:[%s1] sm:$0xff]
  %v17 = vld [vmem:[%s1 + $0x8] sm:$0xff]
  %v18 = vld [vmem:[%s1 + $0x10] sm:$0xff]
  %v19 = vld [vmem:[%s1 + $0x18] sm:$0xff]
  %v20 = vld [vmem:[%s1 + $0x20] sm:$0xff]
  %v21 = vld [vmem:[%s1 + $0x28] sm:$0xff]
  %v22 = vld [vmem:[%s1 + $0x30] sm:$0xff]
  %v23 = vld [vmem:[%s1 + $0x38] sm:$0xff]
  %v24 = vld [vmem:[%s1 + $0x40] sm:$0xff]
  %v25 = vld [vmem:[%s1 + $0x48] sm:$0xff]
  %v26 = vld [vmem:[%s1 + $0x50] sm:$0xff]
  %v27 = vld [vmem:[%s1 + $0x58] sm:$0xff]
  %v28 = vld [vmem:[%s1 + $0x60] sm:$0xff]
  %v29 = vld [vmem:[%s1 + $0x68] sm:$0xff]
  %v30 = vld [vmem:[%s1 + $0x70] sm:$0xff]
  %v31 = vld [vmem:[%s1 + $0x78] sm:$0xff]
  %v32 = vld [vmem:[%s1 + $0x80] sm:$0xff]
  %v33 = vld [vmem:[%s1 + $0x88] sm:$0xff]
  %v34 = vld [vmem:[%s1 + $0x90] sm:$0xff]
  %v35 = vld [vmem:[%s1 + $0x98] sm:$0xff]
  %v36 = vld [vmem:[%s1 + $0xa0] sm:$0xff]
  %v37 = vld [vmem:[%s1 + $0xa8] sm:$0xff]
  %v38 = vld [vmem:[%s1 + $0xb0] sm:$0xff]
  %v39 = vld [vmem:[%s1 + $0xb8] sm:$0xff]
  %v40 = vld [vmem:[%s1 + $0xc0] sm:$0xff]
  %v41 = vld [vmem:[%s1 + $0xc8] sm:$0xff]
  %v42 = vld [vmem:[%s1 + $0xd0] sm:$0xff]
  %v43 = vld [vmem:[%s1 + $0xd8] sm:$0xff]
  %v44 = vld [vmem:[%s1 + $0xe0] sm:$0xff]
  %v45 = vld [vmem:[%s1 + $0xe8] sm:$0xff]
  %v46 = vld [vmem:[%s1 + $0xf0] sm:$0xff]
  %v47 = vld [vmem:[%s1 + $0xf8] sm:$0xff]
  %v48 = vld [vmem:[%s1 + $0x100] sm:$0xff]
  %v49 = vld [vmem:[%s1 + $0x108] sm:$0xff]
  %v50 = vld [vmem:[%s1 + $0x110] sm:$0xff]
  %v51 = vld [vmem:[%s1 + $0x118] sm:$0xff]
  %v52 = vld [vmem:[%s1 + $0x120] sm:$0xff]
  %v53 = vld [vmem:[%s1 + $0x128] sm:$0xff]
  %v54 = vld [vmem:[%s1 + $0x130] sm:$0xff]
  %v55 = vld [vmem:[%s1 + $0x138] sm:$0xff]
  %v56 = vld [vmem:[%s1 + $0x140] sm:$0xff]
  %v57 = vld [vmem:[%s1 + $0x148] sm:$0xff]
  %v58 = vld [vmem:[%s1 + $0x150] sm:$0xff]
  %v59 = vld [vmem:[%s1 + $0x158] sm:$0xff]
  %v60 = vld [vmem:[%s1 + $0x160] sm:$0xff]
  %v61 = vld [vmem:[%s1 + $0x168] sm:$0xff]
  %v62 = vld [vmem:[%s1 + $0x170] sm:$0xff]
  %v63 = vld [vmem:[%s1 + $0x178] sm:$0xff]
  %v64 = vld [vmem:[%s1 + $0x180] sm:$0xff]
  %v65 = vld [vmem:[%s1 + $0x188] sm:$0xff]
  %v66 = vld [vmem:[%s1 + $0x190] sm:$0xff]
  %v67 = vld [vmem:[%s1 + $0x198] sm:$0xff]
  %v68 = vld [vmem:[%s1 + $0x1a0] sm:$0xff]
  %v69 = vld [vmem:[%s1 + $0x1a8] sm:$0xff]
  %v70 = vld [vmem:[%s1 + $0x1b0] sm:$0xff]
  %v71 = vld [vmem:[%s1 + $0x1b8] sm:$0xff]
  %v72 = vld [vmem:[%s1 + $0x1c0] sm:$0xff]
  %v73 = vld [vmem:[%s1 + $0x1c8] sm:$0xff]
  %v74 = vld [vmem:[%s1 + $0x1d0] sm:$0xff]
  %v75 = vld [vmem:[%s1 + $0x1d8] sm:$0xff]
  %v76 = vld [vmem:[%s1 + $0x1e0] sm:$0xff]
  %v77 = vld [vmem:[%s1 + $0x1e8] sm:$0xff]
  %v78 = vld [vmem:[%s1 + $0x1f0] sm:$0xff]
  %v79 = vld [vmem:[%s1 + $0x1f8] sm:$0xff]
  %v80 = vld [vmem:[%s2] sm:$0xf]
  %v82 = vlaneseq
  %v83 = vshrl.u32 %v82, 7
  %v84 = vsub.s32 0, %v83
  %v85 = vrot.slane %v80, %v84
  %v86 = vlaneseq
  %v87 = vshrl.u32 %v86, 7
  %v88 = vsub.s32 1, %v87
  %v89 = vrot.slane %v80, %v88
  %v90 = vlaneseq
  %v91 = vshrl.u32 %v90, 7
  %v92 = vsub.s32 2, %v91
  %v93 = vrot.slane %v80, %v92
  %v94 = vlaneseq
  %v95 = vshrl.u32 %v94, 7
  %v96 = vsub.s32 3, %v95
  %v97 = vrot.slane %v80, %v96
  %v104 = vunpack.c.l.b16 %v14
  %v105 = vunpack.c.h.b16 %v14
  %v106 = vunpack.c.l.b16 %v15
  %v107 = vunpack.c.h.b16 %v15
  %v108 = vpack.c.b16 %v106, %v104
  %v109 = vpack.c.b16 %v107, %v105
  %v176 = vunpack.c.l.b16 %v16
  %v177 = vunpack.c.h.b16 %v16
  %v178 = vunpack.c.l.b16 %v17
  %v179 = vunpack.c.h.b16 %v17
  %v180 = vunpack.c.l.b16 %v18
  %v181 = vunpack.c.h.b16 %v18
  %v182 = vunpack.c.l.b16 %v19
  %v183 = vunpack.c.h.b16 %v19
  %v184 = vunpack.c.l.b16 %v20
  %v185 = vunpack.c.h.b16 %v20
  %v186 = vunpack.c.l.b16 %v21
  %v187 = vunpack.c.h.b16 %v21
  %v188 = vunpack.c.l.b16 %v22
  %v189 = vunpack.c.h.b16 %v22
  %v190 = vunpack.c.l.b16 %v23
  %v191 = vunpack.c.h.b16 %v23
  %v192 = vunpack.c.l.b16 %v24
  %v193 = vunpack.c.h.b16 %v24
  %v194 = vunpack.c.l.b16 %v25
  %v195 = vunpack.c.h.b16 %v25
  %v196 = vunpack.c.l.b16 %v26
  %v197 = vunpack.c.h.b16 %v26
  %v198 = vunpack.c.l.b16 %v27
  %v199 = vunpack.c.h.b16 %v27
  %v200 = vunpack.c.l.b16 %v28
  %v201 = vunpack.c.h.b16 %v28
  %v202 = vunpack.c.l.b16 %v29
  %v203 = vunpack.c.h.b16 %v29
  %v204 = vunpack.c.l.b16 %v30
  %v205 = vunpack.c.h.b16 %v30
  %v206 = vunpack.c.l.b16 %v31
  %v207 = vunpack.c.h.b16 %v31
  %v208 = vunpack.c.l.b16 %v32
  %v209 = vunpack.c.h.b16 %v32
  %v210 = vunpack.c.l.b16 %v33
  %v211 = vunpack.c.h.b16 %v33
  %v212 = vunpack.c.l.b16 %v34
  %v213 = vunpack.c.h.b16 %v34
  %v214 = vunpack.c.l.b16 %v35
  %v215 = vunpack.c.h.b16 %v35
  %v216 = vunpack.c.l.b16 %v36
  %v217 = vunpack.c.h.b16 %v36
  %v218 = vunpack.c.l.b16 %v37
  %v219 = vunpack.c.h.b16 %v37
  %v220 = vunpack.c.l.b16 %v38
  %v221 = vunpack.c.h.b16 %v38
  %v222 = vunpack.c.l.b16 %v39
  %v223 = vunpack.c.h.b16 %v39
  %v224 = vunpack.c.l.b16 %v40
  %v225 = vunpack.c.h.b16 %v40
  %v226 = vunpack.c.l.b16 %v41
  %v227 = vunpack.c.h.b16 %v41
  %v228 = vunpack.c.l.b16 %v42
  %v229 = vunpack.c.h.b16 %v42
  %v230 = vunpack.c.l.b16 %v43
  %v231 = vunpack.c.h.b16 %v43
  %v232 = vunpack.c.l.b16 %v44
  %v233 = vunpack.c.h.b16 %v44
  %v234 = vunpack.c.l.b16 %v45
  %v235 = vunpack.c.h.b16 %v45
  %v236 = vunpack.c.l.b16 %v46
  %v237 = vunpack.c.h.b16 %v46
  %v238 = vunpack.c.l.b16 %v47
  %v239 = vunpack.c.h.b16 %v47
  %v240 = vunpack.c.l.b16 %v48
  %v241 = vunpack.c.h.b16 %v48
  %v242 = vunpack.c.l.b16 %v49
  %v243 = vunpack.c.h.b16 %v49
  %v244 = vunpack.c.l.b16 %v50
  %v245 = vunpack.c.h.b16 %v50
  %v246 = vunpack.c.l.b16 %v51
  %v247 = vunpack.c.h.b16 %v51
  %v248 = vunpack.c.l.b16 %v52
  %v249 = vunpack.c.h.b16 %v52
  %v250 = vunpack.c.l.b16 %v53
  %v251 = vunpack.c.h.b16 %v53
  %v252 = vunpack.c.l.b16 %v54
  %v253 = vunpack.c.h.b16 %v54
  %v254 = vunpack.c.l.b16 %v55
  %v255 = vunpack.c.h.b16 %v55
  %v256 = vunpack.c.l.b16 %v56
  %v257 = vunpack.c.h.b16 %v56
  %v258 = vunpack.c.l.b16 %v57
  %v259 = vunpack.c.h.b16 %v57
  %v260 = vunpack.c.l.b16 %v58
  %v261 = vunpack.c.h.b16 %v58
  %v262 = vunpack.c.l.b16 %v59
  %v263 = vunpack.c.h.b16 %v59
  %v264 = vunpack.c.l.b16 %v60
  %v265 = vunpack.c.h.b16 %v60
  %v266 = vunpack.c.l.b16 %v61
  %v267 = vunpack.c.h.b16 %v61
  %v268 = vunpack.c.l.b16 %v62
  %v269 = vunpack.c.h.b16 %v62
  %v270 = vunpack.c.l.b16 %v63
  %v271 = vunpack.c.h.b16 %v63
  %v272 = vunpack.c.l.b16 %v64
  %v273 = vunpack.c.h.b16 %v64
  %v274 = vunpack.c.l.b16 %v65
  %v275 = vunpack.c.h.b16 %v65
  %v276 = vunpack.c.l.b16 %v66
  %v277 = vunpack.c.h.b16 %v66
  %v278 = vunpack.c.l.b16 %v67
  %v279 = vunpack.c.h.b16 %v67
  %v280 = vunpack.c.l.b16 %v68
  %v281 = vunpack.c.h.b16 %v68
  %v282 = vunpack.c.l.b16 %v69
  %v283 = vunpack.c.h.b16 %v69
  %v284 = vunpack.c.l.b16 %v70
  %v285 = vunpack.c.h.b16 %v70
  %v286 = vunpack.c.l.b16 %v71
  %v287 = vunpack.c.h.b16 %v71
  %v288 = vunpack.c.l.b16 %v72
  %v289 = vunpack.c.h.b16 %v72
  %v290 = vunpack.c.l.b16 %v73
  %v291 = vunpack.c.h.b16 %v73
  %v292 = vunpack.c.l.b16 %v74
  %v293 = vunpack.c.h.b16 %v74
  %v294 = vunpack.c.l.b16 %v75
  %v295 = vunpack.c.h.b16 %v75
  %v296 = vunpack.c.l.b16 %v76
  %v297 = vunpack.c.h.b16 %v76
  %v298 = vunpack.c.l.b16 %v77
  %v299 = vunpack.c.h.b16 %v77
  %v300 = vunpack.c.l.b16 %v78
  %v301 = vunpack.c.h.b16 %v78
  %v302 = vunpack.c.l.b16 %v79
  %v303 = vunpack.c.h.b16 %v79
  %v304 = vpack.c.b16 %v180, %v176
  %v305 = vpack.c.b16 %v181, %v177
  %v306 = vpack.c.b16 %v182, %v178
  %v307 = vpack.c.b16 %v183, %v179
  %v308 = vpack.c.b16 %v188, %v184
  %v309 = vpack.c.b16 %v189, %v185
  %v310 = vpack.c.b16 %v190, %v186
  %v311 = vpack.c.b16 %v191, %v187
  %v312 = vpack.c.b16 %v196, %v192
  %v313 = vpack.c.b16 %v197, %v193
  %v314 = vpack.c.b16 %v198, %v194
  %v315 = vpack.c.b16 %v199, %v195
  %v316 = vpack.c.b16 %v204, %v200
  %v317 = vpack.c.b16 %v205, %v201
  %v318 = vpack.c.b16 %v206, %v202
  %v319 = vpack.c.b16 %v207, %v203
  %v320 = vpack.c.b16 %v212, %v208
  %v321 = vpack.c.b16 %v213, %v209
  %v322 = vpack.c.b16 %v214, %v210
  %v323 = vpack.c.b16 %v215, %v211
  %v324 = vpack.c.b16 %v220, %v216
  %v325 = vpack.c.b16 %v221, %v217
  %v326 = vpack.c.b16 %v222, %v218
  %v327 = vpack.c.b16 %v223, %v219
  %v328 = vpack.c.b16 %v228, %v224
  %v329 = vpack.c.b16 %v229, %v225
  %v330 = vpack.c.b16 %v230, %v226
  %v331 = vpack.c.b16 %v231, %v227
  %v332 = vpack.c.b16 %v236, %v232
  %v333 = vpack.c.b16 %v237, %v233
  %v334 = vpack.c.b16 %v238, %v234
  %v335 = vpack.c.b16 %v239, %v235
  %v336 = vpack.c.b16 %v244, %v240
  %v337 = vpack.c.b16 %v245, %v241
  %v338 = vpack.c.b16 %v246, %v242
  %v339 = vpack.c.b16 %v247, %v243
  %v340 = vpack.c.b16 %v252, %v248
  %v341 = vpack.c.b16 %v253, %v249
  %v342 = vpack.c.b16 %v254, %v250
  %v343 = vpack.c.b16 %v255, %v251
  %v344 = vpack.c.b16 %v260, %v256
  %v345 = vpack.c.b16 %v261, %v257
  %v346 = vpack.c.b16 %v262, %v258
  %v347 = vpack.c.b16 %v263, %v259
  %v348 = vpack.c.b16 %v268, %v264
  %v349 = vpack.c.b16 %v269, %v265
  %v350 = vpack.c.b16 %v270, %v266
  %v351 = vpack.c.b16 %v271, %v267
  %v352 = vpack.c.b16 %v276, %v272
  %v353 = vpack.c.b16 %v277, %v273
  %v354 = vpack.c.b16 %v278, %v274
  %v355 = vpack.c.b16 %v279, %v275
  %v356 = vpack.c.b16 %v284, %v280
  %v357 = vpack.c.b16 %v285, %v281
  %v358 = vpack.c.b16 %v286, %v282
  %v359 = vpack.c.b16 %v287, %v283
  %v360 = vpack.c.b16 %v292, %v288
  %v361 = vpack.c.b16 %v293, %v289
  %v362 = vpack.c.b16 %v294, %v290
  %v363 = vpack.c.b16 %v295, %v291
  %v364 = vpack.c.b16 %v300, %v296
  %v365 = vpack.c.b16 %v301, %v297
  %v366 = vpack.c.b16 %v302, %v298
  %v367 = vpack.c.b16 %v303, %v299
  %432 = vmatprep.subr.bf16.mxu0 %v305
  %433 = vmatpush1.bf16.msra.mxu0 %v304
  %434 = vmatprep.subr.bf16.mxu0 %v309
  %435 = vmatpush1.bf16.msra.mxu0 %v308
  %436 = vmatprep.subr.bf16.mxu0 %v313
  %437 = vmatpush1.bf16.msra.mxu0 %v312
  %438 = vmatprep.subr.bf16.mxu0 %v317
  %439 = vmatpush1.bf16.msra.mxu0 %v316
  %440 = vmatprep.subr.bf16.mxu0 %v321
  %441 = vmatpush1.bf16.msra.mxu0 %v320
  %442 = vmatprep.subr.bf16.mxu0 %v325
  %443 = vmatpush1.bf16.msra.mxu0 %v324
  %444 = vmatprep.subr.bf16.mxu0 %v329
  %445 = vmatpush1.bf16.msra.mxu0 %v328
  %446 = vmatprep.subr.bf16.mxu0 %v333
  %447 = vmatpush1.bf16.msra.mxu0 %v332
  %448 = vmatprep.subr.bf16.mxu0 %v337
  %449 = vmatpush1.bf16.msra.mxu0 %v336
  %450 = vmatprep.subr.bf16.mxu0 %v341
  %451 = vmatpush1.bf16.msra.mxu0 %v340
  %452 = vmatprep.subr.bf16.mxu0 %v345
  %453 = vmatpush1.bf16.msra.mxu0 %v344
  %454 = vmatprep.subr.bf16.mxu0 %v349
  %455 = vmatpush1.bf16.msra.mxu0 %v348
  %456 = vmatprep.subr.bf16.mxu0 %v353
  %457 = vmatpush1.bf16.msra.mxu0 %v352
  %458 = vmatprep.subr.bf16.mxu0 %v357
  %459 = vmatpush1.bf16.msra.mxu0 %v356
  %460 = vmatprep.subr.bf16.mxu0 %v361
  %461 = vmatpush1.bf16.msra.mxu0 %v360
  %462 = vmatprep.subr.bf16.mxu0 %v365
  %463 = vmatpush1.bf16.msra.mxu0 %v364
  %464 = vmatprep.mubr.bf16.mxu0 %v109
  %465 = vmatmul.mubr.bf16.gmra.mrb[0].mxu0 %v108
  %v466 = vpop.f32.mrb[0].mxu0
  %v467 = vadd.f32 %v85, %v466
  %v468 = vpop.f32.mrb[0].mxu0
  %v469 = vadd.f32 %v89, %v468
  %v470 = vpop.f32.mrb[0].mxu0
  %v471 = vadd.f32 %v85, %v470
  %v472 = vpop.f32.mrb[0].mxu0
  %v473 = vadd.f32 %v89, %v472
  %474 = vdwg.mxu0
  %475 = vmatprep.subr.bf16.mxu0 %v307
  %476 = vmatpush1.bf16.msra.mxu0 %v306
  %477 = vmatprep.subr.bf16.mxu0 %v311
  %478 = vmatpush1.bf16.msra.mxu0 %v310
  %479 = vmatprep.subr.bf16.mxu0 %v315
  %480 = vmatpush1.bf16.msra.mxu0 %v314
  %481 = vmatprep.subr.bf16.mxu0 %v319
  %482 = vmatpush1.bf16.msra.mxu0 %v318
  %483 = vmatprep.subr.bf16.mxu0 %v323
  %484 = vmatpush1.bf16.msra.mxu0 %v322
  %485 = vmatprep.subr.bf16.mxu0 %v327
  %486 = vmatpush1.bf16.msra.mxu0 %v326
  %487 = vmatprep.subr.bf16.mxu0 %v331
  %488 = vmatpush1.bf16.msra.mxu0 %v330
  %489 = vmatprep.subr.bf16.mxu0 %v335
  %490 = vmatpush1.bf16.msra.mxu0 %v334
  %491 = vmatprep.subr.bf16.mxu0 %v339
  %492 = vmatpush1.bf16.msra.mxu0 %v338
  %493 = vmatprep.subr.bf16.mxu0 %v343
  %494 = vmatpush1.bf16.msra.mxu0 %v342
  %495 = vmatprep.subr.bf16.mxu0 %v347
  %496 = vmatpush1.bf16.msra.mxu0 %v346
  %497 = vmatprep.subr.bf16.mxu0 %v351
  %498 = vmatpush1.bf16.msra.mxu0 %v350
  %499 = vmatprep.subr.bf16.mxu0 %v355
  %500 = vmatpush1.bf16.msra.mxu0 %v354
  %501 = vmatprep.subr.bf16.mxu0 %v359
  %502 = vmatpush1.bf16.msra.mxu0 %v358
  %503 = vmatprep.subr.bf16.mxu0 %v363
  %504 = vmatpush1.bf16.msra.mxu0 %v362
  %505 = vmatprep.subr.bf16.mxu0 %v367
  %506 = vmatpush1.bf16.msra.mxu0 %v366
  %507 = vmatprep.mubr.bf16.mxu0 %v109
  %508 = vmatmul.mubr.bf16.gmra.mrb[0].mxu0 %v108
  %v509 = vpop.f32.mrb[0].mxu0
  %v510 = vadd.f32 %v93, %v509
  %v511 = vpop.f32.mrb[0].mxu0
  %v512 = vadd.f32 %v97, %v511
  %v513 = vpop.f32.mrb[0].mxu0
  %v514 = vadd.f32 %v93, %v513
  %v515 = vpop.f32.mrb[0].mxu0
  %v516 = vadd.f32 %v97, %v515
  %517 = vdwg.mxu0
  %v518 = vmax.f32 %v467, 0.0
  %v519 = vmax.f32 %v469, 0.0
  %v520 = vmax.f32 %v510, 0.0
  %v521 = vmax.f32 %v512, 0.0
  %v522 = vmax.f32 %v471, 0.0
  %v523 = vmax.f32 %v473, 0.0
  %v524 = vmax.f32 %v514, 0.0
  %v525 = vmax.f32 %v516, 0.0
  %v526 = vpack.c.bf16 %v522, %v518
  %v527 = vpack.c.bf16 %v523, %v519
  %v528 = vpack.c.bf16 %v524, %v520
  %v529 = vpack.c.bf16 %v525, %v521
  %v534 = vunpack.c.l.b16 %v526
  %v535 = vunpack.c.l.b16 %v527
  %v536 = vunpack.c.l.b16 %v528
  %v537 = vunpack.c.l.b16 %v529
  %v538 = vunpack.c.h.b16 %v526
  %v539 = vunpack.c.h.b16 %v527
  %v540 = vunpack.c.h.b16 %v528
  %v541 = vunpack.c.h.b16 %v529
  %v542 = vpack.c.b16 %v535, %v534
  %v543 = vpack.c.b16 %v537, %v536
  %v544 = vpack.c.b16 %v539, %v538
  %v545 = vpack.c.b16 %v541, %v540
  %550 = vst [vmem:[%s3] sm:$0xff] %v542
  %551 = vst [vmem:[%s3 + $0x8] sm:$0xff] %v543
  %552 = vst [vmem:[%s3 + $0x10] sm:$0xff] %v544
  %553 = vst [vmem:[%s3 + $0x18] sm:$0xff] %v545
  // Predicated region
  $region14: #{drdnet_forward.36} parent=0 // pred_check
    _
  $region15: #{drdnet_forward.36} parent=0 // pred_check_branch
    %555 = sbr.rel (0) target = $region17
  $region16: #{drdnet_forward.36} parent=0 // pred_region
    _
  $region17: #{drdnet_forward.36} parent=0 // pred_fallthru
    _
  // Predicated region
  $region18: #{drdnet_forward.36} parent=0 // pred_check
    _
  $region19: #{drdnet_forward.36} parent=0 // pred_check_branch
    %557 = sbr.rel (0) target = $region21
  $region20: #{drdnet_forward.36} parent=0 // pred_region
    _
  $region21: #{drdnet_forward.36} parent=0 // pred_fallthru
    _

// kernel: drdnet_forward.37
$region0: #{drdnet_forward.37}
  #allocation0 [shape = 'u32[]', space=smem, size = 0x4, offset = 0x4, fixed_abs, tag = 'smem constant byte address 0x4 - core index']
  #allocation1 [shape = 'u32[144,128]{1,0:T(1,128)}', space=vmem, size = 0x12000, scoped, tag = 'internal scratch']
  %s0 = inlined_call_operand.vmem [shape: bf16[16,512], index: 0, kind: input, shape index: {}]
  %s1 = inlined_call_operand.vmem [shape: f32[1,512], index: 1, kind: input, shape index: {}]
  %s2 = inlined_call_operand.vmem [shape: f32[1,512], index: 2, kind: input, shape index: {}]
  %s3 = inlined_call_operand.vmem [shape: bf16[16,512], index: 3, kind: output, shape index: {}]
  %s4 = sld [smem:[#allocation0]]
  $region22: #{drdnet_forward.37} parent=0
    _
  %s6 = ssub.s32 1, %s4
  %s7 = scalar_select 0, %s6, %s4
  // Predicated region
  $region2: #{drdnet_forward.37} parent=0 // pred_check
    _
  $region3: #{drdnet_forward.37} parent=0 // pred_check_branch
    %9 = sbr.rel (0) target = $region5
  $region4: #{drdnet_forward.37} parent=0 // pred_region
    _
  $region5: #{drdnet_forward.37} parent=0 // pred_fallthru
    _
  // Predicated region
  $region6: #{drdnet_forward.37} parent=0 // pred_check
    _
  $region7: #{drdnet_forward.37} parent=0 // pred_check_branch
    %11 = sbr.rel (0) target = $region9
  $region8: #{drdnet_forward.37} parent=0 // pred_region
    _
  $region9: #{drdnet_forward.37} parent=0 // pred_fallthru
    _
  // Predicated region
  $region10: #{drdnet_forward.37} parent=0 // pred_check
    _
  $region11: #{drdnet_forward.37} parent=0 // pred_check_branch
    %13 = sbr.rel (0) target = $region13
  $region12: #{drdnet_forward.37} parent=0 // pred_region
    _
  $region13: #{drdnet_forward.37} parent=0 // pred_fallthru
    _
  %v14 = vld [vmem:[%s0] sm:$0xff]
  %v15 = vld [vmem:[%s0 + $0x8] sm:$0xff]
  %v16 = vld [vmem:[%s0 + $0x10] sm:$0xff]
  %v17 = vld [vmem:[%s0 + $0x18] sm:$0xff]
  %v18 = vunpack.c.l.bf16 %v14
  %v19 = vunpack.c.h.bf16 %v14
  %v20 = vunpack.c.l.bf16 %v15
  %v21 = vunpack.c.h.bf16 %v15
  %v22 = vunpack.c.l.bf16 %v16
  %v23 = vunpack.c.h.bf16 %v16
  %v24 = vunpack.c.l.bf16 %v17
  %v25 = vunpack.c.h.bf16 %v17
  %v26 = vlaneseq
  %v27 = vshrl.u32 %v26, 7
  %v28 = vadd.s32 %v27, 8
  %vm29 = vcmp.lt.s32.totalorder %v27, 2
  %vm30 = vcmp.lt.s32.totalorder %v28, 2
  %v31 = vsel %vm29, 1, 0
  %v32 = vsel %vm30, 1, 0
  %v33 = vcvt.s32.f32 %v31
  %v34 = vcvt.s32.f32 %v32
  %v35 = vadd.f32 %v18, %v22
  %v36 = vrot.slane %v35, 4
  %v37 = vadd.f32 %v35, %v36
  %v38 = vrot.slane %v37, 2
  %v39 = vadd.f32 %v37, %v38
  %v40 = vrot.slane %v39, 1
  %v41 = vadd.f32 %v39, %v40
  %v42 = vadd.f32 %v19, %v23
  %v43 = vrot.slane %v42, 4
  %v44 = vadd.f32 %v42, %v43
  %v45 = vrot.slane %v44, 2
  %v46 = vadd.f32 %v44, %v45
  %v47 = vrot.slane %v46, 1
  %v48 = vadd.f32 %v46, %v47
  %v49 = vadd.f32 %v20, %v24
  %v50 = vrot.slane %v49, 4
  %v51 = vadd.f32 %v49, %v50
  %v52 = vrot.slane %v51, 2
  %v53 = vadd.f32 %v51, %v52
  %v54 = vrot.slane %v53, 1
  %v55 = vadd.f32 %v53, %v54
  %v56 = vadd.f32 %v21, %v25
  %v57 = vrot.slane %v56, 4
  %v58 = vadd.f32 %v56, %v57
  %v59 = vrot.slane %v58, 2
  %v60 = vadd.f32 %v58, %v59
  %v61 = vrot.slane %v60, 1
  %v62 = vadd.f32 %v60, %v61
  %v63 = vmul.f32 %v41, 0.5
  %v64 = vmul.f32 %v48, 0.5
  %v65 = vmul.f32 %v55, 0.5
  %v66 = vmul.f32 %v62, 0.5
  %v67 = vsub.f32 %v18, %v63
  %v68 = vsub.f32 %v19, %v64
  %v69 = vsub.f32 %v20, %v65
  %v70 = vsub.f32 %v21, %v66
  %v71 = vsub.f32 %v22, %v63
  %v72 = vsub.f32 %v23, %v64
  %v73 = vsub.f32 %v24, %v65
  %v74 = vsub.f32 %v25, %v66
  %v75 = vmul.f32 %v67, %v33
  %v76 = vmul.f32 %v68, %v33
  %v77 = vmul.f32 %v69, %v33
  %v78 = vmul.f32 %v70, %v33
  %v79 = vmul.f32 %v71, %v34
  %v80 = vmul.f32 %v72, %v34
  %v81 = vmul.f32 %v73, %v34
  %v82 = vmul.f32 %v74, %v34
  %v83 = vmul.f32 %v75, %v75
  %v84 = vmul.f32 %v76, %v76
  %v85 = vmul.f32 %v77, %v77
  %v86 = vmul.f32 %v78, %v78
  %v87 = vmul.f32 %v79, %v79
  %v88 = vmul.f32 %v80, %v80
  %v89 = vmul.f32 %v81, %v81
  %v90 = vmul.f32 %v82, %v82
  %v91 = vadd.f32 %v83, %v87
  %v92 = vrot.slane %v91, 4
  %v93 = vadd.f32 %v91, %v92
  %v94 = vrot.slane %v93, 2
  %v95 = vadd.f32 %v93, %v94
  %v96 = vrot.slane %v95, 1
  %v97 = vadd.f32 %v95, %v96
  %v98 = vadd.f32 %v84, %v88
  %v99 = vrot.slane %v98, 4
  %v100 = vadd.f32 %v98, %v99
  %v101 = vrot.slane %v100, 2
  %v102 = vadd.f32 %v100, %v101
  %v103 = vrot.slane %v102, 1
  %v104 = vadd.f32 %v102, %v103
  %v105 = vadd.f32 %v85, %v89
  %v106 = vrot.slane %v105, 4
  %v107 = vadd.f32 %v105, %v106
  %v108 = vrot.slane %v107, 2
  %v109 = vadd.f32 %v107, %v108
  %v110 = vrot.slane %v109, 1
  %v111 = vadd.f32 %v109, %v110
  %v112 = vadd.f32 %v86, %v90
  %v113 = vrot.slane %v112, 4
  %v114 = vadd.f32 %v112, %v113
  %v115 = vrot.slane %v114, 2
  %v116 = vadd.f32 %v114, %v115
  %v117 = vrot.slane %v116, 1
  %v118 = vadd.f32 %v116, %v117
  %v119 = vmul.f32 %v97, 0.5
  %v120 = vmul.f32 %v104, 0.5
  %v121 = vmul.f32 %v111, 0.5
  %v122 = vmul.f32 %v118, 0.5
  %v123 = vld [vmem:[%s1] sm:$0xf]
  %v124 = vadd.f32 %v119, 1e-05
  %v125 = vadd.f32 %v120, 1e-05
  %v126 = vadd.f32 %v121, 1e-05
  %v127 = vadd.f32 %v122, 1e-05
  %v128 = vrsqrt.pop %v124
  %v129 = vrsqrt.pop %v125
  %v130 = vrsqrt.pop %v126
  %v131 = vrsqrt.pop %v127
  %v136 = vcombine.low %v128, %v129
  %v137 = vcombine.low %v130, %v131
  %v139 = vunpack.c.l.s4 1966171168
  %v140 = vunpack.c.0.s8 %v139
  %v141 = vlaneseq
  %v142 = vshrl.u32 %v141, 7
  %v143 = vsub.s32 %v140, %v142
  %v144 = vrot.slane %v136, %v143
  %v146 = vunpack.c.l.s4 1966171168
  %v147 = vunpack.c.0.s8 %v146
  %v148 = vlaneseq
  %v149 = vshrl.u32 %v148, 7
  %v150 = vsub.s32 %v147, %v149
  %v151 = vrot.slane %v137, %v150
  %v152 = vcombine.low %v144, %v151
  %v154 = vunpack.c.l.s4 1966171168
  %v155 = vunpack.c.0.s8 %v154
  %v156 = vlaneseq
  %v157 = vshrl.u32 %v156, 7
  %v158 = vsub.s32 %v155, %v157
  %v159 = vrot.slane %v152, %v158
  %v161 = vmul.f32 %v123, %v159
  %v162 = vld [vmem:[%s2] sm:$0xf]
  %v164 = vlaneseq
  %v165 = vshrl.u32 %v164, 7
  %v166 = vsub.s32 0, %v165
  %v167 = vrot.slane %v161, %v166
  %v168 = vlaneseq
  %v169 = vshrl.u32 %v168, 7
  %v170 = vsub.s32 1, %v169
  %v171 = vrot.slane %v161, %v170
  %v172 = vlaneseq
  %v173 = vshrl.u32 %v172, 7
  %v174 = vsub.s32 2, %v173
  %v175 = vrot.slane %v161, %v174
  %v176 = vlaneseq
  %v177 = vshrl.u32 %v176, 7
  %v178 = vsub.s32 3, %v177
  %v179 = vrot.slane %v161, %v178
  %v184 = vmul.f32 %v63, %v167
  %v185 = vmul.f32 %v64, %v171
  %v186 = vmul.f32 %v65, %v175
  %v187 = vmul.f32 %v66, %v179
  %v192 = vcombine.low %v184, %v185
  %v193 = vcombine.low %v186, %v187
  %v195 = vunpack.c.l.s4 1966171168
  %v196 = vunpack.c.0.s8 %v195
  %v197 = vlaneseq
  %v198 = vshrl.u32 %v197, 7
  %v199 = vsub.s32 %v196, %v198
  %v200 = vrot.slane %v192, %v199
  %v202 = vunpack.c.l.s4 1966171168
  %v203 = vunpack.c.0.s8 %v202
  %v204 = vlaneseq
  %v205 = vshrl.u32 %v204, 7
  %v206 = vsub.s32 %v203, %v205
  %v207 = vrot.slane %v193, %v206
  %v208 = vcombine.low %v200, %v207
  %v210 = vunpack.c.l.s4 1966171168
  %v211 = vunpack.c.0.s8 %v210
  %v212 = vlaneseq
  %v213 = vshrl.u32 %v212, 7
  %v214 = vsub.s32 %v211, %v213
  %v215 = vrot.slane %v208, %v214
  %v217 = vsub.f32 %v162, %v215
  %v218 = vmul.f32 %v18, %v167
  %v219 = vmul.f32 %v19, %v171
  %v220 = vmul.f32 %v20, %v175
  %v221 = vmul.f32 %v21, %v179
  %v222 = vmul.f32 %v22, %v167
  %v223 = vmul.f32 %v23, %v171
  %v224 = vmul.f32 %v24, %v175
  %v225 = vmul.f32 %v25, %v179
  %v227 = vlaneseq
  %v228 = vshrl.u32 %v227, 7
  %v229 = vsub.s32 0, %v228
  %v230 = vrot.slane %v217, %v229
  %v231 = vlaneseq
  %v232 = vshrl.u32 %v231, 7
  %v233 = vsub.s32 1, %v232
  %v234 = vrot.slane %v217, %v233
  %v235 = vlaneseq
  %v236 = vshrl.u32 %v235, 7
  %v237 = vsub.s32 2, %v236
  %v238 = vrot.slane %v217, %v237
  %v239 = vlaneseq
  %v240 = vshrl.u32 %v239, 7
  %v241 = vsub.s32 3, %v240
  %v242 = vrot.slane %v217, %v241
  %v247 = vadd.f32 %v218, %v230
  %v248 = vadd.f32 %v219, %v234
  %v249 = vadd.f32 %v220, %v238
  %v250 = vadd.f32 %v221, %v242
  %v251 = vadd.f32 %v222, %v230
  %v252 = vadd.f32 %v223, %v234
  %v253 = vadd.f32 %v224, %v238
  %v254 = vadd.f32 %v225, %v242
  %v255 = vpack.c.bf16 %v251, %v247
  %v256 = vpack.c.bf16 %v252, %v248
  %v257 = vpack.c.bf16 %v253, %v249
  %v258 = vpack.c.bf16 %v254, %v250
  %v263 = vunpack.c.l.b16 %v255
  %v264 = vunpack.c.l.b16 %v256
  %v265 = vunpack.c.l.b16 %v257
  %v266 = vunpack.c.l.b16 %v258
  %v267 = vunpack.c.h.b16 %v255
  %v268 = vunpack.c.h.b16 %v256
  %v269 = vunpack.c.h.b16 %v257
  %v270 = vunpack.c.h.b16 %v258
  %v271 = vpack.c.b16 %v264, %v263
  %v272 = vpack.c.b16 %v266, %v265
  %v273 = vpack.c.b16 %v268, %v267
  %v274 = vpack.c.b16 %v270, %v269
  %279 = vst [vmem:[%s3] sm:$0xff] %v271
  %280 = vst [vmem:[%s3 + $0x8] sm:$0xff] %v272
  %281 = vst [vmem:[%s3 + $0x10] sm:$0xff] %v273
  %282 = vst [vmem:[%s3 + $0x18] sm:$0xff] %v274
  // Predicated region
  $region14: #{drdnet_forward.37} parent=0 // pred_check
    _
  $region15: #{drdnet_forward.37} parent=0 // pred_check_branch
    %284 = sbr.rel (0) target = $region17
  $region16: #{drdnet_forward.37} parent=0 // pred_region
    _
  $region17: #{drdnet_forward.37} parent=0 // pred_fallthru
    _
  // Predicated region
  $region18: #{drdnet_forward.37} parent=0 // pred_check
    _
  $region19: #{drdnet_forward.37} parent=0 // pred_check_branch
    %286 = sbr.rel (0) target = $region21
  $region20: #{drdnet_forward.37} parent=0 // pred_region
    _
  $region21: #{drdnet_forward.37} parent=0 // pred_fallthru
    _

// kernel: drdnet_forward.38
$region0: #{drdnet_forward.38}
  #allocation0 [shape = 'u32[]', space=smem, size = 0x4, offset = 0x4, fixed_abs, tag = 'smem constant byte address 0x4 - core index']
  #allocation1 [shape = 'u32[144,128]{1,0:T(1,128)}', space=vmem, size = 0x12000, scoped, tag = 'internal scratch']
  %s0 = inlined_call_operand.vmem [shape: bf16[32,128], index: 0, kind: input, shape index: {}]
  %s1 = inlined_call_operand.vmem [shape: bf16[128,128], index: 1, kind: input, shape index: {}]
  %s2 = inlined_call_operand.vmem [shape: f32[1,128], index: 2, kind: input, shape index: {}]
  %s3 = inlined_call_operand.vmem [shape: bf16[32,128], index: 3, kind: output, shape index: {}]
  %s4 = sld [smem:[#allocation0]]
  $region22: #{drdnet_forward.38} parent=0
    _
  %s6 = ssub.s32 1, %s4
  %s7 = scalar_select 0, %s6, %s4
  // Predicated region
  $region2: #{drdnet_forward.38} parent=0 // pred_check
    _
  $region3: #{drdnet_forward.38} parent=0 // pred_check_branch
    %9 = sbr.rel (0) target = $region5
  $region4: #{drdnet_forward.38} parent=0 // pred_region
    _
  $region5: #{drdnet_forward.38} parent=0 // pred_fallthru
    _
  // Predicated region
  $region6: #{drdnet_forward.38} parent=0 // pred_check
    _
  $region7: #{drdnet_forward.38} parent=0 // pred_check_branch
    %11 = sbr.rel (0) target = $region9
  $region8: #{drdnet_forward.38} parent=0 // pred_region
    _
  $region9: #{drdnet_forward.38} parent=0 // pred_fallthru
    _
  // Predicated region
  $region10: #{drdnet_forward.38} parent=0 // pred_check
    _
  $region11: #{drdnet_forward.38} parent=0 // pred_check_branch
    %13 = sbr.rel (0) target = $region13
  $region12: #{drdnet_forward.38} parent=0 // pred_region
    _
  $region13: #{drdnet_forward.38} parent=0 // pred_fallthru
    _
  %v15 = vld [vmem:[%s0] sm:$0xf]
  %v16 = vld [vmem:[%s0 + $0x4] sm:$0xf]
  %v17 = vld [vmem:[%s0 + $0x8] sm:$0xf]
  %v18 = vld [vmem:[%s0 + $0xc] sm:$0xf]
  %v19 = vld [vmem:[%s1] sm:$0xf]
  %v20 = vld [vmem:[%s1 + $0x4] sm:$0xf]
  %v21 = vld [vmem:[%s1 + $0x8] sm:$0xf]
  %v22 = vld [vmem:[%s1 + $0xc] sm:$0xf]
  %v23 = vld [vmem:[%s1 + $0x10] sm:$0xf]
  %v24 = vld [vmem:[%s1 + $0x14] sm:$0xf]
  %v25 = vld [vmem:[%s1 + $0x18] sm:$0xf]
  %v26 = vld [vmem:[%s1 + $0x1c] sm:$0xf]
  %v27 = vld [vmem:[%s1 + $0x20] sm:$0xf]
  %v28 = vld [vmem:[%s1 + $0x24] sm:$0xf]
  %v29 = vld [vmem:[%s1 + $0x28] sm:$0xf]
  %v30 = vld [vmem:[%s1 + $0x2c] sm:$0xf]
  %v31 = vld [vmem:[%s1 + $0x30] sm:$0xf]
  %v32 = vld [vmem:[%s1 + $0x34] sm:$0xf]
  %v33 = vld [vmem:[%s1 + $0x38] sm:$0xf]
  %v34 = vld [vmem:[%s1 + $0x3c] sm:$0xf]
  %v35 = vld [vmem:[%s2] sm:$0x1]
  %v37 = vlaneseq
  %v38 = vshrl.u32 %v37, 7
  %v39 = vsub.s32 0, %v38
  %v40 = vrot.slane %v35, %v39
  %v46 = vunpack.c.l.b16 %v15
  %v47 = vunpack.c.l.b16 %v16
  %v48 = vunpack.c.l.b16 %v17
  %v49 = vunpack.c.l.b16 %v18
  %v50 = vpack.c.b16 %v47, %v46
  %v51 = vpack.c.b16 %v49, %v48
  %v70 = vunpack.c.l.b16 %v19
  %v71 = vunpack.c.l.b16 %v20
  %v72 = vunpack.c.l.b16 %v21
  %v73 = vunpack.c.l.b16 %v22
  %v74 = vunpack.c.l.b16 %v23
  %v75 = vunpack.c.l.b16 %v24
  %v76 = vunpack.c.l.b16 %v25
  %v77 = vunpack.c.l.b16 %v26
  %v78 = vunpack.c.l.b16 %v27
  %v79 = vunpack.c.l.b16 %v28
  %v80 = vunpack.c.l.b16 %v29
  %v81 = vunpack.c.l.b16 %v30
  %v82 = vunpack.c.l.b16 %v31
  %v83 = vunpack.c.l.b16 %v32
  %v84 = vunpack.c.l.b16 %v33
  %v85 = vunpack.c.l.b16 %v34
  %v86 = vpack.c.b16 %v71, %v70
  %v87 = vpack.c.b16 %v73, %v72
  %v88 = vpack.c.b16 %v75, %v74
  %v89 = vpack.c.b16 %v77, %v76
  %v90 = vpack.c.b16 %v79, %v78
  %v91 = vpack.c.b16 %v81, %v80
  %v92 = vpack.c.b16 %v83, %v82
  %v93 = vpack.c.b16 %v85, %v84
  %102 = vmatprep.subr.bf16.mxu0 0
  %103 = vmatpush1.bf16.msra.mxu0 %v86
  %104 = vmatprep.subr.bf16.mxu0 0
  %105 = vmatpush1.bf16.msra.mxu0 %v87
  %106 = vmatprep.subr.bf16.mxu0 0
  %107 = vmatpush1.bf16.msra.mxu0 %v88
  %108 = vmatprep.subr.bf16.mxu0 0
  %109 = vmatpush1.bf16.msra.mxu0 %v89
  %110 = vmatprep.subr.bf16.mxu0 0
  %111 = vmatpush1.bf16.msra.mxu0 %v90
  %112 = vmatprep.subr.bf16.mxu0 0
  %113 = vmatpush1.bf16.msra.mxu0 %v91
  %114 = vmatprep.subr.bf16.mxu0 0
  %115 = vmatpush1.bf16.msra.mxu0 %v92
  %116 = vmatprep.subr.bf16.mxu0 0
  %117 = vmatpush1.bf16.msra.mxu0 %v93
  %118 = vmatprep.subr.bf16.mxu0 0
  %119 = vmatpush1.bf16.msra.mxu0 0
  %120 = vmatprep.subr.bf16.mxu0 0
  %121 = vmatpush1.bf16.msra.mxu0 0
  %122 = vmatprep.subr.bf16.mxu0 0
  %123 = vmatpush1.bf16.msra.mxu0 0
  %124 = vmatprep.subr.bf16.mxu0 0
  %125 = vmatpush1.bf16.msra.mxu0 0
  %126 = vmatprep.subr.bf16.mxu0 0
  %127 = vmatpush1.bf16.msra.mxu0 0
  %128 = vmatprep.subr.bf16.mxu0 0
  %129 = vmatpush1.bf16.msra.mxu0 0
  %130 = vmatprep.subr.bf16.mxu0 0
  %131 = vmatpush1.bf16.msra.mxu0 0
  %132 = vmatprep.subr.bf16.mxu0 0
  %133 = vmatpush1.bf16.msra.mxu0 0
  %134 = vmatprep.mubr.bf16.mxu0 0
  %135 = vmatmul.mubr.bf16.gmra.mrb[0].mxu0 %v50
  %v136 = vpop.f32.mrb[0].mxu0
  %v137 = vadd.f32 %v40, %v136
  %v138 = vpop.f32.mrb[0].mxu0
  %v139 = vpop.f32.mrb[0].mxu0
  %v140 = vadd.f32 %v40, %v139
  %v141 = vpop.f32.mrb[0].mxu0
  %142 = vmatprep.mubr.bf16.mxu0 0
  %143 = vmatmul.mubr.bf16.gmra.mrb[0].mxu0 %v51
  %v144 = vpop.f32.mrb[0].mxu0
  %v145 = vadd.f32 %v40, %v144
  %v146 = vpop.f32.mrb[0].mxu0
  %v147 = vpop.f32.mrb[0].mxu0
  %v148 = vadd.f32 %v40, %v147
  %v149 = vpop.f32.mrb[0].mxu0
  %150 = vdwg.mxu0
  %v151 = vmax.f32 %v137, 0.0
  %v152 = vmax.f32 %v140, 0.0
  %v153 = vmax.f32 %v145, 0.0
  %v154 = vmax.f32 %v148, 0.0
  %v155 = vpack.c.bf16 %v152, %v151
  %v156 = vpack.c.bf16 %v154, %v153
  %v159 = vunpack.c.l.b16 %v155
  %v160 = vunpack.c.h.b16 %v155
  %v161 = vunpack.c.l.b16 %v156
  %v162 = vunpack.c.h.b16 %v156
  %v163 = vpack.c.b16 %v159, %v159
  %v164 = vpack.c.b16 %v160, %v160
  %v165 = vpack.c.b16 %v161, %v161
  %v166 = vpack.c.b16 %v162, %v162
  %171 = vst [vmem:[%s3] sm:$0xf] %v163
  %172 = vst [vmem:[%s3 + $0x4] sm:$0xf] %v164
  %173 = vst [vmem:[%s3 + $0x8] sm:$0xf] %v165
  %174 = vst [vmem:[%s3 + $0xc] sm:$0xf] %v166
  // Predicated region
  $region14: #{drdnet_forward.38} parent=0 // pred_check
    _
  $region15: #{drdnet_forward.38} parent=0 // pred_check_branch
    %176 = sbr.rel (0) target = $region17
  $region16: #{drdnet_forward.38} parent=0 // pred_region
    _
  $region17: #{drdnet_forward.38} parent=0 // pred_fallthru
    _
  // Predicated region
  $region18: #{drdnet_forward.38} parent=0 // pred_check
    _
  $region19: #{drdnet_forward.38} parent=0 // pred_check_branch
    %178 = sbr.rel (0) target = $region21
  $region20: #{drdnet_forward.38} parent=0 // pred_region
    _
  $region21: #{drdnet_forward.38} parent=0 // pred_fallthru
    _

// kernel: drdnet_forward.41
$region0: #{drdnet_forward.41}
  #allocation0 [shape = 'u32[]', space=smem, size = 0x4, offset = 0x4, fixed_abs, tag = 'smem constant byte address 0x4 - core index']
  #allocation1 [shape = 'u32[144,128]{1,0:T(1,128)}', space=vmem, size = 0x12000, scoped, tag = 'internal scratch']
  %s0 = inlined_call_operand.vmem [shape: bf16[16,512], index: 0, kind: input, shape index: {}]
  %s1 = inlined_call_operand.vmem [shape: bf16[512,256], index: 1, kind: input, shape index: {}]
  %s2 = inlined_call_operand.vmem [shape: f32[1,256], index: 2, kind: input, shape index: {}]
  %s3 = inlined_call_operand.vmem [shape: bf16[256,128], index: 3, kind: input, shape index: {}]
  %s4 = inlined_call_operand.vmem [shape: f32[1,128], index: 4, kind: input, shape index: {}, may-alias: {4,6,8,10,12,14,16}]
  %s5 = inlined_call_operand.vmem [shape: bf16[128,128], index: 5, kind: input, shape index: {}]
  %s6 = inlined_call_operand.vmem [shape: f32[1,128], index: 6, kind: input, shape index: {}, may-alias: {4,6,8,10,12,14,16}]
  %s7 = inlined_call_operand.vmem [shape: bf16[128,128], index: 7, kind: input, shape index: {}]
  %s8 = inlined_call_operand.vmem [shape: f32[1,128], index: 8, kind: input, shape index: {}, may-alias: {4,6,8,10,12,14,16}]
  %s9 = inlined_call_operand.vmem [shape: bf16[128,128], index: 9, kind: input, shape index: {}]
  %s10 = inlined_call_operand.vmem [shape: f32[1,128], index: 10, kind: input, shape index: {}, may-alias: {4,6,8,10,12,14,16}]
  %s11 = inlined_call_operand.vmem [shape: bf16[128,128], index: 11, kind: input, shape index: {}]
  %s12 = inlined_call_operand.vmem [shape: f32[1,128], index: 12, kind: input, shape index: {}, may-alias: {4,6,8,10,12,14,16}]
  %s13 = inlined_call_operand.vmem [shape: bf16[128,128], index: 13, kind: input, shape index: {}]
  %s14 = inlined_call_operand.vmem [shape: f32[1,128], index: 14, kind: input, shape index: {}, may-alias: {4,6,8,10,12,14,16}]
  %s15 = inlined_call_operand.vmem [shape: bf16[128,128], index: 15, kind: input, shape index: {}]
  %s16 = inlined_call_operand.vmem [shape: f32[1,128], index: 16, kind: input, shape index: {}, may-alias: {4,6,8,10,12,14,16}]
  %s17 = inlined_call_operand.vmem [shape: bf16[16,128], index: 17, kind: output, shape index: {}]
  %s18 = sld [smem:[#allocation0]]
  $region78: #{drdnet_forward.41} parent=0
    _
  %s20 = ssub.s32 1, %s18
  %s21 = scalar_select 0, %s20, %s18
  // Predicated region
  $region2: #{drdnet_forward.41} parent=0 // pred_check
    _
  $region3: #{drdnet_forward.41} parent=0 // pred_check_branch
    %23 = sbr.rel (0) target = $region5
  $region4: #{drdnet_forward.41} parent=0 // pred_region
    _
  $region5: #{drdnet_forward.41} parent=0 // pred_fallthru
    _
  // Predicated region
  $region6: #{drdnet_forward.41} parent=0 // pred_check
    _
  $region7: #{drdnet_forward.41} parent=0 // pred_check_branch
    %25 = sbr.rel (0) target = $region9
  $region8: #{drdnet_forward.41} parent=0 // pred_region
    _
  $region9: #{drdnet_forward.41} parent=0 // pred_fallthru
    _
  // Predicated region
  $region10: #{drdnet_forward.41} parent=0 // pred_check
    _
  $region11: #{drdnet_forward.41} parent=0 // pred_check_branch
    %27 = sbr.rel (0) target = $region13
  $region12: #{drdnet_forward.41} parent=0 // pred_region
    _
  $region13: #{drdnet_forward.41} parent=0 // pred_fallthru
    _
  // Predicated region
  $region14: #{drdnet_forward.41} parent=0 // pred_check
    _
  $region15: #{drdnet_forward.41} parent=0 // pred_check_branch
    %29 = sbr.rel (0) target = $region17
  $region16: #{drdnet_forward.41} parent=0 // pred_region
    _
  $region17: #{drdnet_forward.41} parent=0 // pred_fallthru
    _
  // Predicated region
  $region18: #{drdnet_forward.41} parent=0 // pred_check
    _
  $region19: #{drdnet_forward.41} parent=0 // pred_check_branch
    %31 = sbr.rel (0) target = $region21
  $region20: #{drdnet_forward.41} parent=0 // pred_region
    _
  $region21: #{drdnet_forward.41} parent=0 // pred_fallthru
    _
  // Predicated region
  $region22: #{drdnet_forward.41} parent=0 // pred_check
    _
  $region23: #{drdnet_forward.41} parent=0 // pred_check_branch
    %33 = sbr.rel (0) target = $region25
  $region24: #{drdnet_forward.41} parent=0 // pred_region
    _
  $region25: #{drdnet_forward.41} parent=0 // pred_fallthru
    _
  // Predicated region
  $region26: #{drdnet_forward.41} parent=0 // pred_check
    _
  $region27: #{drdnet_forward.41} parent=0 // pred_check_branch
    %35 = sbr.rel (0) target = $region29
  $region28: #{drdnet_forward.41} parent=0 // pred_region
    _
  $region29: #{drdnet_forward.41} parent=0 // pred_fallthru
    _
  // Predicated region
  $region30: #{drdnet_forward.41} parent=0 // pred_check
    _
  $region31: #{drdnet_forward.41} parent=0 // pred_check_branch
    %37 = sbr.rel (0) target = $region33
  $region32: #{drdnet_forward.41} parent=0 // pred_region
    _
  $region33: #{drdnet_forward.41} parent=0 // pred_fallthru
    _
  // Predicated region
  $region34: #{drdnet_forward.41} parent=0 // pred_check
    _
  $region35: #{drdnet_forward.41} parent=0 // pred_check_branch
    %39 = sbr.rel (0) target = $region37
  $region36: #{drdnet_forward.41} parent=0 // pred_region
    _
  $region37: #{drdnet_forward.41} parent=0 // pred_fallthru
    _
  // Predicated region
  $region38: #{drdnet_forward.41} parent=0 // pred_check
    _
  $region39: #{drdnet_forward.41} parent=0 // pred_check_branch
    %41 = sbr.rel (0) target = $region41
  $region40: #{drdnet_forward.41} parent=0 // pred_region
    _
  $region41: #{drdnet_forward.41} parent=0 // pred_fallthru
    _
  // Predicated region
  $region42: #{drdnet_forward.41} parent=0 // pred_check
    _
  $region43: #{drdnet_forward.41} parent=0 // pred_check_branch
    %43 = sbr.rel (0) target = $region45
  $region44: #{drdnet_forward.41} parent=0 // pred_region
    _
  $region45: #{drdnet_forward.41} parent=0 // pred_fallthru
    _
  // Predicated region
  $region46: #{drdnet_forward.41} parent=0 // pred_check
    _
  $region47: #{drdnet_forward.41} parent=0 // pred_check_branch
    %45 = sbr.rel (0) target = $region49
  $region48: #{drdnet_forward.41} parent=0 // pred_region
    _
  $region49: #{drdnet_forward.41} parent=0 // pred_fallthru
    _
  // Predicated region
  $region50: #{drdnet_forward.41} parent=0 // pred_check
    _
  $region51: #{drdnet_forward.41} parent=0 // pred_check_branch
    %47 = sbr.rel (0) target = $region53
  $region52: #{drdnet_forward.41} parent=0 // pred_region
    _
  $region53: #{drdnet_forward.41} parent=0 // pred_fallthru
    _
  // Predicated region
  $region54: #{drdnet_forward.41} parent=0 // pred_check
    _
  $region55: #{drdnet_forward.41} parent=0 // pred_check_branch
    %49 = sbr.rel (0) target = $region57
  $region56: #{drdnet_forward.41} parent=0 // pred_region
    _
  $region57: #{drdnet_forward.41} parent=0 // pred_fallthru
    _
  // Predicated region
  $region58: #{drdnet_forward.41} parent=0 // pred_check
    _
  $region59: #{drdnet_forward.41} parent=0 // pred_check_branch
    %51 = sbr.rel (0) target = $region61
  $region60: #{drdnet_forward.41} parent=0 // pred_region
    _
  $region61: #{drdnet_forward.41} parent=0 // pred_fallthru
    _
  // Predicated region
  $region62: #{drdnet_forward.41} parent=0 // pred_check
    _
  $region63: #{drdnet_forward.41} parent=0 // pred_check_branch
    %53 = sbr.rel (0) target = $region65
  $region64: #{drdnet_forward.41} parent=0 // pred_region
    _
  $region65: #{drdnet_forward.41} parent=0 // pred_fallthru
    _
  // Predicated region
  $region66: #{drdnet_forward.41} parent=0 // pred_check
    _
  $region67: #{drdnet_forward.41} parent=0 // pred_check_branch
    %55 = sbr.rel (0) target = $region69
  $region68: #{drdnet_forward.41} parent=0 // pred_region
    _
  $region69: #{drdnet_forward.41} parent=0 // pred_fallthru
    _
  %v57 = vld [vmem:[%s0] sm:$0xff]
  %v58 = vld [vmem:[%s0 + $0x8] sm:$0xff]
  %v59 = vld [vmem:[%s0 + $0x10] sm:$0xff]
  %v60 = vld [vmem:[%s0 + $0x18] sm:$0xff]
  %v61 = vld [vmem:[%s1] sm:$0xff]
  %v62 = vld [vmem:[%s1 + $0x8] sm:$0xff]
  %v63 = vld [vmem:[%s1 + $0x10] sm:$0xff]
  %v64 = vld [vmem:[%s1 + $0x18] sm:$0xff]
  %v65 = vld [vmem:[%s1 + $0x20] sm:$0xff]
  %v66 = vld [vmem:[%s1 + $0x28] sm:$0xff]
  %v67 = vld [vmem:[%s1 + $0x30] sm:$0xff]
  %v68 = vld [vmem:[%s1 + $0x38] sm:$0xff]
  %v69 = vld [vmem:[%s1 + $0x40] sm:$0xff]
  %v70 = vld [vmem:[%s1 + $0x48] sm:$0xff]
  %v71 = vld [vmem:[%s1 + $0x50] sm:$0xff]
  %v72 = vld [vmem:[%s1 + $0x58] sm:$0xff]
  %v73 = vld [vmem:[%s1 + $0x60] sm:$0xff]
  %v74 = vld [vmem:[%s1 + $0x68] sm:$0xff]
  %v75 = vld [vmem:[%s1 + $0x70] sm:$0xff]
  %v76 = vld [vmem:[%s1 + $0x78] sm:$0xff]
  %v77 = vld [vmem:[%s1 + $0x80] sm:$0xff]
  %v78 = vld [vmem:[%s1 + $0x88] sm:$0xff]
  %v79 = vld [vmem:[%s1 + $0x90] sm:$0xff]
  %v80 = vld [vmem:[%s1 + $0x98] sm:$0xff]
  %v81 = vld [vmem:[%s1 + $0xa0] sm:$0xff]
  %v82 = vld [vmem:[%s1 + $0xa8] sm:$0xff]
  %v83 = vld [vmem:[%s1 + $0xb0] sm:$0xff]
  %v84 = vld [vmem:[%s1 + $0xb8] sm:$0xff]
  %v85 = vld [vmem:[%s1 + $0xc0] sm:$0xff]
  %v86 = vld [vmem:[%s1 + $0xc8] sm:$0xff]
  %v87 = vld [vmem:[%s1 + $0xd0] sm:$0xff]
  %v88 = vld [vmem:[%s1 + $0xd8] sm:$0xff]
  %v89 = vld [vmem:[%s1 + $0xe0] sm:$0xff]
  %v90 = vld [vmem:[%s1 + $0xe8] sm:$0xff]
  %v91 = vld [vmem:[%s1 + $0xf0] sm:$0xff]
  %v92 = vld [vmem:[%s1 + $0xf8] sm:$0xff]
  %v93 = vld [vmem:[%s1 + $0x100] sm:$0xff]
  %v94 = vld [vmem:[%s1 + $0x108] sm:$0xff]
  %v95 = vld [vmem:[%s1 + $0x110] sm:$0xff]
  %v96 = vld [vmem:[%s1 + $0x118] sm:$0xff]
  %v97 = vld [vmem:[%s1 + $0x120] sm:$0xff]
  %v98 = vld [vmem:[%s1 + $0x128] sm:$0xff]
  %v99 = vld [vmem:[%s1 + $0x130] sm:$0xff]
  %v100 = vld [vmem:[%s1 + $0x138] sm:$0xff]
  %v101 = vld [vmem:[%s1 + $0x140] sm:$0xff]
  %v102 = vld [vmem:[%s1 + $0x148] sm:$0xff]
  %v103 = vld [vmem:[%s1 + $0x150] sm:$0xff]
  %v104 = vld [vmem:[%s1 + $0x158] sm:$0xff]
  %v105 = vld [vmem:[%s1 + $0x160] sm:$0xff]
  %v106 = vld [vmem:[%s1 + $0x168] sm:$0xff]
  %v107 = vld [vmem:[%s1 + $0x170] sm:$0xff]
  %v108 = vld [vmem:[%s1 + $0x178] sm:$0xff]
  %v109 = vld [vmem:[%s1 + $0x180] sm:$0xff]
  %v110 = vld [vmem:[%s1 + $0x188] sm:$0xff]
  %v111 = vld [vmem:[%s1 + $0x190] sm:$0xff]
  %v112 = vld [vmem:[%s1 + $0x198] sm:$0xff]
  %v113 = vld [vmem:[%s1 + $0x1a0] sm:$0xff]
  %v114 = vld [vmem:[%s1 + $0x1a8] sm:$0xff]
  %v115 = vld [vmem:[%s1 + $0x1b0] sm:$0xff]
  %v116 = vld [vmem:[%s1 + $0x1b8] sm:$0xff]
  %v117 = vld [vmem:[%s1 + $0x1c0] sm:$0xff]
  %v118 = vld [vmem:[%s1 + $0x1c8] sm:$0xff]
  %v119 = vld [vmem:[%s1 + $0x1d0] sm:$0xff]
  %v120 = vld [vmem:[%s1 + $0x1d8] sm:$0xff]
  %v121 = vld [vmem:[%s1 + $0x1e0] sm:$0xff]
  %v122 = vld [vmem:[%s1 + $0x1e8] sm:$0xff]
  %v123 = vld [vmem:[%s1 + $0x1f0] sm:$0xff]
  %v124 = vld [vmem:[%s1 + $0x1f8] sm:$0xff]
  %v125 = vld [vmem:[%s2] sm:$0x3]
  %v127 = vlaneseq
  %v128 = vshrl.u32 %v127, 7
  %v129 = vsub.s32 0, %v128
  %v130 = vrot.slane %v125, %v129
  %v131 = vlaneseq
  %v132 = vshrl.u32 %v131, 7
  %v133 = vsub.s32 1, %v132
  %v134 = vrot.slane %v125, %v133
  %v141 = vunpack.c.l.b16 %v57
  %v142 = vunpack.c.h.b16 %v57
  %v143 = vunpack.c.l.b16 %v58
  %v144 = vunpack.c.h.b16 %v58
  %v145 = vunpack.c.l.b16 %v59
  %v146 = vunpack.c.h.b16 %v59
  %v147 = vunpack.c.l.b16 %v60
  %v148 = vunpack.c.h.b16 %v60
  %v149 = vpack.c.b16 %v145, %v141
  %v150 = vpack.c.b16 %v146, %v142
  %v151 = vpack.c.b16 %v147, %v143
  %v152 = vpack.c.b16 %v148, %v144
  %v221 = vunpack.c.l.b16 %v61
  %v222 = vunpack.c.h.b16 %v61
  %v223 = vunpack.c.l.b16 %v62
  %v224 = vunpack.c.h.b16 %v62
  %v225 = vunpack.c.l.b16 %v63
  %v226 = vunpack.c.h.b16 %v63
  %v227 = vunpack.c.l.b16 %v64
  %v228 = vunpack.c.h.b16 %v64
  %v229 = vunpack.c.l.b16 %v65
  %v230 = vunpack.c.h.b16 %v65
  %v231 = vunpack.c.l.b16 %v66
  %v232 = vunpack.c.h.b16 %v66
  %v233 = vunpack.c.l.b16 %v67
  %v234 = vunpack.c.h.b16 %v67
  %v235 = vunpack.c.l.b16 %v68
  %v236 = vunpack.c.h.b16 %v68
  %v237 = vunpack.c.l.b16 %v69
  %v238 = vunpack.c.h.b16 %v69
  %v239 = vunpack.c.l.b16 %v70
  %v240 = vunpack.c.h.b16 %v70
  %v241 = vunpack.c.l.b16 %v71
  %v242 = vunpack.c.h.b16 %v71
  %v243 = vunpack.c.l.b16 %v72
  %v244 = vunpack.c.h.b16 %v72
  %v245 = vunpack.c.l.b16 %v73
  %v246 = vunpack.c.h.b16 %v73
  %v247 = vunpack.c.l.b16 %v74
  %v248 = vunpack.c.h.b16 %v74
  %v249 = vunpack.c.l.b16 %v75
  %v250 = vunpack.c.h.b16 %v75
  %v251 = vunpack.c.l.b16 %v76
  %v252 = vunpack.c.h.b16 %v76
  %v253 = vunpack.c.l.b16 %v77
  %v254 = vunpack.c.h.b16 %v77
  %v255 = vunpack.c.l.b16 %v78
  %v256 = vunpack.c.h.b16 %v78
  %v257 = vunpack.c.l.b16 %v79
  %v258 = vunpack.c.h.b16 %v79
  %v259 = vunpack.c.l.b16 %v80
  %v260 = vunpack.c.h.b16 %v80
  %v261 = vunpack.c.l.b16 %v81
  %v262 = vunpack.c.h.b16 %v81
  %v263 = vunpack.c.l.b16 %v82
  %v264 = vunpack.c.h.b16 %v82
  %v265 = vunpack.c.l.b16 %v83
  %v266 = vunpack.c.h.b16 %v83
  %v267 = vunpack.c.l.b16 %v84
  %v268 = vunpack.c.h.b16 %v84
  %v269 = vunpack.c.l.b16 %v85
  %v270 = vunpack.c.h.b16 %v85
  %v271 = vunpack.c.l.b16 %v86
  %v272 = vunpack.c.h.b16 %v86
  %v273 = vunpack.c.l.b16 %v87
  %v274 = vunpack.c.h.b16 %v87
  %v275 = vunpack.c.l.b16 %v88
  %v276 = vunpack.c.h.b16 %v88
  %v277 = vunpack.c.l.b16 %v89
  %v278 = vunpack.c.h.b16 %v89
  %v279 = vunpack.c.l.b16 %v90
  %v280 = vunpack.c.h.b16 %v90
  %v281 = vunpack.c.l.b16 %v91
  %v282 = vunpack.c.h.b16 %v91
  %v283 = vunpack.c.l.b16 %v92
  %v284 = vunpack.c.h.b16 %v92
  %v285 = vunpack.c.l.b16 %v93
  %v286 = vunpack.c.h.b16 %v93
  %v287 = vunpack.c.l.b16 %v94
  %v288 = vunpack.c.h.b16 %v94
  %v289 = vunpack.c.l.b16 %v95
  %v290 = vunpack.c.h.b16 %v95
  %v291 = vunpack.c.l.b16 %v96
  %v292 = vunpack.c.h.b16 %v96
  %v293 = vunpack.c.l.b16 %v97
  %v294 = vunpack.c.h.b16 %v97
  %v295 = vunpack.c.l.b16 %v98
  %v296 = vunpack.c.h.b16 %v98
  %v297 = vunpack.c.l.b16 %v99
  %v298 = vunpack.c.h.b16 %v99
  %v299 = vunpack.c.l.b16 %v100
  %v300 = vunpack.c.h.b16 %v100
  %v301 = vunpack.c.l.b16 %v101
  %v302 = vunpack.c.h.b16 %v101
  %v303 = vunpack.c.l.b16 %v102
  %v304 = vunpack.c.h.b16 %v102
  %v305 = vunpack.c.l.b16 %v103
  %v306 = vunpack.c.h.b16 %v103
  %v307 = vunpack.c.l.b16 %v104
  %v308 = vunpack.c.h.b16 %v104
  %v309 = vunpack.c.l.b16 %v105
  %v310 = vunpack.c.h.b16 %v105
  %v311 = vunpack.c.l.b16 %v106
  %v312 = vunpack.c.h.b16 %v106
  %v313 = vunpack.c.l.b16 %v107
  %v314 = vunpack.c.h.b16 %v107
  %v315 = vunpack.c.l.b16 %v108
  %v316 = vunpack.c.h.b16 %v108
  %v317 = vunpack.c.l.b16 %v109
  %v318 = vunpack.c.h.b16 %v109
  %v319 = vunpack.c.l.b16 %v110
  %v320 = vunpack.c.h.b16 %v110
  %v321 = vunpack.c.l.b16 %v111
  %v322 = vunpack.c.h.b16 %v111
  %v323 = vunpack.c.l.b16 %v112
  %v324 = vunpack.c.h.b16 %v112
  %v325 = vunpack.c.l.b16 %v113
  %v326 = vunpack.c.h.b16 %v113
  %v327 = vunpack.c.l.b16 %v114
  %v328 = vunpack.c.h.b16 %v114
  %v329 = vunpack.c.l.b16 %v115
  %v330 = vunpack.c.h.b16 %v115
  %v331 = vunpack.c.l.b16 %v116
  %v332 = vunpack.c.h.b16 %v116
  %v333 = vunpack.c.l.b16 %v117
  %v334 = vunpack.c.h.b16 %v117
  %v335 = vunpack.c.l.b16 %v118
  %v336 = vunpack.c.h.b16 %v118
  %v337 = vunpack.c.l.b16 %v119
  %v338 = vunpack.c.h.b16 %v119
  %v339 = vunpack.c.l.b16 %v120
  %v340 = vunpack.c.h.b16 %v120
  %v341 = vunpack.c.l.b16 %v121
  %v342 = vunpack.c.h.b16 %v121
  %v343 = vunpack.c.l.b16 %v122
  %v344 = vunpack.c.h.b16 %v122
  %v345 = vunpack.c.l.b16 %v123
  %v346 = vunpack.c.h.b16 %v123
  %v347 = vunpack.c.l.b16 %v124
  %v348 = vunpack.c.h.b16 %v124
  %v349 = vpack.c.b16 %v223, %v221
  %v350 = vpack.c.b16 %v224, %v222
  %v351 = vpack.c.b16 %v227, %v225
  %v352 = vpack.c.b16 %v228, %v226
  %v353 = vpack.c.b16 %v231, %v229
  %v354 = vpack.c.b16 %v232, %v230
  %v355 = vpack.c.b16 %v235, %v233
  %v356 = vpack.c.b16 %v236, %v234
  %v357 = vpack.c.b16 %v239, %v237
  %v358 = vpack.c.b16 %v240, %v238
  %v359 = vpack.c.b16 %v243, %v241
  %v360 = vpack.c.b16 %v244, %v242
  %v361 = vpack.c.b16 %v247, %v245
  %v362 = vpack.c.b16 %v248, %v246
  %v363 = vpack.c.b16 %v251, %v249
  %v364 = vpack.c.b16 %v252, %v250
  %v365 = vpack.c.b16 %v255, %v253
  %v366 = vpack.c.b16 %v256, %v254
  %v367 = vpack.c.b16 %v259, %v257
  %v368 = vpack.c.b16 %v260, %v258
  %v369 = vpack.c.b16 %v263, %v261
  %v370 = vpack.c.b16 %v264, %v262
  %v371 = vpack.c.b16 %v267, %v265
  %v372 = vpack.c.b16 %v268, %v266
  %v373 = vpack.c.b16 %v271, %v269
  %v374 = vpack.c.b16 %v272, %v270
  %v375 = vpack.c.b16 %v275, %v273
  %v376 = vpack.c.b16 %v276, %v274
  %v377 = vpack.c.b16 %v279, %v277
  %v378 = vpack.c.b16 %v280, %v278
  %v379 = vpack.c.b16 %v283, %v281
  %v380 = vpack.c.b16 %v284, %v282
  %v381 = vpack.c.b16 %v287, %v285
  %v382 = vpack.c.b16 %v288, %v286
  %v383 = vpack.c.b16 %v291, %v289
  %v384 = vpack.c.b16 %v292, %v290
  %v385 = vpack.c.b16 %v295, %v293
  %v386 = vpack.c.b16 %v296, %v294
  %v387 = vpack.c.b16 %v299, %v297
  %v388 = vpack.c.b16 %v300, %v298
  %v389 = vpack.c.b16 %v303, %v301
  %v390 = vpack.c.b16 %v304, %v302
  %v391 = vpack.c.b16 %v307, %v305
  %v392 = vpack.c.b16 %v308, %v306
  %v393 = vpack.c.b16 %v311, %v309
  %v394 = vpack.c.b16 %v312, %v310
  %v395 = vpack.c.b16 %v315, %v313
  %v396 = vpack.c.b16 %v316, %v314
  %v397 = vpack.c.b16 %v319, %v317
  %v398 = vpack.c.b16 %v320, %v318
  %v399 = vpack.c.b16 %v323, %v321
  %v400 = vpack.c.b16 %v324, %v322
  %v401 = vpack.c.b16 %v327, %v325
  %v402 = vpack.c.b16 %v328, %v326
  %v403 = vpack.c.b16 %v331, %v329
  %v404 = vpack.c.b16 %v332, %v330
  %v405 = vpack.c.b16 %v335, %v333
  %v406 = vpack.c.b16 %v336, %v334
  %v407 = vpack.c.b16 %v339, %v337
  %v408 = vpack.c.b16 %v340, %v338
  %v409 = vpack.c.b16 %v343, %v341
  %v410 = vpack.c.b16 %v344, %v342
  %v411 = vpack.c.b16 %v347, %v345
  %v412 = vpack.c.b16 %v348, %v346
  %477 = vmatprep.subr.bf16.mxu0 %v350
  %478 = vmatpush1.bf16.msra.mxu0 %v349
  %479 = vmatprep.subr.bf16.mxu0 %v352
  %480 = vmatpush1.bf16.msra.mxu0 %v351
  %481 = vmatprep.subr.bf16.mxu0 %v354
  %482 = vmatpush1.bf16.msra.mxu0 %v353
  %483 = vmatprep.subr.bf16.mxu0 %v356
  %484 = vmatpush1.bf16.msra.mxu0 %v355
  %485 = vmatprep.subr.bf16.mxu0 %v358
  %486 = vmatpush1.bf16.msra.mxu0 %v357
  %487 = vmatprep.subr.bf16.mxu0 %v360
  %488 = vmatpush1.bf16.msra.mxu0 %v359
  %489 = vmatprep.subr.bf16.mxu0 %v362
  %490 = vmatpush1.bf16.msra.mxu0 %v361
  %491 = vmatprep.subr.bf16.mxu0 %v364
  %492 = vmatpush1.bf16.msra.mxu0 %v363
  %493 = vmatprep.subr.bf16.mxu0 %v366
  %494 = vmatpush1.bf16.msra.mxu0 %v365
  %495 = vmatprep.subr.bf16.mxu0 %v368
  %496 = vmatpush1.bf16.msra.mxu0 %v367
  %497 = vmatprep.subr.bf16.mxu0 %v370
  %498 = vmatpush1.bf16.msra.mxu0 %v369
  %499 = vmatprep.subr.bf16.mxu0 %v372
  %500 = vmatpush1.bf16.msra.mxu0 %v371
  %501 = vmatprep.subr.bf16.mxu0 %v374
  %502 = vmatpush1.bf16.msra.mxu0 %v373
  %503 = vmatprep.subr.bf16.mxu0 %v376
  %504 = vmatpush1.bf16.msra.mxu0 %v375
  %505 = vmatprep.subr.bf16.mxu0 %v378
  %506 = vmatpush1.bf16.msra.mxu0 %v377
  %507 = vmatprep.subr.bf16.mxu0 %v380
  %508 = vmatpush1.bf16.msra.mxu0 %v379
  %509 = vmatprep.mubr.bf16.mxu0 %v150
  %510 = vmatmul.mubr.bf16.gmra.mrb[0].mxu0 %v149
  %v511 = vpop.f32.mrb[0].mxu0
  %v512 = vadd.f32 %v130, %v511
  %v513 = vpop.f32.mrb[0].mxu0
  %v514 = vadd.f32 %v134, %v513
  %v515 = vpop.f32.mrb[0].mxu0
  %v516 = vadd.f32 %v130, %v515
  %v517 = vpop.f32.mrb[0].mxu0
  %v518 = vadd.f32 %v134, %v517
  %519 = vdwg.mxu0
  %520 = vmatprep.subr.bf16.mxu0 %v382
  %521 = vmatpush1.bf16.msra.mxu0 %v381
  %522 = vmatprep.subr.bf16.mxu0 %v384
  %523 = vmatpush1.bf16.msra.mxu0 %v383
  %524 = vmatprep.subr.bf16.mxu0 %v386
  %525 = vmatpush1.bf16.msra.mxu0 %v385
  %526 = vmatprep.subr.bf16.mxu0 %v388
  %527 = vmatpush1.bf16.msra.mxu0 %v387
  %528 = vmatprep.subr.bf16.mxu0 %v390
  %529 = vmatpush1.bf16.msra.mxu0 %v389
  %530 = vmatprep.subr.bf16.mxu0 %v392
  %531 = vmatpush1.bf16.msra.mxu0 %v391
  %532 = vmatprep.subr.bf16.mxu0 %v394
  %533 = vmatpush1.bf16.msra.mxu0 %v393
  %534 = vmatprep.subr.bf16.mxu0 %v396
  %535 = vmatpush1.bf16.msra.mxu0 %v395
  %536 = vmatprep.subr.bf16.mxu0 %v398
  %537 = vmatpush1.bf16.msra.mxu0 %v397
  %538 = vmatprep.subr.bf16.mxu0 %v400
  %539 = vmatpush1.bf16.msra.mxu0 %v399
  %540 = vmatprep.subr.bf16.mxu0 %v402
  %541 = vmatpush1.bf16.msra.mxu0 %v401
  %542 = vmatprep.subr.bf16.mxu0 %v404
  %543 = vmatpush1.bf16.msra.mxu0 %v403
  %544 = vmatprep.subr.bf16.mxu0 %v406
  %545 = vmatpush1.bf16.msra.mxu0 %v405
  %546 = vmatprep.subr.bf16.mxu0 %v408
  %547 = vmatpush1.bf16.msra.mxu0 %v407
  %548 = vmatprep.subr.bf16.mxu0 %v410
  %549 = vmatpush1.bf16.msra.mxu0 %v409
  %550 = vmatprep.subr.bf16.mxu0 %v412
  %551 = vmatpush1.bf16.msra.mxu0 %v411
  %552 = vmatprep.mubr.bf16.mxu0 %v152
  %553 = vmatmul.mubr.bf16.gmra.mrb[0].mxu0 %v151
  %v554 = vpop.f32.mrb[0].mxu0
  %v555 = vadd.f32 %v512, %v554
  %v556 = vpop.f32.mrb[0].mxu0
  %v557 = vadd.f32 %v514, %v556
  %v558 = vpop.f32.mrb[0].mxu0
  %v559 = vadd.f32 %v516, %v558
  %v560 = vpop.f32.mrb[0].mxu0
  %v561 = vadd.f32 %v518, %v560
  %562 = vdwg.mxu0
  %v563 = vmax.f32 %v555, 0.0
  %v564 = vmax.f32 %v557, 0.0
  %v565 = vmax.f32 %v559, 0.0
  %v566 = vmax.f32 %v561, 0.0
  %v567 = vpack.c.bf16 %v565, %v563
  %v568 = vpack.c.bf16 %v566, %v564
  %v569 = vld [vmem:[%s3] sm:$0xf]
  %v570 = vld [vmem:[%s3 + $0x4] sm:$0xf]
  %v571 = vld [vmem:[%s3 + $0x8] sm:$0xf]
  %v572 = vld [vmem:[%s3 + $0xc] sm:$0xf]
  %v573 = vld [vmem:[%s3 + $0x10] sm:$0xf]
  %v574 = vld [vmem:[%s3 + $0x14] sm:$0xf]
  %v575 = vld [vmem:[%s3 + $0x18] sm:$0xf]
  %v576 = vld [vmem:[%s3 + $0x1c] sm:$0xf]
  %v577 = vld [vmem:[%s3 + $0x20] sm:$0xf]
  %v578 = vld [vmem:[%s3 + $0x24] sm:$0xf]
  %v579 = vld [vmem:[%s3 + $0x28] sm:$0xf]
  %v580 = vld [vmem:[%s3 + $0x2c] sm:$0xf]
  %v581 = vld [vmem:[%s3 + $0x30] sm:$0xf]
  %v582 = vld [vmem:[%s3 + $0x34] sm:$0xf]
  %v583 = vld [vmem:[%s3 + $0x38] sm:$0xf]
  %v584 = vld [vmem:[%s3 + $0x3c] sm:$0xf]
  %v585 = vld [vmem:[%s3 + $0x40] sm:$0xf]
  %v586 = vld [vmem:[%s3 + $0x44] sm:$0xf]
  %v587 = vld [vmem:[%s3 + $0x48] sm:$0xf]
  %v588 = vld [vmem:[%s3 + $0x4c] sm:$0xf]
  %v589 = vld [vmem:[%s3 + $0x50] sm:$0xf]
  %v590 = vld [vmem:[%s3 + $0x54] sm:$0xf]
  %v591 = vld [vmem:[%s3 + $0x58] sm:$0xf]
  %v592 = vld [vmem:[%s3 + $0x5c] sm:$0xf]
  %v593 = vld [vmem:[%s3 + $0x60] sm:$0xf]
  %v594 = vld [vmem:[%s3 + $0x64] sm:$0xf]
  %v595 = vld [vmem:[%s3 + $0x68] sm:$0xf]
  %v596 = vld [vmem:[%s3 + $0x6c] sm:$0xf]
  %v597 = vld [vmem:[%s3 + $0x70] sm:$0xf]
  %v598 = vld [vmem:[%s3 + $0x74] sm:$0xf]
  %v599 = vld [vmem:[%s3 + $0x78] sm:$0xf]
  %v600 = vld [vmem:[%s3 + $0x7c] sm:$0xf]
  %v601 = vld [vmem:[%s4] sm:$0x1]
  %v603 = vlaneseq
  %v604 = vshrl.u32 %v603, 7
  %v605 = vsub.s32 0, %v604
  %v606 = vrot.slane %v601, %v605
  %v640 = vunpack.c.l.b16 %v569
  %v641 = vunpack.c.l.b16 %v570
  %v642 = vunpack.c.l.b16 %v571
  %v643 = vunpack.c.l.b16 %v572
  %v644 = vunpack.c.l.b16 %v573
  %v645 = vunpack.c.l.b16 %v574
  %v646 = vunpack.c.l.b16 %v575
  %v647 = vunpack.c.l.b16 %v576
  %v648 = vunpack.c.l.b16 %v577
  %v649 = vunpack.c.l.b16 %v578
  %v650 = vunpack.c.l.b16 %v579
  %v651 = vunpack.c.l.b16 %v580
  %v652 = vunpack.c.l.b16 %v581
  %v653 = vunpack.c.l.b16 %v582
  %v654 = vunpack.c.l.b16 %v583
  %v655 = vunpack.c.l.b16 %v584
  %v656 = vunpack.c.l.b16 %v585
  %v657 = vunpack.c.l.b16 %v586
  %v658 = vunpack.c.l.b16 %v587
  %v659 = vunpack.c.l.b16 %v588
  %v660 = vunpack.c.l.b16 %v589
  %v661 = vunpack.c.l.b16 %v590
  %v662 = vunpack.c.l.b16 %v591
  %v663 = vunpack.c.l.b16 %v592
  %v664 = vunpack.c.l.b16 %v593
  %v665 = vunpack.c.l.b16 %v594
  %v666 = vunpack.c.l.b16 %v595
  %v667 = vunpack.c.l.b16 %v596
  %v668 = vunpack.c.l.b16 %v597
  %v669 = vunpack.c.l.b16 %v598
  %v670 = vunpack.c.l.b16 %v599
  %v671 = vunpack.c.l.b16 %v600
  %v672 = vpack.c.b16 %v641, %v640
  %v673 = vpack.c.b16 %v643, %v642
  %v674 = vpack.c.b16 %v645, %v644
  %v675 = vpack.c.b16 %v647, %v646
  %v676 = vpack.c.b16 %v649, %v648
  %v677 = vpack.c.b16 %v651, %v650
  %v678 = vpack.c.b16 %v653, %v652
  %v679 = vpack.c.b16 %v655, %v654
  %v680 = vpack.c.b16 %v657, %v656
  %v681 = vpack.c.b16 %v659, %v658
  %v682 = vpack.c.b16 %v661, %v660
  %v683 = vpack.c.b16 %v663, %v662
  %v684 = vpack.c.b16 %v665, %v664
  %v685 = vpack.c.b16 %v667, %v666
  %v686 = vpack.c.b16 %v669, %v668
  %v687 = vpack.c.b16 %v671, %v670
  %704 = vmatprep.subr.bf16.mxu0 0
  %705 = vmatpush1.bf16.msra.mxu0 %v672
  %706 = vmatprep.subr.bf16.mxu0 0
  %707 = vmatpush1.bf16.msra.mxu0 %v673
  %708 = vmatprep.subr.bf16.mxu0 0
  %709 = vmatpush1.bf16.msra.mxu0 %v674
  %710 = vmatprep.subr.bf16.mxu0 0
  %711 = vmatpush1.bf16.msra.mxu0 %v675
  %712 = vmatprep.subr.bf16.mxu0 0
  %713 = vmatpush1.bf16.msra.mxu0 %v676
  %714 = vmatprep.subr.bf16.mxu0 0
  %715 = vmatpush1.bf16.msra.mxu0 %v677
  %716 = vmatprep.subr.bf16.mxu0 0
  %717 = vmatpush1.bf16.msra.mxu0 %v678
  %718 = vmatprep.subr.bf16.mxu0 0
  %719 = vmatpush1.bf16.msra.mxu0 %v679
  %720 = vmatprep.subr.bf16.mxu0 0
  %721 = vmatpush1.bf16.msra.mxu0 %v680
  %722 = vmatprep.subr.bf16.mxu0 0
  %723 = vmatpush1.bf16.msra.mxu0 %v681
  %724 = vmatprep.subr.bf16.mxu0 0
  %725 = vmatpush1.bf16.msra.mxu0 %v682
  %726 = vmatprep.subr.bf16.mxu0 0
  %727 = vmatpush1.bf16.msra.mxu0 %v683
  %728 = vmatprep.subr.bf16.mxu0 0
  %729 = vmatpush1.bf16.msra.mxu0 %v684
  %730 = vmatprep.subr.bf16.mxu0 0
  %731 = vmatpush1.bf16.msra.mxu0 %v685
  %732 = vmatprep.subr.bf16.mxu0 0
  %733 = vmatpush1.bf16.msra.mxu0 %v686
  %734 = vmatprep.subr.bf16.mxu0 0
  %735 = vmatpush1.bf16.msra.mxu0 %v687
  %736 = vmatprep.mubr.bf16.mxu0 %v568
  %737 = vmatmul.mubr.bf16.gmra.mrb[0].mxu0 %v567
  %v738 = vpop.f32.mrb[0].mxu0
  %v739 = vadd.f32 %v606, %v738
  %v740 = vpop.f32.mrb[0].mxu0
  %v741 = vpop.f32.mrb[0].mxu0
  %v742 = vadd.f32 %v606, %v741
  %v743 = vpop.f32.mrb[0].mxu0
  %744 = vdwg.mxu0
  %v745 = vmax.f32 %v739, 0.0
  %v746 = vmax.f32 %v742, 0.0
  %v747 = vpack.c.bf16 %v746, %v745
  %v748 = vld [vmem:[%s5] sm:$0xf]
  %v749 = vld [vmem:[%s5 + $0x4] sm:$0xf]
  %v750 = vld [vmem:[%s5 + $0x8] sm:$0xf]
  %v751 = vld [vmem:[%s5 + $0xc] sm:$0xf]
  %v752 = vld [vmem:[%s5 + $0x10] sm:$0xf]
  %v753 = vld [vmem:[%s5 + $0x14] sm:$0xf]
  %v754 = vld [vmem:[%s5 + $0x18] sm:$0xf]
  %v755 = vld [vmem:[%s5 + $0x1c] sm:$0xf]
  %v756 = vld [vmem:[%s5 + $0x20] sm:$0xf]
  %v757 = vld [vmem:[%s5 + $0x24] sm:$0xf]
  %v758 = vld [vmem:[%s5 + $0x28] sm:$0xf]
  %v759 = vld [vmem:[%s5 + $0x2c] sm:$0xf]
  %v760 = vld [vmem:[%s5 + $0x30] sm:$0xf]
  %v761 = vld [vmem:[%s5 + $0x34] sm:$0xf]
  %v762 = vld [vmem:[%s5 + $0x38] sm:$0xf]
  %v763 = vld [vmem:[%s5 + $0x3c] sm:$0xf]
  %v764 = vld [vmem:[%s6] sm:$0x1]
  %v766 = vlaneseq
  %v767 = vshrl.u32 %v766, 7
  %v768 = vsub.s32 0, %v767
  %v769 = vrot.slane %v764, %v768
  %v787 = vunpack.c.l.b16 %v748
  %v788 = vunpack.c.l.b16 %v749
  %v789 = vunpack.c.l.b16 %v750
  %v790 = vunpack.c.l.b16 %v751
  %v791 = vunpack.c.l.b16 %v752
  %v792 = vunpack.c.l.b16 %v753
  %v793 = vunpack.c.l.b16 %v754
  %v794 = vunpack.c.l.b16 %v755
  %v795 = vunpack.c.l.b16 %v756
  %v796 = vunpack.c.l.b16 %v757
  %v797 = vunpack.c.l.b16 %v758
  %v798 = vunpack.c.l.b16 %v759
  %v799 = vunpack.c.l.b16 %v760
  %v800 = vunpack.c.l.b16 %v761
  %v801 = vunpack.c.l.b16 %v762
  %v802 = vunpack.c.l.b16 %v763
  %v803 = vpack.c.b16 %v788, %v787
  %v804 = vpack.c.b16 %v790, %v789
  %v805 = vpack.c.b16 %v792, %v791
  %v806 = vpack.c.b16 %v794, %v793
  %v807 = vpack.c.b16 %v796, %v795
  %v808 = vpack.c.b16 %v798, %v797
  %v809 = vpack.c.b16 %v800, %v799
  %v810 = vpack.c.b16 %v802, %v801
  %819 = vmatprep.subr.bf16.mxu0 0
  %820 = vmatpush1.bf16.msra.mxu0 %v803
  %821 = vmatprep.subr.bf16.mxu0 0
  %822 = vmatpush1.bf16.msra.mxu0 %v804
  %823 = vmatprep.subr.bf16.mxu0 0
  %824 = vmatpush1.bf16.msra.mxu0 %v805
  %825 = vmatprep.subr.bf16.mxu0 0
  %826 = vmatpush1.bf16.msra.mxu0 %v806
  %827 = vmatprep.subr.bf16.mxu0 0
  %828 = vmatpush1.bf16.msra.mxu0 %v807
  %829 = vmatprep.subr.bf16.mxu0 0
  %830 = vmatpush1.bf16.msra.mxu0 %v808
  %831 = vmatprep.subr.bf16.mxu0 0
  %832 = vmatpush1.bf16.msra.mxu0 %v809
  %833 = vmatprep.subr.bf16.mxu0 0
  %834 = vmatpush1.bf16.msra.mxu0 %v810
  %835 = vmatprep.subr.bf16.mxu0 0
  %836 = vmatpush1.bf16.msra.mxu0 0
  %837 = vmatprep.subr.bf16.mxu0 0
  %838 = vmatpush1.bf16.msra.mxu0 0
  %839 = vmatprep.subr.bf16.mxu0 0
  %840 = vmatpush1.bf16.msra.mxu0 0
  %841 = vmatprep.subr.bf16.mxu0 0
  %842 = vmatpush1.bf16.msra.mxu0 0
  %843 = vmatprep.subr.bf16.mxu0 0
  %844 = vmatpush1.bf16.msra.mxu0 0
  %845 = vmatprep.subr.bf16.mxu0 0
  %846 = vmatpush1.bf16.msra.mxu0 0
  %847 = vmatprep.subr.bf16.mxu0 0
  %848 = vmatpush1.bf16.msra.mxu0 0
  %849 = vmatprep.subr.bf16.mxu0 0
  %850 = vmatpush1.bf16.msra.mxu0 0
  %851 = vmatprep.mubr.bf16.mxu0 0
  %852 = vmatmul.mubr.bf16.gmra.mrb[0].mxu0 %v747
  %v853 = vpop.f32.mrb[0].mxu0
  %v854 = vadd.f32 %v769, %v853
  %v855 = vpop.f32.mrb[0].mxu0
  %v856 = vpop.f32.mrb[0].mxu0
  %v857 = vadd.f32 %v769, %v856
  %v858 = vpop.f32.mrb[0].mxu0
  %859 = vdwg.mxu0
  %v860 = vmax.f32 %v854, 0.0
  %v861 = vmax.f32 %v857, 0.0
  %v862 = vpack.c.bf16 %v861, %v860
  %v863 = vld [vmem:[%s7] sm:$0xf]
  %v864 = vld [vmem:[%s7 + $0x4] sm:$0xf]
  %v865 = vld [vmem:[%s7 + $0x8] sm:$0xf]
  %v866 = vld [vmem:[%s7 + $0xc] sm:$0xf]
  %v867 = vld [vmem:[%s7 + $0x10] sm:$0xf]
  %v868 = vld [vmem:[%s7 + $0x14] sm:$0xf]
  %v869 = vld [vmem:[%s7 + $0x18] sm:$0xf]
  %v870 = vld [vmem:[%s7 + $0x1c] sm:$0xf]
  %v871 = vld [vmem:[%s7 + $0x20] sm:$0xf]
  %v872 = vld [vmem:[%s7 + $0x24] sm:$0xf]
  %v873 = vld [vmem:[%s7 + $0x28] sm:$0xf]
  %v874 = vld [vmem:[%s7 + $0x2c] sm:$0xf]
  %v875 = vld [vmem:[%s7 + $0x30] sm:$0xf]
  %v876 = vld [vmem:[%s7 + $0x34] sm:$0xf]
  %v877 = vld [vmem:[%s7 + $0x38] sm:$0xf]
  %v878 = vld [vmem:[%s7 + $0x3c] sm:$0xf]
  %v879 = vld [vmem:[%s8] sm:$0x1]
  %v881 = vlaneseq
  %v882 = vshrl.u32 %v881, 7
  %v883 = vsub.s32 0, %v882
  %v884 = vrot.slane %v879, %v883
  %v902 = vunpack.c.l.b16 %v863
  %v903 = vunpack.c.l.b16 %v864
  %v904 = vunpack.c.l.b16 %v865
  %v905 = vunpack.c.l.b16 %v866
  %v906 = vunpack.c.l.b16 %v867
  %v907 = vunpack.c.l.b16 %v868
  %v908 = vunpack.c.l.b16 %v869
  %v909 = vunpack.c.l.b16 %v870
  %v910 = vunpack.c.l.b16 %v871
  %v911 = vunpack.c.l.b16 %v872
  %v912 = vunpack.c.l.b16 %v873
  %v913 = vunpack.c.l.b16 %v874
  %v914 = vunpack.c.l.b16 %v875
  %v915 = vunpack.c.l.b16 %v876
  %v916 = vunpack.c.l.b16 %v877
  %v917 = vunpack.c.l.b16 %v878
  %v918 = vpack.c.b16 %v903, %v902
  %v919 = vpack.c.b16 %v905, %v904
  %v920 = vpack.c.b16 %v907, %v906
  %v921 = vpack.c.b16 %v909, %v908
  %v922 = vpack.c.b16 %v911, %v910
  %v923 = vpack.c.b16 %v913, %v912
  %v924 = vpack.c.b16 %v915, %v914
  %v925 = vpack.c.b16 %v917, %v916
  %934 = vmatprep.subr.bf16.mxu0 0
  %935 = vmatpush1.bf16.msra.mxu0 %v918
  %936 = vmatprep.subr.bf16.mxu0 0
  %937 = vmatpush1.bf16.msra.mxu0 %v919
  %938 = vmatprep.subr.bf16.mxu0 0
  %939 = vmatpush1.bf16.msra.mxu0 %v920
  %940 = vmatprep.subr.bf16.mxu0 0
  %941 = vmatpush1.bf16.msra.mxu0 %v921
  %942 = vmatprep.subr.bf16.mxu0 0
  %943 = vmatpush1.bf16.msra.mxu0 %v922
  %944 = vmatprep.subr.bf16.mxu0 0
  %945 = vmatpush1.bf16.msra.mxu0 %v923
  %946 = vmatprep.subr.bf16.mxu0 0
  %947 = vmatpush1.bf16.msra.mxu0 %v924
  %948 = vmatprep.subr.bf16.mxu0 0
  %949 = vmatpush1.bf16.msra.mxu0 %v925
  %950 = vmatprep.subr.bf16.mxu0 0
  %951 = vmatpush1.bf16.msra.mxu0 0
  %952 = vmatprep.subr.bf16.mxu0 0
  %953 = vmatpush1.bf16.msra.mxu0 0
  %954 = vmatprep.subr.bf16.mxu0 0
  %955 = vmatpush1.bf16.msra.mxu0 0
  %956 = vmatprep.subr.bf16.mxu0 0
  %957 = vmatpush1.bf16.msra.mxu0 0
  %958 = vmatprep.subr.bf16.mxu0 0
  %959 = vmatpush1.bf16.msra.mxu0 0
  %960 = vmatprep.subr.bf16.mxu0 0
  %961 = vmatpush1.bf16.msra.mxu0 0
  %962 = vmatprep.subr.bf16.mxu0 0
  %963 = vmatpush1.bf16.msra.mxu0 0
  %964 = vmatprep.subr.bf16.mxu0 0
  %965 = vmatpush1.bf16.msra.mxu0 0
  %966 = vmatprep.mubr.bf16.mxu0 0
  %967 = vmatmul.mubr.bf16.gmra.mrb[0].mxu0 %v862
  %v968 = vpop.f32.mrb[0].mxu0
  %v969 = vadd.f32 %v884, %v968
  %v970 = vpop.f32.mrb[0].mxu0
  %v971 = vpop.f32.mrb[0].mxu0
  %v972 = vadd.f32 %v884, %v971
  %v973 = vpop.f32.mrb[0].mxu0
  %974 = vdwg.mxu0
  %v975 = vmax.f32 %v969, 0.0
  %v976 = vmax.f32 %v972, 0.0
  %v977 = vpack.c.bf16 %v976, %v975
  %v978 = vld [vmem:[%s9] sm:$0xf]
  %v979 = vld [vmem:[%s9 + $0x4] sm:$0xf]
  %v980 = vld [vmem:[%s9 + $0x8] sm:$0xf]
  %v981 = vld [vmem:[%s9 + $0xc] sm:$0xf]
  %v982 = vld [vmem:[%s9 + $0x10] sm:$0xf]
  %v983 = vld [vmem:[%s9 + $0x14] sm:$0xf]
  %v984 = vld [vmem:[%s9 + $0x18] sm:$0xf]
  %v985 = vld [vmem:[%s9 + $0x1c] sm:$0xf]
  %v986 = vld [vmem:[%s9 + $0x20] sm:$0xf]
  %v987 = vld [vmem:[%s9 + $0x24] sm:$0xf]
  %v988 = vld [vmem:[%s9 + $0x28] sm:$0xf]
  %v989 = vld [vmem:[%s9 + $0x2c] sm:$0xf]
  %v990 = vld [vmem:[%s9 + $0x30] sm:$0xf]
  %v991 = vld [vmem:[%s9 + $0x34] sm:$0xf]
  %v992 = vld [vmem:[%s9 + $0x38] sm:$0xf]
  %v993 = vld [vmem:[%s9 + $0x3c] sm:$0xf]
  %v994 = vld [vmem:[%s10] sm:$0x1]
  %v996 = vlaneseq
  %v997 = vshrl.u32 %v996, 7
  %v998 = vsub.s32 0, %v997
  %v999 = vrot.slane %v994, %v998
  %v1017 = vunpack.c.l.b16 %v978
  %v1018 = vunpack.c.l.b16 %v979
  %v1019 = vunpack.c.l.b16 %v980
  %v1020 = vunpack.c.l.b16 %v981
  %v1021 = vunpack.c.l.b16 %v982
  %v1022 = vunpack.c.l.b16 %v983
  %v1023 = vunpack.c.l.b16 %v984
  %v1024 = vunpack.c.l.b16 %v985
  %v1025 = vunpack.c.l.b16 %v986
  %v1026 = vunpack.c.l.b16 %v987
  %v1027 = vunpack.c.l.b16 %v988
  %v1028 = vunpack.c.l.b16 %v989
  %v1029 = vunpack.c.l.b16 %v990
  %v1030 = vunpack.c.l.b16 %v991
  %v1031 = vunpack.c.l.b16 %v992
  %v1032 = vunpack.c.l.b16 %v993
  %v1033 = vpack.c.b16 %v1018, %v1017
  %v1034 = vpack.c.b16 %v1020, %v1019
  %v1035 = vpack.c.b16 %v1022, %v1021
  %v1036 = vpack.c.b16 %v1024, %v1023
  %v1037 = vpack.c.b16 %v1026, %v1025
  %v1038 = vpack.c.b16 %v1028, %v1027
  %v1039 = vpack.c.b16 %v1030, %v1029
  %v1040 = vpack.c.b16 %v1032, %v1031
  %1049 = vmatprep.subr.bf16.mxu0 0
  %1050 = vmatpush1.bf16.msra.mxu0 %v1033
  %1051 = vmatprep.subr.bf16.mxu0 0
  %1052 = vmatpush1.bf16.msra.mxu0 %v1034
  %1053 = vmatprep.subr.bf16.mxu0 0
  %1054 = vmatpush1.bf16.msra.mxu0 %v1035
  %1055 = vmatprep.subr.bf16.mxu0 0
  %1056 = vmatpush1.bf16.msra.mxu0 %v1036
  %1057 = vmatprep.subr.bf16.mxu0 0
  %1058 = vmatpush1.bf16.msra.mxu0 %v1037
  %1059 = vmatprep.subr.bf16.mxu0 0
  %1060 = vmatpush1.bf16.msra.mxu0 %v1038
  %1061 = vmatprep.subr.bf16.mxu0 0
  %1062 = vmatpush1.bf16.msra.mxu0 %v1039
  %1063 = vmatprep.subr.bf16.mxu0 0
  %1064 = vmatpush1.bf16.msra.mxu0 %v1040
  %1065 = vmatprep.subr.bf16.mxu0 0
  %1066 = vmatpush1.bf16.msra.mxu0 0
  %1067 = vmatprep.subr.bf16.mxu0 0
  %1068 = vmatpush1.bf16.msra.mxu0 0
  %1069 = vmatprep.subr.bf16.mxu0 0
  %1070 = vmatpush1.bf16.msra.mxu0 0
  %1071 = vmatprep.subr.bf16.mxu0 0
  %1072 = vmatpush1.bf16.msra.mxu0 0
  %1073 = vmatprep.subr.bf16.mxu0 0
  %1074 = vmatpush1.bf16.msra.mxu0 0
  %1075 = vmatprep.subr.bf16.mxu0 0
  %1076 = vmatpush1.bf16.msra.mxu0 0
  %1077 = vmatprep.subr.bf16.mxu0 0
  %1078 = vmatpush1.bf16.msra.mxu0 0
  %1079 = vmatprep.subr.bf16.mxu0 0
  %1080 = vmatpush1.bf16.msra.mxu0 0
  %1081 = vmatprep.mubr.bf16.mxu0 0
  %1082 = vmatmul.mubr.bf16.gmra.mrb[0].mxu0 %v977
  %v1083 = vpop.f32.mrb[0].mxu0
  %v1084 = vadd.f32 %v999, %v1083
  %v1085 = vpop.f32.mrb[0].mxu0
  %v1086 = vpop.f32.mrb[0].mxu0
  %v1087 = vadd.f32 %v999, %v1086
  %v1088 = vpop.f32.mrb[0].mxu0
  %1089 = vdwg.mxu0
  %v1090 = vmax.f32 %v1084, 0.0
  %v1091 = vmax.f32 %v1087, 0.0
  %v1092 = vpack.c.bf16 %v1091, %v1090
  %v1093 = vld [vmem:[%s11] sm:$0xf]
  %v1094 = vld [vmem:[%s11 + $0x4] sm:$0xf]
  %v1095 = vld [vmem:[%s11 + $0x8] sm:$0xf]
  %v1096 = vld [vmem:[%s11 + $0xc] sm:$0xf]
  %v1097 = vld [vmem:[%s11 + $0x10] sm:$0xf]
  %v1098 = vld [vmem:[%s11 + $0x14] sm:$0xf]
  %v1099 = vld [vmem:[%s11 + $0x18] sm:$0xf]
  %v1100 = vld [vmem:[%s11 + $0x1c] sm:$0xf]
  %v1101 = vld [vmem:[%s11 + $0x20] sm:$0xf]
  %v1102 = vld [vmem:[%s11 + $0x24] sm:$0xf]
  %v1103 = vld [vmem:[%s11 + $0x28] sm:$0xf]
  %v1104 = vld [vmem:[%s11 + $0x2c] sm:$0xf]
  %v1105 = vld [vmem:[%s11 + $0x30] sm:$0xf]
  %v1106 = vld [vmem:[%s11 + $0x34] sm:$0xf]
  %v1107 = vld [vmem:[%s11 + $0x38] sm:$0xf]
  %v1108 = vld [vmem:[%s11 + $0x3c] sm:$0xf]
  %v1109 = vld [vmem:[%s12] sm:$0x1]
  %v1111 = vlaneseq
  %v1112 = vshrl.u32 %v1111, 7
  %v1113 = vsub.s32 0, %v1112
  %v1114 = vrot.slane %v1109, %v1113
  %v1132 = vunpack.c.l.b16 %v1093
  %v1133 = vunpack.c.l.b16 %v1094
  %v1134 = vunpack.c.l.b16 %v1095
  %v1135 = vunpack.c.l.b16 %v1096
  %v1136 = vunpack.c.l.b16 %v1097
  %v1137 = vunpack.c.l.b16 %v1098
  %v1138 = vunpack.c.l.b16 %v1099
  %v1139 = vunpack.c.l.b16 %v1100
  %v1140 = vunpack.c.l.b16 %v1101
  %v1141 = vunpack.c.l.b16 %v1102
  %v1142 = vunpack.c.l.b16 %v1103
  %v1143 = vunpack.c.l.b16 %v1104
  %v1144 = vunpack.c.l.b16 %v1105
  %v1145 = vunpack.c.l.b16 %v1106
  %v1146 = vunpack.c.l.b16 %v1107
  %v1147 = vunpack.c.l.b16 %v1108
  %v1148 = vpack.c.b16 %v1133, %v1132
  %v1149 = vpack.c.b16 %v1135, %v1134
  %v1150 = vpack.c.b16 %v1137, %v1136
  %v1151 = vpack.c.b16 %v1139, %v1138
  %v1152 = vpack.c.b16 %v1141, %v1140
  %v1153 = vpack.c.b16 %v1143, %v1142
  %v1154 = vpack.c.b16 %v1145, %v1144
  %v1155 = vpack.c.b16 %v1147, %v1146
  %1164 = vmatprep.subr.bf16.mxu0 0
  %1165 = vmatpush1.bf16.msra.mxu0 %v1148
  %1166 = vmatprep.subr.bf16.mxu0 0
  %1167 = vmatpush1.bf16.msra.mxu0 %v1149
  %1168 = vmatprep.subr.bf16.mxu0 0
  %1169 = vmatpush1.bf16.msra.mxu0 %v1150
  %1170 = vmatprep.subr.bf16.mxu0 0
  %1171 = vmatpush1.bf16.msra.mxu0 %v1151
  %1172 = vmatprep.subr.bf16.mxu0 0
  %1173 = vmatpush1.bf16.msra.mxu0 %v1152
  %1174 = vmatprep.subr.bf16.mxu0 0
  %1175 = vmatpush1.bf16.msra.mxu0 %v1153
  %1176 = vmatprep.subr.bf16.mxu0 0
  %1177 = vmatpush1.bf16.msra.mxu0 %v1154
  %1178 = vmatprep.subr.bf16.mxu0 0
  %1179 = vmatpush1.bf16.msra.mxu0 %v1155
  %1180 = vmatprep.subr.bf16.mxu0 0
  %1181 = vmatpush1.bf16.msra.mxu0 0
  %1182 = vmatprep.subr.bf16.mxu0 0
  %1183 = vmatpush1.bf16.msra.mxu0 0
  %1184 = vmatprep.subr.bf16.mxu0 0
  %1185 = vmatpush1.bf16.msra.mxu0 0
  %1186 = vmatprep.subr.bf16.mxu0 0
  %1187 = vmatpush1.bf16.msra.mxu0 0
  %1188 = vmatprep.subr.bf16.mxu0 0
  %1189 = vmatpush1.bf16.msra.mxu0 0
  %1190 = vmatprep.subr.bf16.mxu0 0
  %1191 = vmatpush1.bf16.msra.mxu0 0
  %1192 = vmatprep.subr.bf16.mxu0 0
  %1193 = vmatpush1.bf16.msra.mxu0 0
  %1194 = vmatprep.subr.bf16.mxu0 0
  %1195 = vmatpush1.bf16.msra.mxu0 0
  %1196 = vmatprep.mubr.bf16.mxu0 0
  %1197 = vmatmul.mubr.bf16.gmra.mrb[0].mxu0 %v1092
  %v1198 = vpop.f32.mrb[0].mxu0
  %v1199 = vadd.f32 %v1114, %v1198
  %v1200 = vpop.f32.mrb[0].mxu0
  %v1201 = vpop.f32.mrb[0].mxu0
  %v1202 = vadd.f32 %v1114, %v1201
  %v1203 = vpop.f32.mrb[0].mxu0
  %1204 = vdwg.mxu0
  %v1205 = vmax.f32 %v1199, 0.0
  %v1206 = vmax.f32 %v1202, 0.0
  %v1207 = vpack.c.bf16 %v1206, %v1205
  %v1208 = vld [vmem:[%s13] sm:$0xf]
  %v1209 = vld [vmem:[%s13 + $0x4] sm:$0xf]
  %v1210 = vld [vmem:[%s13 + $0x8] sm:$0xf]
  %v1211 = vld [vmem:[%s13 + $0xc] sm:$0xf]
  %v1212 = vld [vmem:[%s13 + $0x10] sm:$0xf]
  %v1213 = vld [vmem:[%s13 + $0x14] sm:$0xf]
  %v1214 = vld [vmem:[%s13 + $0x18] sm:$0xf]
  %v1215 = vld [vmem:[%s13 + $0x1c] sm:$0xf]
  %v1216 = vld [vmem:[%s13 + $0x20] sm:$0xf]
  %v1217 = vld [vmem:[%s13 + $0x24] sm:$0xf]
  %v1218 = vld [vmem:[%s13 + $0x28] sm:$0xf]
  %v1219 = vld [vmem:[%s13 + $0x2c] sm:$0xf]
  %v1220 = vld [vmem:[%s13 + $0x30] sm:$0xf]
  %v1221 = vld [vmem:[%s13 + $0x34] sm:$0xf]
  %v1222 = vld [vmem:[%s13 + $0x38] sm:$0xf]
  %v1223 = vld [vmem:[%s13 + $0x3c] sm:$0xf]
  %v1224 = vld [vmem:[%s14] sm:$0x1]
  %v1226 = vlaneseq
  %v1227 = vshrl.u32 %v1226, 7
  %v1228 = vsub.s32 0, %v1227
  %v1229 = vrot.slane %v1224, %v1228
  %v1247 = vunpack.c.l.b16 %v1208
  %v1248 = vunpack.c.l.b16 %v1209
  %v1249 = vunpack.c.l.b16 %v1210
  %v1250 = vunpack.c.l.b16 %v1211
  %v1251 = vunpack.c.l.b16 %v1212
  %v1252 = vunpack.c.l.b16 %v1213
  %v1253 = vunpack.c.l.b16 %v1214
  %v1254 = vunpack.c.l.b16 %v1215
  %v1255 = vunpack.c.l.b16 %v1216
  %v1256 = vunpack.c.l.b16 %v1217
  %v1257 = vunpack.c.l.b16 %v1218
  %v1258 = vunpack.c.l.b16 %v1219
  %v1259 = vunpack.c.l.b16 %v1220
  %v1260 = vunpack.c.l.b16 %v1221
  %v1261 = vunpack.c.l.b16 %v1222
  %v1262 = vunpack.c.l.b16 %v1223
  %v1263 = vpack.c.b16 %v1248, %v1247
  %v1264 = vpack.c.b16 %v1250, %v1249
  %v1265 = vpack.c.b16 %v1252, %v1251
  %v1266 = vpack.c.b16 %v1254, %v1253
  %v1267 = vpack.c.b16 %v1256, %v1255
  %v1268 = vpack.c.b16 %v1258, %v1257
  %v1269 = vpack.c.b16 %v1260, %v1259
  %v1270 = vpack.c.b16 %v1262, %v1261
  %1279 = vmatprep.subr.bf16.mxu0 0
  %1280 = vmatpush1.bf16.msra.mxu0 %v1263
  %1281 = vmatprep.subr.bf16.mxu0 0
  %1282 = vmatpush1.bf16.msra.mxu0 %v1264
  %1283 = vmatprep.subr.bf16.mxu0 0
  %1284 = vmatpush1.bf16.msra.mxu0 %v1265
  %1285 = vmatprep.subr.bf16.mxu0 0
  %1286 = vmatpush1.bf16.msra.mxu0 %v1266
  %1287 = vmatprep.subr.bf16.mxu0 0
  %1288 = vmatpush1.bf16.msra.mxu0 %v1267
  %1289 = vmatprep.subr.bf16.mxu0 0
  %1290 = vmatpush1.bf16.msra.mxu0 %v1268
  %1291 = vmatprep.subr.bf16.mxu0 0
  %1292 = vmatpush1.bf16.msra.mxu0 %v1269
  %1293 = vmatprep.subr.bf16.mxu0 0
  %1294 = vmatpush1.bf16.msra.mxu0 %v1270
  %1295 = vmatprep.subr.bf16.mxu0 0
  %1296 = vmatpush1.bf16.msra.mxu0 0
  %1297 = vmatprep.subr.bf16.mxu0 0
  %1298 = vmatpush1.bf16.msra.mxu0 0
  %1299 = vmatprep.subr.bf16.mxu0 0
  %1300 = vmatpush1.bf16.msra.mxu0 0
  %1301 = vmatprep.subr.bf16.mxu0 0
  %1302 = vmatpush1.bf16.msra.mxu0 0
  %1303 = vmatprep.subr.bf16.mxu0 0
  %1304 = vmatpush1.bf16.msra.mxu0 0
  %1305 = vmatprep.subr.bf16.mxu0 0
  %1306 = vmatpush1.bf16.msra.mxu0 0
  %1307 = vmatprep.subr.bf16.mxu0 0
  %1308 = vmatpush1.bf16.msra.mxu0 0
  %1309 = vmatprep.subr.bf16.mxu0 0
  %1310 = vmatpush1.bf16.msra.mxu0 0
  %1311 = vmatprep.mubr.bf16.mxu0 0
  %1312 = vmatmul.mubr.bf16.gmra.mrb[0].mxu0 %v1207
  %v1313 = vpop.f32.mrb[0].mxu0
  %v1314 = vadd.f32 %v1229, %v1313
  %v1315 = vpop.f32.mrb[0].mxu0
  %v1316 = vpop.f32.mrb[0].mxu0
  %v1317 = vadd.f32 %v1229, %v1316
  %v1318 = vpop.f32.mrb[0].mxu0
  %1319 = vdwg.mxu0
  %v1320 = vmax.f32 %v1314, 0.0
  %v1321 = vmax.f32 %v1317, 0.0
  %v1322 = vpack.c.bf16 %v1321, %v1320
  %v1323 = vld [vmem:[%s15] sm:$0xf]
  %v1324 = vld [vmem:[%s15 + $0x4] sm:$0xf]
  %v1325 = vld [vmem:[%s15 + $0x8] sm:$0xf]
  %v1326 = vld [vmem:[%s15 + $0xc] sm:$0xf]
  %v1327 = vld [vmem:[%s15 + $0x10] sm:$0xf]
  %v1328 = vld [vmem:[%s15 + $0x14] sm:$0xf]
  %v1329 = vld [vmem:[%s15 + $0x18] sm:$0xf]
  %v1330 = vld [vmem:[%s15 + $0x1c] sm:$0xf]
  %v1331 = vld [vmem:[%s15 + $0x20] sm:$0xf]
  %v1332 = vld [vmem:[%s15 + $0x24] sm:$0xf]
  %v1333 = vld [vmem:[%s15 + $0x28] sm:$0xf]
  %v1334 = vld [vmem:[%s15 + $0x2c] sm:$0xf]
  %v1335 = vld [vmem:[%s15 + $0x30] sm:$0xf]
  %v1336 = vld [vmem:[%s15 + $0x34] sm:$0xf]
  %v1337 = vld [vmem:[%s15 + $0x38] sm:$0xf]
  %v1338 = vld [vmem:[%s15 + $0x3c] sm:$0xf]
  %v1339 = vld [vmem:[%s16] sm:$0x1]
  %v1341 = vlaneseq
  %v1342 = vshrl.u32 %v1341, 7
  %v1343 = vsub.s32 0, %v1342
  %v1344 = vrot.slane %v1339, %v1343
  %v1362 = vunpack.c.l.b16 %v1323
  %v1363 = vunpack.c.l.b16 %v1324
  %v1364 = vunpack.c.l.b16 %v1325
  %v1365 = vunpack.c.l.b16 %v1326
  %v1366 = vunpack.c.l.b16 %v1327
  %v1367 = vunpack.c.l.b16 %v1328
  %v1368 = vunpack.c.l.b16 %v1329
  %v1369 = vunpack.c.l.b16 %v1330
  %v1370 = vunpack.c.l.b16 %v1331
  %v1371 = vunpack.c.l.b16 %v1332
  %v1372 = vunpack.c.l.b16 %v1333
  %v1373 = vunpack.c.l.b16 %v1334
  %v1374 = vunpack.c.l.b16 %v1335
  %v1375 = vunpack.c.l.b16 %v1336
  %v1376 = vunpack.c.l.b16 %v1337
  %v1377 = vunpack.c.l.b16 %v1338
  %v1378 = vpack.c.b16 %v1363, %v1362
  %v1379 = vpack.c.b16 %v1365, %v1364
  %v1380 = vpack.c.b16 %v1367, %v1366
  %v1381 = vpack.c.b16 %v1369, %v1368
  %v1382 = vpack.c.b16 %v1371, %v1370
  %v1383 = vpack.c.b16 %v1373, %v1372
  %v1384 = vpack.c.b16 %v1375, %v1374
  %v1385 = vpack.c.b16 %v1377, %v1376
  %1394 = vmatprep.subr.bf16.mxu0 0
  %1395 = vmatpush1.bf16.msra.mxu0 %v1378
  %1396 = vmatprep.subr.bf16.mxu0 0
  %1397 = vmatpush1.bf16.msra.mxu0 %v1379
  %1398 = vmatprep.subr.bf16.mxu0 0
  %1399 = vmatpush1.bf16.msra.mxu0 %v1380
  %1400 = vmatprep.subr.bf16.mxu0 0
  %1401 = vmatpush1.bf16.msra.mxu0 %v1381
  %1402 = vmatprep.subr.bf16.mxu0 0
  %1403 = vmatpush1.bf16.msra.mxu0 %v1382
  %1404 = vmatprep.subr.bf16.mxu0 0
  %1405 = vmatpush1.bf16.msra.mxu0 %v1383
  %1406 = vmatprep.subr.bf16.mxu0 0
  %1407 = vmatpush1.bf16.msra.mxu0 %v1384
  %1408 = vmatprep.subr.bf16.mxu0 0
  %1409 = vmatpush1.bf16.msra.mxu0 %v1385
  %1410 = vmatprep.subr.bf16.mxu0 0
  %1411 = vmatpush1.bf16.msra.mxu0 0
  %1412 = vmatprep.subr.bf16.mxu0 0
  %1413 = vmatpush1.bf16.msra.mxu0 0
  %1414 = vmatprep.subr.bf16.mxu0 0
  %1415 = vmatpush1.bf16.msra.mxu0 0
  %1416 = vmatprep.subr.bf16.mxu0 0
  %1417 = vmatpush1.bf16.msra.mxu0 0
  %1418 = vmatprep.subr.bf16.mxu0 0
  %1419 = vmatpush1.bf16.msra.mxu0 0
  %1420 = vmatprep.subr.bf16.mxu0 0
  %1421 = vmatpush1.bf16.msra.mxu0 0
  %1422 = vmatprep.subr.bf16.mxu0 0
  %1423 = vmatpush1.bf16.msra.mxu0 0
  %1424 = vmatprep.subr.bf16.mxu0 0
  %1425 = vmatpush1.bf16.msra.mxu0 0
  %1426 = vmatprep.mubr.bf16.mxu0 0
  %1427 = vmatmul.mubr.bf16.gmra.mrb[0].mxu0 %v1322
  %v1428 = vpop.f32.mrb[0].mxu0
  %v1429 = vadd.f32 %v1344, %v1428
  %v1430 = vpop.f32.mrb[0].mxu0
  %v1431 = vpop.f32.mrb[0].mxu0
  %v1432 = vadd.f32 %v1344, %v1431
  %v1433 = vpop.f32.mrb[0].mxu0
  %1434 = vdwg.mxu0
  %v1435 = vmax.f32 %v1429, 0.0
  %v1436 = vmax.f32 %v1432, 0.0
  %v1437 = vpack.c.bf16 %v1436, %v1435
  %v1439 = vunpack.c.l.b16 %v1437
  %v1440 = vunpack.c.h.b16 %v1437
  %v1441 = vpack.c.b16 %v1439, %v1439
  %v1442 = vpack.c.b16 %v1440, %v1440
  %1445 = vst [vmem:[%s17] sm:$0xf] %v1441
  %1446 = vst [vmem:[%s17 + $0x4] sm:$0xf] %v1442
  // Predicated region
  $region70: #{drdnet_forward.41} parent=0 // pred_check
    _
  $region71: #{drdnet_forward.41} parent=0 // pred_check_branch
    %1448 = sbr.rel (0) target = $region73
  $region72: #{drdnet_forward.41} parent=0 // pred_region
    _
  $region73: #{drdnet_forward.41} parent=0 // pred_fallthru
    _
  // Predicated region
  $region74: #{drdnet_forward.41} parent=0 // pred_check
    _
  $region75: #{drdnet_forward.41} parent=0 // pred_check_branch
    %1450 = sbr.rel (0) target = $region77
  $region76: #{drdnet_forward.41} parent=0 // pred_region
    _
  $region77: #{drdnet_forward.41} parent=0 // pred_fallthru
    _

// kernel: drdnet_forward.39
$region0: #{drdnet_forward.39}
  #allocation0 [shape = 'u32[]', space=smem, size = 0x4, offset = 0x4, fixed_abs, tag = 'smem constant byte address 0x4 - core index']
  #allocation1 [shape = 'u32[144,128]{1,0:T(1,128)}', space=vmem, size = 0x12000, scoped, tag = 'internal scratch']
  %s0 = inlined_call_operand.vmem [shape: bf16[16,1152], index: 0, kind: input, shape index: {}]
  %s1 = inlined_call_operand.vmem [shape: bf16[1152,512], index: 1, kind: input, shape index: {}]
  %s2 = inlined_call_operand.vmem [shape: f32[1,512], index: 2, kind: input, shape index: {}]
  %s3 = inlined_call_operand.vmem [shape: bf16[16,512], index: 3, kind: output, shape index: {}]
  %s4 = sld [smem:[#allocation0]]
  $region22: #{drdnet_forward.39} parent=0
    _
  %s6 = ssub.s32 1, %s4
  %s7 = scalar_select 0, %s6, %s4
  // Predicated region
  $region2: #{drdnet_forward.39} parent=0 // pred_check
    _
  $region3: #{drdnet_forward.39} parent=0 // pred_check_branch
    %9 = sbr.rel (0) target = $region5
  $region4: #{drdnet_forward.39} parent=0 // pred_region
    _
  $region5: #{drdnet_forward.39} parent=0 // pred_fallthru
    _
  // Predicated region
  $region6: #{drdnet_forward.39} parent=0 // pred_check
    _
  $region7: #{drdnet_forward.39} parent=0 // pred_check_branch
    %11 = sbr.rel (0) target = $region9
  $region8: #{drdnet_forward.39} parent=0 // pred_region
    _
  $region9: #{drdnet_forward.39} parent=0 // pred_fallthru
    _
  // Predicated region
  $region10: #{drdnet_forward.39} parent=0 // pred_check
    _
  $region11: #{drdnet_forward.39} parent=0 // pred_check_branch
    %13 = sbr.rel (0) target = $region13
  $region12: #{drdnet_forward.39} parent=0 // pred_region
    _
  $region13: #{drdnet_forward.39} parent=0 // pred_fallthru
    _
  %v15 = vld [vmem:[%s0] sm:$0xff]
  %v16 = vld [vmem:[%s0 + $0x8] sm:$0xff]
  %v17 = vld [vmem:[%s0 + $0x10] sm:$0xff]
  %v18 = vld [vmem:[%s0 + $0x18] sm:$0xff]
  %v19 = vld [vmem:[%s0 + $0x20] sm:$0xf]
  %v20 = vld [vmem:[%s0 + $0x24] sm:$0xff]
  %v21 = vld [vmem:[%s0 + $0x2c] sm:$0xff]
  %v22 = vld [vmem:[%s0 + $0x34] sm:$0xff]
  %v23 = vld [vmem:[%s0 + $0x3c] sm:$0xff]
  %v24 = vld [vmem:[%s0 + $0x44] sm:$0xf]
  %v25 = vld [vmem:[%s1] sm:$0xff]
  %v26 = vld [vmem:[%s1 + $0x8] sm:$0xff]
  %v27 = vld [vmem:[%s1 + $0x10] sm:$0xff]
  %v28 = vld [vmem:[%s1 + $0x18] sm:$0xff]
  %v29 = vld [vmem:[%s1 + $0x20] sm:$0xff]
  %v30 = vld [vmem:[%s1 + $0x28] sm:$0xff]
  %v31 = vld [vmem:[%s1 + $0x30] sm:$0xff]
  %v32 = vld [vmem:[%s1 + $0x38] sm:$0xff]
  %v33 = vld [vmem:[%s1 + $0x40] sm:$0xff]
  %v34 = vld [vmem:[%s1 + $0x48] sm:$0xff]
  %v35 = vld [vmem:[%s1 + $0x50] sm:$0xff]
  %v36 = vld [vmem:[%s1 + $0x58] sm:$0xff]
  %v37 = vld [vmem:[%s1 + $0x60] sm:$0xff]
  %v38 = vld [vmem:[%s1 + $0x68] sm:$0xff]
  %v39 = vld [vmem:[%s1 + $0x70] sm:$0xff]
  %v40 = vld [vmem:[%s1 + $0x78] sm:$0xff]
  %v41 = vld [vmem:[%s1 + $0x80] sm:$0xff]
  %v42 = vld [vmem:[%s1 + $0x88] sm:$0xff]
  %v43 = vld [vmem:[%s1 + $0x90] sm:$0xff]
  %v44 = vld [vmem:[%s1 + $0x98] sm:$0xff]
  %v45 = vld [vmem:[%s1 + $0xa0] sm:$0xff]
  %v46 = vld [vmem:[%s1 + $0xa8] sm:$0xff]
  %v47 = vld [vmem:[%s1 + $0xb0] sm:$0xff]
  %v48 = vld [vmem:[%s1 + $0xb8] sm:$0xff]
  %v49 = vld [vmem:[%s1 + $0xc0] sm:$0xff]
  %v50 = vld [vmem:[%s1 + $0xc8] sm:$0xff]
  %v51 = vld [vmem:[%s1 + $0xd0] sm:$0xff]
  %v52 = vld [vmem:[%s1 + $0xd8] sm:$0xff]
  %v53 = vld [vmem:[%s1 + $0xe0] sm:$0xff]
  %v54 = vld [vmem:[%s1 + $0xe8] sm:$0xff]
  %v55 = vld [vmem:[%s1 + $0xf0] sm:$0xff]
  %v56 = vld [vmem:[%s1 + $0xf8] sm:$0xff]
  %v57 = vld [vmem:[%s1 + $0x100] sm:$0xff]
  %v58 = vld [vmem:[%s1 + $0x108] sm:$0xff]
  %v59 = vld [vmem:[%s1 + $0x110] sm:$0xff]
  %v60 = vld [vmem:[%s1 + $0x118] sm:$0xff]
  %v61 = vld [vmem:[%s1 + $0x120] sm:$0xff]
  %v62 = vld [vmem:[%s1 + $0x128] sm:$0xff]
  %v63 = vld [vmem:[%s1 + $0x130] sm:$0xff]
  %v64 = vld [vmem:[%s1 + $0x138] sm:$0xff]
  %v65 = vld [vmem:[%s1 + $0x140] sm:$0xff]
  %v66 = vld [vmem:[%s1 + $0x148] sm:$0xff]
  %v67 = vld [vmem:[%s1 + $0x150] sm:$0xff]
  %v68 = vld [vmem:[%s1 + $0x158] sm:$0xff]
  %v69 = vld [vmem:[%s1 + $0x160] sm:$0xff]
  %v70 = vld [vmem:[%s1 + $0x168] sm:$0xff]
  %v71 = vld [vmem:[%s1 + $0x170] sm:$0xff]
  %v72 = vld [vmem:[%s1 + $0x178] sm:$0xff]
  %v73 = vld [vmem:[%s1 + $0x180] sm:$0xff]
  %v74 = vld [vmem:[%s1 + $0x188] sm:$0xff]
  %v75 = vld [vmem:[%s1 + $0x190] sm:$0xff]
  %v76 = vld [vmem:[%s1 + $0x198] sm:$0xff]
  %v77 = vld [vmem:[%s1 + $0x1a0] sm:$0xff]
  %v78 = vld [vmem:[%s1 + $0x1a8] sm:$0xff]
  %v79 = vld [vmem:[%s1 + $0x1b0] sm:$0xff]
  %v80 = vld [vmem:[%s1 + $0x1b8] sm:$0xff]
  %v81 = vld [vmem:[%s1 + $0x1c0] sm:$0xff]
  %v82 = vld [vmem:[%s1 + $0x1c8] sm:$0xff]
  %v83 = vld [vmem:[%s1 + $0x1d0] sm:$0xff]
  %v84 = vld [vmem:[%s1 + $0x1d8] sm:$0xff]
  %v85 = vld [vmem:[%s1 + $0x1e0] sm:$0xff]
  %v86 = vld [vmem:[%s1 + $0x1e8] sm:$0xff]
  %v87 = vld [vmem:[%s1 + $0x1f0] sm:$0xff]
  %v88 = vld [vmem:[%s1 + $0x1f8] sm:$0xff]
  %v89 = vld [vmem:[%s1 + $0x200] sm:$0xff]
  %v90 = vld [vmem:[%s1 + $0x208] sm:$0xff]
  %v91 = vld [vmem:[%s1 + $0x210] sm:$0xff]
  %v92 = vld [vmem:[%s1 + $0x218] sm:$0xff]
  %v93 = vld [vmem:[%s1 + $0x220] sm:$0xff]
  %v94 = vld [vmem:[%s1 + $0x228] sm:$0xff]
  %v95 = vld [vmem:[%s1 + $0x230] sm:$0xff]
  %v96 = vld [vmem:[%s1 + $0x238] sm:$0xff]
  %v97 = vld [vmem:[%s1 + $0x240] sm:$0xff]
  %v98 = vld [vmem:[%s1 + $0x248] sm:$0xff]
  %v99 = vld [vmem:[%s1 + $0x250] sm:$0xff]
  %v100 = vld [vmem:[%s1 + $0x258] sm:$0xff]
  %v101 = vld [vmem:[%s1 + $0x260] sm:$0xff]
  %v102 = vld [vmem:[%s1 + $0x268] sm:$0xff]
  %v103 = vld [vmem:[%s1 + $0x270] sm:$0xff]
  %v104 = vld [vmem:[%s1 + $0x278] sm:$0xff]
  %v105 = vld [vmem:[%s1 + $0x280] sm:$0xff]
  %v106 = vld [vmem:[%s1 + $0x288] sm:$0xff]
  %v107 = vld [vmem:[%s1 + $0x290] sm:$0xff]
  %v108 = vld [vmem:[%s1 + $0x298] sm:$0xff]
  %v109 = vld [vmem:[%s1 + $0x2a0] sm:$0xff]
  %v110 = vld [vmem:[%s1 + $0x2a8] sm:$0xff]
  %v111 = vld [vmem:[%s1 + $0x2b0] sm:$0xff]
  %v112 = vld [vmem:[%s1 + $0x2b8] sm:$0xff]
  %v113 = vld [vmem:[%s1 + $0x2c0] sm:$0xff]
  %v114 = vld [vmem:[%s1 + $0x2c8] sm:$0xff]
  %v115 = vld [vmem:[%s1 + $0x2d0] sm:$0xff]
  %v116 = vld [vmem:[%s1 + $0x2d8] sm:$0xff]
  %v117 = vld [vmem:[%s1 + $0x2e0] sm:$0xff]
  %v118 = vld [vmem:[%s1 + $0x2e8] sm:$0xff]
  %v119 = vld [vmem:[%s1 + $0x2f0] sm:$0xff]
  %v120 = vld [vmem:[%s1 + $0x2f8] sm:$0xff]
  %v121 = vld [vmem:[%s1 + $0x300] sm:$0xff]
  %v122 = vld [vmem:[%s1 + $0x308] sm:$0xff]
  %v123 = vld [vmem:[%s1 + $0x310] sm:$0xff]
  %v124 = vld [vmem:[%s1 + $0x318] sm:$0xff]
  %v125 = vld [vmem:[%s1 + $0x320] sm:$0xff]
  %v126 = vld [vmem:[%s1 + $0x328] sm:$0xff]
  %v127 = vld [vmem:[%s1 + $0x330] sm:$0xff]
  %v128 = vld [vmem:[%s1 + $0x338] sm:$0xff]
  %v129 = vld [vmem:[%s1 + $0x340] sm:$0xff]
  %v130 = vld [vmem:[%s1 + $0x348] sm:$0xff]
  %v131 = vld [vmem:[%s1 + $0x350] sm:$0xff]
  %v132 = vld [vmem:[%s1 + $0x358] sm:$0xff]
  %v133 = vld [vmem:[%s1 + $0x360] sm:$0xff]
  %v134 = vld [vmem:[%s1 + $0x368] sm:$0xff]
  %v135 = vld [vmem:[%s1 + $0x370] sm:$0xff]
  %v136 = vld [vmem:[%s1 + $0x378] sm:$0xff]
  %v137 = vld [vmem:[%s1 + $0x380] sm:$0xff]
  %v138 = vld [vmem:[%s1 + $0x388] sm:$0xff]
  %v139 = vld [vmem:[%s1 + $0x390] sm:$0xff]
  %v140 = vld [vmem:[%s1 + $0x398] sm:$0xff]
  %v141 = vld [vmem:[%s1 + $0x3a0] sm:$0xff]
  %v142 = vld [vmem:[%s1 + $0x3a8] sm:$0xff]
  %v143 = vld [vmem:[%s1 + $0x3b0] sm:$0xff]
  %v144 = vld [vmem:[%s1 + $0x3b8] sm:$0xff]
  %v145 = vld [vmem:[%s1 + $0x3c0] sm:$0xff]
  %v146 = vld [vmem:[%s1 + $0x3c8] sm:$0xff]
  %v147 = vld [vmem:[%s1 + $0x3d0] sm:$0xff]
  %v148 = vld [vmem:[%s1 + $0x3d8] sm:$0xff]
  %v149 = vld [vmem:[%s1 + $0x3e0] sm:$0xff]
  %v150 = vld [vmem:[%s1 + $0x3e8] sm:$0xff]
  %v151 = vld [vmem:[%s1 + $0x3f0] sm:$0xff]
  %v152 = vld [vmem:[%s1 + $0x3f8] sm:$0xff]
  %v153 = vld [vmem:[%s1 + $0x400] sm:$0xff]
  %v154 = vld [vmem:[%s1 + $0x408] sm:$0xff]
  %v155 = vld [vmem:[%s1 + $0x410] sm:$0xff]
  %v156 = vld [vmem:[%s1 + $0x418] sm:$0xff]
  %v157 = vld [vmem:[%s1 + $0x420] sm:$0xff]
  %v158 = vld [vmem:[%s1 + $0x428] sm:$0xff]
  %v159 = vld [vmem:[%s1 + $0x430] sm:$0xff]
  %v160 = vld [vmem:[%s1 + $0x438] sm:$0xff]
  %v161 = vld [vmem:[%s1 + $0x440] sm:$0xff]
  %v162 = vld [vmem:[%s1 + $0x448] sm:$0xff]
  %v163 = vld [vmem:[%s1 + $0x450] sm:$0xff]
  %v164 = vld [vmem:[%s1 + $0x458] sm:$0xff]
  %v165 = vld [vmem:[%s1 + $0x460] sm:$0xff]
  %v166 = vld [vmem:[%s1 + $0x468] sm:$0xff]
  %v167 = vld [vmem:[%s1 + $0x470] sm:$0xff]
  %v168 = vld [vmem:[%s1 + $0x478] sm:$0xff]
  %v169 = vld [vmem:[%s1 + $0x480] sm:$0xff]
  %v170 = vld [vmem:[%s1 + $0x488] sm:$0xff]
  %v171 = vld [vmem:[%s1 + $0x490] sm:$0xff]
  %v172 = vld [vmem:[%s1 + $0x498] sm:$0xff]
  %v173 = vld [vmem:[%s1 + $0x4a0] sm:$0xff]
  %v174 = vld [vmem:[%s1 + $0x4a8] sm:$0xff]
  %v175 = vld [vmem:[%s1 + $0x4b0] sm:$0xff]
  %v176 = vld [vmem:[%s1 + $0x4b8] sm:$0xff]
  %v177 = vld [vmem:[%s1 + $0x4c0] sm:$0xff]
  %v178 = vld [vmem:[%s1 + $0x4c8] sm:$0xff]
  %v179 = vld [vmem:[%s1 + $0x4d0] sm:$0xff]
  %v180 = vld [vmem:[%s1 + $0x4d8] sm:$0xff]
  %v181 = vld [vmem:[%s1 + $0x4e0] sm:$0xff]
  %v182 = vld [vmem:[%s1 + $0x4e8] sm:$0xff]
  %v183 = vld [vmem:[%s1 + $0x4f0] sm:$0xff]
  %v184 = vld [vmem:[%s1 + $0x4f8] sm:$0xff]
  %v185 = vld [vmem:[%s1 + $0x500] sm:$0xff]
  %v186 = vld [vmem:[%s1 + $0x508] sm:$0xff]
  %v187 = vld [vmem:[%s1 + $0x510] sm:$0xff]
  %v188 = vld [vmem:[%s1 + $0x518] sm:$0xff]
  %v189 = vld [vmem:[%s1 + $0x520] sm:$0xff]
  %v190 = vld [vmem:[%s1 + $0x528] sm:$0xff]
  %v191 = vld [vmem:[%s1 + $0x530] sm:$0xff]
  %v192 = vld [vmem:[%s1 + $0x538] sm:$0xff]
  %v193 = vld [vmem:[%s1 + $0x540] sm:$0xff]
  %v194 = vld [vmem:[%s1 + $0x548] sm:$0xff]
  %v195 = vld [vmem:[%s1 + $0x550] sm:$0xff]
  %v196 = vld [vmem:[%s1 + $0x558] sm:$0xff]
  %v197 = vld [vmem:[%s1 + $0x560] sm:$0xff]
  %v198 = vld [vmem:[%s1 + $0x568] sm:$0xff]
  %v199 = vld [vmem:[%s1 + $0x570] sm:$0xff]
  %v200 = vld [vmem:[%s1 + $0x578] sm:$0xff]
  %v201 = vld [vmem:[%s1 + $0x580] sm:$0xff]
  %v202 = vld [vmem:[%s1 + $0x588] sm:$0xff]
  %v203 = vld [vmem:[%s1 + $0x590] sm:$0xff]
  %v204 = vld [vmem:[%s1 + $0x598] sm:$0xff]
  %v205 = vld [vmem:[%s1 + $0x5a0] sm:$0xff]
  %v206 = vld [vmem:[%s1 + $0x5a8] sm:$0xff]
  %v207 = vld [vmem:[%s1 + $0x5b0] sm:$0xff]
  %v208 = vld [vmem:[%s1 + $0x5b8] sm:$0xff]
  %v209 = vld [vmem:[%s1 + $0x5c0] sm:$0xff]
  %v210 = vld [vmem:[%s1 + $0x5c8] sm:$0xff]
  %v211 = vld [vmem:[%s1 + $0x5d0] sm:$0xff]
  %v212 = vld [vmem:[%s1 + $0x5d8] sm:$0xff]
  %v213 = vld [vmem:[%s1 + $0x5e0] sm:$0xff]
  %v214 = vld [vmem:[%s1 + $0x5e8] sm:$0xff]
  %v215 = vld [vmem:[%s1 + $0x5f0] sm:$0xff]
  %v216 = vld [vmem:[%s1 + $0x5f8] sm:$0xff]
  %v217 = vld [vmem:[%s1 + $0x600] sm:$0xff]
  %v218 = vld [vmem:[%s1 + $0x608] sm:$0xff]
  %v219 = vld [vmem:[%s1 + $0x610] sm:$0xff]
  %v220 = vld [vmem:[%s1 + $0x618] sm:$0xff]
  %v221 = vld [vmem:[%s1 + $0x620] sm:$0xff]
  %v222 = vld [vmem:[%s1 + $0x628] sm:$0xff]
  %v223 = vld [vmem:[%s1 + $0x630] sm:$0xff]
  %v224 = vld [vmem:[%s1 + $0x638] sm:$0xff]
  %v225 = vld [vmem:[%s1 + $0x640] sm:$0xff]
  %v226 = vld [vmem:[%s1 + $0x648] sm:$0xff]
  %v227 = vld [vmem:[%s1 + $0x650] sm:$0xff]
  %v228 = vld [vmem:[%s1 + $0x658] sm:$0xff]
  %v229 = vld [vmem:[%s1 + $0x660] sm:$0xff]
  %v230 = vld [vmem:[%s1 + $0x668] sm:$0xff]
  %v231 = vld [vmem:[%s1 + $0x670] sm:$0xff]
  %v232 = vld [vmem:[%s1 + $0x678] sm:$0xff]
  %v233 = vld [vmem:[%s1 + $0x680] sm:$0xff]
  %v234 = vld [vmem:[%s1 + $0x688] sm:$0xff]
  %v235 = vld [vmem:[%s1 + $0x690] sm:$0xff]
  %v236 = vld [vmem:[%s1 + $0x698] sm:$0xff]
  %v237 = vld [vmem:[%s1 + $0x6a0] sm:$0xff]
  %v238 = vld [vmem:[%s1 + $0x6a8] sm:$0xff]
  %v239 = vld [vmem:[%s1 + $0x6b0] sm:$0xff]
  %v240 = vld [vmem:[%s1 + $0x6b8] sm:$0xff]
  %v241 = vld [vmem:[%s1 + $0x6c0] sm:$0xff]
  %v242 = vld [vmem:[%s1 + $0x6c8] sm:$0xff]
  %v243 = vld [vmem:[%s1 + $0x6d0] sm:$0xff]
  %v244 = vld [vmem:[%s1 + $0x6d8] sm:$0xff]
  %v245 = vld [vmem:[%s1 + $0x6e0] sm:$0xff]
  %v246 = vld [vmem:[%s1 + $0x6e8] sm:$0xff]
  %v247 = vld [vmem:[%s1 + $0x6f0] sm:$0xff]
  %v248 = vld [vmem:[%s1 + $0x6f8] sm:$0xff]
  %v249 = vld [vmem:[%s1 + $0x700] sm:$0xff]
  %v250 = vld [vmem:[%s1 + $0x708] sm:$0xff]
  %v251 = vld [vmem:[%s1 + $0x710] sm:$0xff]
  %v252 = vld [vmem:[%s1 + $0x718] sm:$0xff]
  %v253 = vld [vmem:[%s1 + $0x720] sm:$0xff]
  %v254 = vld [vmem:[%s1 + $0x728] sm:$0xff]
  %v255 = vld [vmem:[%s1 + $0x730] sm:$0xff]
  %v256 = vld [vmem:[%s1 + $0x738] sm:$0xff]
  %v257 = vld [vmem:[%s1 + $0x740] sm:$0xff]
  %v258 = vld [vmem:[%s1 + $0x748] sm:$0xff]
  %v259 = vld [vmem:[%s1 + $0x750] sm:$0xff]
  %v260 = vld [vmem:[%s1 + $0x758] sm:$0xff]
  %v261 = vld [vmem:[%s1 + $0x760] sm:$0xff]
  %v262 = vld [vmem:[%s1 + $0x768] sm:$0xff]
  %v263 = vld [vmem:[%s1 + $0x770] sm:$0xff]
  %v264 = vld [vmem:[%s1 + $0x778] sm:$0xff]
  %v265 = vld [vmem:[%s1 + $0x780] sm:$0xff]
  %v266 = vld [vmem:[%s1 + $0x788] sm:$0xff]
  %v267 = vld [vmem:[%s1 + $0x790] sm:$0xff]
  %v268 = vld [vmem:[%s1 + $0x798] sm:$0xff]
  %v269 = vld [vmem:[%s1 + $0x7a0] sm:$0xff]
  %v270 = vld [vmem:[%s1 + $0x7a8] sm:$0xff]
  %v271 = vld [vmem:[%s1 + $0x7b0] sm:$0xff]
  %v272 = vld [vmem:[%s1 + $0x7b8] sm:$0xff]
  %v273 = vld [vmem:[%s1 + $0x7c0] sm:$0xff]
  %v274 = vld [vmem:[%s1 + $0x7c8] sm:$0xff]
  %v275 = vld [vmem:[%s1 + $0x7d0] sm:$0xff]
  %v276 = vld [vmem:[%s1 + $0x7d8] sm:$0xff]
  %v277 = vld [vmem:[%s1 + $0x7e0] sm:$0xff]
  %v278 = vld [vmem:[%s1 + $0x7e8] sm:$0xff]
  %v279 = vld [vmem:[%s1 + $0x7f0] sm:$0xff]
  %v280 = vld [vmem:[%s1 + $0x7f8] sm:$0xff]
  %v281 = vld [vmem:[%s1 + $0x800] sm:$0xff]
  %v282 = vld [vmem:[%s1 + $0x808] sm:$0xff]
  %v283 = vld [vmem:[%s1 + $0x810] sm:$0xff]
  %v284 = vld [vmem:[%s1 + $0x818] sm:$0xff]
  %v285 = vld [vmem:[%s1 + $0x820] sm:$0xff]
  %v286 = vld [vmem:[%s1 + $0x828] sm:$0xff]
  %v287 = vld [vmem:[%s1 + $0x830] sm:$0xff]
  %v288 = vld [vmem:[%s1 + $0x838] sm:$0xff]
  %v289 = vld [vmem:[%s1 + $0x840] sm:$0xff]
  %v290 = vld [vmem:[%s1 + $0x848] sm:$0xff]
  %v291 = vld [vmem:[%s1 + $0x850] sm:$0xff]
  %v292 = vld [vmem:[%s1 + $0x858] sm:$0xff]
  %v293 = vld [vmem:[%s1 + $0x860] sm:$0xff]
  %v294 = vld [vmem:[%s1 + $0x868] sm:$0xff]
  %v295 = vld [vmem:[%s1 + $0x870] sm:$0xff]
  %v296 = vld [vmem:[%s1 + $0x878] sm:$0xff]
  %v297 = vld [vmem:[%s1 + $0x880] sm:$0xff]
  %v298 = vld [vmem:[%s1 + $0x888] sm:$0xff]
  %v299 = vld [vmem:[%s1 + $0x890] sm:$0xff]
  %v300 = vld [vmem:[%s1 + $0x898] sm:$0xff]
  %v301 = vld [vmem:[%s1 + $0x8a0] sm:$0xff]
  %v302 = vld [vmem:[%s1 + $0x8a8] sm:$0xff]
  %v303 = vld [vmem:[%s1 + $0x8b0] sm:$0xff]
  %v304 = vld [vmem:[%s1 + $0x8b8] sm:$0xff]
  %v305 = vld [vmem:[%s1 + $0x8c0] sm:$0xff]
  %v306 = vld [vmem:[%s1 + $0x8c8] sm:$0xff]
  %v307 = vld [vmem:[%s1 + $0x8d0] sm:$0xff]
  %v308 = vld [vmem:[%s1 + $0x8d8] sm:$0xff]
  %v309 = vld [vmem:[%s1 + $0x8e0] sm:$0xff]
  %v310 = vld [vmem:[%s1 + $0x8e8] sm:$0xff]
  %v311 = vld [vmem:[%s1 + $0x8f0] sm:$0xff]
  %v312 = vld [vmem:[%s1 + $0x8f8] sm:$0xff]
  %v313 = vld [vmem:[%s2] sm:$0xf]
  %v315 = vlaneseq
  %v316 = vshrl.u32 %v315, 7
  %v317 = vsub.s32 0, %v316
  %v318 = vrot.slane %v313, %v317
  %v319 = vlaneseq
  %v320 = vshrl.u32 %v319, 7
  %v321 = vsub.s32 1, %v320
  %v322 = vrot.slane %v313, %v321
  %v323 = vlaneseq
  %v324 = vshrl.u32 %v323, 7
  %v325 = vsub.s32 2, %v324
  %v326 = vrot.slane %v313, %v325
  %v327 = vlaneseq
  %v328 = vshrl.u32 %v327, 7
  %v329 = vsub.s32 3, %v328
  %v330 = vrot.slane %v313, %v329
  %v345 = vunpack.c.l.b16 %v15
  %v346 = vunpack.c.h.b16 %v15
  %v347 = vunpack.c.l.b16 %v16
  %v348 = vunpack.c.h.b16 %v16
  %v349 = vunpack.c.l.b16 %v17
  %v350 = vunpack.c.h.b16 %v17
  %v351 = vunpack.c.l.b16 %v18
  %v352 = vunpack.c.h.b16 %v18
  %v353 = vunpack.c.l.b16 %v19
  %v354 = vunpack.c.l.b16 %v20
  %v355 = vunpack.c.h.b16 %v20
  %v356 = vunpack.c.l.b16 %v21
  %v357 = vunpack.c.h.b16 %v21
  %v358 = vunpack.c.l.b16 %v22
  %v359 = vunpack.c.h.b16 %v22
  %v360 = vunpack.c.l.b16 %v23
  %v361 = vunpack.c.h.b16 %v23
  %v362 = vunpack.c.l.b16 %v24
  %v363 = vpack.c.b16 %v354, %v345
  %v364 = vpack.c.b16 %v355, %v346
  %v365 = vpack.c.b16 %v356, %v347
  %v366 = vpack.c.b16 %v357, %v348
  %v367 = vpack.c.b16 %v358, %v349
  %v368 = vpack.c.b16 %v359, %v350
  %v369 = vpack.c.b16 %v360, %v351
  %v370 = vpack.c.b16 %v361, %v352
  %v371 = vpack.c.b16 %v362, %v353
  %v669 = vunpack.c.l.b16 %v25
  %v670 = vunpack.c.h.b16 %v25
  %v671 = vunpack.c.l.b16 %v26
  %v672 = vunpack.c.h.b16 %v26
  %v673 = vunpack.c.l.b16 %v27
  %v674 = vunpack.c.h.b16 %v27
  %v675 = vunpack.c.l.b16 %v28
  %v676 = vunpack.c.h.b16 %v28
  %v677 = vunpack.c.l.b16 %v29
  %v678 = vunpack.c.h.b16 %v29
  %v679 = vunpack.c.l.b16 %v30
  %v680 = vunpack.c.h.b16 %v30
  %v681 = vunpack.c.l.b16 %v31
  %v682 = vunpack.c.h.b16 %v31
  %v683 = vunpack.c.l.b16 %v32
  %v684 = vunpack.c.h.b16 %v32
  %v685 = vunpack.c.l.b16 %v33
  %v686 = vunpack.c.h.b16 %v33
  %v687 = vunpack.c.l.b16 %v34
  %v688 = vunpack.c.h.b16 %v34
  %v689 = vunpack.c.l.b16 %v35
  %v690 = vunpack.c.h.b16 %v35
  %v691 = vunpack.c.l.b16 %v36
  %v692 = vunpack.c.h.b16 %v36
  %v693 = vunpack.c.l.b16 %v37
  %v694 = vunpack.c.h.b16 %v37
  %v695 = vunpack.c.l.b16 %v38
  %v696 = vunpack.c.h.b16 %v38
  %v697 = vunpack.c.l.b16 %v39
  %v698 = vunpack.c.h.b16 %v39
  %v699 = vunpack.c.l.b16 %v40
  %v700 = vunpack.c.h.b16 %v40
  %v701 = vunpack.c.l.b16 %v41
  %v702 = vunpack.c.h.b16 %v41
  %v703 = vunpack.c.l.b16 %v42
  %v704 = vunpack.c.h.b16 %v42
  %v705 = vunpack.c.l.b16 %v43
  %v706 = vunpack.c.h.b16 %v43
  %v707 = vunpack.c.l.b16 %v44
  %v708 = vunpack.c.h.b16 %v44
  %v709 = vunpack.c.l.b16 %v45
  %v710 = vunpack.c.h.b16 %v45
  %v711 = vunpack.c.l.b16 %v46
  %v712 = vunpack.c.h.b16 %v46
  %v713 = vunpack.c.l.b16 %v47
  %v714 = vunpack.c.h.b16 %v47
  %v715 = vunpack.c.l.b16 %v48
  %v716 = vunpack.c.h.b16 %v48
  %v717 = vunpack.c.l.b16 %v49
  %v718 = vunpack.c.h.b16 %v49
  %v719 = vunpack.c.l.b16 %v50
  %v720 = vunpack.c.h.b16 %v50
  %v721 = vunpack.c.l.b16 %v51
  %v722 = vunpack.c.h.b16 %v51
  %v723 = vunpack.c.l.b16 %v52
  %v724 = vunpack.c.h.b16 %v52
  %v725 = vunpack.c.l.b16 %v53
  %v726 = vunpack.c.h.b16 %v53
  %v727 = vunpack.c.l.b16 %v54
  %v728 = vunpack.c.h.b16 %v54
  %v729 = vunpack.c.l.b16 %v55
  %v730 = vunpack.c.h.b16 %v55
  %v731 = vunpack.c.l.b16 %v56
  %v732 = vunpack.c.h.b16 %v56
  %v733 = vunpack.c.l.b16 %v57
  %v734 = vunpack.c.h.b16 %v57
  %v735 = vunpack.c.l.b16 %v58
  %v736 = vunpack.c.h.b16 %v58
  %v737 = vunpack.c.l.b16 %v59
  %v738 = vunpack.c.h.b16 %v59
  %v739 = vunpack.c.l.b16 %v60
  %v740 = vunpack.c.h.b16 %v60
  %v741 = vunpack.c.l.b16 %v61
  %v742 = vunpack.c.h.b16 %v61
  %v743 = vunpack.c.l.b16 %v62
  %v744 = vunpack.c.h.b16 %v62
  %v745 = vunpack.c.l.b16 %v63
  %v746 = vunpack.c.h.b16 %v63
  %v747 = vunpack.c.l.b16 %v64
  %v748 = vunpack.c.h.b16 %v64
  %v749 = vunpack.c.l.b16 %v65
  %v750 = vunpack.c.h.b16 %v65
  %v751 = vunpack.c.l.b16 %v66
  %v752 = vunpack.c.h.b16 %v66
  %v753 = vunpack.c.l.b16 %v67
  %v754 = vunpack.c.h.b16 %v67
  %v755 = vunpack.c.l.b16 %v68
  %v756 = vunpack.c.h.b16 %v68
  %v757 = vunpack.c.l.b16 %v69
  %v758 = vunpack.c.h.b16 %v69
  %v759 = vunpack.c.l.b16 %v70
  %v760 = vunpack.c.h.b16 %v70
  %v761 = vunpack.c.l.b16 %v71
  %v762 = vunpack.c.h.b16 %v71
  %v763 = vunpack.c.l.b16 %v72
  %v764 = vunpack.c.h.b16 %v72
  %v765 = vunpack.c.l.b16 %v73
  %v766 = vunpack.c.h.b16 %v73
  %v767 = vunpack.c.l.b16 %v74
  %v768 = vunpack.c.h.b16 %v74
  %v769 = vunpack.c.l.b16 %v75
  %v770 = vunpack.c.h.b16 %v75
  %v771 = vunpack.c.l.b16 %v76
  %v772 = vunpack.c.h.b16 %v76
  %v773 = vunpack.c.l.b16 %v77
  %v774 = vunpack.c.h.b16 %v77
  %v775 = vunpack.c.l.b16 %v78
  %v776 = vunpack.c.h.b16 %v78
  %v777 = vunpack.c.l.b16 %v79
  %v778 = vunpack.c.h.b16 %v79
  %v779 = vunpack.c.l.b16 %v80
  %v780 = vunpack.c.h.b16 %v80
  %v781 = vunpack.c.l.b16 %v81
  %v782 = vunpack.c.h.b16 %v81
  %v783 = vunpack.c.l.b16 %v82
  %v784 = vunpack.c.h.b16 %v82
  %v785 = vunpack.c.l.b16 %v83
  %v786 = vunpack.c.h.b16 %v83
  %v787 = vunpack.c.l.b16 %v84
  %v788 = vunpack.c.h.b16 %v84
  %v789 = vunpack.c.l.b16 %v85
  %v790 = vunpack.c.h.b16 %v85
  %v791 = vunpack.c.l.b16 %v86
  %v792 = vunpack.c.h.b16 %v86
  %v793 = vunpack.c.l.b16 %v87
  %v794 = vunpack.c.h.b16 %v87
  %v795 = vunpack.c.l.b16 %v88
  %v796 = vunpack.c.h.b16 %v88
  %v797 = vunpack.c.l.b16 %v89
  %v798 = vunpack.c.h.b16 %v89
  %v799 = vunpack.c.l.b16 %v90
  %v800 = vunpack.c.h.b16 %v90
  %v801 = vunpack.c.l.b16 %v91
  %v802 = vunpack.c.h.b16 %v91
  %v803 = vunpack.c.l.b16 %v92
  %v804 = vunpack.c.h.b16 %v92
  %v805 = vunpack.c.l.b16 %v93
  %v806 = vunpack.c.h.b16 %v93
  %v807 = vunpack.c.l.b16 %v94
  %v808 = vunpack.c.h.b16 %v94
  %v809 = vunpack.c.l.b16 %v95
  %v810 = vunpack.c.h.b16 %v95
  %v811 = vunpack.c.l.b16 %v96
  %v812 = vunpack.c.h.b16 %v96
  %v813 = vunpack.c.l.b16 %v97
  %v814 = vunpack.c.h.b16 %v97
  %v815 = vunpack.c.l.b16 %v98
  %v816 = vunpack.c.h.b16 %v98
  %v817 = vunpack.c.l.b16 %v99
  %v818 = vunpack.c.h.b16 %v99
  %v819 = vunpack.c.l.b16 %v100
  %v820 = vunpack.c.h.b16 %v100
  %v821 = vunpack.c.l.b16 %v101
  %v822 = vunpack.c.h.b16 %v101
  %v823 = vunpack.c.l.b16 %v102
  %v824 = vunpack.c.h.b16 %v102
  %v825 = vunpack.c.l.b16 %v103
  %v826 = vunpack.c.h.b16 %v103
  %v827 = vunpack.c.l.b16 %v104
  %v828 = vunpack.c.h.b16 %v104
  %v829 = vunpack.c.l.b16 %v105
  %v830 = vunpack.c.h.b16 %v105
  %v831 = vunpack.c.l.b16 %v106
  %v832 = vunpack.c.h.b16 %v106
  %v833 = vunpack.c.l.b16 %v107
  %v834 = vunpack.c.h.b16 %v107
  %v835 = vunpack.c.l.b16 %v108
  %v836 = vunpack.c.h.b16 %v108
  %v837 = vunpack.c.l.b16 %v109
  %v838 = vunpack.c.h.b16 %v109
  %v839 = vunpack.c.l.b16 %v110
  %v840 = vunpack.c.h.b16 %v110
  %v841 = vunpack.c.l.b16 %v111
  %v842 = vunpack.c.h.b16 %v111
  %v843 = vunpack.c.l.b16 %v112
  %v844 = vunpack.c.h.b16 %v112
  %v845 = vunpack.c.l.b16 %v113
  %v846 = vunpack.c.h.b16 %v113
  %v847 = vunpack.c.l.b16 %v114
  %v848 = vunpack.c.h.b16 %v114
  %v849 = vunpack.c.l.b16 %v115
  %v850 = vunpack.c.h.b16 %v115
  %v851 = vunpack.c.l.b16 %v116
  %v852 = vunpack.c.h.b16 %v116
  %v853 = vunpack.c.l.b16 %v117
  %v854 = vunpack.c.h.b16 %v117
  %v855 = vunpack.c.l.b16 %v118
  %v856 = vunpack.c.h.b16 %v118
  %v857 = vunpack.c.l.b16 %v119
  %v858 = vunpack.c.h.b16 %v119
  %v859 = vunpack.c.l.b16 %v120
  %v860 = vunpack.c.h.b16 %v120
  %v861 = vunpack.c.l.b16 %v121
  %v862 = vunpack.c.h.b16 %v121
  %v863 = vunpack.c.l.b16 %v122
  %v864 = vunpack.c.h.b16 %v122
  %v865 = vunpack.c.l.b16 %v123
  %v866 = vunpack.c.h.b16 %v123
  %v867 = vunpack.c.l.b16 %v124
  %v868 = vunpack.c.h.b16 %v124
  %v869 = vunpack.c.l.b16 %v125
  %v870 = vunpack.c.h.b16 %v125
  %v871 = vunpack.c.l.b16 %v126
  %v872 = vunpack.c.h.b16 %v126
  %v873 = vunpack.c.l.b16 %v127
  %v874 = vunpack.c.h.b16 %v127
  %v875 = vunpack.c.l.b16 %v128
  %v876 = vunpack.c.h.b16 %v128
  %v877 = vunpack.c.l.b16 %v129
  %v878 = vunpack.c.h.b16 %v129
  %v879 = vunpack.c.l.b16 %v130
  %v880 = vunpack.c.h.b16 %v130
  %v881 = vunpack.c.l.b16 %v131
  %v882 = vunpack.c.h.b16 %v131
  %v883 = vunpack.c.l.b16 %v132
  %v884 = vunpack.c.h.b16 %v132
  %v885 = vunpack.c.l.b16 %v133
  %v886 = vunpack.c.h.b16 %v133
  %v887 = vunpack.c.l.b16 %v134
  %v888 = vunpack.c.h.b16 %v134
  %v889 = vunpack.c.l.b16 %v135
  %v890 = vunpack.c.h.b16 %v135
  %v891 = vunpack.c.l.b16 %v136
  %v892 = vunpack.c.h.b16 %v136
  %v893 = vunpack.c.l.b16 %v137
  %v894 = vunpack.c.h.b16 %v137
  %v895 = vunpack.c.l.b16 %v138
  %v896 = vunpack.c.h.b16 %v138
  %v897 = vunpack.c.l.b16 %v139
  %v898 = vunpack.c.h.b16 %v139
  %v899 = vunpack.c.l.b16 %v140
  %v900 = vunpack.c.h.b16 %v140
  %v901 = vunpack.c.l.b16 %v141
  %v902 = vunpack.c.h.b16 %v141
  %v903 = vunpack.c.l.b16 %v142
  %v904 = vunpack.c.h.b16 %v142
  %v905 = vunpack.c.l.b16 %v143
  %v906 = vunpack.c.h.b16 %v143
  %v907 = vunpack.c.l.b16 %v144
  %v908 = vunpack.c.h.b16 %v144
  %v909 = vunpack.c.l.b16 %v145
  %v910 = vunpack.c.h.b16 %v145
  %v911 = vunpack.c.l.b16 %v146
  %v912 = vunpack.c.h.b16 %v146
  %v913 = vunpack.c.l.b16 %v147
  %v914 = vunpack.c.h.b16 %v147
  %v915 = vunpack.c.l.b16 %v148
  %v916 = vunpack.c.h.b16 %v148
  %v917 = vunpack.c.l.b16 %v149
  %v918 = vunpack.c.h.b16 %v149
  %v919 = vunpack.c.l.b16 %v150
  %v920 = vunpack.c.h.b16 %v150
  %v921 = vunpack.c.l.b16 %v151
  %v922 = vunpack.c.h.b16 %v151
  %v923 = vunpack.c.l.b16 %v152
  %v924 = vunpack.c.h.b16 %v152
  %v925 = vunpack.c.l.b16 %v153
  %v926 = vunpack.c.h.b16 %v153
  %v927 = vunpack.c.l.b16 %v154
  %v928 = vunpack.c.h.b16 %v154
  %v929 = vunpack.c.l.b16 %v155
  %v930 = vunpack.c.h.b16 %v155
  %v931 = vunpack.c.l.b16 %v156
  %v932 = vunpack.c.h.b16 %v156
  %v933 = vunpack.c.l.b16 %v157
  %v934 = vunpack.c.h.b16 %v157
  %v935 = vunpack.c.l.b16 %v158
  %v936 = vunpack.c.h.b16 %v158
  %v937 = vunpack.c.l.b16 %v159
  %v938 = vunpack.c.h.b16 %v159
  %v939 = vunpack.c.l.b16 %v160
  %v940 = vunpack.c.h.b16 %v160
  %v941 = vunpack.c.l.b16 %v161
  %v942 = vunpack.c.h.b16 %v161
  %v943 = vunpack.c.l.b16 %v162
  %v944 = vunpack.c.h.b16 %v162
  %v945 = vunpack.c.l.b16 %v163
  %v946 = vunpack.c.h.b16 %v163
  %v947 = vunpack.c.l.b16 %v164
  %v948 = vunpack.c.h.b16 %v164
  %v949 = vunpack.c.l.b16 %v165
  %v950 = vunpack.c.h.b16 %v165
  %v951 = vunpack.c.l.b16 %v166
  %v952 = vunpack.c.h.b16 %v166
  %v953 = vunpack.c.l.b16 %v167
  %v954 = vunpack.c.h.b16 %v167
  %v955 = vunpack.c.l.b16 %v168
  %v956 = vunpack.c.h.b16 %v168
  %v957 = vunpack.c.l.b16 %v169
  %v958 = vunpack.c.h.b16 %v169
  %v959 = vunpack.c.l.b16 %v170
  %v960 = vunpack.c.h.b16 %v170
  %v961 = vunpack.c.l.b16 %v171
  %v962 = vunpack.c.h.b16 %v171
  %v963 = vunpack.c.l.b16 %v172
  %v964 = vunpack.c.h.b16 %v172
  %v965 = vunpack.c.l.b16 %v173
  %v966 = vunpack.c.h.b16 %v173
  %v967 = vunpack.c.l.b16 %v174
  %v968 = vunpack.c.h.b16 %v174
  %v969 = vunpack.c.l.b16 %v175
  %v970 = vunpack.c.h.b16 %v175
  %v971 = vunpack.c.l.b16 %v176
  %v972 = vunpack.c.h.b16 %v176
  %v973 = vunpack.c.l.b16 %v177
  %v974 = vunpack.c.h.b16 %v177
  %v975 = vunpack.c.l.b16 %v178
  %v976 = vunpack.c.h.b16 %v178
  %v977 = vunpack.c.l.b16 %v179
  %v978 = vunpack.c.h.b16 %v179
  %v979 = vunpack.c.l.b16 %v180
  %v980 = vunpack.c.h.b16 %v180
  %v981 = vunpack.c.l.b16 %v181
  %v982 = vunpack.c.h.b16 %v181
  %v983 = vunpack.c.l.b16 %v182
  %v984 = vunpack.c.h.b16 %v182
  %v985 = vunpack.c.l.b16 %v183
  %v986 = vunpack.c.h.b16 %v183
  %v987 = vunpack.c.l.b16 %v184
  %v988 = vunpack.c.h.b16 %v184
  %v989 = vunpack.c.l.b16 %v185
  %v990 = vunpack.c.h.b16 %v185
  %v991 = vunpack.c.l.b16 %v186
  %v992 = vunpack.c.h.b16 %v186
  %v993 = vunpack.c.l.b16 %v187
  %v994 = vunpack.c.h.b16 %v187
  %v995 = vunpack.c.l.b16 %v188
  %v996 = vunpack.c.h.b16 %v188
  %v997 = vunpack.c.l.b16 %v189
  %v998 = vunpack.c.h.b16 %v189
  %v999 = vunpack.c.l.b16 %v190
  %v1000 = vunpack.c.h.b16 %v190
  %v1001 = vunpack.c.l.b16 %v191
  %v1002 = vunpack.c.h.b16 %v191
  %v1003 = vunpack.c.l.b16 %v192
  %v1004 = vunpack.c.h.b16 %v192
  %v1005 = vunpack.c.l.b16 %v193
  %v1006 = vunpack.c.h.b16 %v193
  %v1007 = vunpack.c.l.b16 %v194
  %v1008 = vunpack.c.h.b16 %v194
  %v1009 = vunpack.c.l.b16 %v195
  %v1010 = vunpack.c.h.b16 %v195
  %v1011 = vunpack.c.l.b16 %v196
  %v1012 = vunpack.c.h.b16 %v196
  %v1013 = vunpack.c.l.b16 %v197
  %v1014 = vunpack.c.h.b16 %v197
  %v1015 = vunpack.c.l.b16 %v198
  %v1016 = vunpack.c.h.b16 %v198
  %v1017 = vunpack.c.l.b16 %v199
  %v1018 = vunpack.c.h.b16 %v199
  %v1019 = vunpack.c.l.b16 %v200
  %v1020 = vunpack.c.h.b16 %v200
  %v1021 = vunpack.c.l.b16 %v201
  %v1022 = vunpack.c.h.b16 %v201
  %v1023 = vunpack.c.l.b16 %v202
  %v1024 = vunpack.c.h.b16 %v202
  %v1025 = vunpack.c.l.b16 %v203
  %v1026 = vunpack.c.h.b16 %v203
  %v1027 = vunpack.c.l.b16 %v204
  %v1028 = vunpack.c.h.b16 %v204
  %v1029 = vunpack.c.l.b16 %v205
  %v1030 = vunpack.c.h.b16 %v205
  %v1031 = vunpack.c.l.b16 %v206
  %v1032 = vunpack.c.h.b16 %v206
  %v1033 = vunpack.c.l.b16 %v207
  %v1034 = vunpack.c.h.b16 %v207
  %v1035 = vunpack.c.l.b16 %v208
  %v1036 = vunpack.c.h.b16 %v208
  %v1037 = vunpack.c.l.b16 %v209
  %v1038 = vunpack.c.h.b16 %v209
  %v1039 = vunpack.c.l.b16 %v210
  %v1040 = vunpack.c.h.b16 %v210
  %v1041 = vunpack.c.l.b16 %v211
  %v1042 = vunpack.c.h.b16 %v211
  %v1043 = vunpack.c.l.b16 %v212
  %v1044 = vunpack.c.h.b16 %v212
  %v1045 = vunpack.c.l.b16 %v213
  %v1046 = vunpack.c.h.b16 %v213
  %v1047 = vunpack.c.l.b16 %v214
  %v1048 = vunpack.c.h.b16 %v214
  %v1049 = vunpack.c.l.b16 %v215
  %v1050 = vunpack.c.h.b16 %v215
  %v1051 = vunpack.c.l.b16 %v216
  %v1052 = vunpack.c.h.b16 %v216
  %v1053 = vunpack.c.l.b16 %v217
  %v1054 = vunpack.c.h.b16 %v217
  %v1055 = vunpack.c.l.b16 %v218
  %v1056 = vunpack.c.h.b16 %v218
  %v1057 = vunpack.c.l.b16 %v219
  %v1058 = vunpack.c.h.b16 %v219
  %v1059 = vunpack.c.l.b16 %v220
  %v1060 = vunpack.c.h.b16 %v220
  %v1061 = vunpack.c.l.b16 %v221
  %v1062 = vunpack.c.h.b16 %v221
  %v1063 = vunpack.c.l.b16 %v222
  %v1064 = vunpack.c.h.b16 %v222
  %v1065 = vunpack.c.l.b16 %v223
  %v1066 = vunpack.c.h.b16 %v223
  %v1067 = vunpack.c.l.b16 %v224
  %v1068 = vunpack.c.h.b16 %v224
  %v1069 = vunpack.c.l.b16 %v225
  %v1070 = vunpack.c.h.b16 %v225
  %v1071 = vunpack.c.l.b16 %v226
  %v1072 = vunpack.c.h.b16 %v226
  %v1073 = vunpack.c.l.b16 %v227
  %v1074 = vunpack.c.h.b16 %v227
  %v1075 = vunpack.c.l.b16 %v228
  %v1076 = vunpack.c.h.b16 %v228
  %v1077 = vunpack.c.l.b16 %v229
  %v1078 = vunpack.c.h.b16 %v229
  %v1079 = vunpack.c.l.b16 %v230
  %v1080 = vunpack.c.h.b16 %v230
  %v1081 = vunpack.c.l.b16 %v231
  %v1082 = vunpack.c.h.b16 %v231
  %v1083 = vunpack.c.l.b16 %v232
  %v1084 = vunpack.c.h.b16 %v232
  %v1085 = vunpack.c.l.b16 %v233
  %v1086 = vunpack.c.h.b16 %v233
  %v1087 = vunpack.c.l.b16 %v234
  %v1088 = vunpack.c.h.b16 %v234
  %v1089 = vunpack.c.l.b16 %v235
  %v1090 = vunpack.c.h.b16 %v235
  %v1091 = vunpack.c.l.b16 %v236
  %v1092 = vunpack.c.h.b16 %v236
  %v1093 = vunpack.c.l.b16 %v237
  %v1094 = vunpack.c.h.b16 %v237
  %v1095 = vunpack.c.l.b16 %v238
  %v1096 = vunpack.c.h.b16 %v238
  %v1097 = vunpack.c.l.b16 %v239
  %v1098 = vunpack.c.h.b16 %v239
  %v1099 = vunpack.c.l.b16 %v240
  %v1100 = vunpack.c.h.b16 %v240
  %v1101 = vunpack.c.l.b16 %v241
  %v1102 = vunpack.c.h.b16 %v241
  %v1103 = vunpack.c.l.b16 %v242
  %v1104 = vunpack.c.h.b16 %v242
  %v1105 = vunpack.c.l.b16 %v243
  %v1106 = vunpack.c.h.b16 %v243
  %v1107 = vunpack.c.l.b16 %v244
  %v1108 = vunpack.c.h.b16 %v244
  %v1109 = vunpack.c.l.b16 %v245
  %v1110 = vunpack.c.h.b16 %v245
  %v1111 = vunpack.c.l.b16 %v246
  %v1112 = vunpack.c.h.b16 %v246
  %v1113 = vunpack.c.l.b16 %v247
  %v1114 = vunpack.c.h.b16 %v247
  %v1115 = vunpack.c.l.b16 %v248
  %v1116 = vunpack.c.h.b16 %v248
  %v1117 = vunpack.c.l.b16 %v249
  %v1118 = vunpack.c.h.b16 %v249
  %v1119 = vunpack.c.l.b16 %v250
  %v1120 = vunpack.c.h.b16 %v250
  %v1121 = vunpack.c.l.b16 %v251
  %v1122 = vunpack.c.h.b16 %v251
  %v1123 = vunpack.c.l.b16 %v252
  %v1124 = vunpack.c.h.b16 %v252
  %v1125 = vunpack.c.l.b16 %v253
  %v1126 = vunpack.c.h.b16 %v253
  %v1127 = vunpack.c.l.b16 %v254
  %v1128 = vunpack.c.h.b16 %v254
  %v1129 = vunpack.c.l.b16 %v255
  %v1130 = vunpack.c.h.b16 %v255
  %v1131 = vunpack.c.l.b16 %v256
  %v1132 = vunpack.c.h.b16 %v256
  %v1133 = vunpack.c.l.b16 %v257
  %v1134 = vunpack.c.h.b16 %v257
  %v1135 = vunpack.c.l.b16 %v258
  %v1136 = vunpack.c.h.b16 %v258
  %v1137 = vunpack.c.l.b16 %v259
  %v1138 = vunpack.c.h.b16 %v259
  %v1139 = vunpack.c.l.b16 %v260
  %v1140 = vunpack.c.h.b16 %v260
  %v1141 = vunpack.c.l.b16 %v261
  %v1142 = vunpack.c.h.b16 %v261
  %v1143 = vunpack.c.l.b16 %v262
  %v1144 = vunpack.c.h.b16 %v262
  %v1145 = vunpack.c.l.b16 %v263
  %v1146 = vunpack.c.h.b16 %v263
  %v1147 = vunpack.c.l.b16 %v264
  %v1148 = vunpack.c.h.b16 %v264
  %v1149 = vunpack.c.l.b16 %v265
  %v1150 = vunpack.c.h.b16 %v265
  %v1151 = vunpack.c.l.b16 %v266
  %v1152 = vunpack.c.h.b16 %v266
  %v1153 = vunpack.c.l.b16 %v267
  %v1154 = vunpack.c.h.b16 %v267
  %v1155 = vunpack.c.l.b16 %v268
  %v1156 = vunpack.c.h.b16 %v268
  %v1157 = vunpack.c.l.b16 %v269
  %v1158 = vunpack.c.h.b16 %v269
  %v1159 = vunpack.c.l.b16 %v270
  %v1160 = vunpack.c.h.b16 %v270
  %v1161 = vunpack.c.l.b16 %v271
  %v1162 = vunpack.c.h.b16 %v271
  %v1163 = vunpack.c.l.b16 %v272
  %v1164 = vunpack.c.h.b16 %v272
  %v1165 = vunpack.c.l.b16 %v273
  %v1166 = vunpack.c.h.b16 %v273
  %v1167 = vunpack.c.l.b16 %v274
  %v1168 = vunpack.c.h.b16 %v274
  %v1169 = vunpack.c.l.b16 %v275
  %v1170 = vunpack.c.h.b16 %v275
  %v1171 = vunpack.c.l.b16 %v276
  %v1172 = vunpack.c.h.b16 %v276
  %v1173 = vunpack.c.l.b16 %v277
  %v1174 = vunpack.c.h.b16 %v277
  %v1175 = vunpack.c.l.b16 %v278
  %v1176 = vunpack.c.h.b16 %v278
  %v1177 = vunpack.c.l.b16 %v279
  %v1178 = vunpack.c.h.b16 %v279
  %v1179 = vunpack.c.l.b16 %v280
  %v1180 = vunpack.c.h.b16 %v280
  %v1181 = vunpack.c.l.b16 %v281
  %v1182 = vunpack.c.h.b16 %v281
  %v1183 = vunpack.c.l.b16 %v282
  %v1184 = vunpack.c.h.b16 %v282
  %v1185 = vunpack.c.l.b16 %v283
  %v1186 = vunpack.c.h.b16 %v283
  %v1187 = vunpack.c.l.b16 %v284
  %v1188 = vunpack.c.h.b16 %v284
  %v1189 = vunpack.c.l.b16 %v285
  %v1190 = vunpack.c.h.b16 %v285
  %v1191 = vunpack.c.l.b16 %v286
  %v1192 = vunpack.c.h.b16 %v286
  %v1193 = vunpack.c.l.b16 %v287
  %v1194 = vunpack.c.h.b16 %v287
  %v1195 = vunpack.c.l.b16 %v288
  %v1196 = vunpack.c.h.b16 %v288
  %v1197 = vunpack.c.l.b16 %v289
  %v1198 = vunpack.c.h.b16 %v289
  %v1199 = vunpack.c.l.b16 %v290
  %v1200 = vunpack.c.h.b16 %v290
  %v1201 = vunpack.c.l.b16 %v291
  %v1202 = vunpack.c.h.b16 %v291
  %v1203 = vunpack.c.l.b16 %v292
  %v1204 = vunpack.c.h.b16 %v292
  %v1205 = vunpack.c.l.b16 %v293
  %v1206 = vunpack.c.h.b16 %v293
  %v1207 = vunpack.c.l.b16 %v294
  %v1208 = vunpack.c.h.b16 %v294
  %v1209 = vunpack.c.l.b16 %v295
  %v1210 = vunpack.c.h.b16 %v295
  %v1211 = vunpack.c.l.b16 %v296
  %v1212 = vunpack.c.h.b16 %v296
  %v1213 = vunpack.c.l.b16 %v297
  %v1214 = vunpack.c.h.b16 %v297
  %v1215 = vunpack.c.l.b16 %v298
  %v1216 = vunpack.c.h.b16 %v298
  %v1217 = vunpack.c.l.b16 %v299
  %v1218 = vunpack.c.h.b16 %v299
  %v1219 = vunpack.c.l.b16 %v300
  %v1220 = vunpack.c.h.b16 %v300
  %v1221 = vunpack.c.l.b16 %v301
  %v1222 = vunpack.c.h.b16 %v301
  %v1223 = vunpack.c.l.b16 %v302
  %v1224 = vunpack.c.h.b16 %v302
  %v1225 = vunpack.c.l.b16 %v303
  %v1226 = vunpack.c.h.b16 %v303
  %v1227 = vunpack.c.l.b16 %v304
  %v1228 = vunpack.c.h.b16 %v304
  %v1229 = vunpack.c.l.b16 %v305
  %v1230 = vunpack.c.h.b16 %v305
  %v1231 = vunpack.c.l.b16 %v306
  %v1232 = vunpack.c.h.b16 %v306
  %v1233 = vunpack.c.l.b16 %v307
  %v1234 = vunpack.c.h.b16 %v307
  %v1235 = vunpack.c.l.b16 %v308
  %v1236 = vunpack.c.h.b16 %v308
  %v1237 = vunpack.c.l.b16 %v309
  %v1238 = vunpack.c.h.b16 %v309
  %v1239 = vunpack.c.l.b16 %v310
  %v1240 = vunpack.c.h.b16 %v310
  %v1241 = vunpack.c.l.b16 %v311
  %v1242 = vunpack.c.h.b16 %v311
  %v1243 = vunpack.c.l.b16 %v312
  %v1244 = vunpack.c.h.b16 %v312
  %v1245 = vpack.c.b16 %v673, %v669
  %v1246 = vpack.c.b16 %v674, %v670
  %v1247 = vpack.c.b16 %v675, %v671
  %v1248 = vpack.c.b16 %v676, %v672
  %v1249 = vpack.c.b16 %v681, %v677
  %v1250 = vpack.c.b16 %v682, %v678
  %v1251 = vpack.c.b16 %v683, %v679
  %v1252 = vpack.c.b16 %v684, %v680
  %v1253 = vpack.c.b16 %v689, %v685
  %v1254 = vpack.c.b16 %v690, %v686
  %v1255 = vpack.c.b16 %v691, %v687
  %v1256 = vpack.c.b16 %v692, %v688
  %v1257 = vpack.c.b16 %v697, %v693
  %v1258 = vpack.c.b16 %v698, %v694
  %v1259 = vpack.c.b16 %v699, %v695
  %v1260 = vpack.c.b16 %v700, %v696
  %v1261 = vpack.c.b16 %v705, %v701
  %v1262 = vpack.c.b16 %v706, %v702
  %v1263 = vpack.c.b16 %v707, %v703
  %v1264 = vpack.c.b16 %v708, %v704
  %v1265 = vpack.c.b16 %v713, %v709
  %v1266 = vpack.c.b16 %v714, %v710
  %v1267 = vpack.c.b16 %v715, %v711
  %v1268 = vpack.c.b16 %v716, %v712
  %v1269 = vpack.c.b16 %v721, %v717
  %v1270 = vpack.c.b16 %v722, %v718
  %v1271 = vpack.c.b16 %v723, %v719
  %v1272 = vpack.c.b16 %v724, %v720
  %v1273 = vpack.c.b16 %v729, %v725
  %v1274 = vpack.c.b16 %v730, %v726
  %v1275 = vpack.c.b16 %v731, %v727
  %v1276 = vpack.c.b16 %v732, %v728
  %v1277 = vpack.c.b16 %v737, %v733
  %v1278 = vpack.c.b16 %v738, %v734
  %v1279 = vpack.c.b16 %v739, %v735
  %v1280 = vpack.c.b16 %v740, %v736
  %v1281 = vpack.c.b16 %v745, %v741
  %v1282 = vpack.c.b16 %v746, %v742
  %v1283 = vpack.c.b16 %v747, %v743
  %v1284 = vpack.c.b16 %v748, %v744
  %v1285 = vpack.c.b16 %v753, %v749
  %v1286 = vpack.c.b16 %v754, %v750
  %v1287 = vpack.c.b16 %v755, %v751
  %v1288 = vpack.c.b16 %v756, %v752
  %v1289 = vpack.c.b16 %v761, %v757
  %v1290 = vpack.c.b16 %v762, %v758
  %v1291 = vpack.c.b16 %v763, %v759
  %v1292 = vpack.c.b16 %v764, %v760
  %v1293 = vpack.c.b16 %v769, %v765
  %v1294 = vpack.c.b16 %v770, %v766
  %v1295 = vpack.c.b16 %v771, %v767
  %v1296 = vpack.c.b16 %v772, %v768
  %v1297 = vpack.c.b16 %v777, %v773
  %v1298 = vpack.c.b16 %v778, %v774
  %v1299 = vpack.c.b16 %v779, %v775
  %v1300 = vpack.c.b16 %v780, %v776
  %v1301 = vpack.c.b16 %v785, %v781
  %v1302 = vpack.c.b16 %v786, %v782
  %v1303 = vpack.c.b16 %v787, %v783
  %v1304 = vpack.c.b16 %v788, %v784
  %v1305 = vpack.c.b16 %v793, %v789
  %v1306 = vpack.c.b16 %v794, %v790
  %v1307 = vpack.c.b16 %v795, %v791
  %v1308 = vpack.c.b16 %v796, %v792
  %v1309 = vpack.c.b16 %v801, %v797
  %v1310 = vpack.c.b16 %v802, %v798
  %v1311 = vpack.c.b16 %v803, %v799
  %v1312 = vpack.c.b16 %v804, %v800
  %v1313 = vpack.c.b16 %v809, %v805
  %v1314 = vpack.c.b16 %v810, %v806
  %v1315 = vpack.c.b16 %v811, %v807
  %v1316 = vpack.c.b16 %v812, %v808
  %v1317 = vpack.c.b16 %v817, %v813
  %v1318 = vpack.c.b16 %v818, %v814
  %v1319 = vpack.c.b16 %v819, %v815
  %v1320 = vpack.c.b16 %v820, %v816
  %v1321 = vpack.c.b16 %v825, %v821
  %v1322 = vpack.c.b16 %v826, %v822
  %v1323 = vpack.c.b16 %v827, %v823
  %v1324 = vpack.c.b16 %v828, %v824
  %v1325 = vpack.c.b16 %v833, %v829
  %v1326 = vpack.c.b16 %v834, %v830
  %v1327 = vpack.c.b16 %v835, %v831
  %v1328 = vpack.c.b16 %v836, %v832
  %v1329 = vpack.c.b16 %v841, %v837
  %v1330 = vpack.c.b16 %v842, %v838
  %v1331 = vpack.c.b16 %v843, %v839
  %v1332 = vpack.c.b16 %v844, %v840
  %v1333 = vpack.c.b16 %v849, %v845
  %v1334 = vpack.c.b16 %v850, %v846
  %v1335 = vpack.c.b16 %v851, %v847
  %v1336 = vpack.c.b16 %v852, %v848
  %v1337 = vpack.c.b16 %v857, %v853
  %v1338 = vpack.c.b16 %v858, %v854
  %v1339 = vpack.c.b16 %v859, %v855
  %v1340 = vpack.c.b16 %v860, %v856
  %v1341 = vpack.c.b16 %v865, %v861
  %v1342 = vpack.c.b16 %v866, %v862
  %v1343 = vpack.c.b16 %v867, %v863
  %v1344 = vpack.c.b16 %v868, %v864
  %v1345 = vpack.c.b16 %v873, %v869
  %v1346 = vpack.c.b16 %v874, %v870
  %v1347 = vpack.c.b16 %v875, %v871
  %v1348 = vpack.c.b16 %v876, %v872
  %v1349 = vpack.c.b16 %v881, %v877
  %v1350 = vpack.c.b16 %v882, %v878
  %v1351 = vpack.c.b16 %v883, %v879
  %v1352 = vpack.c.b16 %v884, %v880
  %v1353 = vpack.c.b16 %v889, %v885
  %v1354 = vpack.c.b16 %v890, %v886
  %v1355 = vpack.c.b16 %v891, %v887
  %v1356 = vpack.c.b16 %v892, %v888
  %v1357 = vpack.c.b16 %v897, %v893
  %v1358 = vpack.c.b16 %v898, %v894
  %v1359 = vpack.c.b16 %v899, %v895
  %v1360 = vpack.c.b16 %v900, %v896
  %v1361 = vpack.c.b16 %v905, %v901
  %v1362 = vpack.c.b16 %v906, %v902
  %v1363 = vpack.c.b16 %v907, %v903
  %v1364 = vpack.c.b16 %v908, %v904
  %v1365 = vpack.c.b16 %v913, %v909
  %v1366 = vpack.c.b16 %v914, %v910
  %v1367 = vpack.c.b16 %v915, %v911
  %v1368 = vpack.c.b16 %v916, %v912
  %v1369 = vpack.c.b16 %v921, %v917
  %v1370 = vpack.c.b16 %v922, %v918
  %v1371 = vpack.c.b16 %v923, %v919
  %v1372 = vpack.c.b16 %v924, %v920
  %v1373 = vpack.c.b16 %v929, %v925
  %v1374 = vpack.c.b16 %v930, %v926
  %v1375 = vpack.c.b16 %v931, %v927
  %v1376 = vpack.c.b16 %v932, %v928
  %v1377 = vpack.c.b16 %v937, %v933
  %v1378 = vpack.c.b16 %v938, %v934
  %v1379 = vpack.c.b16 %v939, %v935
  %v1380 = vpack.c.b16 %v940, %v936
  %v1381 = vpack.c.b16 %v945, %v941
  %v1382 = vpack.c.b16 %v946, %v942
  %v1383 = vpack.c.b16 %v947, %v943
  %v1384 = vpack.c.b16 %v948, %v944
  %v1385 = vpack.c.b16 %v953, %v949
  %v1386 = vpack.c.b16 %v954, %v950
  %v1387 = vpack.c.b16 %v955, %v951
  %v1388 = vpack.c.b16 %v956, %v952
  %v1389 = vpack.c.b16 %v961, %v957
  %v1390 = vpack.c.b16 %v962, %v958
  %v1391 = vpack.c.b16 %v963, %v959
  %v1392 = vpack.c.b16 %v964, %v960
  %v1393 = vpack.c.b16 %v969, %v965
  %v1394 = vpack.c.b16 %v970, %v966
  %v1395 = vpack.c.b16 %v971, %v967
  %v1396 = vpack.c.b16 %v972, %v968
  %v1397 = vpack.c.b16 %v977, %v973
  %v1398 = vpack.c.b16 %v978, %v974
  %v1399 = vpack.c.b16 %v979, %v975
  %v1400 = vpack.c.b16 %v980, %v976
  %v1401 = vpack.c.b16 %v985, %v981
  %v1402 = vpack.c.b16 %v986, %v982
  %v1403 = vpack.c.b16 %v987, %v983
  %v1404 = vpack.c.b16 %v988, %v984
  %v1405 = vpack.c.b16 %v993, %v989
  %v1406 = vpack.c.b16 %v994, %v990
  %v1407 = vpack.c.b16 %v995, %v991
  %v1408 = vpack.c.b16 %v996, %v992
  %v1409 = vpack.c.b16 %v1001, %v997
  %v1410 = vpack.c.b16 %v1002, %v998
  %v1411 = vpack.c.b16 %v1003, %v999
  %v1412 = vpack.c.b16 %v1004, %v1000
  %v1413 = vpack.c.b16 %v1009, %v1005
  %v1414 = vpack.c.b16 %v1010, %v1006
  %v1415 = vpack.c.b16 %v1011, %v1007
  %v1416 = vpack.c.b16 %v1012, %v1008
  %v1417 = vpack.c.b16 %v1017, %v1013
  %v1418 = vpack.c.b16 %v1018, %v1014
  %v1419 = vpack.c.b16 %v1019, %v1015
  %v1420 = vpack.c.b16 %v1020, %v1016
  %v1421 = vpack.c.b16 %v1025, %v1021
  %v1422 = vpack.c.b16 %v1026, %v1022
  %v1423 = vpack.c.b16 %v1027, %v1023
  %v1424 = vpack.c.b16 %v1028, %v1024
  %v1425 = vpack.c.b16 %v1033, %v1029
  %v1426 = vpack.c.b16 %v1034, %v1030
  %v1427 = vpack.c.b16 %v1035, %v1031
  %v1428 = vpack.c.b16 %v1036, %v1032
  %v1429 = vpack.c.b16 %v1041, %v1037
  %v1430 = vpack.c.b16 %v1042, %v1038
  %v1431 = vpack.c.b16 %v1043, %v1039
  %v1432 = vpack.c.b16 %v1044, %v1040
  %v1433 = vpack.c.b16 %v1049, %v1045
  %v1434 = vpack.c.b16 %v1050, %v1046
  %v1435 = vpack.c.b16 %v1051, %v1047
  %v1436 = vpack.c.b16 %v1052, %v1048
  %v1437 = vpack.c.b16 %v1057, %v1053
  %v1438 = vpack.c.b16 %v1058, %v1054
  %v1439 = vpack.c.b16 %v1059, %v1055
  %v1440 = vpack.c.b16 %v1060, %v1056
  %v1441 = vpack.c.b16 %v1065, %v1061
  %v1442 = vpack.c.b16 %v1066, %v1062
  %v1443 = vpack.c.b16 %v1067, %v1063
  %v1444 = vpack.c.b16 %v1068, %v1064
  %v1445 = vpack.c.b16 %v1073, %v1069
  %v1446 = vpack.c.b16 %v1074, %v1070
  %v1447 = vpack.c.b16 %v1075, %v1071
  %v1448 = vpack.c.b16 %v1076, %v1072
  %v1449 = vpack.c.b16 %v1081, %v1077
  %v1450 = vpack.c.b16 %v1082, %v1078
  %v1451 = vpack.c.b16 %v1083, %v1079
  %v1452 = vpack.c.b16 %v1084, %v1080
  %v1453 = vpack.c.b16 %v1089, %v1085
  %v1454 = vpack.c.b16 %v1090, %v1086
  %v1455 = vpack.c.b16 %v1091, %v1087
  %v1456 = vpack.c.b16 %v1092, %v1088
  %v1457 = vpack.c.b16 %v1097, %v1093
  %v1458 = vpack.c.b16 %v1098, %v1094
  %v1459 = vpack.c.b16 %v1099, %v1095
  %v1460 = vpack.c.b16 %v1100, %v1096
  %v1461 = vpack.c.b16 %v1105, %v1101
  %v1462 = vpack.c.b16 %v1106, %v1102
  %v1463 = vpack.c.b16 %v1107, %v1103
  %v1464 = vpack.c.b16 %v1108, %v1104
  %v1465 = vpack.c.b16 %v1113, %v1109
  %v1466 = vpack.c.b16 %v1114, %v1110
  %v1467 = vpack.c.b16 %v1115, %v1111
  %v1468 = vpack.c.b16 %v1116, %v1112
  %v1469 = vpack.c.b16 %v1121, %v1117
  %v1470 = vpack.c.b16 %v1122, %v1118
  %v1471 = vpack.c.b16 %v1123, %v1119
  %v1472 = vpack.c.b16 %v1124, %v1120
  %v1473 = vpack.c.b16 %v1129, %v1125
  %v1474 = vpack.c.b16 %v1130, %v1126
  %v1475 = vpack.c.b16 %v1131, %v1127
  %v1476 = vpack.c.b16 %v1132, %v1128
  %v1477 = vpack.c.b16 %v1137, %v1133
  %v1478 = vpack.c.b16 %v1138, %v1134
  %v1479 = vpack.c.b16 %v1139, %v1135
  %v1480 = vpack.c.b16 %v1140, %v1136
  %v1481 = vpack.c.b16 %v1145, %v1141
  %v1482 = vpack.c.b16 %v1146, %v1142
  %v1483 = vpack.c.b16 %v1147, %v1143
  %v1484 = vpack.c.b16 %v1148, %v1144
  %v1485 = vpack.c.b16 %v1153, %v1149
  %v1486 = vpack.c.b16 %v1154, %v1150
  %v1487 = vpack.c.b16 %v1155, %v1151
  %v1488 = vpack.c.b16 %v1156, %v1152
  %v1489 = vpack.c.b16 %v1161, %v1157
  %v1490 = vpack.c.b16 %v1162, %v1158
  %v1491 = vpack.c.b16 %v1163, %v1159
  %v1492 = vpack.c.b16 %v1164, %v1160
  %v1493 = vpack.c.b16 %v1169, %v1165
  %v1494 = vpack.c.b16 %v1170, %v1166
  %v1495 = vpack.c.b16 %v1171, %v1167
  %v1496 = vpack.c.b16 %v1172, %v1168
  %v1497 = vpack.c.b16 %v1177, %v1173
  %v1498 = vpack.c.b16 %v1178, %v1174
  %v1499 = vpack.c.b16 %v1179, %v1175
  %v1500 = vpack.c.b16 %v1180, %v1176
  %v1501 = vpack.c.b16 %v1185, %v1181
  %v1502 = vpack.c.b16 %v1186, %v1182
  %v1503 = vpack.c.b16 %v1187, %v1183
  %v1504 = vpack.c.b16 %v1188, %v1184
  %v1505 = vpack.c.b16 %v1193, %v1189
  %v1506 = vpack.c.b16 %v1194, %v1190
  %v1507 = vpack.c.b16 %v1195, %v1191
  %v1508 = vpack.c.b16 %v1196, %v1192
  %v1509 = vpack.c.b16 %v1201, %v1197
  %v1510 = vpack.c.b16 %v1202, %v1198
  %v1511 = vpack.c.b16 %v1203, %v1199
  %v1512 = vpack.c.b16 %v1204, %v1200
  %v1513 = vpack.c.b16 %v1209, %v1205
  %v1514 = vpack.c.b16 %v1210, %v1206
  %v1515 = vpack.c.b16 %v1211, %v1207
  %v1516 = vpack.c.b16 %v1212, %v1208
  %v1517 = vpack.c.b16 %v1217, %v1213
  %v1518 = vpack.c.b16 %v1218, %v1214
  %v1519 = vpack.c.b16 %v1219, %v1215
  %v1520 = vpack.c.b16 %v1220, %v1216
  %v1521 = vpack.c.b16 %v1225, %v1221
  %v1522 = vpack.c.b16 %v1226, %v1222
  %v1523 = vpack.c.b16 %v1227, %v1223
  %v1524 = vpack.c.b16 %v1228, %v1224
  %v1525 = vpack.c.b16 %v1233, %v1229
  %v1526 = vpack.c.b16 %v1234, %v1230
  %v1527 = vpack.c.b16 %v1235, %v1231
  %v1528 = vpack.c.b16 %v1236, %v1232
  %v1529 = vpack.c.b16 %v1241, %v1237
  %v1530 = vpack.c.b16 %v1242, %v1238
  %v1531 = vpack.c.b16 %v1243, %v1239
  %v1532 = vpack.c.b16 %v1244, %v1240
  %1821 = vmatprep.subr.bf16.mxu0 %v1246
  %1822 = vmatpush1.bf16.msra.mxu0 %v1245
  %1823 = vmatprep.subr.bf16.mxu0 %v1250
  %1824 = vmatpush1.bf16.msra.mxu0 %v1249
  %1825 = vmatprep.subr.bf16.mxu0 %v1254
  %1826 = vmatpush1.bf16.msra.mxu0 %v1253
  %1827 = vmatprep.subr.bf16.mxu0 %v1258
  %1828 = vmatpush1.bf16.msra.mxu0 %v1257
  %1829 = vmatprep.subr.bf16.mxu0 %v1262
  %1830 = vmatpush1.bf16.msra.mxu0 %v1261
  %1831 = vmatprep.subr.bf16.mxu0 %v1266
  %1832 = vmatpush1.bf16.msra.mxu0 %v1265
  %1833 = vmatprep.subr.bf16.mxu0 %v1270
  %1834 = vmatpush1.bf16.msra.mxu0 %v1269
  %1835 = vmatprep.subr.bf16.mxu0 %v1274
  %1836 = vmatpush1.bf16.msra.mxu0 %v1273
  %1837 = vmatprep.subr.bf16.mxu0 %v1278
  %1838 = vmatpush1.bf16.msra.mxu0 %v1277
  %1839 = vmatprep.subr.bf16.mxu0 %v1282
  %1840 = vmatpush1.bf16.msra.mxu0 %v1281
  %1841 = vmatprep.subr.bf16.mxu0 %v1286
  %1842 = vmatpush1.bf16.msra.mxu0 %v1285
  %1843 = vmatprep.subr.bf16.mxu0 %v1290
  %1844 = vmatpush1.bf16.msra.mxu0 %v1289
  %1845 = vmatprep.subr.bf16.mxu0 %v1294
  %1846 = vmatpush1.bf16.msra.mxu0 %v1293
  %1847 = vmatprep.subr.bf16.mxu0 %v1298
  %1848 = vmatpush1.bf16.msra.mxu0 %v1297
  %1849 = vmatprep.subr.bf16.mxu0 %v1302
  %1850 = vmatpush1.bf16.msra.mxu0 %v1301
  %1851 = vmatprep.subr.bf16.mxu0 %v1306
  %1852 = vmatpush1.bf16.msra.mxu0 %v1305
  %1853 = vmatprep.mubr.bf16.mxu0 %v364
  %1854 = vmatmul.mubr.bf16.gmra.mrb[0].mxu0 %v363
  %v1855 = vpop.f32.mrb[0].mxu0
  %v1856 = vadd.f32 %v318, %v1855
  %v1857 = vpop.f32.mrb[0].mxu0
  %v1858 = vadd.f32 %v322, %v1857
  %v1859 = vpop.f32.mrb[0].mxu0
  %v1860 = vadd.f32 %v318, %v1859
  %v1861 = vpop.f32.mrb[0].mxu0
  %v1862 = vadd.f32 %v322, %v1861
  %1863 = vdwg.mxu0
  %1864 = vmatprep.subr.bf16.mxu0 %v1310
  %1865 = vmatpush1.bf16.msra.mxu0 %v1309
  %1866 = vmatprep.subr.bf16.mxu0 %v1314
  %1867 = vmatpush1.bf16.msra.mxu0 %v1313
  %1868 = vmatprep.subr.bf16.mxu0 %v1318
  %1869 = vmatpush1.bf16.msra.mxu0 %v1317
  %1870 = vmatprep.subr.bf16.mxu0 %v1322
  %1871 = vmatpush1.bf16.msra.mxu0 %v1321
  %1872 = vmatprep.subr.bf16.mxu0 %v1326
  %1873 = vmatpush1.bf16.msra.mxu0 %v1325
  %1874 = vmatprep.subr.bf16.mxu0 %v1330
  %1875 = vmatpush1.bf16.msra.mxu0 %v1329
  %1876 = vmatprep.subr.bf16.mxu0 %v1334
  %1877 = vmatpush1.bf16.msra.mxu0 %v1333
  %1878 = vmatprep.subr.bf16.mxu0 %v1338
  %1879 = vmatpush1.bf16.msra.mxu0 %v1337
  %1880 = vmatprep.subr.bf16.mxu0 %v1342
  %1881 = vmatpush1.bf16.msra.mxu0 %v1341
  %1882 = vmatprep.subr.bf16.mxu0 %v1346
  %1883 = vmatpush1.bf16.msra.mxu0 %v1345
  %1884 = vmatprep.subr.bf16.mxu0 %v1350
  %1885 = vmatpush1.bf16.msra.mxu0 %v1349
  %1886 = vmatprep.subr.bf16.mxu0 %v1354
  %1887 = vmatpush1.bf16.msra.mxu0 %v1353
  %1888 = vmatprep.subr.bf16.mxu0 %v1358
  %1889 = vmatpush1.bf16.msra.mxu0 %v1357
  %1890 = vmatprep.subr.bf16.mxu0 %v1362
  %1891 = vmatpush1.bf16.msra.mxu0 %v1361
  %1892 = vmatprep.subr.bf16.mxu0 %v1366
  %1893 = vmatpush1.bf16.msra.mxu0 %v1365
  %1894 = vmatprep.subr.bf16.mxu0 %v1370
  %1895 = vmatpush1.bf16.msra.mxu0 %v1369
  %1896 = vmatprep.mubr.bf16.mxu0 %v366
  %1897 = vmatmul.mubr.bf16.gmra.mrb[0].mxu0 %v365
  %v1898 = vpop.f32.mrb[0].mxu0
  %v1899 = vadd.f32 %v1856, %v1898
  %v1900 = vpop.f32.mrb[0].mxu0
  %v1901 = vadd.f32 %v1858, %v1900
  %v1902 = vpop.f32.mrb[0].mxu0
  %v1903 = vadd.f32 %v1860, %v1902
  %v1904 = vpop.f32.mrb[0].mxu0
  %v1905 = vadd.f32 %v1862, %v1904
  %1906 = vdwg.mxu0
  %1907 = vmatprep.subr.bf16.mxu0 %v1374
  %1908 = vmatpush1.bf16.msra.mxu0 %v1373
  %1909 = vmatprep.subr.bf16.mxu0 %v1378
  %1910 = vmatpush1.bf16.msra.mxu0 %v1377
  %1911 = vmatprep.subr.bf16.mxu0 %v1382
  %1912 = vmatpush1.bf16.msra.mxu0 %v1381
  %1913 = vmatprep.subr.bf16.mxu0 %v1386
  %1914 = vmatpush1.bf16.msra.mxu0 %v1385
  %1915 = vmatprep.subr.bf16.mxu0 %v1390
  %1916 = vmatpush1.bf16.msra.mxu0 %v1389
  %1917 = vmatprep.subr.bf16.mxu0 %v1394
  %1918 = vmatpush1.bf16.msra.mxu0 %v1393
  %1919 = vmatprep.subr.bf16.mxu0 %v1398
  %1920 = vmatpush1.bf16.msra.mxu0 %v1397
  %1921 = vmatprep.subr.bf16.mxu0 %v1402
  %1922 = vmatpush1.bf16.msra.mxu0 %v1401
  %1923 = vmatprep.subr.bf16.mxu0 %v1406
  %1924 = vmatpush1.bf16.msra.mxu0 %v1405
  %1925 = vmatprep.subr.bf16.mxu0 %v1410
  %1926 = vmatpush1.bf16.msra.mxu0 %v1409
  %1927 = vmatprep.subr.bf16.mxu0 %v1414
  %1928 = vmatpush1.bf16.msra.mxu0 %v1413
  %1929 = vmatprep.subr.bf16.mxu0 %v1418
  %1930 = vmatpush1.bf16.msra.mxu0 %v1417
  %1931 = vmatprep.subr.bf16.mxu0 %v1422
  %1932 = vmatpush1.bf16.msra.mxu0 %v1421
  %1933 = vmatprep.subr.bf16.mxu0 %v1426
  %1934 = vmatpush1.bf16.msra.mxu0 %v1425
  %1935 = vmatprep.subr.bf16.mxu0 %v1430
  %1936 = vmatpush1.bf16.msra.mxu0 %v1429
  %1937 = vmatprep.subr.bf16.mxu0 %v1434
  %1938 = vmatpush1.bf16.msra.mxu0 %v1433
  %1939 = vmatprep.mubr.bf16.mxu0 %v368
  %1940 = vmatmul.mubr.bf16.gmra.mrb[0].mxu0 %v367
  %v1941 = vpop.f32.mrb[0].mxu0
  %v1942 = vadd.f32 %v1899, %v1941
  %v1943 = vpop.f32.mrb[0].mxu0
  %v1944 = vadd.f32 %v1901, %v1943
  %v1945 = vpop.f32.mrb[0].mxu0
  %v1946 = vadd.f32 %v1903, %v1945
  %v1947 = vpop.f32.mrb[0].mxu0
  %v1948 = vadd.f32 %v1905, %v1947
  %1949 = vdwg.mxu0
  %1950 = vmatprep.subr.bf16.mxu0 %v1438
  %1951 = vmatpush1.bf16.msra.mxu0 %v1437
  %1952 = vmatprep.subr.bf16.mxu0 %v1442
  %1953 = vmatpush1.bf16.msra.mxu0 %v1441
  %1954 = vmatprep.subr.bf16.mxu0 %v1446
  %1955 = vmatpush1.bf16.msra.mxu0 %v1445
  %1956 = vmatprep.subr.bf16.mxu0 %v1450
  %1957 = vmatpush1.bf16.msra.mxu0 %v1449
  %1958 = vmatprep.subr.bf16.mxu0 %v1454
  %1959 = vmatpush1.bf16.msra.mxu0 %v1453
  %1960 = vmatprep.subr.bf16.mxu0 %v1458
  %1961 = vmatpush1.bf16.msra.mxu0 %v1457
  %1962 = vmatprep.subr.bf16.mxu0 %v1462
  %1963 = vmatpush1.bf16.msra.mxu0 %v1461
  %1964 = vmatprep.subr.bf16.mxu0 %v1466
  %1965 = vmatpush1.bf16.msra.mxu0 %v1465
  %1966 = vmatprep.subr.bf16.mxu0 %v1470
  %1967 = vmatpush1.bf16.msra.mxu0 %v1469
  %1968 = vmatprep.subr.bf16.mxu0 %v1474
  %1969 = vmatpush1.bf16.msra.mxu0 %v1473
  %1970 = vmatprep.subr.bf16.mxu0 %v1478
  %1971 = vmatpush1.bf16.msra.mxu0 %v1477
  %1972 = vmatprep.subr.bf16.mxu0 %v1482
  %1973 = vmatpush1.bf16.msra.mxu0 %v1481
  %1974 = vmatprep.subr.bf16.mxu0 %v1486
  %1975 = vmatpush1.bf16.msra.mxu0 %v1485
  %1976 = vmatprep.subr.bf16.mxu0 %v1490
  %1977 = vmatpush1.bf16.msra.mxu0 %v1489
  %1978 = vmatprep.subr.bf16.mxu0 %v1494
  %1979 = vmatpush1.bf16.msra.mxu0 %v1493
  %1980 = vmatprep.subr.bf16.mxu0 %v1498
  %1981 = vmatpush1.bf16.msra.mxu0 %v1497
  %1982 = vmatprep.mubr.bf16.mxu0 %v370
  %1983 = vmatmul.mubr.bf16.gmra.mrb[0].mxu0 %v369
  %v1984 = vpop.f32.mrb[0].mxu0
  %v1985 = vadd.f32 %v1942, %v1984
  %v1986 = vpop.f32.mrb[0].mxu0
  %v1987 = vadd.f32 %v1944, %v1986
  %v1988 = vpop.f32.mrb[0].mxu0
  %v1989 = vadd.f32 %v1946, %v1988
  %v1990 = vpop.f32.mrb[0].mxu0
  %v1991 = vadd.f32 %v1948, %v1990
  %1992 = vdwg.mxu0
  %1993 = vmatprep.subr.bf16.mxu0 %v1502
  %1994 = vmatpush1.bf16.msra.mxu0 %v1501
  %1995 = vmatprep.subr.bf16.mxu0 %v1506
  %1996 = vmatpush1.bf16.msra.mxu0 %v1505
  %1997 = vmatprep.subr.bf16.mxu0 %v1510
  %1998 = vmatpush1.bf16.msra.mxu0 %v1509
  %1999 = vmatprep.subr.bf16.mxu0 %v1514
  %2000 = vmatpush1.bf16.msra.mxu0 %v1513
  %2001 = vmatprep.subr.bf16.mxu0 %v1518
  %2002 = vmatpush1.bf16.msra.mxu0 %v1517
  %2003 = vmatprep.subr.bf16.mxu0 %v1522
  %2004 = vmatpush1.bf16.msra.mxu0 %v1521
  %2005 = vmatprep.subr.bf16.mxu0 %v1526
  %2006 = vmatpush1.bf16.msra.mxu0 %v1525
  %2007 = vmatprep.subr.bf16.mxu0 %v1530
  %2008 = vmatpush1.bf16.msra.mxu0 %v1529
  %2009 = vmatprep.subr.bf16.mxu0 0
  %2010 = vmatpush1.bf16.msra.mxu0 0
  %2011 = vmatprep.subr.bf16.mxu0 0
  %2012 = vmatpush1.bf16.msra.mxu0 0
  %2013 = vmatprep.subr.bf16.mxu0 0
  %2014 = vmatpush1.bf16.msra.mxu0 0
  %2015 = vmatprep.subr.bf16.mxu0 0
  %2016 = vmatpush1.bf16.msra.mxu0 0
  %2017 = vmatprep.subr.bf16.mxu0 0
  %2018 = vmatpush1.bf16.msra.mxu0 0
  %2019 = vmatprep.subr.bf16.mxu0 0
  %2020 = vmatpush1.bf16.msra.mxu0 0
  %2021 = vmatprep.subr.bf16.mxu0 0
  %2022 = vmatpush1.bf16.msra.mxu0 0
  %2023 = vmatprep.subr.bf16.mxu0 0
  %2024 = vmatpush1.bf16.msra.mxu0 0
  %2025 = vmatprep.mubr.bf16.mxu0 0
  %2026 = vmatmul.mubr.bf16.gmra.mrb[0].mxu0 %v371
  %v2027 = vpop.f32.mrb[0].mxu0
  %v2028 = vadd.f32 %v1985, %v2027
  %v2029 = vpop.f32.mrb[0].mxu0
  %v2030 = vadd.f32 %v1987, %v2029
  %v2031 = vpop.f32.mrb[0].mxu0
  %v2032 = vadd.f32 %v1989, %v2031
  %v2033 = vpop.f32.mrb[0].mxu0
  %v2034 = vadd.f32 %v1991, %v2033
  %2035 = vdwg.mxu0
  %2036 = vmatprep.subr.bf16.mxu0 %v1248
  %2037 = vmatpush1.bf16.msra.mxu0 %v1247
  %2038 = vmatprep.subr.bf16.mxu0 %v1252
  %2039 = vmatpush1.bf16.msra.mxu0 %v1251
  %2040 = vmatprep.subr.bf16.mxu0 %v1256
  %2041 = vmatpush1.bf16.msra.mxu0 %v1255
  %2042 = vmatprep.subr.bf16.mxu0 %v1260
  %2043 = vmatpush1.bf16.msra.mxu0 %v1259
  %2044 = vmatprep.subr.bf16.mxu0 %v1264
  %2045 = vmatpush1.bf16.msra.mxu0 %v1263
  %2046 = vmatprep.subr.bf16.mxu0 %v1268
  %2047 = vmatpush1.bf16.msra.mxu0 %v1267
  %2048 = vmatprep.subr.bf16.mxu0 %v1272
  %2049 = vmatpush1.bf16.msra.mxu0 %v1271
  %2050 = vmatprep.subr.bf16.mxu0 %v1276
  %2051 = vmatpush1.bf16.msra.mxu0 %v1275
  %2052 = vmatprep.subr.bf16.mxu0 %v1280
  %2053 = vmatpush1.bf16.msra.mxu0 %v1279
  %2054 = vmatprep.subr.bf16.mxu0 %v1284
  %2055 = vmatpush1.bf16.msra.mxu0 %v1283
  %2056 = vmatprep.subr.bf16.mxu0 %v1288
  %2057 = vmatpush1.bf16.msra.mxu0 %v1287
  %2058 = vmatprep.subr.bf16.mxu0 %v1292
  %2059 = vmatpush1.bf16.msra.mxu0 %v1291
  %2060 = vmatprep.subr.bf16.mxu0 %v1296
  %2061 = vmatpush1.bf16.msra.mxu0 %v1295
  %2062 = vmatprep.subr.bf16.mxu0 %v1300
  %2063 = vmatpush1.bf16.msra.mxu0 %v1299
  %2064 = vmatprep.subr.bf16.mxu0 %v1304
  %2065 = vmatpush1.bf16.msra.mxu0 %v1303
  %2066 = vmatprep.subr.bf16.mxu0 %v1308
  %2067 = vmatpush1.bf16.msra.mxu0 %v1307
  %2068 = vmatprep.mubr.bf16.mxu0 %v364
  %2069 = vmatmul.mubr.bf16.gmra.mrb[0].mxu0 %v363
  %v2070 = vpop.f32.mrb[0].mxu0
  %v2071 = vadd.f32 %v326, %v2070
  %v2072 = vpop.f32.mrb[0].mxu0
  %v2073 = vadd.f32 %v330, %v2072
  %v2074 = vpop.f32.mrb[0].mxu0
  %v2075 = vadd.f32 %v326, %v2074
  %v2076 = vpop.f32.mrb[0].mxu0
  %v2077 = vadd.f32 %v330, %v2076
  %2078 = vdwg.mxu0
  %2079 = vmatprep.subr.bf16.mxu0 %v1312
  %2080 = vmatpush1.bf16.msra.mxu0 %v1311
  %2081 = vmatprep.subr.bf16.mxu0 %v1316
  %2082 = vmatpush1.bf16.msra.mxu0 %v1315
  %2083 = vmatprep.subr.bf16.mxu0 %v1320
  %2084 = vmatpush1.bf16.msra.mxu0 %v1319
  %2085 = vmatprep.subr.bf16.mxu0 %v1324
  %2086 = vmatpush1.bf16.msra.mxu0 %v1323
  %2087 = vmatprep.subr.bf16.mxu0 %v1328
  %2088 = vmatpush1.bf16.msra.mxu0 %v1327
  %2089 = vmatprep.subr.bf16.mxu0 %v1332
  %2090 = vmatpush1.bf16.msra.mxu0 %v1331
  %2091 = vmatprep.subr.bf16.mxu0 %v1336
  %2092 = vmatpush1.bf16.msra.mxu0 %v1335
  %2093 = vmatprep.subr.bf16.mxu0 %v1340
  %2094 = vmatpush1.bf16.msra.mxu0 %v1339
  %2095 = vmatprep.subr.bf16.mxu0 %v1344
  %2096 = vmatpush1.bf16.msra.mxu0 %v1343
  %2097 = vmatprep.subr.bf16.mxu0 %v1348
  %2098 = vmatpush1.bf16.msra.mxu0 %v1347
  %2099 = vmatprep.subr.bf16.mxu0 %v1352
  %2100 = vmatpush1.bf16.msra.mxu0 %v1351
  %2101 = vmatprep.subr.bf16.mxu0 %v1356
  %2102 = vmatpush1.bf16.msra.mxu0 %v1355
  %2103 = vmatprep.subr.bf16.mxu0 %v1360
  %2104 = vmatpush1.bf16.msra.mxu0 %v1359
  %2105 = vmatprep.subr.bf16.mxu0 %v1364
  %2106 = vmatpush1.bf16.msra.mxu0 %v1363
  %2107 = vmatprep.subr.bf16.mxu0 %v1368
  %2108 = vmatpush1.bf16.msra.mxu0 %v1367
  %2109 = vmatprep.subr.bf16.mxu0 %v1372
  %2110 = vmatpush1.bf16.msra.mxu0 %v1371
  %2111 = vmatprep.mubr.bf16.mxu0 %v366
  %2112 = vmatmul.mubr.bf16.gmra.mrb[0].mxu0 %v365
  %v2113 = vpop.f32.mrb[0].mxu0
  %v2114 = vadd.f32 %v2071, %v2113
  %v2115 = vpop.f32.mrb[0].mxu0
  %v2116 = vadd.f32 %v2073, %v2115
  %v2117 = vpop.f32.mrb[0].mxu0
  %v2118 = vadd.f32 %v2075, %v2117
  %v2119 = vpop.f32.mrb[0].mxu0
  %v2120 = vadd.f32 %v2077, %v2119
  %2121 = vdwg.mxu0
  %2122 = vmatprep.subr.bf16.mxu0 %v1376
  %2123 = vmatpush1.bf16.msra.mxu0 %v1375
  %2124 = vmatprep.subr.bf16.mxu0 %v1380
  %2125 = vmatpush1.bf16.msra.mxu0 %v1379
  %2126 = vmatprep.subr.bf16.mxu0 %v1384
  %2127 = vmatpush1.bf16.msra.mxu0 %v1383
  %2128 = vmatprep.subr.bf16.mxu0 %v1388
  %2129 = vmatpush1.bf16.msra.mxu0 %v1387
  %2130 = vmatprep.subr.bf16.mxu0 %v1392
  %2131 = vmatpush1.bf16.msra.mxu0 %v1391
  %2132 = vmatprep.subr.bf16.mxu0 %v1396
  %2133 = vmatpush1.bf16.msra.mxu0 %v1395
  %2134 = vmatprep.subr.bf16.mxu0 %v1400
  %2135 = vmatpush1.bf16.msra.mxu0 %v1399
  %2136 = vmatprep.subr.bf16.mxu0 %v1404
  %2137 = vmatpush1.bf16.msra.mxu0 %v1403
  %2138 = vmatprep.subr.bf16.mxu0 %v1408
  %2139 = vmatpush1.bf16.msra.mxu0 %v1407
  %2140 = vmatprep.subr.bf16.mxu0 %v1412
  %2141 = vmatpush1.bf16.msra.mxu0 %v1411
  %2142 = vmatprep.subr.bf16.mxu0 %v1416
  %2143 = vmatpush1.bf16.msra.mxu0 %v1415
  %2144 = vmatprep.subr.bf16.mxu0 %v1420
  %2145 = vmatpush1.bf16.msra.mxu0 %v1419
  %2146 = vmatprep.subr.bf16.mxu0 %v1424
  %2147 = vmatpush1.bf16.msra.mxu0 %v1423
  %2148 = vmatprep.subr.bf16.mxu0 %v1428
  %2149 = vmatpush1.bf16.msra.mxu0 %v1427
  %2150 = vmatprep.subr.bf16.mxu0 %v1432
  %2151 = vmatpush1.bf16.msra.mxu0 %v1431
  %2152 = vmatprep.subr.bf16.mxu0 %v1436
  %2153 = vmatpush1.bf16.msra.mxu0 %v1435
  %2154 = vmatprep.mubr.bf16.mxu0 %v368
  %2155 = vmatmul.mubr.bf16.gmra.mrb[0].mxu0 %v367
  %v2156 = vpop.f32.mrb[0].mxu0
  %v2157 = vadd.f32 %v2114, %v2156
  %v2158 = vpop.f32.mrb[0].mxu0
  %v2159 = vadd.f32 %v2116, %v2158
  %v2160 = vpop.f32.mrb[0].mxu0
  %v2161 = vadd.f32 %v2118, %v2160
  %v2162 = vpop.f32.mrb[0].mxu0
  %v2163 = vadd.f32 %v2120, %v2162
  %2164 = vdwg.mxu0
  %2165 = vmatprep.subr.bf16.mxu0 %v1440
  %2166 = vmatpush1.bf16.msra.mxu0 %v1439
  %2167 = vmatprep.subr.bf16.mxu0 %v1444
  %2168 = vmatpush1.bf16.msra.mxu0 %v1443
  %2169 = vmatprep.subr.bf16.mxu0 %v1448
  %2170 = vmatpush1.bf16.msra.mxu0 %v1447
  %2171 = vmatprep.subr.bf16.mxu0 %v1452
  %2172 = vmatpush1.bf16.msra.mxu0 %v1451
  %2173 = vmatprep.subr.bf16.mxu0 %v1456
  %2174 = vmatpush1.bf16.msra.mxu0 %v1455
  %2175 = vmatprep.subr.bf16.mxu0 %v1460
  %2176 = vmatpush1.bf16.msra.mxu0 %v1459
  %2177 = vmatprep.subr.bf16.mxu0 %v1464
  %2178 = vmatpush1.bf16.msra.mxu0 %v1463
  %2179 = vmatprep.subr.bf16.mxu0 %v1468
  %2180 = vmatpush1.bf16.msra.mxu0 %v1467
  %2181 = vmatprep.subr.bf16.mxu0 %v1472
  %2182 = vmatpush1.bf16.msra.mxu0 %v1471
  %2183 = vmatprep.subr.bf16.mxu0 %v1476
  %2184 = vmatpush1.bf16.msra.mxu0 %v1475
  %2185 = vmatprep.subr.bf16.mxu0 %v1480
  %2186 = vmatpush1.bf16.msra.mxu0 %v1479
  %2187 = vmatprep.subr.bf16.mxu0 %v1484
  %2188 = vmatpush1.bf16.msra.mxu0 %v1483
  %2189 = vmatprep.subr.bf16.mxu0 %v1488
  %2190 = vmatpush1.bf16.msra.mxu0 %v1487
  %2191 = vmatprep.subr.bf16.mxu0 %v1492
  %2192 = vmatpush1.bf16.msra.mxu0 %v1491
  %2193 = vmatprep.subr.bf16.mxu0 %v1496
  %2194 = vmatpush1.bf16.msra.mxu0 %v1495
  %2195 = vmatprep.subr.bf16.mxu0 %v1500
  %2196 = vmatpush1.bf16.msra.mxu0 %v1499
  %2197 = vmatprep.mubr.bf16.mxu0 %v370
  %2198 = vmatmul.mubr.bf16.gmra.mrb[0].mxu0 %v369
  %v2199 = vpop.f32.mrb[0].mxu0
  %v2200 = vadd.f32 %v2157, %v2199
  %v2201 = vpop.f32.mrb[0].mxu0
  %v2202 = vadd.f32 %v2159, %v2201
  %v2203 = vpop.f32.mrb[0].mxu0
  %v2204 = vadd.f32 %v2161, %v2203
  %v2205 = vpop.f32.mrb[0].mxu0
  %v2206 = vadd.f32 %v2163, %v2205
  %2207 = vdwg.mxu0
  %2208 = vmatprep.subr.bf16.mxu0 %v1504
  %2209 = vmatpush1.bf16.msra.mxu0 %v1503
  %2210 = vmatprep.subr.bf16.mxu0 %v1508
  %2211 = vmatpush1.bf16.msra.mxu0 %v1507
  %2212 = vmatprep.subr.bf16.mxu0 %v1512
  %2213 = vmatpush1.bf16.msra.mxu0 %v1511
  %2214 = vmatprep.subr.bf16.mxu0 %v1516
  %2215 = vmatpush1.bf16.msra.mxu0 %v1515
  %2216 = vmatprep.subr.bf16.mxu0 %v1520
  %2217 = vmatpush1.bf16.msra.mxu0 %v1519
  %2218 = vmatprep.subr.bf16.mxu0 %v1524
  %2219 = vmatpush1.bf16.msra.mxu0 %v1523
  %2220 = vmatprep.subr.bf16.mxu0 %v1528
  %2221 = vmatpush1.bf16.msra.mxu0 %v1527
  %2222 = vmatprep.subr.bf16.mxu0 %v1532
  %2223 = vmatpush1.bf16.msra.mxu0 %v1531
  %2224 = vmatprep.subr.bf16.mxu0 0
  %2225 = vmatpush1.bf16.msra.mxu0 0
  %2226 = vmatprep.subr.bf16.mxu0 0
  %2227 = vmatpush1.bf16.msra.mxu0 0
  %2228 = vmatprep.subr.bf16.mxu0 0
  %2229 = vmatpush1.bf16.msra.mxu0 0
  %2230 = vmatprep.subr.bf16.mxu0 0
  %2231 = vmatpush1.bf16.msra.mxu0 0
  %2232 = vmatprep.subr.bf16.mxu0 0
  %2233 = vmatpush1.bf16.msra.mxu0 0
  %2234 = vmatprep.subr.bf16.mxu0 0
  %2235 = vmatpush1.bf16.msra.mxu0 0
  %2236 = vmatprep.subr.bf16.mxu0 0
  %2237 = vmatpush1.bf16.msra.mxu0 0
  %2238 = vmatprep.subr.bf16.mxu0 0
  %2239 = vmatpush1.bf16.msra.mxu0 0
  %2240 = vmatprep.mubr.bf16.mxu0 0
  %2241 = vmatmul.mubr.bf16.gmra.mrb[0].mxu0 %v371
  %v2242 = vpop.f32.mrb[0].mxu0
  %v2243 = vadd.f32 %v2200, %v2242
  %v2244 = vpop.f32.mrb[0].mxu0
  %v2245 = vadd.f32 %v2202, %v2244
  %v2246 = vpop.f32.mrb[0].mxu0
  %v2247 = vadd.f32 %v2204, %v2246
  %v2248 = vpop.f32.mrb[0].mxu0
  %v2249 = vadd.f32 %v2206, %v2248
  %2250 = vdwg.mxu0
  %v2251 = vmax.f32 %v2028, 0.0
  %v2252 = vmax.f32 %v2030, 0.0
  %v2253 = vmax.f32 %v2243, 0.0
  %v2254 = vmax.f32 %v2245, 0.0
  %v2255 = vmax.f32 %v2032, 0.0
  %v2256 = vmax.f32 %v2034, 0.0
  %v2257 = vmax.f32 %v2247, 0.0
  %v2258 = vmax.f32 %v2249, 0.0
  %v2259 = vpack.c.bf16 %v2255, %v2251
  %v2260 = vpack.c.bf16 %v2256, %v2252
  %v2261 = vpack.c.bf16 %v2257, %v2253
  %v2262 = vpack.c.bf16 %v2258, %v2254
  %v2267 = vunpack.c.l.b16 %v2259
  %v2268 = vunpack.c.l.b16 %v2260
  %v2269 = vunpack.c.l.b16 %v2261
  %v2270 = vunpack.c.l.b16 %v2262
  %v2271 = vunpack.c.h.b16 %v2259
  %v2272 = vunpack.c.h.b16 %v2260
  %v2273 = vunpack.c.h.b16 %v2261
  %v2274 = vunpack.c.h.b16 %v2262
  %v2275 = vpack.c.b16 %v2268, %v2267
  %v2276 = vpack.c.b16 %v2270, %v2269
  %v2277 = vpack.c.b16 %v2272, %v2271
  %v2278 = vpack.c.b16 %v2274, %v2273
  %2283 = vst [vmem:[%s3] sm:$0xff] %v2275
  %2284 = vst [vmem:[%s3 + $0x8] sm:$0xff] %v2276
  %2285 = vst [vmem:[%s3 + $0x10] sm:$0xff] %v2277
  %2286 = vst [vmem:[%s3 + $0x18] sm:$0xff] %v2278
  // Predicated region
  $region14: #{drdnet_forward.39} parent=0 // pred_check
    _
  $region15: #{drdnet_forward.39} parent=0 // pred_check_branch
    %2288 = sbr.rel (0) target = $region17
  $region16: #{drdnet_forward.39} parent=0 // pred_region
    _
  $region17: #{drdnet_forward.39} parent=0 // pred_fallthru
    _
  // Predicated region
  $region18: #{drdnet_forward.39} parent=0 // pred_check
    _
  $region19: #{drdnet_forward.39} parent=0 // pred_check_branch
    %2290 = sbr.rel (0) target = $region21
  $region20: #{drdnet_forward.39} parent=0 // pred_region
    _
  $region21: #{drdnet_forward.39} parent=0 // pred_fallthru
    _

</llo_original>
